<compile_context>
chip_gen: v6e
topology: v6e:2x2x1
jax: 0.10.0
libtpu: 0.0.40
codegen_flags: <defaults>
</compile_context>

<pallas_src>
import functools

import jax
import jax.numpy as jnp
from jax.experimental import pallas as pl
from jax.experimental.pallas import tpu as pltpu

NEG_SLOPE = 0.01   # F.leaky_relu default
GN_EPS = 1e-5      # nn.GroupNorm default

# conf values from the spec that affect the forward pass
CONF = {"alpha": 0.5, "forward_eps": 1e-4, "max_iters": 150}

TAPS = 25   # 5x5 kernel taps
CPT = 8     # channel slots per tap in the im2col buffers (sublane-aligned block)


# ---------------------------------------------------------------------------
# Fused DEQ-solver kernel: the whole damped Picard iteration
#     z <- (1-alpha)*z + alpha*Unit(z, x)
# runs in VMEM for one sample per grid step.
# Working layout: (C, H*W) with channels on sublanes, flattened spatial (1024)
# on lanes; padded buffers are (C, (H+8)*W) with 4 zero rows top/bottom.
# ---------------------------------------------------------------------------
def _deq_unit_kernel(z0_ref, x_ref, w1_ref, b1_ref, gw_ref, gb_ref, w2_ref,
                     b2_ref, o_ref, zp_ref, h1p_ref, im1_ref, im2_ref, nc_ref,
                     *, H, W, c_img, c_mid, c_out, alpha, eps, max_iters):
    HW = H * W
    PADF = 4 * W                      # flat offset of the valid (unpadded) region
    n_groups = 3
    cpg = c_mid // n_groups

    def lrelu(v):
        return jnp.where(v >= 0.0, v, NEG_SLOPE * v)

    def stage_taps(src_ref, cin, dst_ref, row_off):
        # Scatter the 25 shifted (W-boundary-masked) tap views of the H-zero-padded
        # source (cin, (H+8)*W) into dst rows [tap*8+row_off, tap*8+row_off+cin).
        col = jax.lax.broadcasted_iota(jnp.int32, (1, HW), 1)
        wpos = col % W
        for dj in range(5):
            shifted = wpos + (dj - 2)
            valid = jnp.logical_and(shifted >= 0, shifted < W)
            for di in range(5):
                tap = di * 5 + dj
                s = (di + 2) * W + (dj - 2)          # static shift into padded flat buffer
                r0 = tap * CPT + row_off
                dst_ref[r0:r0 + cin, :] = jnp.where(valid, src_ref[:, s:s + HW], 0.0)

    # ---- one-time per-sample setup (everything below stays in VMEM) --------
    zp_ref[...] = z0_ref[...]                        # z0 (already H-padded, pad rows = 0)
    h1p_ref[...] = jnp.zeros_like(h1p_ref)           # zero H-pad rows once
    im2_ref[...] = jnp.zeros_like(im2_ref)           # unused channel slots 6,7 must be 0
    stage_taps(x_ref, c_img, im1_ref, c_out)         # image taps (slots 5..7): written ONCE
    nc_ref[0] = jnp.int32(1)                         # not converged

    # ---- damped Picard fixed-point iteration, fully in-kernel --------------
    def step(_, carry):
        @pl.when(nc_ref[0] > 0)
        def _():
            # conv1 over cat([z, image]) == ONE (c_mid, 200) @ (200, HW) matmul
            stage_taps(zp_ref, c_out, im1_ref, 0)    # refresh only the z tap rows
            a1 = jnp.dot(w1_ref[...], im1_ref[...],
                         preferred_element_type=jnp.float32) + b1_ref[...]
            h1 = lrelu(a1)

            # GroupNorm(3 groups x 2 channels): write groups straight into padded h1
            for g in range(n_groups):
                grp = h1[g * cpg:(g + 1) * cpg, :]
                mu = jnp.mean(grp)
                var = jnp.mean(jnp.square(grp - mu))
                gn = (grp - mu) * jax.lax.rsqrt(var + GN_EPS)
                h1p_ref[g * cpg:(g + 1) * cpg, PADF:PADF + HW] = (
                    gn * gw_ref[g * cpg:(g + 1) * cpg, :]
                    + gb_ref[g * cpg:(g + 1) * cpg, :])

            # conv2 == ONE (c_out, 200) @ (200, HW) matmul
            stage_taps(h1p_ref, c_mid, im2_ref, 0)
            a2 = jnp.dot(w2_ref[...], im2_ref[...],
                         preferred_element_type=jnp.float32) + b2_ref[...]
            f = lrelu(a2)

            # damped update + per-sample relative residual (early-stop test)
            z_old = zp_ref[:, PADF:PADF + HW]
            z_new = (1.0 - alpha) * z_old + alpha * f
            diff = z_new - z_old
            num = jnp.sqrt(jnp.sum(diff * diff))
            den = jnp.sqrt(jnp.sum(z_old * z_old)) + 1e-8
            zp_ref[:, PADF:PADF + HW] = z_new
            # continue iff ||dz|| / (||z|| + 1e-8) > eps
            nc_ref[0] = (num > eps * den).astype(jnp.int32)
        return carry

    jax.lax.fori_loop(0, max_iters, step, jnp.int32(0))

    o_ref[...] = zp_ref[:, PADF:PADF + HW].astype(o_ref.dtype)


def deq_unit_solve(params, z0, image, *, alpha, eps, max_iters):
    """Solve z = Unit(z, image) by in-kernel damped Picard iteration.

    z0: (N,5,H,W), image: (N,3,H,W); returns z* (N,5,H,W), all f32 NCHW.
    """
    N, c_img, H, W = image.shape
    c_mid = params["w1"].shape[0]                    # 6
    c_out = params["w2"].shape[0]                    # 5
    HW = H * W
    flat = (H + 8) * W                               # 4 zero rows top + bottom

    pad4 = ((0, 0), (0, 0), (4, 4), (0, 0))
    z0p = jnp.pad(z0, pad4).reshape(N, c_out, flat)
    xp = jnp.pad(image, pad4).reshape(N, c_img, flat)

    # Tap-major packed conv weights: w[co, tap*8 + ci] = W[co, ci, di, dj], tap=di*5+dj.
    # conv1 uses all 8 channel slots (5 z-channels + 3 image channels, matching cat order);
    # conv2 uses 6 of 8 slots, the rest are zero-padded.
    w1p = params["w1"].transpose(0, 2, 3, 1).reshape(c_mid, TAPS * CPT)
    w2p = jnp.pad(params["w2"].transpose(0, 2, 3, 1),
                  ((0, 0), (0, 0), (0, 0), (0, CPT - c_mid))).reshape(c_out, TAPS * CPT)
    b1 = params["b1"].reshape(c_mid, 1)
    b2 = params["b2"].reshape(c_out, 1)
    gw = params["gn_w"].reshape(c_mid, 1)
    gb = params["gn_b"].reshape(c_mid, 1)

    kernel = functools.partial(_deq_unit_kernel, H=H, W=W, c_img=c_img,
                               c_mid=c_mid, c_out=c_out, alpha=alpha,
                               eps=eps, max_iters=max_iters)

    zs = pl.pallas_call(
        kernel,
        out_shape=jax.ShapeDtypeStruct((N, c_out, HW), jnp.float32),
        grid_spec=pltpu.PrefetchScalarGridSpec(
            num_scalar_prefetch=0,
            grid=(N,),
            in_specs=[
                pl.BlockSpec((None, c_out, flat), lambda n: (n, 0, 0)),
                pl.BlockSpec((None, c_img, flat), lambda n: (n, 0, 0)),
                pl.BlockSpec((c_mid, TAPS * CPT), lambda n: (0, 0)),
                pl.BlockSpec((c_mid, 1), lambda n: (0, 0)),
                pl.BlockSpec((c_mid, 1), lambda n: (0, 0)),
                pl.BlockSpec((c_mid, 1), lambda n: (0, 0)),
                pl.BlockSpec((c_out, TAPS * CPT), lambda n: (0, 0)),
                pl.BlockSpec((c_out, 1), lambda n: (0, 0)),
            ],
            out_specs=pl.BlockSpec((None, c_out, HW), lambda n: (n, 0, 0)),
            scratch_shapes=[
                pltpu.VMEM((c_out, flat), jnp.float32),      # zp  : H-padded z
                pltpu.VMEM((c_mid, flat), jnp.float32),      # h1p : H-padded h1
                pltpu.VMEM((TAPS * CPT, HW), jnp.float32),   # im1 : conv1 im2col
                pltpu.VMEM((TAPS * CPT, HW), jnp.float32),   # im2 : conv2 im2col
                pltpu.SMEM((1,), jnp.int32),                 # not-converged flag
            ],
        ),
        compiler_params=pltpu.CompilerParams(
            dimension_semantics=("parallel",),
        ),
    )(z0p, xp, w1p, b1, gw, gb, w2p, b2)

    return zs.reshape(N, c_out, H, W)


def unit_forward(params, z, x):
    """Single application Unit.forward(z, x) via the fused kernel (1 iter, alpha=1)."""
    return deq_unit_solve(params, z, x, alpha=1.0, eps=0.0, max_iters=1)


# ---------------------------------------------------------------------------
# Detection head: Conv2d(5, 10, 32, padding=0) on 32x32 input == one matmul.
# Weight pre-transposed to (5*32*32, 10) so no in-kernel operand transpose.
# ---------------------------------------------------------------------------
def _head_kernel(z_ref, w_ref, b_ref, o_ref):
    o_ref[...] = jnp.dot(z_ref[...], w_ref[...],
                         preferred_element_type=jnp.float32) + b_ref[...]


def detection_head(params, z):
    N = z.shape[0]
    zf = z.reshape(N, -1)                            # (N, 5*32*32)
    wf = params["head_w"].reshape(10, -1).T          # (5*32*32, 10)
    b = params["head_b"].reshape(1, 10)
    out = pl.pallas_call(
        _head_kernel,
        out_shape=jax.ShapeDtypeStruct((N, 10), jnp.float32),
    )(zf, wf, b)
    return out.reshape(N, 10, 1, 1)


# ---------------------------------------------------------------------------
# Full Classifier forward
# TODO(synk): the DEQ class body is not given in the spec; its forward is
# implemented as the standard damped Picard iteration z <- (1-a)*z + a*Unit(z,x)
# with conf's alpha/forward_eps/max_iters, stopping per-sample inside the kernel.
# ---------------------------------------------------------------------------
def classifier_forward(params, image):
    N, _, H, W = image.shape
    z0 = jnp.zeros((N, 5, H, W), jnp.float32)
    z_star = deq_unit_solve(params, z0, image, alpha=CONF["alpha"],
                            eps=CONF["forward_eps"], max_iters=CONF["max_iters"])
    return detection_head(params, z_star)


# ---------------------------------------------------------------------------
# Pure-JAX references (for correctness checks)
# ---------------------------------------------------------------------------
def ref_unit(params, z, x):
    xin = jnp.concatenate([z, x], axis=1)

    def conv(xi, w, b):
        y = jax.lax.conv_general_dilated(
            xi, w, (1, 1), ((2, 2), (2, 2)),
            dimension_numbers=("NCHW", "OIHW", "NCHW"),
            precision=jax.lax.Precision.HIGHEST)
        return y + b.reshape(1, -1, 1, 1)

    def lrelu(v):
        return jnp.where(v >= 0, v, NEG_SLOPE * v)

    h = lrelu(conv(xin, params["w1"], params["b1"]))
    N, C, H, W = h.shape
    hg = h.reshape(N, 3, (C // 3) * H * W)
    mean = hg.mean(axis=2, keepdims=True)
    var = jnp.square(hg - mean).mean(axis=2, keepdims=True)
    hn = ((hg - mean) * jax.lax.rsqrt(var + GN_EPS)).reshape(N, C, H, W)
    hn = hn * params["gn_w"].reshape(1, -1, 1, 1) + params["gn_b"].reshape(1, -1, 1, 1)
    return lrelu(conv(hn, params["w2"], params["b2"]))


def ref_deq_solve(f, z0, alpha, eps, max_iters):
    def cond(carry):
        _, res, it = carry
        return jnp.logical_and(res > eps, it < max_iters)

    def body(carry):
        z, _, it = carry
        z_new = (1.0 - alpha) * z + alpha * f(z)
        res = jnp.linalg.norm(z_new - z) / (jnp.linalg.norm(z) + 1e-8)
        return z_new, res, it + 1

    z, _, _ = jax.lax.while_loop(
        cond, body, (z0, jnp.array(jnp.inf, jnp.float32), jnp.array(0, jnp.int32)))
    return z


def ref_classifier(params, image):
    N, _, H, W = image.shape
    z0 = jnp.zeros((N, 5, H, W), jnp.float32)
    z_star = ref_deq_solve(lambda zz: ref_unit(params, zz, image), z0,
                           CONF["alpha"], CONF["forward_eps"], CONF["max_iters"])
    zf = z_star.reshape(N, -1)
    wf = params["head_w"].reshape(10, -1)
    out = jnp.einsum("nk,ok->no", zf, wf,
                     precision=jax.lax.Precision.HIGHEST) + params["head_b"].reshape(1, 10)
    return out.reshape(N, 10, 1, 1)


# ---------------------------------------------------------------------------
if __name__ == "__main__":
    key = jax.random.PRNGKey(0)
    k = jax.random.split(key, 12)

    # Deterministic synthetic parameters (shapes from Unit / detectionHead).
    # Small weight scale keeps the DEQ map contractive so the fixed point exists.
    params = {
        "w1": 0.05 * jax.random.normal(k[0], (6, 8, 5, 5), jnp.float32),
        "b1": 0.05 * jax.random.normal(k[1], (6,), jnp.float32),
        "w2": 0.05 * jax.random.normal(k[2], (5, 6, 5, 5), jnp.float32),
        "b2": 0.05 * jax.random.normal(k[3], (5,), jnp.float32),
        "gn_w": 1.0 + 0.05 * jax.random.normal(k[4], (6,), jnp.float32),
        "gn_b": 0.05 * jax.random.normal(k[5], (6,), jnp.float32),
        "head_w": 0.05 * jax.random.normal(k[6], (10, 5, 32, 32), jnp.float32),
        "head_b": 0.05 * jax.random.normal(k[7], (10,), jnp.float32),
    }

    # Spatial size must be 32x32 (detection head uses a 32x32 kernel, padding 0).
    N, H, W = 2, 32, 32
    image = jax.random.normal(k[8], (N, 3, H, W), jnp.float32)
    z_probe = jax.random.normal(k[9], (N, 5, H, W), jnp.float32)

    # 1) Single Unit application (1 solver iteration, alpha=1) vs. pure-JAX reference.
    u_out = jax.block_until_ready(jax.jit(unit_forward)(params, z_probe, image))
    assert u_out.shape == (N, 5, H, W), u_out.shape
    u_ref = jax.block_until_ready(jax.jit(ref_unit)(params, z_probe, image))
    u_err = float(jnp.max(jnp.abs(u_out - u_ref)))
    assert u_err < 5e-2, u_err

    # 2) Full Classifier forward: in-kernel DEQ fixed point + detection head.
    out = jax.block_until_ready(jax.jit(classifier_forward)(params, image))
    assert out.shape == (N, 10, 1, 1), out.shape
    ref = jax.block_until_ready(jax.jit(ref_classifier)(params, image))
    rel_err = float(jnp.max(jnp.abs(out - ref)) / (jnp.max(jnp.abs(ref)) + 1e-6))
    assert rel_err < 3e-2, rel_err

    print("KERNEL_OK")
</pallas_src>

<mosaic_0001>
module attributes {stable_mosaic.version = 11 : i64} {
  func.func @_deq_unit_kernel(%arg0: i32, %arg1: memref<1x5x1280xf32, #tpu.memory_space<vmem>>, %arg2: memref<1x3x1280xf32, #tpu.memory_space<vmem>>, %arg3: memref<6x200xf32, #tpu.memory_space<vmem>>, %arg4: memref<6x1xf32, #tpu.memory_space<vmem>>, %arg5: memref<6x1xf32, #tpu.memory_space<vmem>>, %arg6: memref<6x1xf32, #tpu.memory_space<vmem>>, %arg7: memref<5x200xf32, #tpu.memory_space<vmem>>, %arg8: memref<5x1xf32, #tpu.memory_space<vmem>>, %arg9: memref<1x5x1024xf32, #tpu.memory_space<vmem>>, %arg10: memref<5x1280xf32, #tpu.memory_space<vmem>>, %arg11: memref<6x1280xf32, #tpu.memory_space<vmem>>, %arg12: memref<200x1024xf32, #tpu.memory_space<vmem>>, %arg13: memref<200x1024xf32, #tpu.memory_space<vmem>>, %arg14: memref<1xi32, #tpu.memory_space<smem>>) attributes {dimension_semantics = [#tpu.dimension_semantics<parallel>], iteration_bounds = array<i64: 2>, scalar_prefetch = 0 : i64, scratch_operands = 5 : i64, tpu.core_type = #tpu.core_type<tc>, window_params = [{transform_indices = @transform_0, window_bounds = array<i64: 1, 5, 1280>}, {transform_indices = @transform_1, window_bounds = array<i64: 1, 3, 1280>}, {pipeline_mode = #tpu.pipeline_mode<synchronous>, transform_indices = @transform_2, window_bounds = array<i64: 6, 200>}, {pipeline_mode = #tpu.pipeline_mode<synchronous>, transform_indices = @transform_3, window_bounds = array<i64: 6, 1>}, {pipeline_mode = #tpu.pipeline_mode<synchronous>, transform_indices = @transform_4, window_bounds = array<i64: 6, 1>}, {pipeline_mode = #tpu.pipeline_mode<synchronous>, transform_indices = @transform_5, window_bounds = array<i64: 6, 1>}, {pipeline_mode = #tpu.pipeline_mode<synchronous>, transform_indices = @transform_6, window_bounds = array<i64: 5, 200>}, {pipeline_mode = #tpu.pipeline_mode<synchronous>, transform_indices = @transform_7, window_bounds = array<i64: 5, 1>}, {transform_indices = @transform_8, window_bounds = array<i64: 1, 5, 1024>}]} {
    %c0 = arith.constant 0 : index
    %c0_0 = arith.constant 0 : index
    %c0_1 = arith.constant 0 : index
    %0 = vector.load %arg1[%c0, %c0_0, %c0_1] : memref<1x5x1280xf32, #tpu.memory_space<vmem>>, vector<1x5x1280xf32>
    %1 = vector.shape_cast %0 : vector<1x5x1280xf32> to vector<5x1280xf32>
    %c0_2 = arith.constant 0 : index
    %c0_3 = arith.constant 0 : index
    %2 = vector.load %arg10[%c0_2, %c0_3] : memref<5x1280xf32, #tpu.memory_space<vmem>>, vector<5x1280xf32>
    tpu.vector_store %arg10[%c0_2, %c0_3], %1 {strides = array<i32>} : memref<5x1280xf32, #tpu.memory_space<vmem>>, vector<5x1280xf32>,
    %cst = arith.constant 0.000000e+00 : f32
    %3 = vector.broadcast %cst : f32 to vector<6x1280xf32>
    %c0_4 = arith.constant 0 : index
    %c0_5 = arith.constant 0 : index
    %4 = vector.load %arg11[%c0_4, %c0_5] : memref<6x1280xf32, #tpu.memory_space<vmem>>, vector<6x1280xf32>
    tpu.vector_store %arg11[%c0_4, %c0_5], %3 {strides = array<i32>} : memref<6x1280xf32, #tpu.memory_space<vmem>>, vector<6x1280xf32>,
    %cst_6 = arith.constant 0.000000e+00 : f32
    %5 = vector.broadcast %cst_6 : f32 to vector<200x1024xf32>
    %c0_7 = arith.constant 0 : index
    %c0_8 = arith.constant 0 : index
    %6 = vector.load %arg13[%c0_7, %c0_8] : memref<200x1024xf32, #tpu.memory_space<vmem>>, vector<200x1024xf32>
    tpu.vector_store %arg13[%c0_7, %c0_8], %5 {strides = array<i32>} : memref<200x1024xf32, #tpu.memory_space<vmem>>, vector<200x1024xf32>,
    %7 = tpu.iota {dimensions = array<i32: 1>} : vector<1x1024xi32>
    %c32_i32 = arith.constant 32 : i32
    %c0_i32 = arith.constant 0 : i32
    %8 = arith.cmpi eq, %c32_i32, %c0_i32 : i32
    %c1_i32 = arith.constant 1 : i32
    %9 = arith.select %8, %c1_i32, %c32_i32 : i32
    %10 = vector.broadcast %9 : i32 to vector<1x1024xi32>
    %11 = arith.remsi %7, %10 : vector<1x1024xi32>
    %c0_i32_9 = arith.constant 0 : i32
    %12 = vector.broadcast %c0_i32_9 : i32 to vector<1x1024xi32>
    %13 = arith.cmpi ne, %11, %12 : vector<1x1024xi32>
    %c0_i32_10 = arith.constant 0 : i32
    %14 = vector.broadcast %c0_i32_10 : i32 to vector<1x1024xi32>
    %15 = arith.cmpi slt, %11, %14 : vector<1x1024xi32>
    %c0_i32_11 = arith.constant 0 : i32
    %16 = arith.cmpi slt, %9, %c0_i32_11 : i32
    %17 = vector.broadcast %16 : i1 to vector<1x1024xi1>
    %18 = vector.broadcast %17 : vector<1x1024xi1> to vector<1x1024xi1>
    %19 = arith.xori %15, %18 : vector<1x1024xi1>
    %20 = arith.andi %19, %13 : vector<1x1024xi1>
    %21 = vector.broadcast %9 : i32 to vector<1x1024xi32>
    %22 = arith.addi %11, %21 : vector<1x1024xi32>
    %23 = arith.select %20, %22, %11 : vector<1x1024xi1>, vector<1x1024xi32>
    %c-2_i32 = arith.constant -2 : i32
    %24 = vector.broadcast %c-2_i32 : i32 to vector<1x1024xi32>
    %25 = arith.addi %23, %24 : vector<1x1024xi32>
    %c0_i32_12 = arith.constant 0 : i32
    %26 = vector.broadcast %c0_i32_12 : i32 to vector<1x1024xi32>
    %27 = arith.cmpi sge, %25, %26 : vector<1x1024xi32>
    %c32_i32_13 = arith.constant 32 : i32
    %28 = vector.broadcast %c32_i32_13 : i32 to vector<1x1024xi32>
    %29 = arith.cmpi slt, %25, %28 : vector<1x1024xi32>
    %30 = arith.andi %27, %29 : vector<1x1024xi1>
    %c0_14 = arith.constant 0 : index
    %c0_15 = arith.constant 0 : index
    %c62 = arith.constant 62 : index
    %31 = vector.load %arg2[%c0_14, %c0_15, %c62] : memref<1x3x1280xf32, #tpu.memory_space<vmem>>, vector<1x3x1024xf32>
    %32 = vector.shape_cast %31 : vector<1x3x1024xf32> to vector<3x1024xf32>
    %cst_16 = arith.constant 0.000000e+00 : f32
    %33 = vector.shape_cast %30 : vector<1x1024xi1> to vector<1x1024xi1>
    %34 = vector.broadcast %33 : vector<1x1024xi1> to vector<3x1024xi1>
    %35 = vector.broadcast %cst_16 : f32 to vector<3x1024xf32>
    %36 = arith.select %34, %32, %35 : vector<3x1024xi1>, vector<3x1024xf32>
    %c5 = arith.constant 5 : index
    %c0_17 = arith.constant 0 : index
    %37 = vector.load %arg12[%c5, %c0_17] : memref<200x1024xf32, #tpu.memory_space<vmem>>, vector<3x1024xf32>
    tpu.vector_store %arg12[%c5, %c0_17], %36 {strides = array<i32>} : memref<200x1024xf32, #tpu.memory_space<vmem>>, vector<3x1024xf32>,
    %c0_18 = arith.constant 0 : index
    %c0_19 = arith.constant 0 : index
    %c94 = arith.constant 94 : index
    %38 = vector.load %arg2[%c0_18, %c0_19, %c94] : memref<1x3x1280xf32, #tpu.memory_space<vmem>>, vector<1x3x1024xf32>
    %39 = vector.shape_cast %38 : vector<1x3x1024xf32> to vector<3x1024xf32>
    %cst_20 = arith.constant 0.000000e+00 : f32
    %40 = vector.shape_cast %30 : vector<1x1024xi1> to vector<1x1024xi1>
    %41 = vector.broadcast %40 : vector<1x1024xi1> to vector<3x1024xi1>
    %42 = vector.broadcast %cst_20 : f32 to vector<3x1024xf32>
    %43 = arith.select %41, %39, %42 : vector<3x1024xi1>, vector<3x1024xf32>
    %c45 = arith.constant 45 : index
    %c0_21 = arith.constant 0 : index
    %44 = vector.load %arg12[%c45, %c0_21] : memref<200x1024xf32, #tpu.memory_space<vmem>>, vector<3x1024xf32>
    tpu.vector_store %arg12[%c45, %c0_21], %43 {strides = array<i32>} : memref<200x1024xf32, #tpu.memory_space<vmem>>, vector<3x1024xf32>,
    %c0_22 = arith.constant 0 : index
    %c0_23 = arith.constant 0 : index
    %c126 = arith.constant 126 : index
    %45 = vector.load %arg2[%c0_22, %c0_23, %c126] : memref<1x3x1280xf32, #tpu.memory_space<vmem>>, vector<1x3x1024xf32>
    %46 = vector.shape_cast %45 : vector<1x3x1024xf32> to vector<3x1024xf32>
    %cst_24 = arith.constant 0.000000e+00 : f32
    %47 = vector.shape_cast %30 : vector<1x1024xi1> to vector<1x1024xi1>
    %48 = vector.broadcast %47 : vector<1x1024xi1> to vector<3x1024xi1>
    %49 = vector.broadcast %cst_24 : f32 to vector<3x1024xf32>
    %50 = arith.select %48, %46, %49 : vector<3x1024xi1>, vector<3x1024xf32>
    %c85 = arith.constant 85 : index
    %c0_25 = arith.constant 0 : index
    %51 = vector.load %arg12[%c85, %c0_25] : memref<200x1024xf32, #tpu.memory_space<vmem>>, vector<3x1024xf32>
    tpu.vector_store %arg12[%c85, %c0_25], %50 {strides = array<i32>} : memref<200x1024xf32, #tpu.memory_space<vmem>>, vector<3x1024xf32>,
    %c0_26 = arith.constant 0 : index
    %c0_27 = arith.constant 0 : index
    %c158 = arith.constant 158 : index
    %52 = vector.load %arg2[%c0_26, %c0_27, %c158] : memref<1x3x1280xf32, #tpu.memory_space<vmem>>, vector<1x3x1024xf32>
    %53 = vector.shape_cast %52 : vector<1x3x1024xf32> to vector<3x1024xf32>
    %cst_28 = arith.constant 0.000000e+00 : f32
    %54 = vector.shape_cast %30 : vector<1x1024xi1> to vector<1x1024xi1>
    %55 = vector.broadcast %54 : vector<1x1024xi1> to vector<3x1024xi1>
    %56 = vector.broadcast %cst_28 : f32 to vector<3x1024xf32>
    %57 = arith.select %55, %53, %56 : vector<3x1024xi1>, vector<3x1024xf32>
    %c125 = arith.constant 125 : index
    %c0_29 = arith.constant 0 : index
    %58 = vector.load %arg12[%c125, %c0_29] : memref<200x1024xf32, #tpu.memory_space<vmem>>, vector<3x1024xf32>
    tpu.vector_store %arg12[%c125, %c0_29], %57 {strides = array<i32>} : memref<200x1024xf32, #tpu.memory_space<vmem>>, vector<3x1024xf32>,
    %c0_30 = arith.constant 0 : index
    %c0_31 = arith.constant 0 : index
    %c190 = arith.constant 190 : index
    %59 = vector.load %arg2[%c0_30, %c0_31, %c190] : memref<1x3x1280xf32, #tpu.memory_space<vmem>>, vector<1x3x1024xf32>
    %60 = vector.shape_cast %59 : vector<1x3x1024xf32> to vector<3x1024xf32>
    %cst_32 = arith.constant 0.000000e+00 : f32
    %61 = vector.shape_cast %30 : vector<1x1024xi1> to vector<1x1024xi1>
    %62 = vector.broadcast %61 : vector<1x1024xi1> to vector<3x1024xi1>
    %63 = vector.broadcast %cst_32 : f32 to vector<3x1024xf32>
    %64 = arith.select %62, %60, %63 : vector<3x1024xi1>, vector<3x1024xf32>
    %c165 = arith.constant 165 : index
    %c0_33 = arith.constant 0 : index
    %65 = vector.load %arg12[%c165, %c0_33] : memref<200x1024xf32, #tpu.memory_space<vmem>>, vector<3x1024xf32>
    tpu.vector_store %arg12[%c165, %c0_33], %64 {strides = array<i32>} : memref<200x1024xf32, #tpu.memory_space<vmem>>, vector<3x1024xf32>,
    %c-1_i32 = arith.constant -1 : i32
    %66 = vector.broadcast %c-1_i32 : i32 to vector<1x1024xi32>
    %67 = arith.addi %23, %66 : vector<1x1024xi32>
    %c0_i32_34 = arith.constant 0 : i32
    %68 = vector.broadcast %c0_i32_34 : i32 to vector<1x1024xi32>
    %69 = arith.cmpi sge, %67, %68 : vector<1x1024xi32>
    %c32_i32_35 = arith.constant 32 : i32
    %70 = vector.broadcast %c32_i32_35 : i32 to vector<1x1024xi32>
    %71 = arith.cmpi slt, %67, %70 : vector<1x1024xi32>
    %72 = arith.andi %69, %71 : vector<1x1024xi1>
    %c0_36 = arith.constant 0 : index
    %c0_37 = arith.constant 0 : index
    %c63 = arith.constant 63 : index
    %73 = vector.load %arg2[%c0_36, %c0_37, %c63] : memref<1x3x1280xf32, #tpu.memory_space<vmem>>, vector<1x3x1024xf32>
    %74 = vector.shape_cast %73 : vector<1x3x1024xf32> to vector<3x1024xf32>
    %cst_38 = arith.constant 0.000000e+00 : f32
    %75 = vector.shape_cast %72 : vector<1x1024xi1> to vector<1x1024xi1>
    %76 = vector.broadcast %75 : vector<1x1024xi1> to vector<3x1024xi1>
    %77 = vector.broadcast %cst_38 : f32 to vector<3x1024xf32>
    %78 = arith.select %76, %74, %77 : vector<3x1024xi1>, vector<3x1024xf32>
    %c13 = arith.constant 13 : index
    %c0_39 = arith.constant 0 : index
    %79 = vector.load %arg12[%c13, %c0_39] : memref<200x1024xf32, #tpu.memory_space<vmem>>, vector<3x1024xf32>
    tpu.vector_store %arg12[%c13, %c0_39], %78 {strides = array<i32>} : memref<200x1024xf32, #tpu.memory_space<vmem>>, vector<3x1024xf32>,
    %c0_40 = arith.constant 0 : index
    %c0_41 = arith.constant 0 : index
    %c95 = arith.constant 95 : index
    %80 = vector.load %arg2[%c0_40, %c0_41, %c95] : memref<1x3x1280xf32, #tpu.memory_space<vmem>>, vector<1x3x1024xf32>
    %81 = vector.shape_cast %80 : vector<1x3x1024xf32> to vector<3x1024xf32>
    %cst_42 = arith.constant 0.000000e+00 : f32
    %82 = vector.shape_cast %72 : vector<1x1024xi1> to vector<1x1024xi1>
    %83 = vector.broadcast %82 : vector<1x1024xi1> to vector<3x1024xi1>
    %84 = vector.broadcast %cst_42 : f32 to vector<3x1024xf32>
    %85 = arith.select %83, %81, %84 : vector<3x1024xi1>, vector<3x1024xf32>
    %c53 = arith.constant 53 : index
    %c0_43 = arith.constant 0 : index
    %86 = vector.load %arg12[%c53, %c0_43] : memref<200x1024xf32, #tpu.memory_space<vmem>>, vector<3x1024xf32>
    tpu.vector_store %arg12[%c53, %c0_43], %85 {strides = array<i32>} : memref<200x1024xf32, #tpu.memory_space<vmem>>, vector<3x1024xf32>,
    %c0_44 = arith.constant 0 : index
    %c0_45 = arith.constant 0 : index
    %c127 = arith.constant 127 : index
    %87 = vector.load %arg2[%c0_44, %c0_45, %c127] : memref<1x3x1280xf32, #tpu.memory_space<vmem>>, vector<1x3x1024xf32>
    %88 = vector.shape_cast %87 : vector<1x3x1024xf32> to vector<3x1024xf32>
    %cst_46 = arith.constant 0.000000e+00 : f32
    %89 = vector.shape_cast %72 : vector<1x1024xi1> to vector<1x1024xi1>
    %90 = vector.broadcast %89 : vector<1x1024xi1> to vector<3x1024xi1>
    %91 = vector.broadcast %cst_46 : f32 to vector<3x1024xf32>
    %92 = arith.select %90, %88, %91 : vector<3x1024xi1>, vector<3x1024xf32>
    %c93 = arith.constant 93 : index
    %c0_47 = arith.constant 0 : index
    %93 = vector.load %arg12[%c93, %c0_47] : memref<200x1024xf32, #tpu.memory_space<vmem>>, vector<3x1024xf32>
    tpu.vector_store %arg12[%c93, %c0_47], %92 {strides = array<i32>} : memref<200x1024xf32, #tpu.memory_space<vmem>>, vector<3x1024xf32>,
    %c0_48 = arith.constant 0 : index
    %c0_49 = arith.constant 0 : index
    %c159 = arith.constant 159 : index
    %94 = vector.load %arg2[%c0_48, %c0_49, %c159] : memref<1x3x1280xf32, #tpu.memory_space<vmem>>, vector<1x3x1024xf32>
    %95 = vector.shape_cast %94 : vector<1x3x1024xf32> to vector<3x1024xf32>
    %cst_50 = arith.constant 0.000000e+00 : f32
    %96 = vector.shape_cast %72 : vector<1x1024xi1> to vector<1x1024xi1>
    %97 = vector.broadcast %96 : vector<1x1024xi1> to vector<3x1024xi1>
    %98 = vector.broadcast %cst_50 : f32 to vector<3x1024xf32>
    %99 = arith.select %97, %95, %98 : vector<3x1024xi1>, vector<3x1024xf32>
    %c133 = arith.constant 133 : index
    %c0_51 = arith.constant 0 : index
    %100 = vector.load %arg12[%c133, %c0_51] : memref<200x1024xf32, #tpu.memory_space<vmem>>, vector<3x1024xf32>
    tpu.vector_store %arg12[%c133, %c0_51], %99 {strides = array<i32>} : memref<200x1024xf32, #tpu.memory_space<vmem>>, vector<3x1024xf32>,
    %c0_52 = arith.constant 0 : index
    %c0_53 = arith.constant 0 : index
    %c191 = arith.constant 191 : index
    %101 = vector.load %arg2[%c0_52, %c0_53, %c191] : memref<1x3x1280xf32, #tpu.memory_space<vmem>>, vector<1x3x1024xf32>
    %102 = vector.shape_cast %101 : vector<1x3x1024xf32> to vector<3x1024xf32>
    %cst_54 = arith.constant 0.000000e+00 : f32
    %103 = vector.shape_cast %72 : vector<1x1024xi1> to vector<1x1024xi1>
    %104 = vector.broadcast %103 : vector<1x1024xi1> to vector<3x1024xi1>
    %105 = vector.broadcast %cst_54 : f32 to vector<3x1024xf32>
    %106 = arith.select %104, %102, %105 : vector<3x1024xi1>, vector<3x1024xf32>
    %c173 = arith.constant 173 : index
    %c0_55 = arith.constant 0 : index
    %107 = vector.load %arg12[%c173, %c0_55] : memref<200x1024xf32, #tpu.memory_space<vmem>>, vector<3x1024xf32>
    tpu.vector_store %arg12[%c173, %c0_55], %106 {strides = array<i32>} : memref<200x1024xf32, #tpu.memory_space<vmem>>, vector<3x1024xf32>,
    %c0_i32_56 = arith.constant 0 : i32
    %108 = vector.broadcast %c0_i32_56 : i32 to vector<1x1024xi32>
    %109 = arith.addi %23, %108 : vector<1x1024xi32>
    %c0_i32_57 = arith.constant 0 : i32
    %110 = vector.broadcast %c0_i32_57 : i32 to vector<1x1024xi32>
    %111 = arith.cmpi sge, %109, %110 : vector<1x1024xi32>
    %c32_i32_58 = arith.constant 32 : i32
    %112 = vector.broadcast %c32_i32_58 : i32 to vector<1x1024xi32>
    %113 = arith.cmpi slt, %109, %112 : vector<1x1024xi32>
    %114 = arith.andi %111, %113 : vector<1x1024xi1>
    %c0_59 = arith.constant 0 : index
    %c0_60 = arith.constant 0 : index
    %c64 = arith.constant 64 : index
    %115 = vector.load %arg2[%c0_59, %c0_60, %c64] : memref<1x3x1280xf32, #tpu.memory_space<vmem>>, vector<1x3x1024xf32>
    %116 = vector.shape_cast %115 : vector<1x3x1024xf32> to vector<3x1024xf32>
    %cst_61 = arith.constant 0.000000e+00 : f32
    %117 = vector.shape_cast %114 : vector<1x1024xi1> to vector<1x1024xi1>
    %118 = vector.broadcast %117 : vector<1x1024xi1> to vector<3x1024xi1>
    %119 = vector.broadcast %cst_61 : f32 to vector<3x1024xf32>
    %120 = arith.select %118, %116, %119 : vector<3x1024xi1>, vector<3x1024xf32>
    %c21 = arith.constant 21 : index
    %c0_62 = arith.constant 0 : index
    %121 = vector.load %arg12[%c21, %c0_62] : memref<200x1024xf32, #tpu.memory_space<vmem>>, vector<3x1024xf32>
    tpu.vector_store %arg12[%c21, %c0_62], %120 {strides = array<i32>} : memref<200x1024xf32, #tpu.memory_space<vmem>>, vector<3x1024xf32>,
    %c0_63 = arith.constant 0 : index
    %c0_64 = arith.constant 0 : index
    %c96 = arith.constant 96 : index
    %122 = vector.load %arg2[%c0_63, %c0_64, %c96] : memref<1x3x1280xf32, #tpu.memory_space<vmem>>, vector<1x3x1024xf32>
    %123 = vector.shape_cast %122 : vector<1x3x1024xf32> to vector<3x1024xf32>
    %cst_65 = arith.constant 0.000000e+00 : f32
    %124 = vector.shape_cast %114 : vector<1x1024xi1> to vector<1x1024xi1>
    %125 = vector.broadcast %124 : vector<1x1024xi1> to vector<3x1024xi1>
    %126 = vector.broadcast %cst_65 : f32 to vector<3x1024xf32>
    %127 = arith.select %125, %123, %126 : vector<3x1024xi1>, vector<3x1024xf32>
    %c61 = arith.constant 61 : index
    %c0_66 = arith.constant 0 : index
    %128 = vector.load %arg12[%c61, %c0_66] : memref<200x1024xf32, #tpu.memory_space<vmem>>, vector<3x1024xf32>
    tpu.vector_store %arg12[%c61, %c0_66], %127 {strides = array<i32>} : memref<200x1024xf32, #tpu.memory_space<vmem>>, vector<3x1024xf32>,
    %c0_67 = arith.constant 0 : index
    %c0_68 = arith.constant 0 : index
    %c128 = arith.constant 128 : index
    %129 = vector.load %arg2[%c0_67, %c0_68, %c128] : memref<1x3x1280xf32, #tpu.memory_space<vmem>>, vector<1x3x1024xf32>
    %130 = vector.shape_cast %129 : vector<1x3x1024xf32> to vector<3x1024xf32>
    %cst_69 = arith.constant 0.000000e+00 : f32
    %131 = vector.shape_cast %114 : vector<1x1024xi1> to vector<1x1024xi1>
    %132 = vector.broadcast %131 : vector<1x1024xi1> to vector<3x1024xi1>
    %133 = vector.broadcast %cst_69 : f32 to vector<3x1024xf32>
    %134 = arith.select %132, %130, %133 : vector<3x1024xi1>, vector<3x1024xf32>
    %c101 = arith.constant 101 : index
    %c0_70 = arith.constant 0 : index
    %135 = vector.load %arg12[%c101, %c0_70] : memref<200x1024xf32, #tpu.memory_space<vmem>>, vector<3x1024xf32>
    tpu.vector_store %arg12[%c101, %c0_70], %134 {strides = array<i32>} : memref<200x1024xf32, #tpu.memory_space<vmem>>, vector<3x1024xf32>,
    %c0_71 = arith.constant 0 : index
    %c0_72 = arith.constant 0 : index
    %c160 = arith.constant 160 : index
    %136 = vector.load %arg2[%c0_71, %c0_72, %c160] : memref<1x3x1280xf32, #tpu.memory_space<vmem>>, vector<1x3x1024xf32>
    %137 = vector.shape_cast %136 : vector<1x3x1024xf32> to vector<3x1024xf32>
    %cst_73 = arith.constant 0.000000e+00 : f32
    %138 = vector.shape_cast %114 : vector<1x1024xi1> to vector<1x1024xi1>
    %139 = vector.broadcast %138 : vector<1x1024xi1> to vector<3x1024xi1>
    %140 = vector.broadcast %cst_73 : f32 to vector<3x1024xf32>
    %141 = arith.select %139, %137, %140 : vector<3x1024xi1>, vector<3x1024xf32>
    %c141 = arith.constant 141 : index
    %c0_74 = arith.constant 0 : index
    %142 = vector.load %arg12[%c141, %c0_74] : memref<200x1024xf32, #tpu.memory_space<vmem>>, vector<3x1024xf32>
    tpu.vector_store %arg12[%c141, %c0_74], %141 {strides = array<i32>} : memref<200x1024xf32, #tpu.memory_space<vmem>>, vector<3x1024xf32>,
    %c0_75 = arith.constant 0 : index
    %c0_76 = arith.constant 0 : index
    %c192 = arith.constant 192 : index
    %143 = vector.load %arg2[%c0_75, %c0_76, %c192] : memref<1x3x1280xf32, #tpu.memory_space<vmem>>, vector<1x3x1024xf32>
    %144 = vector.shape_cast %143 : vector<1x3x1024xf32> to vector<3x1024xf32>
    %cst_77 = arith.constant 0.000000e+00 : f32
    %145 = vector.shape_cast %114 : vector<1x1024xi1> to vector<1x1024xi1>
    %146 = vector.broadcast %145 : vector<1x1024xi1> to vector<3x1024xi1>
    %147 = vector.broadcast %cst_77 : f32 to vector<3x1024xf32>
    %148 = arith.select %146, %144, %147 : vector<3x1024xi1>, vector<3x1024xf32>
    %c181 = arith.constant 181 : index
    %c0_78 = arith.constant 0 : index
    %149 = vector.load %arg12[%c181, %c0_78] : memref<200x1024xf32, #tpu.memory_space<vmem>>, vector<3x1024xf32>
    tpu.vector_store %arg12[%c181, %c0_78], %148 {strides = array<i32>} : memref<200x1024xf32, #tpu.memory_space<vmem>>, vector<3x1024xf32>,
    %c1_i32_79 = arith.constant 1 : i32
    %150 = vector.broadcast %c1_i32_79 : i32 to vector<1x1024xi32>
    %151 = arith.addi %23, %150 : vector<1x1024xi32>
    %c0_i32_80 = arith.constant 0 : i32
    %152 = vector.broadcast %c0_i32_80 : i32 to vector<1x1024xi32>
    %153 = arith.cmpi sge, %151, %152 : vector<1x1024xi32>
    %c32_i32_81 = arith.constant 32 : i32
    %154 = vector.broadcast %c32_i32_81 : i32 to vector<1x1024xi32>
    %155 = arith.cmpi slt, %151, %154 : vector<1x1024xi32>
    %156 = arith.andi %153, %155 : vector<1x1024xi1>
    %c0_82 = arith.constant 0 : index
    %c0_83 = arith.constant 0 : index
    %c65 = arith.constant 65 : index
    %157 = vector.load %arg2[%c0_82, %c0_83, %c65] : memref<1x3x1280xf32, #tpu.memory_space<vmem>>, vector<1x3x1024xf32>
    %158 = vector.shape_cast %157 : vector<1x3x1024xf32> to vector<3x1024xf32>
    %cst_84 = arith.constant 0.000000e+00 : f32
    %159 = vector.shape_cast %156 : vector<1x1024xi1> to vector<1x1024xi1>
    %160 = vector.broadcast %159 : vector<1x1024xi1> to vector<3x1024xi1>
    %161 = vector.broadcast %cst_84 : f32 to vector<3x1024xf32>
    %162 = arith.select %160, %158, %161 : vector<3x1024xi1>, vector<3x1024xf32>
    %c29 = arith.constant 29 : index
    %c0_85 = arith.constant 0 : index
    %163 = vector.load %arg12[%c29, %c0_85] : memref<200x1024xf32, #tpu.memory_space<vmem>>, vector<3x1024xf32>
    tpu.vector_store %arg12[%c29, %c0_85], %162 {strides = array<i32>} : memref<200x1024xf32, #tpu.memory_space<vmem>>, vector<3x1024xf32>,
    %c0_86 = arith.constant 0 : index
    %c0_87 = arith.constant 0 : index
    %c97 = arith.constant 97 : index
    %164 = vector.load %arg2[%c0_86, %c0_87, %c97] : memref<1x3x1280xf32, #tpu.memory_space<vmem>>, vector<1x3x1024xf32>
    %165 = vector.shape_cast %164 : vector<1x3x1024xf32> to vector<3x1024xf32>
    %cst_88 = arith.constant 0.000000e+00 : f32
    %166 = vector.shape_cast %156 : vector<1x1024xi1> to vector<1x1024xi1>
    %167 = vector.broadcast %166 : vector<1x1024xi1> to vector<3x1024xi1>
    %168 = vector.broadcast %cst_88 : f32 to vector<3x1024xf32>
    %169 = arith.select %167, %165, %168 : vector<3x1024xi1>, vector<3x1024xf32>
    %c69 = arith.constant 69 : index
    %c0_89 = arith.constant 0 : index
    %170 = vector.load %arg12[%c69, %c0_89] : memref<200x1024xf32, #tpu.memory_space<vmem>>, vector<3x1024xf32>
    tpu.vector_store %arg12[%c69, %c0_89], %169 {strides = array<i32>} : memref<200x1024xf32, #tpu.memory_space<vmem>>, vector<3x1024xf32>,
    %c0_90 = arith.constant 0 : index
    %c0_91 = arith.constant 0 : index
    %c129 = arith.constant 129 : index
    %171 = vector.load %arg2[%c0_90, %c0_91, %c129] : memref<1x3x1280xf32, #tpu.memory_space<vmem>>, vector<1x3x1024xf32>
    %172 = vector.shape_cast %171 : vector<1x3x1024xf32> to vector<3x1024xf32>
    %cst_92 = arith.constant 0.000000e+00 : f32
    %173 = vector.shape_cast %156 : vector<1x1024xi1> to vector<1x1024xi1>
    %174 = vector.broadcast %173 : vector<1x1024xi1> to vector<3x1024xi1>
    %175 = vector.broadcast %cst_92 : f32 to vector<3x1024xf32>
    %176 = arith.select %174, %172, %175 : vector<3x1024xi1>, vector<3x1024xf32>
    %c109 = arith.constant 109 : index
    %c0_93 = arith.constant 0 : index
    %177 = vector.load %arg12[%c109, %c0_93] : memref<200x1024xf32, #tpu.memory_space<vmem>>, vector<3x1024xf32>
    tpu.vector_store %arg12[%c109, %c0_93], %176 {strides = array<i32>} : memref<200x1024xf32, #tpu.memory_space<vmem>>, vector<3x1024xf32>,
    %c0_94 = arith.constant 0 : index
    %c0_95 = arith.constant 0 : index
    %c161 = arith.constant 161 : index
    %178 = vector.load %arg2[%c0_94, %c0_95, %c161] : memref<1x3x1280xf32, #tpu.memory_space<vmem>>, vector<1x3x1024xf32>
    %179 = vector.shape_cast %178 : vector<1x3x1024xf32> to vector<3x1024xf32>
    %cst_96 = arith.constant 0.000000e+00 : f32
    %180 = vector.shape_cast %156 : vector<1x1024xi1> to vector<1x1024xi1>
    %181 = vector.broadcast %180 : vector<1x1024xi1> to vector<3x1024xi1>
    %182 = vector.broadcast %cst_96 : f32 to vector<3x1024xf32>
    %183 = arith.select %181, %179, %182 : vector<3x1024xi1>, vector<3x1024xf32>
    %c149 = arith.constant 149 : index
    %c0_97 = arith.constant 0 : index
    %184 = vector.load %arg12[%c149, %c0_97] : memref<200x1024xf32, #tpu.memory_space<vmem>>, vector<3x1024xf32>
    tpu.vector_store %arg12[%c149, %c0_97], %183 {strides = array<i32>} : memref<200x1024xf32, #tpu.memory_space<vmem>>, vector<3x1024xf32>,
    %c0_98 = arith.constant 0 : index
    %c0_99 = arith.constant 0 : index
    %c193 = arith.constant 193 : index
    %185 = vector.load %arg2[%c0_98, %c0_99, %c193] : memref<1x3x1280xf32, #tpu.memory_space<vmem>>, vector<1x3x1024xf32>
    %186 = vector.shape_cast %185 : vector<1x3x1024xf32> to vector<3x1024xf32>
    %cst_100 = arith.constant 0.000000e+00 : f32
    %187 = vector.shape_cast %156 : vector<1x1024xi1> to vector<1x1024xi1>
    %188 = vector.broadcast %187 : vector<1x1024xi1> to vector<3x1024xi1>
    %189 = vector.broadcast %cst_100 : f32 to vector<3x1024xf32>
    %190 = arith.select %188, %186, %189 : vector<3x1024xi1>, vector<3x1024xf32>
    %c189 = arith.constant 189 : index
    %c0_101 = arith.constant 0 : index
    %191 = vector.load %arg12[%c189, %c0_101] : memref<200x1024xf32, #tpu.memory_space<vmem>>, vector<3x1024xf32>
    tpu.vector_store %arg12[%c189, %c0_101], %190 {strides = array<i32>} : memref<200x1024xf32, #tpu.memory_space<vmem>>, vector<3x1024xf32>,
    %c2_i32 = arith.constant 2 : i32
    %192 = vector.broadcast %c2_i32 : i32 to vector<1x1024xi32>
    %193 = arith.addi %23, %192 : vector<1x1024xi32>
    %c0_i32_102 = arith.constant 0 : i32
    %194 = vector.broadcast %c0_i32_102 : i32 to vector<1x1024xi32>
    %195 = arith.cmpi sge, %193, %194 : vector<1x1024xi32>
    %c32_i32_103 = arith.constant 32 : i32
    %196 = vector.broadcast %c32_i32_103 : i32 to vector<1x1024xi32>
    %197 = arith.cmpi slt, %193, %196 : vector<1x1024xi32>
    %198 = arith.andi %195, %197 : vector<1x1024xi1>
    %c0_104 = arith.constant 0 : index
    %c0_105 = arith.constant 0 : index
    %c66 = arith.constant 66 : index
    %199 = vector.load %arg2[%c0_104, %c0_105, %c66] : memref<1x3x1280xf32, #tpu.memory_space<vmem>>, vector<1x3x1024xf32>
    %200 = vector.shape_cast %199 : vector<1x3x1024xf32> to vector<3x1024xf32>
    %cst_106 = arith.constant 0.000000e+00 : f32
    %201 = vector.shape_cast %198 : vector<1x1024xi1> to vector<1x1024xi1>
    %202 = vector.broadcast %201 : vector<1x1024xi1> to vector<3x1024xi1>
    %203 = vector.broadcast %cst_106 : f32 to vector<3x1024xf32>
    %204 = arith.select %202, %200, %203 : vector<3x1024xi1>, vector<3x1024xf32>
    %c37 = arith.constant 37 : index
    %c0_107 = arith.constant 0 : index
    %205 = vector.load %arg12[%c37, %c0_107] : memref<200x1024xf32, #tpu.memory_space<vmem>>, vector<3x1024xf32>
    tpu.vector_store %arg12[%c37, %c0_107], %204 {strides = array<i32>} : memref<200x1024xf32, #tpu.memory_space<vmem>>, vector<3x1024xf32>,
    %c0_108 = arith.constant 0 : index
    %c0_109 = arith.constant 0 : index
    %c98 = arith.constant 98 : index
    %206 = vector.load %arg2[%c0_108, %c0_109, %c98] : memref<1x3x1280xf32, #tpu.memory_space<vmem>>, vector<1x3x1024xf32>
    %207 = vector.shape_cast %206 : vector<1x3x1024xf32> to vector<3x1024xf32>
    %cst_110 = arith.constant 0.000000e+00 : f32
    %208 = vector.shape_cast %198 : vector<1x1024xi1> to vector<1x1024xi1>
    %209 = vector.broadcast %208 : vector<1x1024xi1> to vector<3x1024xi1>
    %210 = vector.broadcast %cst_110 : f32 to vector<3x1024xf32>
    %211 = arith.select %209, %207, %210 : vector<3x1024xi1>, vector<3x1024xf32>
    %c77 = arith.constant 77 : index
    %c0_111 = arith.constant 0 : index
    %212 = vector.load %arg12[%c77, %c0_111] : memref<200x1024xf32, #tpu.memory_space<vmem>>, vector<3x1024xf32>
    tpu.vector_store %arg12[%c77, %c0_111], %211 {strides = array<i32>} : memref<200x1024xf32, #tpu.memory_space<vmem>>, vector<3x1024xf32>,
    %c0_112 = arith.constant 0 : index
    %c0_113 = arith.constant 0 : index
    %c130 = arith.constant 130 : index
    %213 = vector.load %arg2[%c0_112, %c0_113, %c130] : memref<1x3x1280xf32, #tpu.memory_space<vmem>>, vector<1x3x1024xf32>
    %214 = vector.shape_cast %213 : vector<1x3x1024xf32> to vector<3x1024xf32>
    %cst_114 = arith.constant 0.000000e+00 : f32
    %215 = vector.shape_cast %198 : vector<1x1024xi1> to vector<1x1024xi1>
    %216 = vector.broadcast %215 : vector<1x1024xi1> to vector<3x1024xi1>
    %217 = vector.broadcast %cst_114 : f32 to vector<3x1024xf32>
    %218 = arith.select %216, %214, %217 : vector<3x1024xi1>, vector<3x1024xf32>
    %c117 = arith.constant 117 : index
    %c0_115 = arith.constant 0 : index
    %219 = vector.load %arg12[%c117, %c0_115] : memref<200x1024xf32, #tpu.memory_space<vmem>>, vector<3x1024xf32>
    tpu.vector_store %arg12[%c117, %c0_115], %218 {strides = array<i32>} : memref<200x1024xf32, #tpu.memory_space<vmem>>, vector<3x1024xf32>,
    %c0_116 = arith.constant 0 : index
    %c0_117 = arith.constant 0 : index
    %c162 = arith.constant 162 : index
    %220 = vector.load %arg2[%c0_116, %c0_117, %c162] : memref<1x3x1280xf32, #tpu.memory_space<vmem>>, vector<1x3x1024xf32>
    %221 = vector.shape_cast %220 : vector<1x3x1024xf32> to vector<3x1024xf32>
    %cst_118 = arith.constant 0.000000e+00 : f32
    %222 = vector.shape_cast %198 : vector<1x1024xi1> to vector<1x1024xi1>
    %223 = vector.broadcast %222 : vector<1x1024xi1> to vector<3x1024xi1>
    %224 = vector.broadcast %cst_118 : f32 to vector<3x1024xf32>
    %225 = arith.select %223, %221, %224 : vector<3x1024xi1>, vector<3x1024xf32>
    %c157 = arith.constant 157 : index
    %c0_119 = arith.constant 0 : index
    %226 = vector.load %arg12[%c157, %c0_119] : memref<200x1024xf32, #tpu.memory_space<vmem>>, vector<3x1024xf32>
    tpu.vector_store %arg12[%c157, %c0_119], %225 {strides = array<i32>} : memref<200x1024xf32, #tpu.memory_space<vmem>>, vector<3x1024xf32>,
    %c0_120 = arith.constant 0 : index
    %c0_121 = arith.constant 0 : index
    %c194 = arith.constant 194 : index
    %227 = vector.load %arg2[%c0_120, %c0_121, %c194] : memref<1x3x1280xf32, #tpu.memory_space<vmem>>, vector<1x3x1024xf32>
    %228 = vector.shape_cast %227 : vector<1x3x1024xf32> to vector<3x1024xf32>
    %cst_122 = arith.constant 0.000000e+00 : f32
    %229 = vector.shape_cast %198 : vector<1x1024xi1> to vector<1x1024xi1>
    %230 = vector.broadcast %229 : vector<1x1024xi1> to vector<3x1024xi1>
    %231 = vector.broadcast %cst_122 : f32 to vector<3x1024xf32>
    %232 = arith.select %230, %228, %231 : vector<3x1024xi1>, vector<3x1024xf32>
    %c197 = arith.constant 197 : index
    %c0_123 = arith.constant 0 : index
    %233 = vector.load %arg12[%c197, %c0_123] : memref<200x1024xf32, #tpu.memory_space<vmem>>, vector<3x1024xf32>
    tpu.vector_store %arg12[%c197, %c0_123], %232 {strides = array<i32>} : memref<200x1024xf32, #tpu.memory_space<vmem>>, vector<3x1024xf32>,
    %c1_i32_124 = arith.constant 1 : i32
    %c0_125 = arith.constant 0 : index
    %234 = memref.load %arg14[%c0_125] : memref<1xi32, #tpu.memory_space<smem>>
    memref.store %c1_i32_124, %arg14[%c0_125] : memref<1xi32, #tpu.memory_space<smem>>
    %c0_i32_126 = arith.constant 0 : i32
    %c0_127 = arith.constant 0 : index
    %235 = memref.load %arg14[%c0_127] : memref<1xi32, #tpu.memory_space<smem>>
    %c0_i32_128 = arith.constant 0 : i32
    %236 = arith.cmpi sgt, %235, %c0_i32_128 : i32
    %237 = arith.extui %236 : i1 to i32
    %c0_i32_129 = arith.constant 0 : i32
    %238 = arith.cmpi ne, %237, %c0_i32_129 : i32
    scf.if %238 {
      %243 = tpu.iota {dimensions = array<i32: 1>} : vector<1x1024xi32>
      %c32_i32_135 = arith.constant 32 : i32
      %c0_i32_136 = arith.constant 0 : i32
      %244 = arith.cmpi eq, %c32_i32_135, %c0_i32_136 : i32
      %c1_i32_137 = arith.constant 1 : i32
      %245 = arith.select %244, %c1_i32_137, %c32_i32_135 : i32
      %246 = vector.broadcast %245 : i32 to vector<1x1024xi32>
      %247 = arith.remsi %243, %246 : vector<1x1024xi32>
      %c0_i32_138 = arith.constant 0 : i32
      %248 = vector.broadcast %c0_i32_138 : i32 to vector<1x1024xi32>
      %249 = arith.cmpi ne, %247, %248 : vector<1x1024xi32>
      %c0_i32_139 = arith.constant 0 : i32
      %250 = vector.broadcast %c0_i32_139 : i32 to vector<1x1024xi32>
      %251 = arith.cmpi slt, %247, %250 : vector<1x1024xi32>
      %c0_i32_140 = arith.constant 0 : i32
      %252 = arith.cmpi slt, %245, %c0_i32_140 : i32
      %253 = vector.broadcast %252 : i1 to vector<1x1024xi1>
      %254 = vector.broadcast %253 : vector<1x1024xi1> to vector<1x1024xi1>
      %255 = arith.xori %251, %254 : vector<1x1024xi1>
      %256 = arith.andi %255, %249 : vector<1x1024xi1>
      %257 = vector.broadcast %245 : i32 to vector<1x1024xi32>
      %258 = arith.addi %247, %257 : vector<1x1024xi32>
      %259 = arith.select %256, %258, %247 : vector<1x1024xi1>, vector<1x1024xi32>
      %c-2_i32_141 = arith.constant -2 : i32
      %260 = vector.broadcast %c-2_i32_141 : i32 to vector<1x1024xi32>
      %261 = arith.addi %259, %260 : vector<1x1024xi32>
      %c0_i32_142 = arith.constant 0 : i32
      %262 = vector.broadcast %c0_i32_142 : i32 to vector<1x1024xi32>
      %263 = arith.cmpi sge, %261, %262 : vector<1x1024xi32>
      %c32_i32_143 = arith.constant 32 : i32
      %264 = vector.broadcast %c32_i32_143 : i32 to vector<1x1024xi32>
      %265 = arith.cmpi slt, %261, %264 : vector<1x1024xi32>
      %266 = arith.andi %263, %265 : vector<1x1024xi1>
      %c0_144 = arith.constant 0 : index
      %c62_145 = arith.constant 62 : index
      %267 = vector.load %arg10[%c0_144, %c62_145] : memref<5x1280xf32, #tpu.memory_space<vmem>>, vector<5x1024xf32>
      %cst_146 = arith.constant 0.000000e+00 : f32
      %268 = vector.shape_cast %266 : vector<1x1024xi1> to vector<1x1024xi1>
      %269 = vector.broadcast %268 : vector<1x1024xi1> to vector<5x1024xi1>
      %270 = vector.broadcast %cst_146 : f32 to vector<5x1024xf32>
      %271 = arith.select %269, %267, %270 : vector<5x1024xi1>, vector<5x1024xf32>
      %c0_147 = arith.constant 0 : index
      %c0_148 = arith.constant 0 : index
      %272 = vector.load %arg12[%c0_147, %c0_148] : memref<200x1024xf32, #tpu.memory_space<vmem>>, vector<5x1024xf32>
      tpu.vector_store %arg12[%c0_147, %c0_148], %271 {strides = array<i32>} : memref<200x1024xf32, #tpu.memory_space<vmem>>, vector<5x1024xf32>,
      %c0_149 = arith.constant 0 : index
      %c94_150 = arith.constant 94 : index
      %273 = vector.load %arg10[%c0_149, %c94_150] : memref<5x1280xf32, #tpu.memory_space<vmem>>, vector<5x1024xf32>
      %cst_151 = arith.constant 0.000000e+00 : f32
      %274 = vector.shape_cast %266 : vector<1x1024xi1> to vector<1x1024xi1>
      %275 = vector.broadcast %274 : vector<1x1024xi1> to vector<5x1024xi1>
      %276 = vector.broadcast %cst_151 : f32 to vector<5x1024xf32>
      %277 = arith.select %275, %273, %276 : vector<5x1024xi1>, vector<5x1024xf32>
      %c40 = arith.constant 40 : index
      %c0_152 = arith.constant 0 : index
      %278 = vector.load %arg12[%c40, %c0_152] : memref<200x1024xf32, #tpu.memory_space<vmem>>, vector<5x1024xf32>
      tpu.vector_store %arg12[%c40, %c0_152], %277 {strides = array<i32>} : memref<200x1024xf32, #tpu.memory_space<vmem>>, vector<5x1024xf32>,
      %c0_153 = arith.constant 0 : index
      %c126_154 = arith.constant 126 : index
      %279 = vector.load %arg10[%c0_153, %c126_154] : memref<5x1280xf32, #tpu.memory_space<vmem>>, vector<5x1024xf32>
      %cst_155 = arith.constant 0.000000e+00 : f32
      %280 = vector.shape_cast %266 : vector<1x1024xi1> to vector<1x1024xi1>
      %281 = vector.broadcast %280 : vector<1x1024xi1> to vector<5x1024xi1>
      %282 = vector.broadcast %cst_155 : f32 to vector<5x1024xf32>
      %283 = arith.select %281, %279, %282 : vector<5x1024xi1>, vector<5x1024xf32>
      %c80 = arith.constant 80 : index
      %c0_156 = arith.constant 0 : index
      %284 = vector.load %arg12[%c80, %c0_156] : memref<200x1024xf32, #tpu.memory_space<vmem>>, vector<5x1024xf32>
      tpu.vector_store %arg12[%c80, %c0_156], %283 {strides = array<i32>} : memref<200x1024xf32, #tpu.memory_space<vmem>>, vector<5x1024xf32>,
      %c0_157 = arith.constant 0 : index
      %c158_158 = arith.constant 158 : index
      %285 = vector.load %arg10[%c0_157, %c158_158] : memref<5x1280xf32, #tpu.memory_space<vmem>>, vector<5x1024xf32>
      %cst_159 = arith.constant 0.000000e+00 : f32
      %286 = vector.shape_cast %266 : vector<1x1024xi1> to vector<1x1024xi1>
      %287 = vector.broadcast %286 : vector<1x1024xi1> to vector<5x1024xi1>
      %288 = vector.broadcast %cst_159 : f32 to vector<5x1024xf32>
      %289 = arith.select %287, %285, %288 : vector<5x1024xi1>, vector<5x1024xf32>
      %c120 = arith.constant 120 : index
      %c0_160 = arith.constant 0 : index
      %290 = vector.load %arg12[%c120, %c0_160] : memref<200x1024xf32, #tpu.memory_space<vmem>>, vector<5x1024xf32>
      tpu.vector_store %arg12[%c120, %c0_160], %289 {strides = array<i32>} : memref<200x1024xf32, #tpu.memory_space<vmem>>, vector<5x1024xf32>,
      %c0_161 = arith.constant 0 : index
      %c190_162 = arith.constant 190 : index
      %291 = vector.load %arg10[%c0_161, %c190_162] : memref<5x1280xf32, #tpu.memory_space<vmem>>, vector<5x1024xf32>
      %cst_163 = arith.constant 0.000000e+00 : f32
      %292 = vector.shape_cast %266 : vector<1x1024xi1> to vector<1x1024xi1>
      %293 = vector.broadcast %292 : vector<1x1024xi1> to vector<5x1024xi1>
      %294 = vector.broadcast %cst_163 : f32 to vector<5x1024xf32>
      %295 = arith.select %293, %291, %294 : vector<5x1024xi1>, vector<5x1024xf32>
      %c160_164 = arith.constant 160 : index
      %c0_165 = arith.constant 0 : index
      %296 = vector.load %arg12[%c160_164, %c0_165] : memref<200x1024xf32, #tpu.memory_space<vmem>>, vector<5x1024xf32>
      tpu.vector_store %arg12[%c160_164, %c0_165], %295 {strides = array<i32>} : memref<200x1024xf32, #tpu.memory_space<vmem>>, vector<5x1024xf32>,
      %c-1_i32_166 = arith.constant -1 : i32
      %297 = vector.broadcast %c-1_i32_166 : i32 to vector<1x1024xi32>
      %298 = arith.addi %259, %297 : vector<1x1024xi32>
      %c0_i32_167 = arith.constant 0 : i32
      %299 = vector.broadcast %c0_i32_167 : i32 to vector<1x1024xi32>
      %300 = arith.cmpi sge, %298, %299 : vector<1x1024xi32>
      %c32_i32_168 = arith.constant 32 : i32
      %301 = vector.broadcast %c32_i32_168 : i32 to vector<1x1024xi32>
      %302 = arith.cmpi slt, %298, %301 : vector<1x1024xi32>
      %303 = arith.andi %300, %302 : vector<1x1024xi1>
      %c0_169 = arith.constant 0 : index
      %c63_170 = arith.constant 63 : index
      %304 = vector.load %arg10[%c0_169, %c63_170] : memref<5x1280xf32, #tpu.memory_space<vmem>>, vector<5x1024xf32>
      %cst_171 = arith.constant 0.000000e+00 : f32
      %305 = vector.shape_cast %303 : vector<1x1024xi1> to vector<1x1024xi1>
      %306 = vector.broadcast %305 : vector<1x1024xi1> to vector<5x1024xi1>
      %307 = vector.broadcast %cst_171 : f32 to vector<5x1024xf32>
      %308 = arith.select %306, %304, %307 : vector<5x1024xi1>, vector<5x1024xf32>
      %c8 = arith.constant 8 : index
      %c0_172 = arith.constant 0 : index
      %309 = vector.load %arg12[%c8, %c0_172] : memref<200x1024xf32, #tpu.memory_space<vmem>>, vector<5x1024xf32>
      tpu.vector_store %arg12[%c8, %c0_172], %308 {strides = array<i32>} : memref<200x1024xf32, #tpu.memory_space<vmem>>, vector<5x1024xf32>,
      %c0_173 = arith.constant 0 : index
      %c95_174 = arith.constant 95 : index
      %310 = vector.load %arg10[%c0_173, %c95_174] : memref<5x1280xf32, #tpu.memory_space<vmem>>, vector<5x1024xf32>
      %cst_175 = arith.constant 0.000000e+00 : f32
      %311 = vector.shape_cast %303 : vector<1x1024xi1> to vector<1x1024xi1>
      %312 = vector.broadcast %311 : vector<1x1024xi1> to vector<5x1024xi1>
      %313 = vector.broadcast %cst_175 : f32 to vector<5x1024xf32>
      %314 = arith.select %312, %310, %313 : vector<5x1024xi1>, vector<5x1024xf32>
      %c48 = arith.constant 48 : index
      %c0_176 = arith.constant 0 : index
      %315 = vector.load %arg12[%c48, %c0_176] : memref<200x1024xf32, #tpu.memory_space<vmem>>, vector<5x1024xf32>
      tpu.vector_store %arg12[%c48, %c0_176], %314 {strides = array<i32>} : memref<200x1024xf32, #tpu.memory_space<vmem>>, vector<5x1024xf32>,
      %c0_177 = arith.constant 0 : index
      %c127_178 = arith.constant 127 : index
      %316 = vector.load %arg10[%c0_177, %c127_178] : memref<5x1280xf32, #tpu.memory_space<vmem>>, vector<5x1024xf32>
      %cst_179 = arith.constant 0.000000e+00 : f32
      %317 = vector.shape_cast %303 : vector<1x1024xi1> to vector<1x1024xi1>
      %318 = vector.broadcast %317 : vector<1x1024xi1> to vector<5x1024xi1>
      %319 = vector.broadcast %cst_179 : f32 to vector<5x1024xf32>
      %320 = arith.select %318, %316, %319 : vector<5x1024xi1>, vector<5x1024xf32>
      %c88 = arith.constant 88 : index
      %c0_180 = arith.constant 0 : index
      %321 = vector.load %arg12[%c88, %c0_180] : memref<200x1024xf32, #tpu.memory_space<vmem>>, vector<5x1024xf32>
      tpu.vector_store %arg12[%c88, %c0_180], %320 {strides = array<i32>} : memref<200x1024xf32, #tpu.memory_space<vmem>>, vector<5x1024xf32>,
      %c0_181 = arith.constant 0 : index
      %c159_182 = arith.constant 159 : index
      %322 = vector.load %arg10[%c0_181, %c159_182] : memref<5x1280xf32, #tpu.memory_space<vmem>>, vector<5x1024xf32>
      %cst_183 = arith.constant 0.000000e+00 : f32
      %323 = vector.shape_cast %303 : vector<1x1024xi1> to vector<1x1024xi1>
      %324 = vector.broadcast %323 : vector<1x1024xi1> to vector<5x1024xi1>
      %325 = vector.broadcast %cst_183 : f32 to vector<5x1024xf32>
      %326 = arith.select %324, %322, %325 : vector<5x1024xi1>, vector<5x1024xf32>
      %c128_184 = arith.constant 128 : index
      %c0_185 = arith.constant 0 : index
      %327 = vector.load %arg12[%c128_184, %c0_185] : memref<200x1024xf32, #tpu.memory_space<vmem>>, vector<5x1024xf32>
      tpu.vector_store %arg12[%c128_184, %c0_185], %326 {strides = array<i32>} : memref<200x1024xf32, #tpu.memory_space<vmem>>, vector<5x1024xf32>,
      %c0_186 = arith.constant 0 : index
      %c191_187 = arith.constant 191 : index
      %328 = vector.load %arg10[%c0_186, %c191_187] : memref<5x1280xf32, #tpu.memory_space<vmem>>, vector<5x1024xf32>
      %cst_188 = arith.constant 0.000000e+00 : f32
      %329 = vector.shape_cast %303 : vector<1x1024xi1> to vector<1x1024xi1>
      %330 = vector.broadcast %329 : vector<1x1024xi1> to vector<5x1024xi1>
      %331 = vector.broadcast %cst_188 : f32 to vector<5x1024xf32>
      %332 = arith.select %330, %328, %331 : vector<5x1024xi1>, vector<5x1024xf32>
      %c168 = arith.constant 168 : index
      %c0_189 = arith.constant 0 : index
      %333 = vector.load %arg12[%c168, %c0_189] : memref<200x1024xf32, #tpu.memory_space<vmem>>, vector<5x1024xf32>
      tpu.vector_store %arg12[%c168, %c0_189], %332 {strides = array<i32>} : memref<200x1024xf32, #tpu.memory_space<vmem>>, vector<5x1024xf32>,
      %c0_i32_190 = arith.constant 0 : i32
      %334 = vector.broadcast %c0_i32_190 : i32 to vector<1x1024xi32>
      %335 = arith.addi %259, %334 : vector<1x1024xi32>
      %c0_i32_191 = arith.constant 0 : i32
      %336 = vector.broadcast %c0_i32_191 : i32 to vector<1x1024xi32>
      %337 = arith.cmpi sge, %335, %336 : vector<1x1024xi32>
      %c32_i32_192 = arith.constant 32 : i32
      %338 = vector.broadcast %c32_i32_192 : i32 to vector<1x1024xi32>
      %339 = arith.cmpi slt, %335, %338 : vector<1x1024xi32>
      %340 = arith.andi %337, %339 : vector<1x1024xi1>
      %c0_193 = arith.constant 0 : index
      %c64_194 = arith.constant 64 : index
      %341 = vector.load %arg10[%c0_193, %c64_194] : memref<5x1280xf32, #tpu.memory_space<vmem>>, vector<5x1024xf32>
      %cst_195 = arith.constant 0.000000e+00 : f32
      %342 = vector.shape_cast %340 : vector<1x1024xi1> to vector<1x1024xi1>
      %343 = vector.broadcast %342 : vector<1x1024xi1> to vector<5x1024xi1>
      %344 = vector.broadcast %cst_195 : f32 to vector<5x1024xf32>
      %345 = arith.select %343, %341, %344 : vector<5x1024xi1>, vector<5x1024xf32>
      %c16 = arith.constant 16 : index
      %c0_196 = arith.constant 0 : index
      %346 = vector.load %arg12[%c16, %c0_196] : memref<200x1024xf32, #tpu.memory_space<vmem>>, vector<5x1024xf32>
      tpu.vector_store %arg12[%c16, %c0_196], %345 {strides = array<i32>} : memref<200x1024xf32, #tpu.memory_space<vmem>>, vector<5x1024xf32>,
      %c0_197 = arith.constant 0 : index
      %c96_198 = arith.constant 96 : index
      %347 = vector.load %arg10[%c0_197, %c96_198] : memref<5x1280xf32, #tpu.memory_space<vmem>>, vector<5x1024xf32>
      %cst_199 = arith.constant 0.000000e+00 : f32
      %348 = vector.shape_cast %340 : vector<1x1024xi1> to vector<1x1024xi1>
      %349 = vector.broadcast %348 : vector<1x1024xi1> to vector<5x1024xi1>
      %350 = vector.broadcast %cst_199 : f32 to vector<5x1024xf32>
      %351 = arith.select %349, %347, %350 : vector<5x1024xi1>, vector<5x1024xf32>
      %c56 = arith.constant 56 : index
      %c0_200 = arith.constant 0 : index
      %352 = vector.load %arg12[%c56, %c0_200] : memref<200x1024xf32, #tpu.memory_space<vmem>>, vector<5x1024xf32>
      tpu.vector_store %arg12[%c56, %c0_200], %351 {strides = array<i32>} : memref<200x1024xf32, #tpu.memory_space<vmem>>, vector<5x1024xf32>,
      %c0_201 = arith.constant 0 : index
      %c128_202 = arith.constant 128 : index
      %353 = vector.load %arg10[%c0_201, %c128_202] : memref<5x1280xf32, #tpu.memory_space<vmem>>, vector<5x1024xf32>
      %cst_203 = arith.constant 0.000000e+00 : f32
      %354 = vector.shape_cast %340 : vector<1x1024xi1> to vector<1x1024xi1>
      %355 = vector.broadcast %354 : vector<1x1024xi1> to vector<5x1024xi1>
      %356 = vector.broadcast %cst_203 : f32 to vector<5x1024xf32>
      %357 = arith.select %355, %353, %356 : vector<5x1024xi1>, vector<5x1024xf32>
      %c96_204 = arith.constant 96 : index
      %c0_205 = arith.constant 0 : index
      %358 = vector.load %arg12[%c96_204, %c0_205] : memref<200x1024xf32, #tpu.memory_space<vmem>>, vector<5x1024xf32>
      tpu.vector_store %arg12[%c96_204, %c0_205], %357 {strides = array<i32>} : memref<200x1024xf32, #tpu.memory_space<vmem>>, vector<5x1024xf32>,
      %c0_206 = arith.constant 0 : index
      %c160_207 = arith.constant 160 : index
      %359 = vector.load %arg10[%c0_206, %c160_207] : memref<5x1280xf32, #tpu.memory_space<vmem>>, vector<5x1024xf32>
      %cst_208 = arith.constant 0.000000e+00 : f32
      %360 = vector.shape_cast %340 : vector<1x1024xi1> to vector<1x1024xi1>
      %361 = vector.broadcast %360 : vector<1x1024xi1> to vector<5x1024xi1>
      %362 = vector.broadcast %cst_208 : f32 to vector<5x1024xf32>
      %363 = arith.select %361, %359, %362 : vector<5x1024xi1>, vector<5x1024xf32>
      %c136 = arith.constant 136 : index
      %c0_209 = arith.constant 0 : index
      %364 = vector.load %arg12[%c136, %c0_209] : memref<200x1024xf32, #tpu.memory_space<vmem>>, vector<5x1024xf32>
      tpu.vector_store %arg12[%c136, %c0_209], %363 {strides = array<i32>} : memref<200x1024xf32, #tpu.memory_space<vmem>>, vector<5x1024xf32>,
      %c0_210 = arith.constant 0 : index
      %c192_211 = arith.constant 192 : index
      %365 = vector.load %arg10[%c0_210, %c192_211] : memref<5x1280xf32, #tpu.memory_space<vmem>>, vector<5x1024xf32>
      %cst_212 = arith.constant 0.000000e+00 : f32
      %366 = vector.shape_cast %340 : vector<1x1024xi1> to vector<1x1024xi1>
      %367 = vector.broadcast %366 : vector<1x1024xi1> to vector<5x1024xi1>
      %368 = vector.broadcast %cst_212 : f32 to vector<5x1024xf32>
      %369 = arith.select %367, %365, %368 : vector<5x1024xi1>, vector<5x1024xf32>
      %c176 = arith.constant 176 : index
      %c0_213 = arith.constant 0 : index
      %370 = vector.load %arg12[%c176, %c0_213] : memref<200x1024xf32, #tpu.memory_space<vmem>>, vector<5x1024xf32>
      tpu.vector_store %arg12[%c176, %c0_213], %369 {strides = array<i32>} : memref<200x1024xf32, #tpu.memory_space<vmem>>, vector<5x1024xf32>,
      %c1_i32_214 = arith.constant 1 : i32
      %371 = vector.broadcast %c1_i32_214 : i32 to vector<1x1024xi32>
      %372 = arith.addi %259, %371 : vector<1x1024xi32>
      %c0_i32_215 = arith.constant 0 : i32
      %373 = vector.broadcast %c0_i32_215 : i32 to vector<1x1024xi32>
      %374 = arith.cmpi sge, %372, %373 : vector<1x1024xi32>
      %c32_i32_216 = arith.constant 32 : i32
      %375 = vector.broadcast %c32_i32_216 : i32 to vector<1x1024xi32>
      %376 = arith.cmpi slt, %372, %375 : vector<1x1024xi32>
      %377 = arith.andi %374, %376 : vector<1x1024xi1>
      %c0_217 = arith.constant 0 : index
      %c65_218 = arith.constant 65 : index
      %378 = vector.load %arg10[%c0_217, %c65_218] : memref<5x1280xf32, #tpu.memory_space<vmem>>, vector<5x1024xf32>
      %cst_219 = arith.constant 0.000000e+00 : f32
      %379 = vector.shape_cast %377 : vector<1x1024xi1> to vector<1x1024xi1>
      %380 = vector.broadcast %379 : vector<1x1024xi1> to vector<5x1024xi1>
      %381 = vector.broadcast %cst_219 : f32 to vector<5x1024xf32>
      %382 = arith.select %380, %378, %381 : vector<5x1024xi1>, vector<5x1024xf32>
      %c24 = arith.constant 24 : index
      %c0_220 = arith.constant 0 : index
      %383 = vector.load %arg12[%c24, %c0_220] : memref<200x1024xf32, #tpu.memory_space<vmem>>, vector<5x1024xf32>
      tpu.vector_store %arg12[%c24, %c0_220], %382 {strides = array<i32>} : memref<200x1024xf32, #tpu.memory_space<vmem>>, vector<5x1024xf32>,
      %c0_221 = arith.constant 0 : index
      %c97_222 = arith.constant 97 : index
      %384 = vector.load %arg10[%c0_221, %c97_222] : memref<5x1280xf32, #tpu.memory_space<vmem>>, vector<5x1024xf32>
      %cst_223 = arith.constant 0.000000e+00 : f32
      %385 = vector.shape_cast %377 : vector<1x1024xi1> to vector<1x1024xi1>
      %386 = vector.broadcast %385 : vector<1x1024xi1> to vector<5x1024xi1>
      %387 = vector.broadcast %cst_223 : f32 to vector<5x1024xf32>
      %388 = arith.select %386, %384, %387 : vector<5x1024xi1>, vector<5x1024xf32>
      %c64_224 = arith.constant 64 : index
      %c0_225 = arith.constant 0 : index
      %389 = vector.load %arg12[%c64_224, %c0_225] : memref<200x1024xf32, #tpu.memory_space<vmem>>, vector<5x1024xf32>
      tpu.vector_store %arg12[%c64_224, %c0_225], %388 {strides = array<i32>} : memref<200x1024xf32, #tpu.memory_space<vmem>>, vector<5x1024xf32>,
      %c0_226 = arith.constant 0 : index
      %c129_227 = arith.constant 129 : index
      %390 = vector.load %arg10[%c0_226, %c129_227] : memref<5x1280xf32, #tpu.memory_space<vmem>>, vector<5x1024xf32>
      %cst_228 = arith.constant 0.000000e+00 : f32
      %391 = vector.shape_cast %377 : vector<1x1024xi1> to vector<1x1024xi1>
      %392 = vector.broadcast %391 : vector<1x1024xi1> to vector<5x1024xi1>
      %393 = vector.broadcast %cst_228 : f32 to vector<5x1024xf32>
      %394 = arith.select %392, %390, %393 : vector<5x1024xi1>, vector<5x1024xf32>
      %c104 = arith.constant 104 : index
      %c0_229 = arith.constant 0 : index
      %395 = vector.load %arg12[%c104, %c0_229] : memref<200x1024xf32, #tpu.memory_space<vmem>>, vector<5x1024xf32>
      tpu.vector_store %arg12[%c104, %c0_229], %394 {strides = array<i32>} : memref<200x1024xf32, #tpu.memory_space<vmem>>, vector<5x1024xf32>,
      %c0_230 = arith.constant 0 : index
      %c161_231 = arith.constant 161 : index
      %396 = vector.load %arg10[%c0_230, %c161_231] : memref<5x1280xf32, #tpu.memory_space<vmem>>, vector<5x1024xf32>
      %cst_232 = arith.constant 0.000000e+00 : f32
      %397 = vector.shape_cast %377 : vector<1x1024xi1> to vector<1x1024xi1>
      %398 = vector.broadcast %397 : vector<1x1024xi1> to vector<5x1024xi1>
      %399 = vector.broadcast %cst_232 : f32 to vector<5x1024xf32>
      %400 = arith.select %398, %396, %399 : vector<5x1024xi1>, vector<5x1024xf32>
      %c144 = arith.constant 144 : index
      %c0_233 = arith.constant 0 : index
      %401 = vector.load %arg12[%c144, %c0_233] : memref<200x1024xf32, #tpu.memory_space<vmem>>, vector<5x1024xf32>
      tpu.vector_store %arg12[%c144, %c0_233], %400 {strides = array<i32>} : memref<200x1024xf32, #tpu.memory_space<vmem>>, vector<5x1024xf32>,
      %c0_234 = arith.constant 0 : index
      %c193_235 = arith.constant 193 : index
      %402 = vector.load %arg10[%c0_234, %c193_235] : memref<5x1280xf32, #tpu.memory_space<vmem>>, vector<5x1024xf32>
      %cst_236 = arith.constant 0.000000e+00 : f32
      %403 = vector.shape_cast %377 : vector<1x1024xi1> to vector<1x1024xi1>
      %404 = vector.broadcast %403 : vector<1x1024xi1> to vector<5x1024xi1>
      %405 = vector.broadcast %cst_236 : f32 to vector<5x1024xf32>
      %406 = arith.select %404, %402, %405 : vector<5x1024xi1>, vector<5x1024xf32>
      %c184 = arith.constant 184 : index
      %c0_237 = arith.constant 0 : index
      %407 = vector.load %arg12[%c184, %c0_237] : memref<200x1024xf32, #tpu.memory_space<vmem>>, vector<5x1024xf32>
      tpu.vector_store %arg12[%c184, %c0_237], %406 {strides = array<i32>} : memref<200x1024xf32, #tpu.memory_space<vmem>>, vector<5x1024xf32>,
      %c2_i32_238 = arith.constant 2 : i32
      %408 = vector.broadcast %c2_i32_238 : i32 to vector<1x1024xi32>
      %409 = arith.addi %259, %408 : vector<1x1024xi32>
      %c0_i32_239 = arith.constant 0 : i32
      %410 = vector.broadcast %c0_i32_239 : i32 to vector<1x1024xi32>
      %411 = arith.cmpi sge, %409, %410 : vector<1x1024xi32>
      %c32_i32_240 = arith.constant 32 : i32
      %412 = vector.broadcast %c32_i32_240 : i32 to vector<1x1024xi32>
      %413 = arith.cmpi slt, %409, %412 : vector<1x1024xi32>
      %414 = arith.andi %411, %413 : vector<1x1024xi1>
      %c0_241 = arith.constant 0 : index
      %c66_242 = arith.constant 66 : index
      %415 = vector.load %arg10[%c0_241, %c66_242] : memref<5x1280xf32, #tpu.memory_space<vmem>>, vector<5x1024xf32>
      %cst_243 = arith.constant 0.000000e+00 : f32
      %416 = vector.shape_cast %414 : vector<1x1024xi1> to vector<1x1024xi1>
      %417 = vector.broadcast %416 : vector<1x1024xi1> to vector<5x1024xi1>
      %418 = vector.broadcast %cst_243 : f32 to vector<5x1024xf32>
      %419 = arith.select %417, %415, %418 : vector<5x1024xi1>, vector<5x1024xf32>
      %c32 = arith.constant 32 : index
      %c0_244 = arith.constant 0 : index
      %420 = vector.load %arg12[%c32, %c0_244] : memref<200x1024xf32, #tpu.memory_space<vmem>>, vector<5x1024xf32>
      tpu.vector_store %arg12[%c32, %c0_244], %419 {strides = array<i32>} : memref<200x1024xf32, #tpu.memory_space<vmem>>, vector<5x1024xf32>,
      %c0_245 = arith.constant 0 : index
      %c98_246 = arith.constant 98 : index
      %421 = vector.load %arg10[%c0_245, %c98_246] : memref<5x1280xf32, #tpu.memory_space<vmem>>, vector<5x1024xf32>
      %cst_247 = arith.constant 0.000000e+00 : f32
      %422 = vector.shape_cast %414 : vector<1x1024xi1> to vector<1x1024xi1>
      %423 = vector.broadcast %422 : vector<1x1024xi1> to vector<5x1024xi1>
      %424 = vector.broadcast %cst_247 : f32 to vector<5x1024xf32>
      %425 = arith.select %423, %421, %424 : vector<5x1024xi1>, vector<5x1024xf32>
      %c72 = arith.constant 72 : index
      %c0_248 = arith.constant 0 : index
      %426 = vector.load %arg12[%c72, %c0_248] : memref<200x1024xf32, #tpu.memory_space<vmem>>, vector<5x1024xf32>
      tpu.vector_store %arg12[%c72, %c0_248], %425 {strides = array<i32>} : memref<200x1024xf32, #tpu.memory_space<vmem>>, vector<5x1024xf32>,
      %c0_249 = arith.constant 0 : index
      %c130_250 = arith.constant 130 : index
      %427 = vector.load %arg10[%c0_249, %c130_250] : memref<5x1280xf32, #tpu.memory_space<vmem>>, vector<5x1024xf32>
      %cst_251 = arith.constant 0.000000e+00 : f32
      %428 = vector.shape_cast %414 : vector<1x1024xi1> to vector<1x1024xi1>
      %429 = vector.broadcast %428 : vector<1x1024xi1> to vector<5x1024xi1>
      %430 = vector.broadcast %cst_251 : f32 to vector<5x1024xf32>
      %431 = arith.select %429, %427, %430 : vector<5x1024xi1>, vector<5x1024xf32>
      %c112 = arith.constant 112 : index
      %c0_252 = arith.constant 0 : index
      %432 = vector.load %arg12[%c112, %c0_252] : memref<200x1024xf32, #tpu.memory_space<vmem>>, vector<5x1024xf32>
      tpu.vector_store %arg12[%c112, %c0_252], %431 {strides = array<i32>} : memref<200x1024xf32, #tpu.memory_space<vmem>>, vector<5x1024xf32>,
      %c0_253 = arith.constant 0 : index
      %c162_254 = arith.constant 162 : index
      %433 = vector.load %arg10[%c0_253, %c162_254] : memref<5x1280xf32, #tpu.memory_space<vmem>>, vector<5x1024xf32>
      %cst_255 = arith.constant 0.000000e+00 : f32
      %434 = vector.shape_cast %414 : vector<1x1024xi1> to vector<1x1024xi1>
      %435 = vector.broadcast %434 : vector<1x1024xi1> to vector<5x1024xi1>
      %436 = vector.broadcast %cst_255 : f32 to vector<5x1024xf32>
      %437 = arith.select %435, %433, %436 : vector<5x1024xi1>, vector<5x1024xf32>
      %c152 = arith.constant 152 : index
      %c0_256 = arith.constant 0 : index
      %438 = vector.load %arg12[%c152, %c0_256] : memref<200x1024xf32, #tpu.memory_space<vmem>>, vector<5x1024xf32>
      tpu.vector_store %arg12[%c152, %c0_256], %437 {strides = array<i32>} : memref<200x1024xf32, #tpu.memory_space<vmem>>, vector<5x1024xf32>,
      %c0_257 = arith.constant 0 : index
      %c194_258 = arith.constant 194 : index
      %439 = vector.load %arg10[%c0_257, %c194_258] : memref<5x1280xf32, #tpu.memory_space<vmem>>, vector<5x1024xf32>
      %cst_259 = arith.constant 0.000000e+00 : f32
      %440 = vector.shape_cast %414 : vector<1x1024xi1> to vector<1x1024xi1>
      %441 = vector.broadcast %440 : vector<1x1024xi1> to vector<5x1024xi1>
      %442 = vector.broadcast %cst_259 : f32 to vector<5x1024xf32>
      %443 = arith.select %441, %439, %442 : vector<5x1024xi1>, vector<5x1024xf32>
      %c192_260 = arith.constant 192 : index
      %c0_261 = arith.constant 0 : index
      %444 = vector.load %arg12[%c192_260, %c0_261] : memref<200x1024xf32, #tpu.memory_space<vmem>>, vector<5x1024xf32>
      tpu.vector_store %arg12[%c192_260, %c0_261], %443 {strides = array<i32>} : memref<200x1024xf32, #tpu.memory_space<vmem>>, vector<5x1024xf32>,
      %c0_262 = arith.constant 0 : index
      %c0_263 = arith.constant 0 : index
      %445 = vector.load %arg3[%c0_262, %c0_263] : memref<6x200xf32, #tpu.memory_space<vmem>>, vector<6x200xf32>
      %c0_264 = arith.constant 0 : index
      %c0_265 = arith.constant 0 : index
      %446 = vector.load %arg12[%c0_264, %c0_265] : memref<200x1024xf32, #tpu.memory_space<vmem>>, vector<200x1024xf32>
      %cst_266 = arith.constant dense<0.000000e+00> : vector<6x1024xf32>
      %447 = tpu.matmul %445, %446, %cst_266 {dimension_numbers = #tpu.dot_dimension_numbers<[1], [0], [0], [1], [0, 0, 1, 1], [], []>} : vector<6x200xf32>, vector<200x1024xf32>, vector<6x1024xf32> -> vector<6x1024xf32>
      %c0_267 = arith.constant 0 : index
      %c0_268 = arith.constant 0 : index
      %448 = vector.load %arg4[%c0_267, %c0_268] : memref<6x1xf32, #tpu.memory_space<vmem>>, vector<6x1xf32>
      %449 = vector.broadcast %448 : vector<6x1xf32> to vector<6x1024xf32>
      %450 = arith.addf %447, %449 : vector<6x1024xf32>
      %cst_269 = arith.constant 0.000000e+00 : f32
      %451 = vector.broadcast %cst_269 : f32 to vector<6x1024xf32>
      %452 = arith.cmpf oge, %450, %451 : vector<6x1024xf32>
      %cst_270 = arith.constant 0.00999999977 : f32
      %453 = vector.broadcast %cst_270 : f32 to vector<6x1024xf32>
      %454 = arith.mulf %453, %450 : vector<6x1024xf32>
      %455 = arith.select %452, %450, %454 : vector<6x1024xi1>, vector<6x1024xf32>
      %456 = vector.extract_strided_slice %455 {offsets = [0, 0], sizes = [2, 1024], strides = [1, 1]} : vector<6x1024xf32> to vector<2x1024xf32>
      %457 = vector.shape_cast %456 : vector<2x1024xf32> to vector<1x2x1024xf32>
      %cst_271 = arith.constant dense<0.000000e+00> : vector<1xf32>
      %458 = vector.multi_reduction <add>, %457, %cst_271 [1, 2] : vector<1x2x1024xf32> to vector<1xf32>
      %459 = vector.shape_cast %458 : vector<1xf32> to vector<1x1x1xf32>
      %460 = vector.extract %459[0, 0, 0] : f32 from vector<1x1x1xf32>
      %cst_272 = arith.constant 2.048000e+03 : f32
      %461 = arith.divf %460, %cst_272 : f32
      %462 = vector.broadcast %461 : f32 to vector<2x1024xf32>
      %463 = arith.subf %456, %462 : vector<2x1024xf32>
      %464 = arith.mulf %463, %463 : vector<2x1024xf32>
      %465 = vector.shape_cast %464 : vector<2x1024xf32> to vector<1x2x1024xf32>
      %cst_273 = arith.constant dense<0.000000e+00> : vector<1xf32>
      %466 = vector.multi_reduction <add>, %465, %cst_273 [1, 2] : vector<1x2x1024xf32> to vector<1xf32>
      %467 = vector.shape_cast %466 : vector<1xf32> to vector<1x1x1xf32>
      %468 = vector.extract %467[0, 0, 0] : f32 from vector<1x1x1xf32>
      %cst_274 = arith.constant 2.048000e+03 : f32
      %469 = arith.divf %468, %cst_274 : f32
      %470 = vector.broadcast %461 : f32 to vector<2x1024xf32>
      %471 = arith.subf %456, %470 : vector<2x1024xf32>
      %cst_275 = arith.constant 9.99999974E-6 : f32
      %472 = arith.addf %469, %cst_275 : f32
      %473 = math.rsqrt %472 : f32
      %474 = vector.broadcast %473 : f32 to vector<2x1024xf32>
      %475 = arith.mulf %471, %474 : vector<2x1024xf32>
      %c0_276 = arith.constant 0 : index
      %c0_277 = arith.constant 0 : index
      %476 = vector.load %arg5[%c0_276, %c0_277] : memref<6x1xf32, #tpu.memory_space<vmem>>, vector<2x1xf32>
      %477 = vector.broadcast %476 : vector<2x1xf32> to vector<2x1024xf32>
      %478 = arith.mulf %475, %477 : vector<2x1024xf32>
      %c0_278 = arith.constant 0 : index
      %c0_279 = arith.constant 0 : index
      %479 = vector.load %arg6[%c0_278, %c0_279] : memref<6x1xf32, #tpu.memory_space<vmem>>, vector<2x1xf32>
      %480 = vector.broadcast %479 : vector<2x1xf32> to vector<2x1024xf32>
      %481 = arith.addf %478, %480 : vector<2x1024xf32>
      %c0_280 = arith.constant 0 : index
      %c128_281 = arith.constant 128 : index
      %482 = vector.load %arg11[%c0_280, %c128_281] : memref<6x1280xf32, #tpu.memory_space<vmem>>, vector<2x1024xf32>
      tpu.vector_store %arg11[%c0_280, %c128_281], %481 {strides = array<i32>} : memref<6x1280xf32, #tpu.memory_space<vmem>>, vector<2x1024xf32>,
      %483 = vector.extract_strided_slice %455 {offsets = [2, 0], sizes = [2, 1024], strides = [1, 1]} : vector<6x1024xf32> to vector<2x1024xf32>
      %484 = vector.shape_cast %483 : vector<2x1024xf32> to vector<1x2x1024xf32>
      %cst_282 = arith.constant dense<0.000000e+00> : vector<1xf32>
      %485 = vector.multi_reduction <add>, %484, %cst_282 [1, 2] : vector<1x2x1024xf32> to vector<1xf32>
      %486 = vector.shape_cast %485 : vector<1xf32> to vector<1x1x1xf32>
      %487 = vector.extract %486[0, 0, 0] : f32 from vector<1x1x1xf32>
      %cst_283 = arith.constant 2.048000e+03 : f32
      %488 = arith.divf %487, %cst_283 : f32
      %489 = vector.broadcast %488 : f32 to vector<2x1024xf32>
      %490 = arith.subf %483, %489 : vector<2x1024xf32>
      %491 = arith.mulf %490, %490 : vector<2x1024xf32>
      %492 = vector.shape_cast %491 : vector<2x1024xf32> to vector<1x2x1024xf32>
      %cst_284 = arith.constant dense<0.000000e+00> : vector<1xf32>
      %493 = vector.multi_reduction <add>, %492, %cst_284 [1, 2] : vector<1x2x1024xf32> to vector<1xf32>
      %494 = vector.shape_cast %493 : vector<1xf32> to vector<1x1x1xf32>
      %495 = vector.extract %494[0, 0, 0] : f32 from vector<1x1x1xf32>
      %cst_285 = arith.constant 2.048000e+03 : f32
      %496 = arith.divf %495, %cst_285 : f32
      %497 = vector.broadcast %488 : f32 to vector<2x1024xf32>
      %498 = arith.subf %483, %497 : vector<2x1024xf32>
      %cst_286 = arith.constant 9.99999974E-6 : f32
      %499 = arith.addf %496, %cst_286 : f32
      %500 = math.rsqrt %499 : f32
      %501 = vector.broadcast %500 : f32 to vector<2x1024xf32>
      %502 = arith.mulf %498, %501 : vector<2x1024xf32>
      %c2 = arith.constant 2 : index
      %c0_287 = arith.constant 0 : index
      %503 = vector.load %arg5[%c2, %c0_287] : memref<6x1xf32, #tpu.memory_space<vmem>>, vector<2x1xf32>
      %504 = vector.broadcast %503 : vector<2x1xf32> to vector<2x1024xf32>
      %505 = arith.mulf %502, %504 : vector<2x1024xf32>
      %c2_288 = arith.constant 2 : index
      %c0_289 = arith.constant 0 : index
      %506 = vector.load %arg6[%c2_288, %c0_289] : memref<6x1xf32, #tpu.memory_space<vmem>>, vector<2x1xf32>
      %507 = vector.broadcast %506 : vector<2x1xf32> to vector<2x1024xf32>
      %508 = arith.addf %505, %507 : vector<2x1024xf32>
      %c2_290 = arith.constant 2 : index
      %c128_291 = arith.constant 128 : index
      %509 = vector.load %arg11[%c2_290, %c128_291] : memref<6x1280xf32, #tpu.memory_space<vmem>>, vector<2x1024xf32>
      tpu.vector_store %arg11[%c2_290, %c128_291], %508 {strides = array<i32>} : memref<6x1280xf32, #tpu.memory_space<vmem>>, vector<2x1024xf32>,
      %510 = vector.extract_strided_slice %455 {offsets = [4, 0], sizes = [2, 1024], strides = [1, 1]} : vector<6x1024xf32> to vector<2x1024xf32>
      %511 = vector.shape_cast %510 : vector<2x1024xf32> to vector<1x2x1024xf32>
      %cst_292 = arith.constant dense<0.000000e+00> : vector<1xf32>
      %512 = vector.multi_reduction <add>, %511, %cst_292 [1, 2] : vector<1x2x1024xf32> to vector<1xf32>
      %513 = vector.shape_cast %512 : vector<1xf32> to vector<1x1x1xf32>
      %514 = vector.extract %513[0, 0, 0] : f32 from vector<1x1x1xf32>
      %cst_293 = arith.constant 2.048000e+03 : f32
      %515 = arith.divf %514, %cst_293 : f32
      %516 = vector.broadcast %515 : f32 to vector<2x1024xf32>
      %517 = arith.subf %510, %516 : vector<2x1024xf32>
      %518 = arith.mulf %517, %517 : vector<2x1024xf32>
      %519 = vector.shape_cast %518 : vector<2x1024xf32> to vector<1x2x1024xf32>
      %cst_294 = arith.constant dense<0.000000e+00> : vector<1xf32>
      %520 = vector.multi_reduction <add>, %519, %cst_294 [1, 2] : vector<1x2x1024xf32> to vector<1xf32>
      %521 = vector.shape_cast %520 : vector<1xf32> to vector<1x1x1xf32>
      %522 = vector.extract %521[0, 0, 0] : f32 from vector<1x1x1xf32>
      %cst_295 = arith.constant 2.048000e+03 : f32
      %523 = arith.divf %522, %cst_295 : f32
      %524 = vector.broadcast %515 : f32 to vector<2x1024xf32>
      %525 = arith.subf %510, %524 : vector<2x1024xf32>
      %cst_296 = arith.constant 9.99999974E-6 : f32
      %526 = arith.addf %523, %cst_296 : f32
      %527 = math.rsqrt %526 : f32
      %528 = vector.broadcast %527 : f32 to vector<2x1024xf32>
      %529 = arith.mulf %525, %528 : vector<2x1024xf32>
      %c4 = arith.constant 4 : index
      %c0_297 = arith.constant 0 : index
      %530 = vector.load %arg5[%c4, %c0_297] : memref<6x1xf32, #tpu.memory_space<vmem>>, vector<2x1xf32>
      %531 = vector.broadcast %530 : vector<2x1xf32> to vector<2x1024xf32>
      %532 = arith.mulf %529, %531 : vector<2x1024xf32>
      %c4_298 = arith.constant 4 : index
      %c0_299 = arith.constant 0 : index
      %533 = vector.load %arg6[%c4_298, %c0_299] : memref<6x1xf32, #tpu.memory_space<vmem>>, vector<2x1xf32>
      %534 = vector.broadcast %533 : vector<2x1xf32> to vector<2x1024xf32>
      %535 = arith.addf %532, %534 : vector<2x1024xf32>
      %c4_300 = arith.constant 4 : index
      %c128_301 = arith.constant 128 : index
      %536 = vector.load %arg11[%c4_300, %c128_301] : memref<6x1280xf32, #tpu.memory_space<vmem>>, vector<2x1024xf32>
      tpu.vector_store %arg11[%c4_300, %c128_301], %535 {strides = array<i32>} : memref<6x1280xf32, #tpu.memory_space<vmem>>, vector<2x1024xf32>,
      %537 = tpu.iota {dimensions = array<i32: 1>} : vector<1x1024xi32>
      %c32_i32_302 = arith.constant 32 : i32
      %c0_i32_303 = arith.constant 0 : i32
      %538 = arith.cmpi eq, %c32_i32_302, %c0_i32_303 : i32
      %c1_i32_304 = arith.constant 1 : i32
      %539 = arith.select %538, %c1_i32_304, %c32_i32_302 : i32
      %540 = vector.broadcast %539 : i32 to vector<1x1024xi32>
      %541 = arith.remsi %537, %540 : vector<1x1024xi32>
      %c0_i32_305 = arith.constant 0 : i32
      %542 = vector.broadcast %c0_i32_305 : i32 to vector<1x1024xi32>
      %543 = arith.cmpi ne, %541, %542 : vector<1x1024xi32>
      %c0_i32_306 = arith.constant 0 : i32
      %544 = vector.broadcast %c0_i32_306 : i32 to vector<1x1024xi32>
      %545 = arith.cmpi slt, %541, %544 : vector<1x1024xi32>
      %c0_i32_307 = arith.constant 0 : i32
      %546 = arith.cmpi slt, %539, %c0_i32_307 : i32
      %547 = vector.broadcast %546 : i1 to vector<1x1024xi1>
      %548 = vector.broadcast %547 : vector<1x1024xi1> to vector<1x1024xi1>
      %549 = arith.xori %545, %548 : vector<1x1024xi1>
      %550 = arith.andi %549, %543 : vector<1x1024xi1>
      %551 = vector.broadcast %539 : i32 to vector<1x1024xi32>
      %552 = arith.addi %541, %551 : vector<1x1024xi32>
      %553 = arith.select %550, %552, %541 : vector<1x1024xi1>, vector<1x1024xi32>
      %c-2_i32_308 = arith.constant -2 : i32
      %554 = vector.broadcast %c-2_i32_308 : i32 to vector<1x1024xi32>
      %555 = arith.addi %553, %554 : vector<1x1024xi32>
      %c0_i32_309 = arith.constant 0 : i32
      %556 = vector.broadcast %c0_i32_309 : i32 to vector<1x1024xi32>
      %557 = arith.cmpi sge, %555, %556 : vector<1x1024xi32>
      %c32_i32_310 = arith.constant 32 : i32
      %558 = vector.broadcast %c32_i32_310 : i32 to vector<1x1024xi32>
      %559 = arith.cmpi slt, %555, %558 : vector<1x1024xi32>
      %560 = arith.andi %557, %559 : vector<1x1024xi1>
      %c0_311 = arith.constant 0 : index
      %c62_312 = arith.constant 62 : index
      %561 = vector.load %arg11[%c0_311, %c62_312] : memref<6x1280xf32, #tpu.memory_space<vmem>>, vector<6x1024xf32>
      %cst_313 = arith.constant 0.000000e+00 : f32
      %562 = vector.shape_cast %560 : vector<1x1024xi1> to vector<1x1024xi1>
      %563 = vector.broadcast %562 : vector<1x1024xi1> to vector<6x1024xi1>
      %564 = vector.broadcast %cst_313 : f32 to vector<6x1024xf32>
      %565 = arith.select %563, %561, %564 : vector<6x1024xi1>, vector<6x1024xf32>
      %c0_314 = arith.constant 0 : index
      %c0_315 = arith.constant 0 : index
      %566 = vector.load %arg13[%c0_314, %c0_315] : memref<200x1024xf32, #tpu.memory_space<vmem>>, vector<6x1024xf32>
      tpu.vector_store %arg13[%c0_314, %c0_315], %565 {strides = array<i32>} : memref<200x1024xf32, #tpu.memory_space<vmem>>, vector<6x1024xf32>,
      %c0_316 = arith.constant 0 : index
      %c94_317 = arith.constant 94 : index
      %567 = vector.load %arg11[%c0_316, %c94_317] : memref<6x1280xf32, #tpu.memory_space<vmem>>, vector<6x1024xf32>
      %cst_318 = arith.constant 0.000000e+00 : f32
      %568 = vector.shape_cast %560 : vector<1x1024xi1> to vector<1x1024xi1>
      %569 = vector.broadcast %568 : vector<1x1024xi1> to vector<6x1024xi1>
      %570 = vector.broadcast %cst_318 : f32 to vector<6x1024xf32>
      %571 = arith.select %569, %567, %570 : vector<6x1024xi1>, vector<6x1024xf32>
      %c40_319 = arith.constant 40 : index
      %c0_320 = arith.constant 0 : index
      %572 = vector.load %arg13[%c40_319, %c0_320] : memref<200x1024xf32, #tpu.memory_space<vmem>>, vector<6x1024xf32>
      tpu.vector_store %arg13[%c40_319, %c0_320], %571 {strides = array<i32>} : memref<200x1024xf32, #tpu.memory_space<vmem>>, vector<6x1024xf32>,
      %c0_321 = arith.constant 0 : index
      %c126_322 = arith.constant 126 : index
      %573 = vector.load %arg11[%c0_321, %c126_322] : memref<6x1280xf32, #tpu.memory_space<vmem>>, vector<6x1024xf32>
      %cst_323 = arith.constant 0.000000e+00 : f32
      %574 = vector.shape_cast %560 : vector<1x1024xi1> to vector<1x1024xi1>
      %575 = vector.broadcast %574 : vector<1x1024xi1> to vector<6x1024xi1>
      %576 = vector.broadcast %cst_323 : f32 to vector<6x1024xf32>
      %577 = arith.select %575, %573, %576 : vector<6x1024xi1>, vector<6x1024xf32>
      %c80_324 = arith.constant 80 : index
      %c0_325 = arith.constant 0 : index
      %578 = vector.load %arg13[%c80_324, %c0_325] : memref<200x1024xf32, #tpu.memory_space<vmem>>, vector<6x1024xf32>
      tpu.vector_store %arg13[%c80_324, %c0_325], %577 {strides = array<i32>} : memref<200x1024xf32, #tpu.memory_space<vmem>>, vector<6x1024xf32>,
      %c0_326 = arith.constant 0 : index
      %c158_327 = arith.constant 158 : index
      %579 = vector.load %arg11[%c0_326, %c158_327] : memref<6x1280xf32, #tpu.memory_space<vmem>>, vector<6x1024xf32>
      %cst_328 = arith.constant 0.000000e+00 : f32
      %580 = vector.shape_cast %560 : vector<1x1024xi1> to vector<1x1024xi1>
      %581 = vector.broadcast %580 : vector<1x1024xi1> to vector<6x1024xi1>
      %582 = vector.broadcast %cst_328 : f32 to vector<6x1024xf32>
      %583 = arith.select %581, %579, %582 : vector<6x1024xi1>, vector<6x1024xf32>
      %c120_329 = arith.constant 120 : index
      %c0_330 = arith.constant 0 : index
      %584 = vector.load %arg13[%c120_329, %c0_330] : memref<200x1024xf32, #tpu.memory_space<vmem>>, vector<6x1024xf32>
      tpu.vector_store %arg13[%c120_329, %c0_330], %583 {strides = array<i32>} : memref<200x1024xf32, #tpu.memory_space<vmem>>, vector<6x1024xf32>,
      %c0_331 = arith.constant 0 : index
      %c190_332 = arith.constant 190 : index
      %585 = vector.load %arg11[%c0_331, %c190_332] : memref<6x1280xf32, #tpu.memory_space<vmem>>, vector<6x1024xf32>
      %cst_333 = arith.constant 0.000000e+00 : f32
      %586 = vector.shape_cast %560 : vector<1x1024xi1> to vector<1x1024xi1>
      %587 = vector.broadcast %586 : vector<1x1024xi1> to vector<6x1024xi1>
      %588 = vector.broadcast %cst_333 : f32 to vector<6x1024xf32>
      %589 = arith.select %587, %585, %588 : vector<6x1024xi1>, vector<6x1024xf32>
      %c160_334 = arith.constant 160 : index
      %c0_335 = arith.constant 0 : index
      %590 = vector.load %arg13[%c160_334, %c0_335] : memref<200x1024xf32, #tpu.memory_space<vmem>>, vector<6x1024xf32>
      tpu.vector_store %arg13[%c160_334, %c0_335], %589 {strides = array<i32>} : memref<200x1024xf32, #tpu.memory_space<vmem>>, vector<6x1024xf32>,
      %c-1_i32_336 = arith.constant -1 : i32
      %591 = vector.broadcast %c-1_i32_336 : i32 to vector<1x1024xi32>
      %592 = arith.addi %553, %591 : vector<1x1024xi32>
      %c0_i32_337 = arith.constant 0 : i32
      %593 = vector.broadcast %c0_i32_337 : i32 to vector<1x1024xi32>
      %594 = arith.cmpi sge, %592, %593 : vector<1x1024xi32>
      %c32_i32_338 = arith.constant 32 : i32
      %595 = vector.broadcast %c32_i32_338 : i32 to vector<1x1024xi32>
      %596 = arith.cmpi slt, %592, %595 : vector<1x1024xi32>
      %597 = arith.andi %594, %596 : vector<1x1024xi1>
      %c0_339 = arith.constant 0 : index
      %c63_340 = arith.constant 63 : index
      %598 = vector.load %arg11[%c0_339, %c63_340] : memref<6x1280xf32, #tpu.memory_space<vmem>>, vector<6x1024xf32>
      %cst_341 = arith.constant 0.000000e+00 : f32
      %599 = vector.shape_cast %597 : vector<1x1024xi1> to vector<1x1024xi1>
      %600 = vector.broadcast %599 : vector<1x1024xi1> to vector<6x1024xi1>
      %601 = vector.broadcast %cst_341 : f32 to vector<6x1024xf32>
      %602 = arith.select %600, %598, %601 : vector<6x1024xi1>, vector<6x1024xf32>
      %c8_342 = arith.constant 8 : index
      %c0_343 = arith.constant 0 : index
      %603 = vector.load %arg13[%c8_342, %c0_343] : memref<200x1024xf32, #tpu.memory_space<vmem>>, vector<6x1024xf32>
      tpu.vector_store %arg13[%c8_342, %c0_343], %602 {strides = array<i32>} : memref<200x1024xf32, #tpu.memory_space<vmem>>, vector<6x1024xf32>,
      %c0_344 = arith.constant 0 : index
      %c95_345 = arith.constant 95 : index
      %604 = vector.load %arg11[%c0_344, %c95_345] : memref<6x1280xf32, #tpu.memory_space<vmem>>, vector<6x1024xf32>
      %cst_346 = arith.constant 0.000000e+00 : f32
      %605 = vector.shape_cast %597 : vector<1x1024xi1> to vector<1x1024xi1>
      %606 = vector.broadcast %605 : vector<1x1024xi1> to vector<6x1024xi1>
      %607 = vector.broadcast %cst_346 : f32 to vector<6x1024xf32>
      %608 = arith.select %606, %604, %607 : vector<6x1024xi1>, vector<6x1024xf32>
      %c48_347 = arith.constant 48 : index
      %c0_348 = arith.constant 0 : index
      %609 = vector.load %arg13[%c48_347, %c0_348] : memref<200x1024xf32, #tpu.memory_space<vmem>>, vector<6x1024xf32>
      tpu.vector_store %arg13[%c48_347, %c0_348], %608 {strides = array<i32>} : memref<200x1024xf32, #tpu.memory_space<vmem>>, vector<6x1024xf32>,
      %c0_349 = arith.constant 0 : index
      %c127_350 = arith.constant 127 : index
      %610 = vector.load %arg11[%c0_349, %c127_350] : memref<6x1280xf32, #tpu.memory_space<vmem>>, vector<6x1024xf32>
      %cst_351 = arith.constant 0.000000e+00 : f32
      %611 = vector.shape_cast %597 : vector<1x1024xi1> to vector<1x1024xi1>
      %612 = vector.broadcast %611 : vector<1x1024xi1> to vector<6x1024xi1>
      %613 = vector.broadcast %cst_351 : f32 to vector<6x1024xf32>
      %614 = arith.select %612, %610, %613 : vector<6x1024xi1>, vector<6x1024xf32>
      %c88_352 = arith.constant 88 : index
      %c0_353 = arith.constant 0 : index
      %615 = vector.load %arg13[%c88_352, %c0_353] : memref<200x1024xf32, #tpu.memory_space<vmem>>, vector<6x1024xf32>
      tpu.vector_store %arg13[%c88_352, %c0_353], %614 {strides = array<i32>} : memref<200x1024xf32, #tpu.memory_space<vmem>>, vector<6x1024xf32>,
      %c0_354 = arith.constant 0 : index
      %c159_355 = arith.constant 159 : index
      %616 = vector.load %arg11[%c0_354, %c159_355] : memref<6x1280xf32, #tpu.memory_space<vmem>>, vector<6x1024xf32>
      %cst_356 = arith.constant 0.000000e+00 : f32
      %617 = vector.shape_cast %597 : vector<1x1024xi1> to vector<1x1024xi1>
      %618 = vector.broadcast %617 : vector<1x1024xi1> to vector<6x1024xi1>
      %619 = vector.broadcast %cst_356 : f32 to vector<6x1024xf32>
      %620 = arith.select %618, %616, %619 : vector<6x1024xi1>, vector<6x1024xf32>
      %c128_357 = arith.constant 128 : index
      %c0_358 = arith.constant 0 : index
      %621 = vector.load %arg13[%c128_357, %c0_358] : memref<200x1024xf32, #tpu.memory_space<vmem>>, vector<6x1024xf32>
      tpu.vector_store %arg13[%c128_357, %c0_358], %620 {strides = array<i32>} : memref<200x1024xf32, #tpu.memory_space<vmem>>, vector<6x1024xf32>,
      %c0_359 = arith.constant 0 : index
      %c191_360 = arith.constant 191 : index
      %622 = vector.load %arg11[%c0_359, %c191_360] : memref<6x1280xf32, #tpu.memory_space<vmem>>, vector<6x1024xf32>
      %cst_361 = arith.constant 0.000000e+00 : f32
      %623 = vector.shape_cast %597 : vector<1x1024xi1> to vector<1x1024xi1>
      %624 = vector.broadcast %623 : vector<1x1024xi1> to vector<6x1024xi1>
      %625 = vector.broadcast %cst_361 : f32 to vector<6x1024xf32>
      %626 = arith.select %624, %622, %625 : vector<6x1024xi1>, vector<6x1024xf32>
      %c168_362 = arith.constant 168 : index
      %c0_363 = arith.constant 0 : index
      %627 = vector.load %arg13[%c168_362, %c0_363] : memref<200x1024xf32, #tpu.memory_space<vmem>>, vector<6x1024xf32>
      tpu.vector_store %arg13[%c168_362, %c0_363], %626 {strides = array<i32>} : memref<200x1024xf32, #tpu.memory_space<vmem>>, vector<6x1024xf32>,
      %c0_i32_364 = arith.constant 0 : i32
      %628 = vector.broadcast %c0_i32_364 : i32 to vector<1x1024xi32>
      %629 = arith.addi %553, %628 : vector<1x1024xi32>
      %c0_i32_365 = arith.constant 0 : i32
      %630 = vector.broadcast %c0_i32_365 : i32 to vector<1x1024xi32>
      %631 = arith.cmpi sge, %629, %630 : vector<1x1024xi32>
      %c32_i32_366 = arith.constant 32 : i32
      %632 = vector.broadcast %c32_i32_366 : i32 to vector<1x1024xi32>
      %633 = arith.cmpi slt, %629, %632 : vector<1x1024xi32>
      %634 = arith.andi %631, %633 : vector<1x1024xi1>
      %c0_367 = arith.constant 0 : index
      %c64_368 = arith.constant 64 : index
      %635 = vector.load %arg11[%c0_367, %c64_368] : memref<6x1280xf32, #tpu.memory_space<vmem>>, vector<6x1024xf32>
      %cst_369 = arith.constant 0.000000e+00 : f32
      %636 = vector.shape_cast %634 : vector<1x1024xi1> to vector<1x1024xi1>
      %637 = vector.broadcast %636 : vector<1x1024xi1> to vector<6x1024xi1>
      %638 = vector.broadcast %cst_369 : f32 to vector<6x1024xf32>
      %639 = arith.select %637, %635, %638 : vector<6x1024xi1>, vector<6x1024xf32>
      %c16_370 = arith.constant 16 : index
      %c0_371 = arith.constant 0 : index
      %640 = vector.load %arg13[%c16_370, %c0_371] : memref<200x1024xf32, #tpu.memory_space<vmem>>, vector<6x1024xf32>
      tpu.vector_store %arg13[%c16_370, %c0_371], %639 {strides = array<i32>} : memref<200x1024xf32, #tpu.memory_space<vmem>>, vector<6x1024xf32>,
      %c0_372 = arith.constant 0 : index
      %c96_373 = arith.constant 96 : index
      %641 = vector.load %arg11[%c0_372, %c96_373] : memref<6x1280xf32, #tpu.memory_space<vmem>>, vector<6x1024xf32>
      %cst_374 = arith.constant 0.000000e+00 : f32
      %642 = vector.shape_cast %634 : vector<1x1024xi1> to vector<1x1024xi1>
      %643 = vector.broadcast %642 : vector<1x1024xi1> to vector<6x1024xi1>
      %644 = vector.broadcast %cst_374 : f32 to vector<6x1024xf32>
      %645 = arith.select %643, %641, %644 : vector<6x1024xi1>, vector<6x1024xf32>
      %c56_375 = arith.constant 56 : index
      %c0_376 = arith.constant 0 : index
      %646 = vector.load %arg13[%c56_375, %c0_376] : memref<200x1024xf32, #tpu.memory_space<vmem>>, vector<6x1024xf32>
      tpu.vector_store %arg13[%c56_375, %c0_376], %645 {strides = array<i32>} : memref<200x1024xf32, #tpu.memory_space<vmem>>, vector<6x1024xf32>,
      %c0_377 = arith.constant 0 : index
      %c128_378 = arith.constant 128 : index
      %647 = vector.load %arg11[%c0_377, %c128_378] : memref<6x1280xf32, #tpu.memory_space<vmem>>, vector<6x1024xf32>
      %cst_379 = arith.constant 0.000000e+00 : f32
      %648 = vector.shape_cast %634 : vector<1x1024xi1> to vector<1x1024xi1>
      %649 = vector.broadcast %648 : vector<1x1024xi1> to vector<6x1024xi1>
      %650 = vector.broadcast %cst_379 : f32 to vector<6x1024xf32>
      %651 = arith.select %649, %647, %650 : vector<6x1024xi1>, vector<6x1024xf32>
      %c96_380 = arith.constant 96 : index
      %c0_381 = arith.constant 0 : index
      %652 = vector.load %arg13[%c96_380, %c0_381] : memref<200x1024xf32, #tpu.memory_space<vmem>>, vector<6x1024xf32>
      tpu.vector_store %arg13[%c96_380, %c0_381], %651 {strides = array<i32>} : memref<200x1024xf32, #tpu.memory_space<vmem>>, vector<6x1024xf32>,
      %c0_382 = arith.constant 0 : index
      %c160_383 = arith.constant 160 : index
      %653 = vector.load %arg11[%c0_382, %c160_383] : memref<6x1280xf32, #tpu.memory_space<vmem>>, vector<6x1024xf32>
      %cst_384 = arith.constant 0.000000e+00 : f32
      %654 = vector.shape_cast %634 : vector<1x1024xi1> to vector<1x1024xi1>
      %655 = vector.broadcast %654 : vector<1x1024xi1> to vector<6x1024xi1>
      %656 = vector.broadcast %cst_384 : f32 to vector<6x1024xf32>
      %657 = arith.select %655, %653, %656 : vector<6x1024xi1>, vector<6x1024xf32>
      %c136_385 = arith.constant 136 : index
      %c0_386 = arith.constant 0 : index
      %658 = vector.load %arg13[%c136_385, %c0_386] : memref<200x1024xf32, #tpu.memory_space<vmem>>, vector<6x1024xf32>
      tpu.vector_store %arg13[%c136_385, %c0_386], %657 {strides = array<i32>} : memref<200x1024xf32, #tpu.memory_space<vmem>>, vector<6x1024xf32>,
      %c0_387 = arith.constant 0 : index
      %c192_388 = arith.constant 192 : index
      %659 = vector.load %arg11[%c0_387, %c192_388] : memref<6x1280xf32, #tpu.memory_space<vmem>>, vector<6x1024xf32>
      %cst_389 = arith.constant 0.000000e+00 : f32
      %660 = vector.shape_cast %634 : vector<1x1024xi1> to vector<1x1024xi1>
      %661 = vector.broadcast %660 : vector<1x1024xi1> to vector<6x1024xi1>
      %662 = vector.broadcast %cst_389 : f32 to vector<6x1024xf32>
      %663 = arith.select %661, %659, %662 : vector<6x1024xi1>, vector<6x1024xf32>
      %c176_390 = arith.constant 176 : index
      %c0_391 = arith.constant 0 : index
      %664 = vector.load %arg13[%c176_390, %c0_391] : memref<200x1024xf32, #tpu.memory_space<vmem>>, vector<6x1024xf32>
      tpu.vector_store %arg13[%c176_390, %c0_391], %663 {strides = array<i32>} : memref<200x1024xf32, #tpu.memory_space<vmem>>, vector<6x1024xf32>,
      %c1_i32_392 = arith.constant 1 : i32
      %665 = vector.broadcast %c1_i32_392 : i32 to vector<1x1024xi32>
      %666 = arith.addi %553, %665 : vector<1x1024xi32>
      %c0_i32_393 = arith.constant 0 : i32
      %667 = vector.broadcast %c0_i32_393 : i32 to vector<1x1024xi32>
      %668 = arith.cmpi sge, %666, %667 : vector<1x1024xi32>
      %c32_i32_394 = arith.constant 32 : i32
      %669 = vector.broadcast %c32_i32_394 : i32 to vector<1x1024xi32>
      %670 = arith.cmpi slt, %666, %669 : vector<1x1024xi32>
      %671 = arith.andi %668, %670 : vector<1x1024xi1>
      %c0_395 = arith.constant 0 : index
      %c65_396 = arith.constant 65 : index
      %672 = vector.load %arg11[%c0_395, %c65_396] : memref<6x1280xf32, #tpu.memory_space<vmem>>, vector<6x1024xf32>
      %cst_397 = arith.constant 0.000000e+00 : f32
      %673 = vector.shape_cast %671 : vector<1x1024xi1> to vector<1x1024xi1>
      %674 = vector.broadcast %673 : vector<1x1024xi1> to vector<6x1024xi1>
      %675 = vector.broadcast %cst_397 : f32 to vector<6x1024xf32>
      %676 = arith.select %674, %672, %675 : vector<6x1024xi1>, vector<6x1024xf32>
      %c24_398 = arith.constant 24 : index
      %c0_399 = arith.constant 0 : index
      %677 = vector.load %arg13[%c24_398, %c0_399] : memref<200x1024xf32, #tpu.memory_space<vmem>>, vector<6x1024xf32>
      tpu.vector_store %arg13[%c24_398, %c0_399], %676 {strides = array<i32>} : memref<200x1024xf32, #tpu.memory_space<vmem>>, vector<6x1024xf32>,
      %c0_400 = arith.constant 0 : index
      %c97_401 = arith.constant 97 : index
      %678 = vector.load %arg11[%c0_400, %c97_401] : memref<6x1280xf32, #tpu.memory_space<vmem>>, vector<6x1024xf32>
      %cst_402 = arith.constant 0.000000e+00 : f32
      %679 = vector.shape_cast %671 : vector<1x1024xi1> to vector<1x1024xi1>
      %680 = vector.broadcast %679 : vector<1x1024xi1> to vector<6x1024xi1>
      %681 = vector.broadcast %cst_402 : f32 to vector<6x1024xf32>
      %682 = arith.select %680, %678, %681 : vector<6x1024xi1>, vector<6x1024xf32>
      %c64_403 = arith.constant 64 : index
      %c0_404 = arith.constant 0 : index
      %683 = vector.load %arg13[%c64_403, %c0_404] : memref<200x1024xf32, #tpu.memory_space<vmem>>, vector<6x1024xf32>
      tpu.vector_store %arg13[%c64_403, %c0_404], %682 {strides = array<i32>} : memref<200x1024xf32, #tpu.memory_space<vmem>>, vector<6x1024xf32>,
      %c0_405 = arith.constant 0 : index
      %c129_406 = arith.constant 129 : index
      %684 = vector.load %arg11[%c0_405, %c129_406] : memref<6x1280xf32, #tpu.memory_space<vmem>>, vector<6x1024xf32>
      %cst_407 = arith.constant 0.000000e+00 : f32
      %685 = vector.shape_cast %671 : vector<1x1024xi1> to vector<1x1024xi1>
      %686 = vector.broadcast %685 : vector<1x1024xi1> to vector<6x1024xi1>
      %687 = vector.broadcast %cst_407 : f32 to vector<6x1024xf32>
      %688 = arith.select %686, %684, %687 : vector<6x1024xi1>, vector<6x1024xf32>
      %c104_408 = arith.constant 104 : index
      %c0_409 = arith.constant 0 : index
      %689 = vector.load %arg13[%c104_408, %c0_409] : memref<200x1024xf32, #tpu.memory_space<vmem>>, vector<6x1024xf32>
      tpu.vector_store %arg13[%c104_408, %c0_409], %688 {strides = array<i32>} : memref<200x1024xf32, #tpu.memory_space<vmem>>, vector<6x1024xf32>,
      %c0_410 = arith.constant 0 : index
      %c161_411 = arith.constant 161 : index
      %690 = vector.load %arg11[%c0_410, %c161_411] : memref<6x1280xf32, #tpu.memory_space<vmem>>, vector<6x1024xf32>
      %cst_412 = arith.constant 0.000000e+00 : f32
      %691 = vector.shape_cast %671 : vector<1x1024xi1> to vector<1x1024xi1>
      %692 = vector.broadcast %691 : vector<1x1024xi1> to vector<6x1024xi1>
      %693 = vector.broadcast %cst_412 : f32 to vector<6x1024xf32>
      %694 = arith.select %692, %690, %693 : vector<6x1024xi1>, vector<6x1024xf32>
      %c144_413 = arith.constant 144 : index
      %c0_414 = arith.constant 0 : index
      %695 = vector.load %arg13[%c144_413, %c0_414] : memref<200x1024xf32, #tpu.memory_space<vmem>>, vector<6x1024xf32>
      tpu.vector_store %arg13[%c144_413, %c0_414], %694 {strides = array<i32>} : memref<200x1024xf32, #tpu.memory_space<vmem>>, vector<6x1024xf32>,
      %c0_415 = arith.constant 0 : index
      %c193_416 = arith.constant 193 : index
      %696 = vector.load %arg11[%c0_415, %c193_416] : memref<6x1280xf32, #tpu.memory_space<vmem>>, vector<6x1024xf32>
      %cst_417 = arith.constant 0.000000e+00 : f32
      %697 = vector.shape_cast %671 : vector<1x1024xi1> to vector<1x1024xi1>
      %698 = vector.broadcast %697 : vector<1x1024xi1> to vector<6x1024xi1>
      %699 = vector.broadcast %cst_417 : f32 to vector<6x1024xf32>
      %700 = arith.select %698, %696, %699 : vector<6x1024xi1>, vector<6x1024xf32>
      %c184_418 = arith.constant 184 : index
      %c0_419 = arith.constant 0 : index
      %701 = vector.load %arg13[%c184_418, %c0_419] : memref<200x1024xf32, #tpu.memory_space<vmem>>, vector<6x1024xf32>
      tpu.vector_store %arg13[%c184_418, %c0_419], %700 {strides = array<i32>} : memref<200x1024xf32, #tpu.memory_space<vmem>>, vector<6x1024xf32>,
      %c2_i32_420 = arith.constant 2 : i32
      %702 = vector.broadcast %c2_i32_420 : i32 to vector<1x1024xi32>
      %703 = arith.addi %553, %702 : vector<1x1024xi32>
      %c0_i32_421 = arith.constant 0 : i32
      %704 = vector.broadcast %c0_i32_421 : i32 to vector<1x1024xi32>
      %705 = arith.cmpi sge, %703, %704 : vector<1x1024xi32>
      %c32_i32_422 = arith.constant 32 : i32
      %706 = vector.broadcast %c32_i32_422 : i32 to vector<1x1024xi32>
      %707 = arith.cmpi slt, %703, %706 : vector<1x1024xi32>
      %708 = arith.andi %705, %707 : vector<1x1024xi1>
      %c0_423 = arith.constant 0 : index
      %c66_424 = arith.constant 66 : index
      %709 = vector.load %arg11[%c0_423, %c66_424] : memref<6x1280xf32, #tpu.memory_space<vmem>>, vector<6x1024xf32>
      %cst_425 = arith.constant 0.000000e+00 : f32
      %710 = vector.shape_cast %708 : vector<1x1024xi1> to vector<1x1024xi1>
      %711 = vector.broadcast %710 : vector<1x1024xi1> to vector<6x1024xi1>
      %712 = vector.broadcast %cst_425 : f32 to vector<6x1024xf32>
      %713 = arith.select %711, %709, %712 : vector<6x1024xi1>, vector<6x1024xf32>
      %c32_426 = arith.constant 32 : index
      %c0_427 = arith.constant 0 : index
      %714 = vector.load %arg13[%c32_426, %c0_427] : memref<200x1024xf32, #tpu.memory_space<vmem>>, vector<6x1024xf32>
      tpu.vector_store %arg13[%c32_426, %c0_427], %713 {strides = array<i32>} : memref<200x1024xf32, #tpu.memory_space<vmem>>, vector<6x1024xf32>,
      %c0_428 = arith.constant 0 : index
      %c98_429 = arith.constant 98 : index
      %715 = vector.load %arg11[%c0_428, %c98_429] : memref<6x1280xf32, #tpu.memory_space<vmem>>, vector<6x1024xf32>
      %cst_430 = arith.constant 0.000000e+00 : f32
      %716 = vector.shape_cast %708 : vector<1x1024xi1> to vector<1x1024xi1>
      %717 = vector.broadcast %716 : vector<1x1024xi1> to vector<6x1024xi1>
      %718 = vector.broadcast %cst_430 : f32 to vector<6x1024xf32>
      %719 = arith.select %717, %715, %718 : vector<6x1024xi1>, vector<6x1024xf32>
      %c72_431 = arith.constant 72 : index
      %c0_432 = arith.constant 0 : index
      %720 = vector.load %arg13[%c72_431, %c0_432] : memref<200x1024xf32, #tpu.memory_space<vmem>>, vector<6x1024xf32>
      tpu.vector_store %arg13[%c72_431, %c0_432], %719 {strides = array<i32>} : memref<200x1024xf32, #tpu.memory_space<vmem>>, vector<6x1024xf32>,
      %c0_433 = arith.constant 0 : index
      %c130_434 = arith.constant 130 : index
      %721 = vector.load %arg11[%c0_433, %c130_434] : memref<6x1280xf32, #tpu.memory_space<vmem>>, vector<6x1024xf32>
      %cst_435 = arith.constant 0.000000e+00 : f32
      %722 = vector.shape_cast %708 : vector<1x1024xi1> to vector<1x1024xi1>
      %723 = vector.broadcast %722 : vector<1x1024xi1> to vector<6x1024xi1>
      %724 = vector.broadcast %cst_435 : f32 to vector<6x1024xf32>
      %725 = arith.select %723, %721, %724 : vector<6x1024xi1>, vector<6x1024xf32>
      %c112_436 = arith.constant 112 : index
      %c0_437 = arith.constant 0 : index
      %726 = vector.load %arg13[%c112_436, %c0_437] : memref<200x1024xf32, #tpu.memory_space<vmem>>, vector<6x1024xf32>
      tpu.vector_store %arg13[%c112_436, %c0_437], %725 {strides = array<i32>} : memref<200x1024xf32, #tpu.memory_space<vmem>>, vector<6x1024xf32>,
      %c0_438 = arith.constant 0 : index
      %c162_439 = arith.constant 162 : index
      %727 = vector.load %arg11[%c0_438, %c162_439] : memref<6x1280xf32, #tpu.memory_space<vmem>>, vector<6x1024xf32>
      %cst_440 = arith.constant 0.000000e+00 : f32
      %728 = vector.shape_cast %708 : vector<1x1024xi1> to vector<1x1024xi1>
      %729 = vector.broadcast %728 : vector<1x1024xi1> to vector<6x1024xi1>
      %730 = vector.broadcast %cst_440 : f32 to vector<6x1024xf32>
      %731 = arith.select %729, %727, %730 : vector<6x1024xi1>, vector<6x1024xf32>
      %c152_441 = arith.constant 152 : index
      %c0_442 = arith.constant 0 : index
      %732 = vector.load %arg13[%c152_441, %c0_442] : memref<200x1024xf32, #tpu.memory_space<vmem>>, vector<6x1024xf32>
      tpu.vector_store %arg13[%c152_441, %c0_442], %731 {strides = array<i32>} : memref<200x1024xf32, #tpu.memory_space<vmem>>, vector<6x1024xf32>,
      %c0_443 = arith.constant 0 : index
      %c194_444 = arith.constant 194 : index
      %733 = vector.load %arg11[%c0_443, %c194_444] : memref<6x1280xf32, #tpu.memory_space<vmem>>, vector<6x1024xf32>
      %cst_445 = arith.constant 0.000000e+00 : f32
      %734 = vector.shape_cast %708 : vector<1x1024xi1> to vector<1x1024xi1>
      %735 = vector.broadcast %734 : vector<1x1024xi1> to vector<6x1024xi1>
      %736 = vector.broadcast %cst_445 : f32 to vector<6x1024xf32>
      %737 = arith.select %735, %733, %736 : vector<6x1024xi1>, vector<6x1024xf32>
      %c192_446 = arith.constant 192 : index
      %c0_447 = arith.constant 0 : index
      %738 = vector.load %arg13[%c192_446, %c0_447] : memref<200x1024xf32, #tpu.memory_space<vmem>>, vector<6x1024xf32>
      tpu.vector_store %arg13[%c192_446, %c0_447], %737 {strides = array<i32>} : memref<200x1024xf32, #tpu.memory_space<vmem>>, vector<6x1024xf32>,
      %c0_448 = arith.constant 0 : index
      %c0_449 = arith.constant 0 : index
      %739 = vector.load %arg7[%c0_448, %c0_449] : memref<5x200xf32, #tpu.memory_space<vmem>>, vector<5x200xf32>
      %c0_450 = arith.constant 0 : index
      %c0_451 = arith.constant 0 : index
      %740 = vector.load %arg13[%c0_450, %c0_451] : memref<200x1024xf32, #tpu.memory_space<vmem>>, vector<200x1024xf32>
      %cst_452 = arith.constant dense<0.000000e+00> : vector<5x1024xf32>
      %741 = tpu.matmul %739, %740, %cst_452 {dimension_numbers = #tpu.dot_dimension_numbers<[1], [0], [0], [1], [0, 0, 1, 1], [], []>} : vector<5x200xf32>, vector<200x1024xf32>, vector<5x1024xf32> -> vector<5x1024xf32>
      %c0_453 = arith.constant 0 : index
      %c0_454 = arith.constant 0 : index
      %742 = vector.load %arg8[%c0_453, %c0_454] : memref<5x1xf32, #tpu.memory_space<vmem>>, vector<5x1xf32>
      %743 = vector.broadcast %742 : vector<5x1xf32> to vector<5x1024xf32>
      %744 = arith.addf %741, %743 : vector<5x1024xf32>
      %cst_455 = arith.constant 0.000000e+00 : f32
      %745 = vector.broadcast %cst_455 : f32 to vector<5x1024xf32>
      %746 = arith.cmpf oge, %744, %745 : vector<5x1024xf32>
      %cst_456 = arith.constant 0.00999999977 : f32
      %747 = vector.broadcast %cst_456 : f32 to vector<5x1024xf32>
      %748 = arith.mulf %747, %744 : vector<5x1024xf32>
      %749 = arith.select %746, %744, %748 : vector<5x1024xi1>, vector<5x1024xf32>
      %c0_457 = arith.constant 0 : index
      %c128_458 = arith.constant 128 : index
      %750 = vector.load %arg10[%c0_457, %c128_458] : memref<5x1280xf32, #tpu.memory_space<vmem>>, vector<5x1024xf32>
      %cst_459 = arith.constant 0.000000e+00 : f32
      %751 = vector.broadcast %cst_459 : f32 to vector<5x1024xf32>
      %752 = arith.mulf %751, %750 : vector<5x1024xf32>
      %cst_460 = arith.constant 1.000000e+00 : f32
      %753 = vector.broadcast %cst_460 : f32 to vector<5x1024xf32>
      %754 = arith.mulf %753, %749 : vector<5x1024xf32>
      %755 = arith.addf %752, %754 : vector<5x1024xf32>
      %756 = arith.subf %755, %750 : vector<5x1024xf32>
      %757 = arith.mulf %756, %756 : vector<5x1024xf32>
      %758 = vector.shape_cast %757 : vector<5x1024xf32> to vector<1x5x1024xf32>
      %cst_461 = arith.constant dense<0.000000e+00> : vector<1xf32>
      %759 = vector.multi_reduction <add>, %758, %cst_461 [1, 2] : vector<1x5x1024xf32> to vector<1xf32>
      %760 = vector.shape_cast %759 : vector<1xf32> to vector<1x1x1xf32>
      %761 = vector.extract %760[0, 0, 0] : f32 from vector<1x1x1xf32>
      %762 = math.sqrt %761 : f32
      %763 = arith.mulf %750, %750 : vector<5x1024xf32>
      %764 = vector.shape_cast %763 : vector<5x1024xf32> to vector<1x5x1024xf32>
      %cst_462 = arith.constant dense<0.000000e+00> : vector<1xf32>
      %765 = vector.multi_reduction <add>, %764, %cst_462 [1, 2] : vector<1x5x1024xf32> to vector<1xf32>
      %766 = vector.shape_cast %765 : vector<1xf32> to vector<1x1x1xf32>
      %767 = vector.extract %766[0, 0, 0] : f32 from vector<1x1x1xf32>
      %768 = math.sqrt %767 : f32
      %cst_463 = arith.constant 9.99999993E-9 : f32
      %769 = arith.addf %768, %cst_463 : f32
      %c0_464 = arith.constant 0 : index
      %c128_465 = arith.constant 128 : index
      %770 = vector.load %arg10[%c0_464, %c128_465] : memref<5x1280xf32, #tpu.memory_space<vmem>>, vector<5x1024xf32>
      tpu.vector_store %arg10[%c0_464, %c128_465], %755 {strides = array<i32>} : memref<5x1280xf32, #tpu.memory_space<vmem>>, vector<5x1024xf32>,
      %cst_466 = arith.constant 0.000000e+00 : f32
      %771 = arith.mulf %cst_466, %769 : f32
      %772 = arith.cmpf ogt, %762, %771 : f32
      %773 = arith.extui %772 : i1 to i32
      %c0_467 = arith.constant 0 : index
      %774 = memref.load %arg14[%c0_467] : memref<1xi32, #tpu.memory_space<smem>>
      memref.store %773, %arg14[%c0_467] : memref<1xi32, #tpu.memory_space<smem>>
    } else {
    }
    %c0_130 = arith.constant 0 : index
    %c128_131 = arith.constant 128 : index
    %239 = vector.load %arg10[%c0_130, %c128_131] : memref<5x1280xf32, #tpu.memory_space<vmem>>, vector<5x1024xf32>
    %c0_132 = arith.constant 0 : index
    %c0_133 = arith.constant 0 : index
    %c0_134 = arith.constant 0 : index
    %240 = vector.load %arg9[%c0_132, %c0_133, %c0_134] : memref<1x5x1024xf32, #tpu.memory_space<vmem>>, vector<1x5x1024xf32>
    %241 = vector.shape_cast %240 : vector<1x5x1024xf32> to vector<5x1024xf32>
    %242 = vector.shape_cast %239 : vector<5x1024xf32> to vector<1x5x1024xf32>
    tpu.vector_store %arg9[%c0_132, %c0_133, %c0_134], %242 {strides = array<i32>} : memref<1x5x1024xf32, #tpu.memory_space<vmem>>, vector<1x5x1024xf32>,
    return
  }
  func.func @transform_0(%arg0: i32) -> (i32, i32, i32) {
    %c0_i32 = arith.constant 0 : i32
    %c0_i32_0 = arith.constant 0 : i32
    %c0_i32_1 = arith.constant 0 : i32
    return %arg0, %c0_i32, %c0_i32_0 : i32, i32, i32
  }
  func.func @transform_1(%arg0: i32) -> (i32, i32, i32) {
    %c0_i32 = arith.constant 0 : i32
    %c0_i32_0 = arith.constant 0 : i32
    %c0_i32_1 = arith.constant 0 : i32
    return %arg0, %c0_i32, %c0_i32_0 : i32, i32, i32
  }
  func.func @transform_2(%arg0: i32) -> (i32, i32) {
    %c0_i32 = arith.constant 0 : i32
    %c0_i32_0 = arith.constant 0 : i32
    %c0_i32_1 = arith.constant 0 : i32
    return %c0_i32, %c0_i32_0 : i32, i32
  }
  func.func @transform_3(%arg0: i32) -> (i32, i32) {
    %c0_i32 = arith.constant 0 : i32
    %c0_i32_0 = arith.constant 0 : i32
    %c0_i32_1 = arith.constant 0 : i32
    return %c0_i32, %c0_i32_0 : i32, i32
  }
  func.func @transform_4(%arg0: i32) -> (i32, i32) {
    %c0_i32 = arith.constant 0 : i32
    %c0_i32_0 = arith.constant 0 : i32
    %c0_i32_1 = arith.constant 0 : i32
    return %c0_i32, %c0_i32_0 : i32, i32
  }
  func.func @transform_5(%arg0: i32) -> (i32, i32) {
    %c0_i32 = arith.constant 0 : i32
    %c0_i32_0 = arith.constant 0 : i32
    %c0_i32_1 = arith.constant 0 : i32
    return %c0_i32, %c0_i32_0 : i32, i32
  }
  func.func @transform_6(%arg0: i32) -> (i32, i32) {
    %c0_i32 = arith.constant 0 : i32
    %c0_i32_0 = arith.constant 0 : i32
    %c0_i32_1 = arith.constant 0 : i32
    return %c0_i32, %c0_i32_0 : i32, i32
  }
  func.func @transform_7(%arg0: i32) -> (i32, i32) {
    %c0_i32 = arith.constant 0 : i32
    %c0_i32_0 = arith.constant 0 : i32
    %c0_i32_1 = arith.constant 0 : i32
    return %c0_i32, %c0_i32_0 : i32, i32
  }
  func.func @transform_8(%arg0: i32) -> (i32, i32, i32) {
    %c0_i32 = arith.constant 0 : i32
    %c0_i32_0 = arith.constant 0 : i32
    %c0_i32_1 = arith.constant 0 : i32
    return %arg0, %c0_i32, %c0_i32_0 : i32, i32, i32
  }
}

</mosaic_0001>

<llo_original>
// kernel: unit_forward.1
$region0: #{unit_forward.1}
  #allocation0 [shape = 'u32[]', space=smem, size = 0x4, offset = 0x4, fixed_abs, tag = 'smem constant byte address 0x4 - core index']
  #allocation1 [shape = 'u32[144,128]{1,0:T(1,128)}', space=vmem, size = 0x12000, scoped, tag = 'internal scratch']
  #allocation2 [shape = 'f32[5,1280]{1,0:T(8,128)}', space=vmem, size = 0xa000, scoped, tag = 'scratch operand']
  #allocation3 [shape = 'f32[6,1280]{1,0:T(8,128)}', space=vmem, size = 0xa000, scoped, tag = 'scratch operand']
  #allocation4 [shape = 'f32[200,1024]{1,0:T(8,128)}', space=vmem, size = 0xc8000, scoped, tag = 'scratch operand']
  #allocation5 [shape = 'f32[200,1024]{1,0:T(8,128)}', space=vmem, size = 0xc8000, scoped, tag = 'scratch operand']
  #allocation6 [shape = 's32[1]{0:T(128)}', space=smem, size = 0x200, scoped, tag = 'scratch operand']
  %s0 = inlined_call_operand.vmem [shape: f32[2,5,1280], index: 0, kind: input, shape index: {}]
  %s1 = inlined_call_operand.vmem [shape: f32[2,3,1280], index: 1, kind: input, shape index: {}]
  %s2 = inlined_call_operand.vmem [shape: f32[6,200], index: 2, kind: input, shape index: {}]
  %s3 = inlined_call_operand.vmem [shape: f32[6,1], index: 3, kind: input, shape index: {}]
  %s4 = inlined_call_operand.vmem [shape: f32[6,1], index: 4, kind: input, shape index: {}]
  %s5 = inlined_call_operand.vmem [shape: f32[6,1], index: 5, kind: input, shape index: {}]
  %s6 = inlined_call_operand.vmem [shape: f32[5,200], index: 6, kind: input, shape index: {}]
  %s7 = inlined_call_operand.vmem [shape: f32[5,1], index: 7, kind: input, shape index: {}]
  %s8 = inlined_call_operand.vmem [shape: f32[2,5,1024], index: 8, kind: output, shape index: {}]
  %s9 = sld [smem:[#allocation0]]
  $region69: #{unit_forward.1} parent=0
    _
  %s11 = ssub.s32 1, %s9
  %s12 = scalar_select 0, %s11, %s9
  loop: start=0, step=1, limit=4
  $region2: #{unit_forward.1} parent=0 // loop_pre_header
    _
  $region3: #{unit_forward.1} parent=0 // loop_header
    %s14 = sphi 0, %s18
    %p15 = scmp.ge.s32.totalorder %s14, 4
    %s24 = sphi 0, %s26
    %s27 = sphi 0, %s24
    %s28 = sphi 0, %s27
    %s44 = sphi 0, %s28
    %s50 = sphi 0, %s52
    %s53 = sphi 0, %s50
    %s54 = sphi 0, %s53
    %s70 = sphi 0, %s54
    %s74 = sphi 0, %s74
    %s76 = sphi 0, %s74
    %s77 = sphi 0, %s76
    %s91 = sphi 0, %s77
    %s95 = sphi 0, %s95
    %s97 = sphi 0, %s95
    %s98 = sphi 0, %s97
    %s112 = sphi 0, %s98
    %s116 = sphi 0, %s116
    %s118 = sphi 0, %s116
    %s119 = sphi 0, %s118
    %s133 = sphi 0, %s119
    %s137 = sphi 0, %s137
    %s139 = sphi 0, %s137
    %s140 = sphi 0, %s139
    %s154 = sphi 0, %s140
    %s158 = sphi 0, %s158
    %s160 = sphi 0, %s158
    %s161 = sphi 0, %s160
    %s175 = sphi 0, %s161
    %s179 = sphi 0, %s179
    %s181 = sphi 0, %s179
    %s182 = sphi 0, %s181
    %s196 = sphi 0, %s182
    %s202 = sphi 0, %s204
    %s205 = sphi 0, %s202
    %s206 = sphi 0, %s205
    %s222 = sphi 0, %s206
  $region4: #{unit_forward.1} parent=0 // loop_header_branch
    %17 = sbr.rel (%p15) target = $region8
  $region5: #{unit_forward.1} parent=0 // loop_body
    %s19 = ssub.s32 %s14, 1
    %s20 = ssub.s32 %s14, 2
    %s21 = sadd.s32 %s14, 1
    %s22 = ssub.s32 %s14, %s21
    %p23 = scmp.eq.s32.totalorder %s22, 0
    %s25 = sadd.s32 %s24, 1
    %s26 = scalar_select %p23, %s24, %s25
    %p29 = pneg %p23
    %p30 = scmp.eq.s32.totalorder %s14, 1
    %p31 = por %p29, %p30
    %p32 = scmp.ne.s32.totalorder %s24, %s27
    %p33 = scmp.eq.s32.totalorder %s14, 0
    %p34 = por %p32, %p33
    %p35 = scmp.ne.s32.totalorder %s24, %s27
    %p36 = scmp.eq.s32.totalorder %s19, 1
    %p37 = por %p35, %p36
    %p38 = scmp.ne.s32.totalorder %s27, %s28
    %p39 = scmp.eq.s32.totalorder %s19, 0
    %p40 = por %p38, %p39
    %p41 = scmp.ne.s32.totalorder %s27, %s28
    %p42 = scmp.eq.s32.totalorder %s20, 1
    %p43 = por %p41, %p42
    %p45 = scmp.ne.s32.totalorder %s28, %s44
    %p46 = scmp.eq.s32.totalorder %s20, 0
    %p47 = por %p45, %p46
    %s48 = ssub.s32 %s14, %s21
    %p49 = scmp.eq.s32.totalorder %s48, 0
    %s51 = sadd.s32 %s50, 1
    %s52 = scalar_select %p49, %s50, %s51
    %p55 = pneg %p49
    %p56 = scmp.eq.s32.totalorder %s14, 1
    %p57 = por %p55, %p56
    %p58 = scmp.ne.s32.totalorder %s50, %s53
    %p59 = scmp.eq.s32.totalorder %s14, 0
    %p60 = por %p58, %p59
    %p61 = scmp.ne.s32.totalorder %s50, %s53
    %p62 = scmp.eq.s32.totalorder %s19, 1
    %p63 = por %p61, %p62
    %p64 = scmp.ne.s32.totalorder %s53, %s54
    %p65 = scmp.eq.s32.totalorder %s19, 0
    %p66 = por %p64, %p65
    %p67 = scmp.ne.s32.totalorder %s53, %s54
    %p68 = scmp.eq.s32.totalorder %s20, 1
    %p69 = por %p67, %p68
    %p71 = scmp.ne.s32.totalorder %s54, %s70
    %p72 = scmp.eq.s32.totalorder %s20, 0
    %p73 = por %p71, %p72
    %s75 = sadd.s32 %s74, 1
    %p78 = scmp.eq.s32.totalorder %s14, 1
    %p79 = scmp.ne.s32.totalorder %s74, %s76
    %p80 = scmp.eq.s32.totalorder %s14, 0
    %p81 = por %p79, %p80
    %p82 = scmp.ne.s32.totalorder %s74, %s76
    %p83 = scmp.eq.s32.totalorder %s19, 1
    %p84 = por %p82, %p83
    %p85 = scmp.ne.s32.totalorder %s76, %s77
    %p86 = scmp.eq.s32.totalorder %s19, 0
    %p87 = por %p85, %p86
    %p88 = scmp.ne.s32.totalorder %s76, %s77
    %p89 = scmp.eq.s32.totalorder %s20, 1
    %p90 = por %p88, %p89
    %p92 = scmp.ne.s32.totalorder %s77, %s91
    %p93 = scmp.eq.s32.totalorder %s20, 0
    %p94 = por %p92, %p93
    %s96 = sadd.s32 %s95, 1
    %p99 = scmp.eq.s32.totalorder %s14, 1
    %p100 = scmp.ne.s32.totalorder %s95, %s97
    %p101 = scmp.eq.s32.totalorder %s14, 0
    %p102 = por %p100, %p101
    %p103 = scmp.ne.s32.totalorder %s95, %s97
    %p104 = scmp.eq.s32.totalorder %s19, 1
    %p105 = por %p103, %p104
    %p106 = scmp.ne.s32.totalorder %s97, %s98
    %p107 = scmp.eq.s32.totalorder %s19, 0
    %p108 = por %p106, %p107
    %p109 = scmp.ne.s32.totalorder %s97, %s98
    %p110 = scmp.eq.s32.totalorder %s20, 1
    %p111 = por %p109, %p110
    %p113 = scmp.ne.s32.totalorder %s98, %s112
    %p114 = scmp.eq.s32.totalorder %s20, 0
    %p115 = por %p113, %p114
    %s117 = sadd.s32 %s116, 1
    %p120 = scmp.eq.s32.totalorder %s14, 1
    %p121 = scmp.ne.s32.totalorder %s116, %s118
    %p122 = scmp.eq.s32.totalorder %s14, 0
    %p123 = por %p121, %p122
    %p124 = scmp.ne.s32.totalorder %s116, %s118
    %p125 = scmp.eq.s32.totalorder %s19, 1
    %p126 = por %p124, %p125
    %p127 = scmp.ne.s32.totalorder %s118, %s119
    %p128 = scmp.eq.s32.totalorder %s19, 0
    %p129 = por %p127, %p128
    %p130 = scmp.ne.s32.totalorder %s118, %s119
    %p131 = scmp.eq.s32.totalorder %s20, 1
    %p132 = por %p130, %p131
    %p134 = scmp.ne.s32.totalorder %s119, %s133
    %p135 = scmp.eq.s32.totalorder %s20, 0
    %p136 = por %p134, %p135
    %s138 = sadd.s32 %s137, 1
    %p141 = scmp.eq.s32.totalorder %s14, 1
    %p142 = scmp.ne.s32.totalorder %s137, %s139
    %p143 = scmp.eq.s32.totalorder %s14, 0
    %p144 = por %p142, %p143
    %p145 = scmp.ne.s32.totalorder %s137, %s139
    %p146 = scmp.eq.s32.totalorder %s19, 1
    %p147 = por %p145, %p146
    %p148 = scmp.ne.s32.totalorder %s139, %s140
    %p149 = scmp.eq.s32.totalorder %s19, 0
    %p150 = por %p148, %p149
    %p151 = scmp.ne.s32.totalorder %s139, %s140
    %p152 = scmp.eq.s32.totalorder %s20, 1
    %p153 = por %p151, %p152
    %p155 = scmp.ne.s32.totalorder %s140, %s154
    %p156 = scmp.eq.s32.totalorder %s20, 0
    %p157 = por %p155, %p156
    %s159 = sadd.s32 %s158, 1
    %p162 = scmp.eq.s32.totalorder %s14, 1
    %p163 = scmp.ne.s32.totalorder %s158, %s160
    %p164 = scmp.eq.s32.totalorder %s14, 0
    %p165 = por %p163, %p164
    %p166 = scmp.ne.s32.totalorder %s158, %s160
    %p167 = scmp.eq.s32.totalorder %s19, 1
    %p168 = por %p166, %p167
    %p169 = scmp.ne.s32.totalorder %s160, %s161
    %p170 = scmp.eq.s32.totalorder %s19, 0
    %p171 = por %p169, %p170
    %p172 = scmp.ne.s32.totalorder %s160, %s161
    %p173 = scmp.eq.s32.totalorder %s20, 1
    %p174 = por %p172, %p173
    %p176 = scmp.ne.s32.totalorder %s161, %s175
    %p177 = scmp.eq.s32.totalorder %s20, 0
    %p178 = por %p176, %p177
    %s180 = sadd.s32 %s179, 1
    %p183 = scmp.eq.s32.totalorder %s14, 1
    %p184 = scmp.ne.s32.totalorder %s179, %s181
    %p185 = scmp.eq.s32.totalorder %s14, 0
    %p186 = por %p184, %p185
    %p187 = scmp.ne.s32.totalorder %s179, %s181
    %p188 = scmp.eq.s32.totalorder %s19, 1
    %p189 = por %p187, %p188
    %p190 = scmp.ne.s32.totalorder %s181, %s182
    %p191 = scmp.eq.s32.totalorder %s19, 0
    %p192 = por %p190, %p191
    %p193 = scmp.ne.s32.totalorder %s181, %s182
    %p194 = scmp.eq.s32.totalorder %s20, 1
    %p195 = por %p193, %p194
    %p197 = scmp.ne.s32.totalorder %s182, %s196
    %p198 = scmp.eq.s32.totalorder %s20, 0
    %p199 = por %p197, %p198
    %s200 = ssub.s32 %s14, %s21
    %p201 = scmp.eq.s32.totalorder %s200, 0
    %s203 = sadd.s32 %s202, 1
    %s204 = scalar_select %p201, %s202, %s203
    %p207 = pneg %p201
    %p208 = scmp.eq.s32.totalorder %s14, 1
    %p209 = por %p207, %p208
    %p210 = scmp.ne.s32.totalorder %s202, %s205
    %p211 = scmp.eq.s32.totalorder %s14, 0
    %p212 = por %p210, %p211
    %p213 = scmp.ne.s32.totalorder %s202, %s205
    %p214 = scmp.eq.s32.totalorder %s19, 1
    %p215 = por %p213, %p214
    %p216 = scmp.ne.s32.totalorder %s205, %s206
    %p217 = scmp.eq.s32.totalorder %s19, 0
    %p218 = por %p216, %p217
    %p219 = scmp.ne.s32.totalorder %s205, %s206
    %p220 = scmp.eq.s32.totalorder %s20, 1
    %p221 = por %p219, %p220
    %p223 = scmp.ne.s32.totalorder %s206, %s222
    %p224 = scmp.eq.s32.totalorder %s20, 0
    %p225 = por %p223, %p224
    %p226 = scmp.le.s32.totalorder 1, %s14
    %p227 = scmp.lt.s32.totalorder %s14, 3
    %p228 = pnand %p226, %p227
    %p229 = pneg %p228
    // Predicated region
    $region9: #{unit_forward.1} parent=5 // pred_check
      _
    $region10: #{unit_forward.1} parent=5 // pred_check_branch
      %231 = sbr.rel (%p228) target = $region12
    $region11: #{unit_forward.1} parent=5 // pred_region
      %s232 = ssub.s32 %s14, 1
      // Predicated region
      $region13: #{unit_forward.1} parent=11 // pred_check
        %p233 = pneg %p87
      $region14: #{unit_forward.1} parent=11 // pred_check_branch
        %235 = sbr.rel (%p233) target = $region16
      $region15: #{unit_forward.1} parent=11 // pred_region
        _
      $region16: #{unit_forward.1} parent=11 // pred_fallthru
        _
      // Predicated region
      $region17: #{unit_forward.1} parent=11 // pred_check
        %p236 = pneg %p108
      $region18: #{unit_forward.1} parent=11 // pred_check_branch
        %238 = sbr.rel (%p236) target = $region20
      $region19: #{unit_forward.1} parent=11 // pred_region
        _
      $region20: #{unit_forward.1} parent=11 // pred_fallthru
        _
      // Predicated region
      $region21: #{unit_forward.1} parent=11 // pred_check
        %p239 = pneg %p129
      $region22: #{unit_forward.1} parent=11 // pred_check_branch
        %241 = sbr.rel (%p239) target = $region24
      $region23: #{unit_forward.1} parent=11 // pred_region
        _
      $region24: #{unit_forward.1} parent=11 // pred_fallthru
        _
      // Predicated region
      $region25: #{unit_forward.1} parent=11 // pred_check
        %p242 = pneg %p150
      $region26: #{unit_forward.1} parent=11 // pred_check_branch
        %244 = sbr.rel (%p242) target = $region28
      $region27: #{unit_forward.1} parent=11 // pred_region
        _
      $region28: #{unit_forward.1} parent=11 // pred_fallthru
        _
      // Predicated region
      $region29: #{unit_forward.1} parent=11 // pred_check
        %p245 = pneg %p171
      $region30: #{unit_forward.1} parent=11 // pred_check_branch
        %247 = sbr.rel (%p245) target = $region32
      $region31: #{unit_forward.1} parent=11 // pred_region
        _
      $region32: #{unit_forward.1} parent=11 // pred_fallthru
        _
      // Predicated region
      $region33: #{unit_forward.1} parent=11 // pred_check
        %p248 = pneg %p192
      $region34: #{unit_forward.1} parent=11 // pred_check_branch
        %250 = sbr.rel (%p248) target = $region36
      $region35: #{unit_forward.1} parent=11 // pred_region
        _
      $region36: #{unit_forward.1} parent=11 // pred_fallthru
        _
    $region12: #{unit_forward.1} parent=5 // pred_fallthru
      _
    %p251 = scmp.lt.s32.totalorder %s14, 2
    // Predicated region
    $region37: #{unit_forward.1} parent=5 // pred_check
      %p252 = pneg %p251
    $region38: #{unit_forward.1} parent=5 // pred_check_branch
      %254 = sbr.rel (%p252) target = $region40
    $region39: #{unit_forward.1} parent=5 // pred_region
      // Predicated region
      $region41: #{unit_forward.1} parent=39 // pred_check
        %p255 = pneg %p34
      $region42: #{unit_forward.1} parent=39 // pred_check_branch
        %257 = sbr.rel (%p255) target = $region44
      $region43: #{unit_forward.1} parent=39 // pred_region
        %p258 = scmp.lt.s32.totalorder %s14, 1
        %s259 = scalar_select %p258, %s14, 1
        %s260 = smul.addr %s259, 10
        %s261 = smul.addr %s260, 8
        %s262 = scalar_lea.vmem %s0, %s261
      $region44: #{unit_forward.1} parent=39 // pred_fallthru
        _
      // Predicated region
      $region45: #{unit_forward.1} parent=39 // pred_check
        %p263 = pneg %p60
      $region46: #{unit_forward.1} parent=39 // pred_check_branch
        %265 = sbr.rel (%p263) target = $region48
      $region47: #{unit_forward.1} parent=39 // pred_region
        %p266 = scmp.lt.s32.totalorder %s14, 1
        %s267 = scalar_select %p266, %s14, 1
        %s268 = smul.addr %s267, 10
        %s269 = smul.addr %s268, 4
        %s270 = scalar_lea.vmem %s1, %s269
      $region48: #{unit_forward.1} parent=39 // pred_fallthru
        _
    $region40: #{unit_forward.1} parent=5 // pred_fallthru
      _
    %p271 = scmp.le.s32.totalorder 1, %s14
    %p272 = scmp.lt.s32.totalorder %s14, 3
    %p273 = pnand %p271, %p272
    %p274 = pneg %p273
    // Predicated region
    $region49: #{unit_forward.1} parent=5 // pred_check
      _
    $region50: #{unit_forward.1} parent=5 // pred_check_branch
      %276 = sbr.rel (%p273) target = $region52
    $region51: #{unit_forward.1} parent=5 // pred_region
      %s277 = ssub.s32 %s14, 1
      %p278 = scmp.lt.s32.totalorder %s19, 1
      %s279 = scalar_select %p278, %s19, 1
      %s280 = smul.addr %s279, 10
      %s281 = smul.addr %s280, 8
      %s282 = scalar_lea.vmem %s0, %s281
      %p283 = pneg %p40
      %p284 = pneg %p37
      %p285 = scmp.lt.s32.totalorder %s19, 1
      %s286 = scalar_select %p285, %s19, 1
      %s287 = smul.addr %s286, 10
      %s288 = smul.addr %s287, 4
      %s289 = scalar_lea.vmem %s1, %s288
      %p290 = pneg %p66
      %p291 = pneg %p63
      %p292 = pneg %p87
      %p293 = pneg %p84
      %p294 = pneg %p108
      %p295 = pneg %p105
      %p296 = pneg %p129
      %p297 = pneg %p126
      %p298 = pneg %p150
      %p299 = pneg %p147
      %p300 = pneg %p171
      %p301 = pneg %p168
      %p302 = pneg %p192
      %p303 = pneg %p189
      %p304 = pneg %p218
      %p305 = pneg %p215
      %p306 = scmp.lt.s32.totalorder %s19, 1
      %s307 = scalar_select %p306, %s19, 1
      %s308 = smul.addr %s307, 8
      %s309 = smul.addr %s308, 8
      %s310 = scalar_lea.vmem %s8, %s309
      %p311 = scmp.lt.s32.totalorder %s19, 1
      %s312 = scalar_select %p311, %s19, 1
      %s313 = smul.addr %s312, 10
      %s314 = smul.addr %s313, 8
      %s315 = scalar_lea.vmem %s0, %s314
      %p316 = scmp.lt.s32.totalorder %s19, 1
      %s317 = scalar_select %p316, %s19, 1
      %s318 = smul.addr %s317, 10
      %s319 = smul.addr %s318, 4
      %s320 = scalar_lea.vmem %s1, %s319
      %p321 = scmp.lt.s32.totalorder %s19, 1
      %s322 = scalar_select %p321, %s19, 1
      %s323 = smul.addr %s322, 8
      %s324 = smul.addr %s323, 8
      %s325 = scalar_lea.vmem %s8, %s324
      %v326 = vld [vmem:[%s315] sm:$0x1f]
      %v327 = vld [vmem:[%s315 + $0x8] sm:$0x1f]
      %v328 = vld [vmem:[%s315 + $0x10] sm:$0x1f]
      %v329 = vld [vmem:[%s315 + $0x18] sm:$0x1f]
      %v330 = vld [vmem:[%s315 + $0x20] sm:$0x1f]
      %v331 = vld [vmem:[%s315 + $0x28] sm:$0x1f]
      %v332 = vld [vmem:[%s315 + $0x30] sm:$0x1f]
      %v333 = vld [vmem:[%s315 + $0x38] sm:$0x1f]
      %v334 = vld [vmem:[%s315 + $0x40] sm:$0x1f]
      %v335 = vld [vmem:[%s315 + $0x48] sm:$0x1f]
      %336 = vst [vmem:[#allocation2] sm:$0x1f] %v326
      %337 = vst [vmem:[#allocation2 + $0x8] sm:$0x1f] %v327
      %338 = vst [vmem:[#allocation2 + $0x10] sm:$0x1f] %v328
      %339 = vst [vmem:[#allocation2 + $0x18] sm:$0x1f] %v329
      %340 = vst [vmem:[#allocation2 + $0x20] sm:$0x1f] %v330
      %341 = vst [vmem:[#allocation2 + $0x28] sm:$0x1f] %v331
      %342 = vst [vmem:[#allocation2 + $0x30] sm:$0x1f] %v332
      %343 = vst [vmem:[#allocation2 + $0x38] sm:$0x1f] %v333
      %344 = vst [vmem:[#allocation2 + $0x40] sm:$0x1f] %v334
      %345 = vst [vmem:[#allocation2 + $0x48] sm:$0x1f] %v335
      %346 = vst [vmem:[#allocation3] sm:$0x3f] 0.0
      %347 = vst [vmem:[#allocation3 + $0x8] sm:$0x3f] 0.0
      %348 = vst [vmem:[#allocation3 + $0x10] sm:$0x3f] 0.0
      %349 = vst [vmem:[#allocation3 + $0x18] sm:$0x3f] 0.0
      %350 = vst [vmem:[#allocation3 + $0x20] sm:$0x3f] 0.0
      %351 = vst [vmem:[#allocation3 + $0x28] sm:$0x3f] 0.0
      %352 = vst [vmem:[#allocation3 + $0x30] sm:$0x3f] 0.0
      %353 = vst [vmem:[#allocation3 + $0x38] sm:$0x3f] 0.0
      %354 = vst [vmem:[#allocation3 + $0x40] sm:$0x3f] 0.0
      %355 = vst [vmem:[#allocation3 + $0x48] sm:$0x3f] 0.0
      %356 = vst [vmem:[#allocation5] sm:$0xff] 0.0
      %357 = vst [vmem:[#allocation5 + $0x8] sm:$0xff] 0.0
      %358 = vst [vmem:[#allocation5 + $0x10] sm:$0xff] 0.0
      %359 = vst [vmem:[#allocation5 + $0x18] sm:$0xff] 0.0
      %360 = vst [vmem:[#allocation5 + $0x20] sm:$0xff] 0.0
      %361 = vst [vmem:[#allocation5 + $0x28] sm:$0xff] 0.0
      %362 = vst [vmem:[#allocation5 + $0x30] sm:$0xff] 0.0
      %363 = vst [vmem:[#allocation5 + $0x38] sm:$0xff] 0.0
      %364 = vst [vmem:[#allocation5 + $0x40] sm:$0xff] 0.0
      %365 = vst [vmem:[#allocation5 + $0x48] sm:$0xff] 0.0
      %366 = vst [vmem:[#allocation5 + $0x50] sm:$0xff] 0.0
      %367 = vst [vmem:[#allocation5 + $0x58] sm:$0xff] 0.0
      %368 = vst [vmem:[#allocation5 + $0x60] sm:$0xff] 0.0
      %369 = vst [vmem:[#allocation5 + $0x68] sm:$0xff] 0.0
      %370 = vst [vmem:[#allocation5 + $0x70] sm:$0xff] 0.0
      %371 = vst [vmem:[#allocation5 + $0x78] sm:$0xff] 0.0
      %372 = vst [vmem:[#allocation5 + $0x80] sm:$0xff] 0.0
      %373 = vst [vmem:[#allocation5 + $0x88] sm:$0xff] 0.0
      %374 = vst [vmem:[#allocation5 + $0x90] sm:$0xff] 0.0
      %375 = vst [vmem:[#allocation5 + $0x98] sm:$0xff] 0.0
      %376 = vst [vmem:[#allocation5 + $0xa0] sm:$0xff] 0.0
      %377 = vst [vmem:[#allocation5 + $0xa8] sm:$0xff] 0.0
      %378 = vst [vmem:[#allocation5 + $0xb0] sm:$0xff] 0.0
      %379 = vst [vmem:[#allocation5 + $0xb8] sm:$0xff] 0.0
      %380 = vst [vmem:[#allocation5 + $0xc0] sm:$0xff] 0.0
      %381 = vst [vmem:[#allocation5 + $0xc8] sm:$0xff] 0.0
      %382 = vst [vmem:[#allocation5 + $0xd0] sm:$0xff] 0.0
      %383 = vst [vmem:[#allocation5 + $0xd8] sm:$0xff] 0.0
      %384 = vst [vmem:[#allocation5 + $0xe0] sm:$0xff] 0.0
      %385 = vst [vmem:[#allocation5 + $0xe8] sm:$0xff] 0.0
      %386 = vst [vmem:[#allocation5 + $0xf0] sm:$0xff] 0.0
      %387 = vst [vmem:[#allocation5 + $0xf8] sm:$0xff] 0.0
      %388 = vst [vmem:[#allocation5 + $0x100] sm:$0xff] 0.0
      %389 = vst [vmem:[#allocation5 + $0x108] sm:$0xff] 0.0
      %390 = vst [vmem:[#allocation5 + $0x110] sm:$0xff] 0.0
      %391 = vst [vmem:[#allocation5 + $0x118] sm:$0xff] 0.0
      %392 = vst [vmem:[#allocation5 + $0x120] sm:$0xff] 0.0
      %393 = vst [vmem:[#allocation5 + $0x128] sm:$0xff] 0.0
      %394 = vst [vmem:[#allocation5 + $0x130] sm:$0xff] 0.0
      %395 = vst [vmem:[#allocation5 + $0x138] sm:$0xff] 0.0
      %396 = vst [vmem:[#allocation5 + $0x140] sm:$0xff] 0.0
      %397 = vst [vmem:[#allocation5 + $0x148] sm:$0xff] 0.0
      %398 = vst [vmem:[#allocation5 + $0x150] sm:$0xff] 0.0
      %399 = vst [vmem:[#allocation5 + $0x158] sm:$0xff] 0.0
      %400 = vst [vmem:[#allocation5 + $0x160] sm:$0xff] 0.0
      %401 = vst [vmem:[#allocation5 + $0x168] sm:$0xff] 0.0
      %402 = vst [vmem:[#allocation5 + $0x170] sm:$0xff] 0.0
      %403 = vst [vmem:[#allocation5 + $0x178] sm:$0xff] 0.0
      %404 = vst [vmem:[#allocation5 + $0x180] sm:$0xff] 0.0
      %405 = vst [vmem:[#allocation5 + $0x188] sm:$0xff] 0.0
      %406 = vst [vmem:[#allocation5 + $0x190] sm:$0xff] 0.0
      %407 = vst [vmem:[#allocation5 + $0x198] sm:$0xff] 0.0
      %408 = vst [vmem:[#allocation5 + $0x1a0] sm:$0xff] 0.0
      %409 = vst [vmem:[#allocation5 + $0x1a8] sm:$0xff] 0.0
      %410 = vst [vmem:[#allocation5 + $0x1b0] sm:$0xff] 0.0
      %411 = vst [vmem:[#allocation5 + $0x1b8] sm:$0xff] 0.0
      %412 = vst [vmem:[#allocation5 + $0x1c0] sm:$0xff] 0.0
      %413 = vst [vmem:[#allocation5 + $0x1c8] sm:$0xff] 0.0
      %414 = vst [vmem:[#allocation5 + $0x1d0] sm:$0xff] 0.0
      %415 = vst [vmem:[#allocation5 + $0x1d8] sm:$0xff] 0.0
      %416 = vst [vmem:[#allocation5 + $0x1e0] sm:$0xff] 0.0
      %417 = vst [vmem:[#allocation5 + $0x1e8] sm:$0xff] 0.0
      %418 = vst [vmem:[#allocation5 + $0x1f0] sm:$0xff] 0.0
      %419 = vst [vmem:[#allocation5 + $0x1f8] sm:$0xff] 0.0
      %420 = vst [vmem:[#allocation5 + $0x200] sm:$0xff] 0.0
      %421 = vst [vmem:[#allocation5 + $0x208] sm:$0xff] 0.0
      %422 = vst [vmem:[#allocation5 + $0x210] sm:$0xff] 0.0
      %423 = vst [vmem:[#allocation5 + $0x218] sm:$0xff] 0.0
      %424 = vst [vmem:[#allocation5 + $0x220] sm:$0xff] 0.0
      %425 = vst [vmem:[#allocation5 + $0x228] sm:$0xff] 0.0
      %426 = vst [vmem:[#allocation5 + $0x230] sm:$0xff] 0.0
      %427 = vst [vmem:[#allocation5 + $0x238] sm:$0xff] 0.0
      %428 = vst [vmem:[#allocation5 + $0x240] sm:$0xff] 0.0
      %429 = vst [vmem:[#allocation5 + $0x248] sm:$0xff] 0.0
      %430 = vst [vmem:[#allocation5 + $0x250] sm:$0xff] 0.0
      %431 = vst [vmem:[#allocation5 + $0x258] sm:$0xff] 0.0
      %432 = vst [vmem:[#allocation5 + $0x260] sm:$0xff] 0.0
      %433 = vst [vmem:[#allocation5 + $0x268] sm:$0xff] 0.0
      %434 = vst [vmem:[#allocation5 + $0x270] sm:$0xff] 0.0
      %435 = vst [vmem:[#allocation5 + $0x278] sm:$0xff] 0.0
      %436 = vst [vmem:[#allocation5 + $0x280] sm:$0xff] 0.0
      %437 = vst [vmem:[#allocation5 + $0x288] sm:$0xff] 0.0
      %438 = vst [vmem:[#allocation5 + $0x290] sm:$0xff] 0.0
      %439 = vst [vmem:[#allocation5 + $0x298] sm:$0xff] 0.0
      %440 = vst [vmem:[#allocation5 + $0x2a0] sm:$0xff] 0.0
      %441 = vst [vmem:[#allocation5 + $0x2a8] sm:$0xff] 0.0
      %442 = vst [vmem:[#allocation5 + $0x2b0] sm:$0xff] 0.0
      %443 = vst [vmem:[#allocation5 + $0x2b8] sm:$0xff] 0.0
      %444 = vst [vmem:[#allocation5 + $0x2c0] sm:$0xff] 0.0
      %445 = vst [vmem:[#allocation5 + $0x2c8] sm:$0xff] 0.0
      %446 = vst [vmem:[#allocation5 + $0x2d0] sm:$0xff] 0.0
      %447 = vst [vmem:[#allocation5 + $0x2d8] sm:$0xff] 0.0
      %448 = vst [vmem:[#allocation5 + $0x2e0] sm:$0xff] 0.0
      %449 = vst [vmem:[#allocation5 + $0x2e8] sm:$0xff] 0.0
      %450 = vst [vmem:[#allocation5 + $0x2f0] sm:$0xff] 0.0
      %451 = vst [vmem:[#allocation5 + $0x2f8] sm:$0xff] 0.0
      %452 = vst [vmem:[#allocation5 + $0x300] sm:$0xff] 0.0
      %453 = vst [vmem:[#allocation5 + $0x308] sm:$0xff] 0.0
      %454 = vst [vmem:[#allocation5 + $0x310] sm:$0xff] 0.0
      %455 = vst [vmem:[#allocation5 + $0x318] sm:$0xff] 0.0
      %456 = vst [vmem:[#allocation5 + $0x320] sm:$0xff] 0.0
      %457 = vst [vmem:[#allocation5 + $0x328] sm:$0xff] 0.0
      %458 = vst [vmem:[#allocation5 + $0x330] sm:$0xff] 0.0
      %459 = vst [vmem:[#allocation5 + $0x338] sm:$0xff] 0.0
      %460 = vst [vmem:[#allocation5 + $0x340] sm:$0xff] 0.0
      %461 = vst [vmem:[#allocation5 + $0x348] sm:$0xff] 0.0
      %462 = vst [vmem:[#allocation5 + $0x350] sm:$0xff] 0.0
      %463 = vst [vmem:[#allocation5 + $0x358] sm:$0xff] 0.0
      %464 = vst [vmem:[#allocation5 + $0x360] sm:$0xff] 0.0
      %465 = vst [vmem:[#allocation5 + $0x368] sm:$0xff] 0.0
      %466 = vst [vmem:[#allocation5 + $0x370] sm:$0xff] 0.0
      %467 = vst [vmem:[#allocation5 + $0x378] sm:$0xff] 0.0
      %468 = vst [vmem:[#allocation5 + $0x380] sm:$0xff] 0.0
      %469 = vst [vmem:[#allocation5 + $0x388] sm:$0xff] 0.0
      %470 = vst [vmem:[#allocation5 + $0x390] sm:$0xff] 0.0
      %471 = vst [vmem:[#allocation5 + $0x398] sm:$0xff] 0.0
      %472 = vst [vmem:[#allocation5 + $0x3a0] sm:$0xff] 0.0
      %473 = vst [vmem:[#allocation5 + $0x3a8] sm:$0xff] 0.0
      %474 = vst [vmem:[#allocation5 + $0x3b0] sm:$0xff] 0.0
      %475 = vst [vmem:[#allocation5 + $0x3b8] sm:$0xff] 0.0
      %476 = vst [vmem:[#allocation5 + $0x3c0] sm:$0xff] 0.0
      %477 = vst [vmem:[#allocation5 + $0x3c8] sm:$0xff] 0.0
      %478 = vst [vmem:[#allocation5 + $0x3d0] sm:$0xff] 0.0
      %479 = vst [vmem:[#allocation5 + $0x3d8] sm:$0xff] 0.0
      %480 = vst [vmem:[#allocation5 + $0x3e0] sm:$0xff] 0.0
      %481 = vst [vmem:[#allocation5 + $0x3e8] sm:$0xff] 0.0
      %482 = vst [vmem:[#allocation5 + $0x3f0] sm:$0xff] 0.0
      %483 = vst [vmem:[#allocation5 + $0x3f8] sm:$0xff] 0.0
      %484 = vst [vmem:[#allocation5 + $0x400] sm:$0xff] 0.0
      %485 = vst [vmem:[#allocation5 + $0x408] sm:$0xff] 0.0
      %486 = vst [vmem:[#allocation5 + $0x410] sm:$0xff] 0.0
      %487 = vst [vmem:[#allocation5 + $0x418] sm:$0xff] 0.0
      %488 = vst [vmem:[#allocation5 + $0x420] sm:$0xff] 0.0
      %489 = vst [vmem:[#allocation5 + $0x428] sm:$0xff] 0.0
      %490 = vst [vmem:[#allocation5 + $0x430] sm:$0xff] 0.0
      %491 = vst [vmem:[#allocation5 + $0x438] sm:$0xff] 0.0
      %492 = vst [vmem:[#allocation5 + $0x440] sm:$0xff] 0.0
      %493 = vst [vmem:[#allocation5 + $0x448] sm:$0xff] 0.0
      %494 = vst [vmem:[#allocation5 + $0x450] sm:$0xff] 0.0
      %495 = vst [vmem:[#allocation5 + $0x458] sm:$0xff] 0.0
      %496 = vst [vmem:[#allocation5 + $0x460] sm:$0xff] 0.0
      %497 = vst [vmem:[#allocation5 + $0x468] sm:$0xff] 0.0
      %498 = vst [vmem:[#allocation5 + $0x470] sm:$0xff] 0.0
      %499 = vst [vmem:[#allocation5 + $0x478] sm:$0xff] 0.0
      %500 = vst [vmem:[#allocation5 + $0x480] sm:$0xff] 0.0
      %501 = vst [vmem:[#allocation5 + $0x488] sm:$0xff] 0.0
      %502 = vst [vmem:[#allocation5 + $0x490] sm:$0xff] 0.0
      %503 = vst [vmem:[#allocation5 + $0x498] sm:$0xff] 0.0
      %504 = vst [vmem:[#allocation5 + $0x4a0] sm:$0xff] 0.0
      %505 = vst [vmem:[#allocation5 + $0x4a8] sm:$0xff] 0.0
      %506 = vst [vmem:[#allocation5 + $0x4b0] sm:$0xff] 0.0
      %507 = vst [vmem:[#allocation5 + $0x4b8] sm:$0xff] 0.0
      %508 = vst [vmem:[#allocation5 + $0x4c0] sm:$0xff] 0.0
      %509 = vst [vmem:[#allocation5 + $0x4c8] sm:$0xff] 0.0
      %510 = vst [vmem:[#allocation5 + $0x4d0] sm:$0xff] 0.0
      %511 = vst [vmem:[#allocation5 + $0x4d8] sm:$0xff] 0.0
      %512 = vst [vmem:[#allocation5 + $0x4e0] sm:$0xff] 0.0
      %513 = vst [vmem:[#allocation5 + $0x4e8] sm:$0xff] 0.0
      %514 = vst [vmem:[#allocation5 + $0x4f0] sm:$0xff] 0.0
      %515 = vst [vmem:[#allocation5 + $0x4f8] sm:$0xff] 0.0
      %516 = vst [vmem:[#allocation5 + $0x500] sm:$0xff] 0.0
      %517 = vst [vmem:[#allocation5 + $0x508] sm:$0xff] 0.0
      %518 = vst [vmem:[#allocation5 + $0x510] sm:$0xff] 0.0
      %519 = vst [vmem:[#allocation5 + $0x518] sm:$0xff] 0.0
      %520 = vst [vmem:[#allocation5 + $0x520] sm:$0xff] 0.0
      %521 = vst [vmem:[#allocation5 + $0x528] sm:$0xff] 0.0
      %522 = vst [vmem:[#allocation5 + $0x530] sm:$0xff] 0.0
      %523 = vst [vmem:[#allocation5 + $0x538] sm:$0xff] 0.0
      %524 = vst [vmem:[#allocation5 + $0x540] sm:$0xff] 0.0
      %525 = vst [vmem:[#allocation5 + $0x548] sm:$0xff] 0.0
      %526 = vst [vmem:[#allocation5 + $0x550] sm:$0xff] 0.0
      %527 = vst [vmem:[#allocation5 + $0x558] sm:$0xff] 0.0
      %528 = vst [vmem:[#allocation5 + $0x560] sm:$0xff] 0.0
      %529 = vst [vmem:[#allocation5 + $0x568] sm:$0xff] 0.0
      %530 = vst [vmem:[#allocation5 + $0x570] sm:$0xff] 0.0
      %531 = vst [vmem:[#allocation5 + $0x578] sm:$0xff] 0.0
      %532 = vst [vmem:[#allocation5 + $0x580] sm:$0xff] 0.0
      %533 = vst [vmem:[#allocation5 + $0x588] sm:$0xff] 0.0
      %534 = vst [vmem:[#allocation5 + $0x590] sm:$0xff] 0.0
      %535 = vst [vmem:[#allocation5 + $0x598] sm:$0xff] 0.0
      %536 = vst [vmem:[#allocation5 + $0x5a0] sm:$0xff] 0.0
      %537 = vst [vmem:[#allocation5 + $0x5a8] sm:$0xff] 0.0
      %538 = vst [vmem:[#allocation5 + $0x5b0] sm:$0xff] 0.0
      %539 = vst [vmem:[#allocation5 + $0x5b8] sm:$0xff] 0.0
      %540 = vst [vmem:[#allocation5 + $0x5c0] sm:$0xff] 0.0
      %541 = vst [vmem:[#allocation5 + $0x5c8] sm:$0xff] 0.0
      %542 = vst [vmem:[#allocation5 + $0x5d0] sm:$0xff] 0.0
      %543 = vst [vmem:[#allocation5 + $0x5d8] sm:$0xff] 0.0
      %544 = vst [vmem:[#allocation5 + $0x5e0] sm:$0xff] 0.0
      %545 = vst [vmem:[#allocation5 + $0x5e8] sm:$0xff] 0.0
      %546 = vst [vmem:[#allocation5 + $0x5f0] sm:$0xff] 0.0
      %547 = vst [vmem:[#allocation5 + $0x5f8] sm:$0xff] 0.0
      %548 = vst [vmem:[#allocation5 + $0x600] sm:$0xff] 0.0
      %549 = vst [vmem:[#allocation5 + $0x608] sm:$0xff] 0.0
      %550 = vst [vmem:[#allocation5 + $0x610] sm:$0xff] 0.0
      %551 = vst [vmem:[#allocation5 + $0x618] sm:$0xff] 0.0
      %552 = vst [vmem:[#allocation5 + $0x620] sm:$0xff] 0.0
      %553 = vst [vmem:[#allocation5 + $0x628] sm:$0xff] 0.0
      %554 = vst [vmem:[#allocation5 + $0x630] sm:$0xff] 0.0
      %555 = vst [vmem:[#allocation5 + $0x638] sm:$0xff] 0.0
      %v556 = vlaneseq
      %v557 = vand.u32 %v556, 127
      %v558 = vadd.s32 %v557, 128
      %v559 = vadd.s32 %v557, 256
      %v560 = vadd.s32 %v557, 384
      %v561 = vadd.s32 %v557, 512
      %v562 = vadd.s32 %v557, 640
      %v563 = vadd.s32 %v557, 768
      %v564 = vadd.s32 %v557, 896
      %vm565 = vcmp.lt.s32.totalorder %v557, 0
      %v566 = vsub.s32 0, %v557
      %v567 = vsel %vm565, %v566, %v557
      %v568 = vshrl.u32 %v567, 5
      %v569 = vand.u32 %v567, 31
      %v570 = vsub.s32 0, %v569
      %v571 = vsel %vm565, %v570, %v569
      %vm572 = vcmp.lt.s32.totalorder %v558, 0
      %v573 = vsub.s32 0, %v558
      %v574 = vsel %vm572, %v573, %v558
      %v575 = vshrl.u32 %v574, 5
      %v576 = vand.u32 %v574, 31
      %v577 = vsub.s32 0, %v576
      %v578 = vsel %vm572, %v577, %v576
      %vm579 = vcmp.lt.s32.totalorder %v559, 0
      %v580 = vsub.s32 0, %v559
      %v581 = vsel %vm579, %v580, %v559
      %v582 = vshrl.u32 %v581, 5
      %v583 = vand.u32 %v581, 31
      %v584 = vsub.s32 0, %v583
      %v585 = vsel %vm579, %v584, %v583
      %vm586 = vcmp.lt.s32.totalorder %v560, 0
      %v587 = vsub.s32 0, %v560
      %v588 = vsel %vm586, %v587, %v560
      %v589 = vshrl.u32 %v588, 5
      %v590 = vand.u32 %v588, 31
      %v591 = vsub.s32 0, %v590
      %v592 = vsel %vm586, %v591, %v590
      %vm593 = vcmp.lt.s32.totalorder %v561, 0
      %v594 = vsub.s32 0, %v561
      %v595 = vsel %vm593, %v594, %v561
      %v596 = vshrl.u32 %v595, 5
      %v597 = vand.u32 %v595, 31
      %v598 = vsub.s32 0, %v597
      %v599 = vsel %vm593, %v598, %v597
      %vm600 = vcmp.lt.s32.totalorder %v562, 0
      %v601 = vsub.s32 0, %v562
      %v602 = vsel %vm600, %v601, %v562
      %v603 = vshrl.u32 %v602, 5
      %v604 = vand.u32 %v602, 31
      %v605 = vsub.s32 0, %v604
      %v606 = vsel %vm600, %v605, %v604
      %vm607 = vcmp.lt.s32.totalorder %v563, 0
      %v608 = vsub.s32 0, %v563
      %v609 = vsel %vm607, %v608, %v563
      %v610 = vshrl.u32 %v609, 5
      %v611 = vand.u32 %v609, 31
      %v612 = vsub.s32 0, %v611
      %v613 = vsel %vm607, %v612, %v611
      %vm614 = vcmp.lt.s32.totalorder %v564, 0
      %v615 = vsub.s32 0, %v564
      %v616 = vsel %vm614, %v615, %v564
      %v617 = vshrl.u32 %v616, 5
      %v618 = vand.u32 %v616, 31
      %v619 = vsub.s32 0, %v618
      %v620 = vsel %vm614, %v619, %v618
      %vm621 = vcmp.ne.s32.totalorder %v571, 0
      %vm622 = vcmp.ne.s32.totalorder %v578, 0
      %vm623 = vcmp.ne.s32.totalorder %v585, 0
      %vm624 = vcmp.ne.s32.totalorder %v592, 0
      %vm625 = vcmp.ne.s32.totalorder %v599, 0
      %vm626 = vcmp.ne.s32.totalorder %v606, 0
      %vm627 = vcmp.ne.s32.totalorder %v613, 0
      %vm628 = vcmp.ne.s32.totalorder %v620, 0
      %vm629 = vcmp.lt.s32.totalorder %v571, 0
      %vm630 = vcmp.lt.s32.totalorder %v578, 0
      %vm631 = vcmp.lt.s32.totalorder %v585, 0
      %vm632 = vcmp.lt.s32.totalorder %v592, 0
      %vm633 = vcmp.lt.s32.totalorder %v599, 0
      %vm634 = vcmp.lt.s32.totalorder %v606, 0
      %vm635 = vcmp.lt.s32.totalorder %v613, 0
      %vm636 = vcmp.lt.s32.totalorder %v620, 0
      %vm637 = vmand %vm629, %vm621
      %vm638 = vmand %vm630, %vm622
      %vm639 = vmand %vm631, %vm623
      %vm640 = vmand %vm632, %vm624
      %vm641 = vmand %vm633, %vm625
      %vm642 = vmand %vm634, %vm626
      %vm643 = vmand %vm635, %vm627
      %vm644 = vmand %vm636, %vm628
      %v645 = vadd.s32 %v571, 32
      %v646 = vadd.s32 %v578, 32
      %v647 = vadd.s32 %v585, 32
      %v648 = vadd.s32 %v592, 32
      %v649 = vadd.s32 %v599, 32
      %v650 = vadd.s32 %v606, 32
      %v651 = vadd.s32 %v613, 32
      %v652 = vadd.s32 %v620, 32
      %v653 = vsel %vm637, %v645, %v571
      %v654 = vsel %vm638, %v646, %v578
      %v655 = vsel %vm639, %v647, %v585
      %v656 = vsel %vm640, %v648, %v592
      %v657 = vsel %vm641, %v649, %v599
      %v658 = vsel %vm642, %v650, %v606
      %v659 = vsel %vm643, %v651, %v613
      %v660 = vsel %vm644, %v652, %v620
      %v661 = vadd.s32 %v653, 4294967294
      %v662 = vadd.s32 %v654, 4294967294
      %v663 = vadd.s32 %v655, 4294967294
      %v664 = vadd.s32 %v656, 4294967294
      %v665 = vadd.s32 %v657, 4294967294
      %v666 = vadd.s32 %v658, 4294967294
      %v667 = vadd.s32 %v659, 4294967294
      %v668 = vadd.s32 %v660, 4294967294
      %vm669 = vcmp.ge.s32.totalorder %v661, 0
      %vm670 = vcmp.ge.s32.totalorder %v662, 0
      %vm671 = vcmp.ge.s32.totalorder %v663, 0
      %vm672 = vcmp.ge.s32.totalorder %v664, 0
      %vm673 = vcmp.ge.s32.totalorder %v665, 0
      %vm674 = vcmp.ge.s32.totalorder %v666, 0
      %vm675 = vcmp.ge.s32.totalorder %v667, 0
      %vm676 = vcmp.ge.s32.totalorder %v668, 0
      %vm677 = vcmp.lt.s32.totalorder %v661, 32
      %vm678 = vcmp.lt.s32.totalorder %v662, 32
      %vm679 = vcmp.lt.s32.totalorder %v663, 32
      %vm680 = vcmp.lt.s32.totalorder %v664, 32
      %vm681 = vcmp.lt.s32.totalorder %v665, 32
      %vm682 = vcmp.lt.s32.totalorder %v666, 32
      %vm683 = vcmp.lt.s32.totalorder %v667, 32
      %vm684 = vcmp.lt.s32.totalorder %v668, 32
      %vm685 = vmand %vm669, %vm677
      %vm686 = vmand %vm670, %vm678
      %vm687 = vmand %vm671, %vm679
      %vm688 = vmand %vm672, %vm680
      %vm689 = vmand %vm673, %vm681
      %vm690 = vmand %vm674, %vm682
      %vm691 = vmand %vm675, %vm683
      %vm692 = vmand %vm676, %vm684
      %v693 = vld [vmem:[%s320] sm:$0x77]
      %v694 = vld [vmem:[%s320 + $0x8] sm:$0x77]
      %v695 = vld [vmem:[%s320 + $0x10] sm:$0x77]
      %v696 = vld [vmem:[%s320 + $0x18] sm:$0x77]
      %v697 = vld [vmem:[%s320 + $0x20] sm:$0x7]
      %v698 = vsel %vm685, 1, 0
      %v699 = vsel %vm686, 1, 0
      %v700 = vsel %vm687, 1, 0
      %v701 = vsel %vm688, 1, 0
      %v702 = vsel %vm689, 1, 0
      %v703 = vsel %vm690, 1, 0
      %v704 = vsel %vm691, 1, 0
      %v705 = vsel %vm692, 1, 0
      %vm706 = vcmp.eq.s32.totalorder %v698, 1
      %vm707 = vcmp.eq.s32.totalorder %v699, 1
      %vm708 = vcmp.eq.s32.totalorder %v700, 1
      %vm709 = vcmp.eq.s32.totalorder %v701, 1
      %vm710 = vcmp.eq.s32.totalorder %v702, 1
      %vm711 = vcmp.eq.s32.totalorder %v703, 1
      %vm712 = vcmp.eq.s32.totalorder %v704, 1
      %vm713 = vcmp.eq.s32.totalorder %v705, 1
      %v719 = vcombine.high %v693, %v693
      %v720 = vcombine.high %v694, %v694
      %v721 = vcombine.high %v695, %v695
      %v722 = vcombine.high %v696, %v696
      %723 = vrot.lane.b32.xlu0 %v693, 66
      %v724 = vpop.permute.xlu0 %723
      %725 = vrot.lane.b32.xlu0 %v719, 66
      %v726 = vpop.permute.xlu0 %725
      %727 = vrot.lane.b32.xlu0 %v694, 66
      %v728 = vpop.permute.xlu0 %727
      %729 = vrot.lane.b32.xlu0 %v720, 66
      %v730 = vpop.permute.xlu0 %729
      %731 = vrot.lane.b32.xlu0 %v695, 66
      %v732 = vpop.permute.xlu0 %731
      %733 = vrot.lane.b32.xlu0 %v721, 66
      %v734 = vpop.permute.xlu0 %733
      %735 = vrot.lane.b32.xlu0 %v696, 66
      %v736 = vpop.permute.xlu0 %735
      %737 = vrot.lane.b32.xlu0 %v722, 66
      %v738 = vpop.permute.xlu0 %737
      %739 = vrot.lane.b32.xlu0 %v697, 66
      %v740 = vpop.permute.xlu0 %739
      %vm741 = vcmask 539648
      %v742 = vsel %vm741, %v724, %v726
      %v743 = vsel %vm741, %v726, %v728
      %v744 = vsel %vm741, %v728, %v730
      %v745 = vsel %vm741, %v730, %v732
      %v746 = vsel %vm741, %v732, %v734
      %v747 = vsel %vm741, %v734, %v736
      %v748 = vsel %vm741, %v736, %v738
      %v749 = vsel %vm741, %v738, %v740
      %v758 = vsel %vm706, %v742, 0.0
      %v759 = vsel %vm707, %v743, 0.0
      %v760 = vsel %vm708, %v744, 0.0
      %v761 = vsel %vm709, %v745, 0.0
      %v762 = vsel %vm710, %v746, 0.0
      %v763 = vsel %vm711, %v747, 0.0
      %v764 = vsel %vm712, %v748, 0.0
      %v765 = vsel %vm713, %v749, 0.0
      %v774 = vrot.slane %v758, 3
      %v775 = vrot.slane %v759, 3
      %v776 = vrot.slane %v760, 3
      %v777 = vrot.slane %v761, 3
      %v778 = vrot.slane %v762, 3
      %v779 = vrot.slane %v763, 3
      %v780 = vrot.slane %v764, 3
      %v781 = vrot.slane %v765, 3
      %790 = vst [vmem:[#allocation4] sm:$0xe0] %v774
      %791 = vst [vmem:[#allocation4 + $0x8] sm:$0xe0] %v775
      %792 = vst [vmem:[#allocation4 + $0x10] sm:$0xe0] %v776
      %793 = vst [vmem:[#allocation4 + $0x18] sm:$0xe0] %v777
      %794 = vst [vmem:[#allocation4 + $0x20] sm:$0xe0] %v778
      %795 = vst [vmem:[#allocation4 + $0x28] sm:$0xe0] %v779
      %796 = vst [vmem:[#allocation4 + $0x30] sm:$0xe0] %v780
      %797 = vst [vmem:[#allocation4 + $0x38] sm:$0xe0] %v781
      %v798 = vld [vmem:[%s320] sm:$0x77]
      %v799 = vld [vmem:[%s320 + $0x8] sm:$0x77]
      %v800 = vld [vmem:[%s320 + $0x10] sm:$0x77]
      %v801 = vld [vmem:[%s320 + $0x18] sm:$0x77]
      %v802 = vld [vmem:[%s320 + $0x20] sm:$0x7]
      %v808 = vcombine.high %v798, %v798
      %v809 = vcombine.high %v799, %v799
      %v810 = vcombine.high %v800, %v800
      %v811 = vcombine.high %v801, %v801
      %812 = vrot.lane.b32.xlu0 %v798, 34
      %v813 = vpop.permute.xlu0 %812
      %814 = vrot.lane.b32.xlu0 %v808, 34
      %v815 = vpop.permute.xlu0 %814
      %816 = vrot.lane.b32.xlu0 %v799, 34
      %v817 = vpop.permute.xlu0 %816
      %818 = vrot.lane.b32.xlu0 %v809, 34
      %v819 = vpop.permute.xlu0 %818
      %820 = vrot.lane.b32.xlu0 %v800, 34
      %v821 = vpop.permute.xlu0 %820
      %822 = vrot.lane.b32.xlu0 %v810, 34
      %v823 = vpop.permute.xlu0 %822
      %824 = vrot.lane.b32.xlu0 %v801, 34
      %v825 = vpop.permute.xlu0 %824
      %826 = vrot.lane.b32.xlu0 %v811, 34
      %v827 = vpop.permute.xlu0 %826
      %828 = vrot.lane.b32.xlu0 %v802, 34
      %v829 = vpop.permute.xlu0 %828
      %vm830 = vcmask 277504
      %v831 = vsel %vm830, %v813, %v815
      %v832 = vsel %vm830, %v815, %v817
      %v833 = vsel %vm830, %v817, %v819
      %v834 = vsel %vm830, %v819, %v821
      %v835 = vsel %vm830, %v821, %v823
      %v836 = vsel %vm830, %v823, %v825
      %v837 = vsel %vm830, %v825, %v827
      %v838 = vsel %vm830, %v827, %v829
      %v847 = vsel %vm706, %v831, 0.0
      %v848 = vsel %vm707, %v832, 0.0
      %v849 = vsel %vm708, %v833, 0.0
      %v850 = vsel %vm709, %v834, 0.0
      %v851 = vsel %vm710, %v835, 0.0
      %v852 = vsel %vm711, %v836, 0.0
      %v853 = vsel %vm712, %v837, 0.0
      %v854 = vsel %vm713, %v838, 0.0
      %v863 = vrot.slane %v847, 3
      %v864 = vrot.slane %v848, 3
      %v865 = vrot.slane %v849, 3
      %v866 = vrot.slane %v850, 3
      %v867 = vrot.slane %v851, 3
      %v868 = vrot.slane %v852, 3
      %v869 = vrot.slane %v853, 3
      %v870 = vrot.slane %v854, 3
      %879 = vst [vmem:[#allocation4 + $0x140] sm:$0xe0] %v863
      %880 = vst [vmem:[#allocation4 + $0x148] sm:$0xe0] %v864
      %881 = vst [vmem:[#allocation4 + $0x150] sm:$0xe0] %v865
      %882 = vst [vmem:[#allocation4 + $0x158] sm:$0xe0] %v866
      %883 = vst [vmem:[#allocation4 + $0x160] sm:$0xe0] %v867
      %884 = vst [vmem:[#allocation4 + $0x168] sm:$0xe0] %v868
      %885 = vst [vmem:[#allocation4 + $0x170] sm:$0xe0] %v869
      %886 = vst [vmem:[#allocation4 + $0x178] sm:$0xe0] %v870
      %v887 = vld [vmem:[%s320] sm:$0x77]
      %v888 = vld [vmem:[%s320 + $0x8] sm:$0x77]
      %v889 = vld [vmem:[%s320 + $0x10] sm:$0x77]
      %v890 = vld [vmem:[%s320 + $0x18] sm:$0x77]
      %v891 = vld [vmem:[%s320 + $0x20] sm:$0x7]
      %v897 = vcombine.high %v887, %v887
      %v898 = vcombine.high %v888, %v888
      %v899 = vcombine.high %v889, %v889
      %v900 = vcombine.high %v890, %v890
      %901 = vrot.lane.b32.xlu0 %v887, 2
      %v902 = vpop.permute.xlu0 %901
      %903 = vrot.lane.b32.xlu0 %v897, 2
      %v904 = vpop.permute.xlu0 %903
      %905 = vrot.lane.b32.xlu0 %v888, 2
      %v906 = vpop.permute.xlu0 %905
      %907 = vrot.lane.b32.xlu0 %v898, 2
      %v908 = vpop.permute.xlu0 %907
      %909 = vrot.lane.b32.xlu0 %v889, 2
      %v910 = vpop.permute.xlu0 %909
      %911 = vrot.lane.b32.xlu0 %v899, 2
      %v912 = vpop.permute.xlu0 %911
      %913 = vrot.lane.b32.xlu0 %v890, 2
      %v914 = vpop.permute.xlu0 %913
      %915 = vrot.lane.b32.xlu0 %v900, 2
      %v916 = vpop.permute.xlu0 %915
      %917 = vrot.lane.b32.xlu0 %v891, 2
      %v918 = vpop.permute.xlu0 %917
      %vm919 = vcmask 15360
      %v920 = vsel %vm919, %v902, %v904
      %v921 = vsel %vm919, %v904, %v906
      %v922 = vsel %vm919, %v906, %v908
      %v923 = vsel %vm919, %v908, %v910
      %v924 = vsel %vm919, %v910, %v912
      %v925 = vsel %vm919, %v912, %v914
      %v926 = vsel %vm919, %v914, %v916
      %v927 = vsel %vm919, %v916, %v918
      %v936 = vsel %vm706, %v920, 0.0
      %v937 = vsel %vm707, %v921, 0.0
      %v938 = vsel %vm708, %v922, 0.0
      %v939 = vsel %vm709, %v923, 0.0
      %v940 = vsel %vm710, %v924, 0.0
      %v941 = vsel %vm711, %v925, 0.0
      %v942 = vsel %vm712, %v926, 0.0
      %v943 = vsel %vm713, %v927, 0.0
      %v952 = vrot.slane %v936, 3
      %v953 = vrot.slane %v937, 3
      %v954 = vrot.slane %v938, 3
      %v955 = vrot.slane %v939, 3
      %v956 = vrot.slane %v940, 3
      %v957 = vrot.slane %v941, 3
      %v958 = vrot.slane %v942, 3
      %v959 = vrot.slane %v943, 3
      %968 = vst [vmem:[#allocation4 + $0x280] sm:$0xe0] %v952
      %969 = vst [vmem:[#allocation4 + $0x288] sm:$0xe0] %v953
      %970 = vst [vmem:[#allocation4 + $0x290] sm:$0xe0] %v954
      %971 = vst [vmem:[#allocation4 + $0x298] sm:$0xe0] %v955
      %972 = vst [vmem:[#allocation4 + $0x2a0] sm:$0xe0] %v956
      %973 = vst [vmem:[#allocation4 + $0x2a8] sm:$0xe0] %v957
      %974 = vst [vmem:[#allocation4 + $0x2b0] sm:$0xe0] %v958
      %975 = vst [vmem:[#allocation4 + $0x2b8] sm:$0xe0] %v959
      %v976 = vld [vmem:[%s320 + $0x4] sm:$0x77]
      %v977 = vld [vmem:[%s320 + $0xc] sm:$0x77]
      %v978 = vld [vmem:[%s320 + $0x14] sm:$0x77]
      %v979 = vld [vmem:[%s320 + $0x1c] sm:$0x77]
      %v980 = vld [vmem:[%s320 + $0x24] sm:$0x7]
      %v986 = vcombine.high %v976, %v976
      %v987 = vcombine.high %v977, %v977
      %v988 = vcombine.high %v978, %v978
      %v989 = vcombine.high %v979, %v979
      %990 = vrot.lane.b32.xlu0 %v976, 98
      %v991 = vpop.permute.xlu0 %990
      %992 = vrot.lane.b32.xlu0 %v986, 98
      %v993 = vpop.permute.xlu0 %992
      %994 = vrot.lane.b32.xlu0 %v977, 98
      %v995 = vpop.permute.xlu0 %994
      %996 = vrot.lane.b32.xlu0 %v987, 98
      %v997 = vpop.permute.xlu0 %996
      %998 = vrot.lane.b32.xlu0 %v978, 98
      %v999 = vpop.permute.xlu0 %998
      %1000 = vrot.lane.b32.xlu0 %v988, 98
      %v1001 = vpop.permute.xlu0 %1000
      %1002 = vrot.lane.b32.xlu0 %v979, 98
      %v1003 = vpop.permute.xlu0 %1002
      %1004 = vrot.lane.b32.xlu0 %v989, 98
      %v1005 = vpop.permute.xlu0 %1004
      %1006 = vrot.lane.b32.xlu0 %v980, 98
      %v1007 = vpop.permute.xlu0 %1006
      %vm1008 = vcmask 801792
      %v1009 = vsel %vm1008, %v991, %v993
      %v1010 = vsel %vm1008, %v993, %v995
      %v1011 = vsel %vm1008, %v995, %v997
      %v1012 = vsel %vm1008, %v997, %v999
      %v1013 = vsel %vm1008, %v999, %v1001
      %v1014 = vsel %vm1008, %v1001, %v1003
      %v1015 = vsel %vm1008, %v1003, %v1005
      %v1016 = vsel %vm1008, %v1005, %v1007
      %v1025 = vsel %vm706, %v1009, 0.0
      %v1026 = vsel %vm707, %v1010, 0.0
      %v1027 = vsel %vm708, %v1011, 0.0
      %v1028 = vsel %vm709, %v1012, 0.0
      %v1029 = vsel %vm710, %v1013, 0.0
      %v1030 = vsel %vm711, %v1014, 0.0
      %v1031 = vsel %vm712, %v1015, 0.0
      %v1032 = vsel %vm713, %v1016, 0.0
      %v1041 = vrot.slane %v1025, 3
      %v1042 = vrot.slane %v1026, 3
      %v1043 = vrot.slane %v1027, 3
      %v1044 = vrot.slane %v1028, 3
      %v1045 = vrot.slane %v1029, 3
      %v1046 = vrot.slane %v1030, 3
      %v1047 = vrot.slane %v1031, 3
      %v1048 = vrot.slane %v1032, 3
      %1057 = vst [vmem:[#allocation4 + $0x3c0] sm:$0xe0] %v1041
      %1058 = vst [vmem:[#allocation4 + $0x3c8] sm:$0xe0] %v1042
      %1059 = vst [vmem:[#allocation4 + $0x3d0] sm:$0xe0] %v1043
      %1060 = vst [vmem:[#allocation4 + $0x3d8] sm:$0xe0] %v1044
      %1061 = vst [vmem:[#allocation4 + $0x3e0] sm:$0xe0] %v1045
      %1062 = vst [vmem:[#allocation4 + $0x3e8] sm:$0xe0] %v1046
      %1063 = vst [vmem:[#allocation4 + $0x3f0] sm:$0xe0] %v1047
      %1064 = vst [vmem:[#allocation4 + $0x3f8] sm:$0xe0] %v1048
      %v1065 = vld [vmem:[%s320 + $0x4] sm:$0x77]
      %v1066 = vld [vmem:[%s320 + $0xc] sm:$0x77]
      %v1067 = vld [vmem:[%s320 + $0x14] sm:$0x77]
      %v1068 = vld [vmem:[%s320 + $0x1c] sm:$0x77]
      %v1069 = vld [vmem:[%s320 + $0x24] sm:$0x7]
      %v1075 = vcombine.high %v1065, %v1065
      %v1076 = vcombine.high %v1066, %v1066
      %v1077 = vcombine.high %v1067, %v1067
      %v1078 = vcombine.high %v1068, %v1068
      %1079 = vrot.lane.b32.xlu0 %v1065, 66
      %v1080 = vpop.permute.xlu0 %1079
      %1081 = vrot.lane.b32.xlu0 %v1075, 66
      %v1082 = vpop.permute.xlu0 %1081
      %1083 = vrot.lane.b32.xlu0 %v1066, 66
      %v1084 = vpop.permute.xlu0 %1083
      %1085 = vrot.lane.b32.xlu0 %v1076, 66
      %v1086 = vpop.permute.xlu0 %1085
      %1087 = vrot.lane.b32.xlu0 %v1067, 66
      %v1088 = vpop.permute.xlu0 %1087
      %1089 = vrot.lane.b32.xlu0 %v1077, 66
      %v1090 = vpop.permute.xlu0 %1089
      %1091 = vrot.lane.b32.xlu0 %v1068, 66
      %v1092 = vpop.permute.xlu0 %1091
      %1093 = vrot.lane.b32.xlu0 %v1078, 66
      %v1094 = vpop.permute.xlu0 %1093
      %1095 = vrot.lane.b32.xlu0 %v1069, 66
      %v1096 = vpop.permute.xlu0 %1095
      %v1097 = vsel %vm741, %v1080, %v1082
      %v1098 = vsel %vm741, %v1082, %v1084
      %v1099 = vsel %vm741, %v1084, %v1086
      %v1100 = vsel %vm741, %v1086, %v1088
      %v1101 = vsel %vm741, %v1088, %v1090
      %v1102 = vsel %vm741, %v1090, %v1092
      %v1103 = vsel %vm741, %v1092, %v1094
      %v1104 = vsel %vm741, %v1094, %v1096
      %v1113 = vsel %vm706, %v1097, 0.0
      %v1114 = vsel %vm707, %v1098, 0.0
      %v1115 = vsel %vm708, %v1099, 0.0
      %v1116 = vsel %vm709, %v1100, 0.0
      %v1117 = vsel %vm710, %v1101, 0.0
      %v1118 = vsel %vm711, %v1102, 0.0
      %v1119 = vsel %vm712, %v1103, 0.0
      %v1120 = vsel %vm713, %v1104, 0.0
      %v1129 = vrot.slane %v1113, 3
      %v1130 = vrot.slane %v1114, 3
      %v1131 = vrot.slane %v1115, 3
      %v1132 = vrot.slane %v1116, 3
      %v1133 = vrot.slane %v1117, 3
      %v1134 = vrot.slane %v1118, 3
      %v1135 = vrot.slane %v1119, 3
      %v1136 = vrot.slane %v1120, 3
      %1145 = vst [vmem:[#allocation4 + $0x500] sm:$0xe0] %v1129
      %1146 = vst [vmem:[#allocation4 + $0x508] sm:$0xe0] %v1130
      %1147 = vst [vmem:[#allocation4 + $0x510] sm:$0xe0] %v1131
      %1148 = vst [vmem:[#allocation4 + $0x518] sm:$0xe0] %v1132
      %1149 = vst [vmem:[#allocation4 + $0x520] sm:$0xe0] %v1133
      %1150 = vst [vmem:[#allocation4 + $0x528] sm:$0xe0] %v1134
      %1151 = vst [vmem:[#allocation4 + $0x530] sm:$0xe0] %v1135
      %1152 = vst [vmem:[#allocation4 + $0x538] sm:$0xe0] %v1136
      %v1153 = vadd.s32 %v653, 4294967295
      %v1154 = vadd.s32 %v654, 4294967295
      %v1155 = vadd.s32 %v655, 4294967295
      %v1156 = vadd.s32 %v656, 4294967295
      %v1157 = vadd.s32 %v657, 4294967295
      %v1158 = vadd.s32 %v658, 4294967295
      %v1159 = vadd.s32 %v659, 4294967295
      %v1160 = vadd.s32 %v660, 4294967295
      %vm1161 = vcmp.ge.s32.totalorder %v1153, 0
      %vm1162 = vcmp.ge.s32.totalorder %v1154, 0
      %vm1163 = vcmp.ge.s32.totalorder %v1155, 0
      %vm1164 = vcmp.ge.s32.totalorder %v1156, 0
      %vm1165 = vcmp.ge.s32.totalorder %v1157, 0
      %vm1166 = vcmp.ge.s32.totalorder %v1158, 0
      %vm1167 = vcmp.ge.s32.totalorder %v1159, 0
      %vm1168 = vcmp.ge.s32.totalorder %v1160, 0
      %vm1169 = vcmp.lt.s32.totalorder %v1153, 32
      %vm1170 = vcmp.lt.s32.totalorder %v1154, 32
      %vm1171 = vcmp.lt.s32.totalorder %v1155, 32
      %vm1172 = vcmp.lt.s32.totalorder %v1156, 32
      %vm1173 = vcmp.lt.s32.totalorder %v1157, 32
      %vm1174 = vcmp.lt.s32.totalorder %v1158, 32
      %vm1175 = vcmp.lt.s32.totalorder %v1159, 32
      %vm1176 = vcmp.lt.s32.totalorder %v1160, 32
      %vm1177 = vmand %vm1161, %vm1169
      %vm1178 = vmand %vm1162, %vm1170
      %vm1179 = vmand %vm1163, %vm1171
      %vm1180 = vmand %vm1164, %vm1172
      %vm1181 = vmand %vm1165, %vm1173
      %vm1182 = vmand %vm1166, %vm1174
      %vm1183 = vmand %vm1167, %vm1175
      %vm1184 = vmand %vm1168, %vm1176
      %v1185 = vld [vmem:[%s320] sm:$0x77]
      %v1186 = vld [vmem:[%s320 + $0x8] sm:$0x77]
      %v1187 = vld [vmem:[%s320 + $0x10] sm:$0x77]
      %v1188 = vld [vmem:[%s320 + $0x18] sm:$0x77]
      %v1189 = vld [vmem:[%s320 + $0x20] sm:$0x7]
      %v1190 = vsel %vm1177, 1, 0
      %v1191 = vsel %vm1178, 1, 0
      %v1192 = vsel %vm1179, 1, 0
      %v1193 = vsel %vm1180, 1, 0
      %v1194 = vsel %vm1181, 1, 0
      %v1195 = vsel %vm1182, 1, 0
      %v1196 = vsel %vm1183, 1, 0
      %v1197 = vsel %vm1184, 1, 0
      %vm1198 = vcmp.eq.s32.totalorder %v1190, 1
      %vm1199 = vcmp.eq.s32.totalorder %v1191, 1
      %vm1200 = vcmp.eq.s32.totalorder %v1192, 1
      %vm1201 = vcmp.eq.s32.totalorder %v1193, 1
      %vm1202 = vcmp.eq.s32.totalorder %v1194, 1
      %vm1203 = vcmp.eq.s32.totalorder %v1195, 1
      %vm1204 = vcmp.eq.s32.totalorder %v1196, 1
      %vm1205 = vcmp.eq.s32.totalorder %v1197, 1
      %v1211 = vcombine.high %v1185, %v1185
      %v1212 = vcombine.high %v1186, %v1186
      %v1213 = vcombine.high %v1187, %v1187
      %v1214 = vcombine.high %v1188, %v1188
      %1215 = vrot.lane.b32.xlu0 %v1185, 65
      %v1216 = vpop.permute.xlu0 %1215
      %1217 = vrot.lane.b32.xlu0 %v1211, 65
      %v1218 = vpop.permute.xlu0 %1217
      %1219 = vrot.lane.b32.xlu0 %v1186, 65
      %v1220 = vpop.permute.xlu0 %1219
      %1221 = vrot.lane.b32.xlu0 %v1212, 65
      %v1222 = vpop.permute.xlu0 %1221
      %1223 = vrot.lane.b32.xlu0 %v1187, 65
      %v1224 = vpop.permute.xlu0 %1223
      %1225 = vrot.lane.b32.xlu0 %v1213, 65
      %v1226 = vpop.permute.xlu0 %1225
      %1227 = vrot.lane.b32.xlu0 %v1188, 65
      %v1228 = vpop.permute.xlu0 %1227
      %1229 = vrot.lane.b32.xlu0 %v1214, 65
      %v1230 = vpop.permute.xlu0 %1229
      %1231 = vrot.lane.b32.xlu0 %v1189, 65
      %v1232 = vpop.permute.xlu0 %1231
      %vm1233 = vcmask 531456
      %v1234 = vsel %vm1233, %v1216, %v1218
      %v1235 = vsel %vm1233, %v1218, %v1220
      %v1236 = vsel %vm1233, %v1220, %v1222
      %v1237 = vsel %vm1233, %v1222, %v1224
      %v1238 = vsel %vm1233, %v1224, %v1226
      %v1239 = vsel %vm1233, %v1226, %v1228
      %v1240 = vsel %vm1233, %v1228, %v1230
      %v1241 = vsel %vm1233, %v1230, %v1232
      %v1250 = vsel %vm1198, %v1234, 0.0
      %v1251 = vsel %vm1199, %v1235, 0.0
      %v1252 = vsel %vm1200, %v1236, 0.0
      %v1253 = vsel %vm1201, %v1237, 0.0
      %v1254 = vsel %vm1202, %v1238, 0.0
      %v1255 = vsel %vm1203, %v1239, 0.0
      %v1256 = vsel %vm1204, %v1240, 0.0
      %v1257 = vsel %vm1205, %v1241, 0.0
      %v1266 = vrot.slane %v1250, 3
      %v1267 = vrot.slane %v1251, 3
      %v1268 = vrot.slane %v1252, 3
      %v1269 = vrot.slane %v1253, 3
      %v1270 = vrot.slane %v1254, 3
      %v1271 = vrot.slane %v1255, 3
      %v1272 = vrot.slane %v1256, 3
      %v1273 = vrot.slane %v1257, 3
      %1282 = vst [vmem:[#allocation4 + $0x40] sm:$0xe0] %v1266
      %1283 = vst [vmem:[#allocation4 + $0x48] sm:$0xe0] %v1267
      %1284 = vst [vmem:[#allocation4 + $0x50] sm:$0xe0] %v1268
      %1285 = vst [vmem:[#allocation4 + $0x58] sm:$0xe0] %v1269
      %1286 = vst [vmem:[#allocation4 + $0x60] sm:$0xe0] %v1270
      %1287 = vst [vmem:[#allocation4 + $0x68] sm:$0xe0] %v1271
      %1288 = vst [vmem:[#allocation4 + $0x70] sm:$0xe0] %v1272
      %1289 = vst [vmem:[#allocation4 + $0x78] sm:$0xe0] %v1273
      %v1290 = vld [vmem:[%s320] sm:$0x77]
      %v1291 = vld [vmem:[%s320 + $0x8] sm:$0x77]
      %v1292 = vld [vmem:[%s320 + $0x10] sm:$0x77]
      %v1293 = vld [vmem:[%s320 + $0x18] sm:$0x77]
      %v1294 = vld [vmem:[%s320 + $0x20] sm:$0x7]
      %v1300 = vcombine.high %v1290, %v1290
      %v1301 = vcombine.high %v1291, %v1291
      %v1302 = vcombine.high %v1292, %v1292
      %v1303 = vcombine.high %v1293, %v1293
      %1304 = vrot.lane.b32.xlu0 %v1290, 33
      %v1305 = vpop.permute.xlu0 %1304
      %1306 = vrot.lane.b32.xlu0 %v1300, 33
      %v1307 = vpop.permute.xlu0 %1306
      %1308 = vrot.lane.b32.xlu0 %v1291, 33
      %v1309 = vpop.permute.xlu0 %1308
      %1310 = vrot.lane.b32.xlu0 %v1301, 33
      %v1311 = vpop.permute.xlu0 %1310
      %1312 = vrot.lane.b32.xlu0 %v1292, 33
      %v1313 = vpop.permute.xlu0 %1312
      %1314 = vrot.lane.b32.xlu0 %v1302, 33
      %v1315 = vpop.permute.xlu0 %1314
      %1316 = vrot.lane.b32.xlu0 %v1293, 33
      %v1317 = vpop.permute.xlu0 %1316
      %1318 = vrot.lane.b32.xlu0 %v1303, 33
      %v1319 = vpop.permute.xlu0 %1318
      %1320 = vrot.lane.b32.xlu0 %v1294, 33
      %v1321 = vpop.permute.xlu0 %1320
      %vm1322 = vcmask 269312
      %v1323 = vsel %vm1322, %v1305, %v1307
      %v1324 = vsel %vm1322, %v1307, %v1309
      %v1325 = vsel %vm1322, %v1309, %v1311
      %v1326 = vsel %vm1322, %v1311, %v1313
      %v1327 = vsel %vm1322, %v1313, %v1315
      %v1328 = vsel %vm1322, %v1315, %v1317
      %v1329 = vsel %vm1322, %v1317, %v1319
      %v1330 = vsel %vm1322, %v1319, %v1321
      %v1339 = vsel %vm1198, %v1323, 0.0
      %v1340 = vsel %vm1199, %v1324, 0.0
      %v1341 = vsel %vm1200, %v1325, 0.0
      %v1342 = vsel %vm1201, %v1326, 0.0
      %v1343 = vsel %vm1202, %v1327, 0.0
      %v1344 = vsel %vm1203, %v1328, 0.0
      %v1345 = vsel %vm1204, %v1329, 0.0
      %v1346 = vsel %vm1205, %v1330, 0.0
      %v1355 = vrot.slane %v1339, 3
      %v1356 = vrot.slane %v1340, 3
      %v1357 = vrot.slane %v1341, 3
      %v1358 = vrot.slane %v1342, 3
      %v1359 = vrot.slane %v1343, 3
      %v1360 = vrot.slane %v1344, 3
      %v1361 = vrot.slane %v1345, 3
      %v1362 = vrot.slane %v1346, 3
      %1371 = vst [vmem:[#allocation4 + $0x180] sm:$0xe0] %v1355
      %1372 = vst [vmem:[#allocation4 + $0x188] sm:$0xe0] %v1356
      %1373 = vst [vmem:[#allocation4 + $0x190] sm:$0xe0] %v1357
      %1374 = vst [vmem:[#allocation4 + $0x198] sm:$0xe0] %v1358
      %1375 = vst [vmem:[#allocation4 + $0x1a0] sm:$0xe0] %v1359
      %1376 = vst [vmem:[#allocation4 + $0x1a8] sm:$0xe0] %v1360
      %1377 = vst [vmem:[#allocation4 + $0x1b0] sm:$0xe0] %v1361
      %1378 = vst [vmem:[#allocation4 + $0x1b8] sm:$0xe0] %v1362
      %v1379 = vld [vmem:[%s320] sm:$0x77]
      %v1380 = vld [vmem:[%s320 + $0x8] sm:$0x77]
      %v1381 = vld [vmem:[%s320 + $0x10] sm:$0x77]
      %v1382 = vld [vmem:[%s320 + $0x18] sm:$0x77]
      %v1383 = vld [vmem:[%s320 + $0x20] sm:$0x7]
      %v1389 = vcombine.high %v1379, %v1379
      %v1390 = vcombine.high %v1380, %v1380
      %v1391 = vcombine.high %v1381, %v1381
      %v1392 = vcombine.high %v1382, %v1382
      %1393 = vrot.lane.b32.xlu0 %v1379, 1
      %v1394 = vpop.permute.xlu0 %1393
      %1395 = vrot.lane.b32.xlu0 %v1389, 1
      %v1396 = vpop.permute.xlu0 %1395
      %1397 = vrot.lane.b32.xlu0 %v1380, 1
      %v1398 = vpop.permute.xlu0 %1397
      %1399 = vrot.lane.b32.xlu0 %v1390, 1
      %v1400 = vpop.permute.xlu0 %1399
      %1401 = vrot.lane.b32.xlu0 %v1381, 1
      %v1402 = vpop.permute.xlu0 %1401
      %1403 = vrot.lane.b32.xlu0 %v1391, 1
      %v1404 = vpop.permute.xlu0 %1403
      %1405 = vrot.lane.b32.xlu0 %v1382, 1
      %v1406 = vpop.permute.xlu0 %1405
      %1407 = vrot.lane.b32.xlu0 %v1392, 1
      %v1408 = vpop.permute.xlu0 %1407
      %1409 = vrot.lane.b32.xlu0 %v1383, 1
      %v1410 = vpop.permute.xlu0 %1409
      %vm1411 = vcmask 7168
      %v1412 = vsel %vm1411, %v1394, %v1396
      %v1413 = vsel %vm1411, %v1396, %v1398
      %v1414 = vsel %vm1411, %v1398, %v1400
      %v1415 = vsel %vm1411, %v1400, %v1402
      %v1416 = vsel %vm1411, %v1402, %v1404
      %v1417 = vsel %vm1411, %v1404, %v1406
      %v1418 = vsel %vm1411, %v1406, %v1408
      %v1419 = vsel %vm1411, %v1408, %v1410
      %v1428 = vsel %vm1198, %v1412, 0.0
      %v1429 = vsel %vm1199, %v1413, 0.0
      %v1430 = vsel %vm1200, %v1414, 0.0
      %v1431 = vsel %vm1201, %v1415, 0.0
      %v1432 = vsel %vm1202, %v1416, 0.0
      %v1433 = vsel %vm1203, %v1417, 0.0
      %v1434 = vsel %vm1204, %v1418, 0.0
      %v1435 = vsel %vm1205, %v1419, 0.0
      %v1444 = vrot.slane %v1428, 3
      %v1445 = vrot.slane %v1429, 3
      %v1446 = vrot.slane %v1430, 3
      %v1447 = vrot.slane %v1431, 3
      %v1448 = vrot.slane %v1432, 3
      %v1449 = vrot.slane %v1433, 3
      %v1450 = vrot.slane %v1434, 3
      %v1451 = vrot.slane %v1435, 3
      %1460 = vst [vmem:[#allocation4 + $0x2c0] sm:$0xe0] %v1444
      %1461 = vst [vmem:[#allocation4 + $0x2c8] sm:$0xe0] %v1445
      %1462 = vst [vmem:[#allocation4 + $0x2d0] sm:$0xe0] %v1446
      %1463 = vst [vmem:[#allocation4 + $0x2d8] sm:$0xe0] %v1447
      %1464 = vst [vmem:[#allocation4 + $0x2e0] sm:$0xe0] %v1448
      %1465 = vst [vmem:[#allocation4 + $0x2e8] sm:$0xe0] %v1449
      %1466 = vst [vmem:[#allocation4 + $0x2f0] sm:$0xe0] %v1450
      %1467 = vst [vmem:[#allocation4 + $0x2f8] sm:$0xe0] %v1451
      %v1468 = vld [vmem:[%s320 + $0x4] sm:$0x77]
      %v1469 = vld [vmem:[%s320 + $0xc] sm:$0x77]
      %v1470 = vld [vmem:[%s320 + $0x14] sm:$0x77]
      %v1471 = vld [vmem:[%s320 + $0x1c] sm:$0x77]
      %v1472 = vld [vmem:[%s320 + $0x24] sm:$0x7]
      %v1478 = vcombine.high %v1468, %v1468
      %v1479 = vcombine.high %v1469, %v1469
      %v1480 = vcombine.high %v1470, %v1470
      %v1481 = vcombine.high %v1471, %v1471
      %1482 = vrot.lane.b32.xlu0 %v1468, 97
      %v1483 = vpop.permute.xlu0 %1482
      %1484 = vrot.lane.b32.xlu0 %v1478, 97
      %v1485 = vpop.permute.xlu0 %1484
      %1486 = vrot.lane.b32.xlu0 %v1469, 97
      %v1487 = vpop.permute.xlu0 %1486
      %1488 = vrot.lane.b32.xlu0 %v1479, 97
      %v1489 = vpop.permute.xlu0 %1488
      %1490 = vrot.lane.b32.xlu0 %v1470, 97
      %v1491 = vpop.permute.xlu0 %1490
      %1492 = vrot.lane.b32.xlu0 %v1480, 97
      %v1493 = vpop.permute.xlu0 %1492
      %1494 = vrot.lane.b32.xlu0 %v1471, 97
      %v1495 = vpop.permute.xlu0 %1494
      %1496 = vrot.lane.b32.xlu0 %v1481, 97
      %v1497 = vpop.permute.xlu0 %1496
      %1498 = vrot.lane.b32.xlu0 %v1472, 97
      %v1499 = vpop.permute.xlu0 %1498
      %vm1500 = vcmask 793600
      %v1501 = vsel %vm1500, %v1483, %v1485
      %v1502 = vsel %vm1500, %v1485, %v1487
      %v1503 = vsel %vm1500, %v1487, %v1489
      %v1504 = vsel %vm1500, %v1489, %v1491
      %v1505 = vsel %vm1500, %v1491, %v1493
      %v1506 = vsel %vm1500, %v1493, %v1495
      %v1507 = vsel %vm1500, %v1495, %v1497
      %v1508 = vsel %vm1500, %v1497, %v1499
      %v1517 = vsel %vm1198, %v1501, 0.0
      %v1518 = vsel %vm1199, %v1502, 0.0
      %v1519 = vsel %vm1200, %v1503, 0.0
      %v1520 = vsel %vm1201, %v1504, 0.0
      %v1521 = vsel %vm1202, %v1505, 0.0
      %v1522 = vsel %vm1203, %v1506, 0.0
      %v1523 = vsel %vm1204, %v1507, 0.0
      %v1524 = vsel %vm1205, %v1508, 0.0
      %v1533 = vrot.slane %v1517, 3
      %v1534 = vrot.slane %v1518, 3
      %v1535 = vrot.slane %v1519, 3
      %v1536 = vrot.slane %v1520, 3
      %v1537 = vrot.slane %v1521, 3
      %v1538 = vrot.slane %v1522, 3
      %v1539 = vrot.slane %v1523, 3
      %v1540 = vrot.slane %v1524, 3
      %1549 = vst [vmem:[#allocation4 + $0x400] sm:$0xe0] %v1533
      %1550 = vst [vmem:[#allocation4 + $0x408] sm:$0xe0] %v1534
      %1551 = vst [vmem:[#allocation4 + $0x410] sm:$0xe0] %v1535
      %1552 = vst [vmem:[#allocation4 + $0x418] sm:$0xe0] %v1536
      %1553 = vst [vmem:[#allocation4 + $0x420] sm:$0xe0] %v1537
      %1554 = vst [vmem:[#allocation4 + $0x428] sm:$0xe0] %v1538
      %1555 = vst [vmem:[#allocation4 + $0x430] sm:$0xe0] %v1539
      %1556 = vst [vmem:[#allocation4 + $0x438] sm:$0xe0] %v1540
      %v1557 = vld [vmem:[%s320 + $0x4] sm:$0x77]
      %v1558 = vld [vmem:[%s320 + $0xc] sm:$0x77]
      %v1559 = vld [vmem:[%s320 + $0x14] sm:$0x77]
      %v1560 = vld [vmem:[%s320 + $0x1c] sm:$0x77]
      %v1561 = vld [vmem:[%s320 + $0x24] sm:$0x7]
      %v1567 = vcombine.high %v1557, %v1557
      %v1568 = vcombine.high %v1558, %v1558
      %v1569 = vcombine.high %v1559, %v1559
      %v1570 = vcombine.high %v1560, %v1560
      %1571 = vrot.lane.b32.xlu0 %v1557, 65
      %v1572 = vpop.permute.xlu0 %1571
      %1573 = vrot.lane.b32.xlu0 %v1567, 65
      %v1574 = vpop.permute.xlu0 %1573
      %1575 = vrot.lane.b32.xlu0 %v1558, 65
      %v1576 = vpop.permute.xlu0 %1575
      %1577 = vrot.lane.b32.xlu0 %v1568, 65
      %v1578 = vpop.permute.xlu0 %1577
      %1579 = vrot.lane.b32.xlu0 %v1559, 65
      %v1580 = vpop.permute.xlu0 %1579
      %1581 = vrot.lane.b32.xlu0 %v1569, 65
      %v1582 = vpop.permute.xlu0 %1581
      %1583 = vrot.lane.b32.xlu0 %v1560, 65
      %v1584 = vpop.permute.xlu0 %1583
      %1585 = vrot.lane.b32.xlu0 %v1570, 65
      %v1586 = vpop.permute.xlu0 %1585
      %1587 = vrot.lane.b32.xlu0 %v1561, 65
      %v1588 = vpop.permute.xlu0 %1587
      %v1589 = vsel %vm1233, %v1572, %v1574
      %v1590 = vsel %vm1233, %v1574, %v1576
      %v1591 = vsel %vm1233, %v1576, %v1578
      %v1592 = vsel %vm1233, %v1578, %v1580
      %v1593 = vsel %vm1233, %v1580, %v1582
      %v1594 = vsel %vm1233, %v1582, %v1584
      %v1595 = vsel %vm1233, %v1584, %v1586
      %v1596 = vsel %vm1233, %v1586, %v1588
      %v1605 = vsel %vm1198, %v1589, 0.0
      %v1606 = vsel %vm1199, %v1590, 0.0
      %v1607 = vsel %vm1200, %v1591, 0.0
      %v1608 = vsel %vm1201, %v1592, 0.0
      %v1609 = vsel %vm1202, %v1593, 0.0
      %v1610 = vsel %vm1203, %v1594, 0.0
      %v1611 = vsel %vm1204, %v1595, 0.0
      %v1612 = vsel %vm1205, %v1596, 0.0
      %v1621 = vrot.slane %v1605, 3
      %v1622 = vrot.slane %v1606, 3
      %v1623 = vrot.slane %v1607, 3
      %v1624 = vrot.slane %v1608, 3
      %v1625 = vrot.slane %v1609, 3
      %v1626 = vrot.slane %v1610, 3
      %v1627 = vrot.slane %v1611, 3
      %v1628 = vrot.slane %v1612, 3
      %1637 = vst [vmem:[#allocation4 + $0x540] sm:$0xe0] %v1621
      %1638 = vst [vmem:[#allocation4 + $0x548] sm:$0xe0] %v1622
      %1639 = vst [vmem:[#allocation4 + $0x550] sm:$0xe0] %v1623
      %1640 = vst [vmem:[#allocation4 + $0x558] sm:$0xe0] %v1624
      %1641 = vst [vmem:[#allocation4 + $0x560] sm:$0xe0] %v1625
      %1642 = vst [vmem:[#allocation4 + $0x568] sm:$0xe0] %v1626
      %1643 = vst [vmem:[#allocation4 + $0x570] sm:$0xe0] %v1627
      %1644 = vst [vmem:[#allocation4 + $0x578] sm:$0xe0] %v1628
      %vm1645 = vcmp.ge.s32.totalorder %v653, 0
      %vm1646 = vcmp.ge.s32.totalorder %v654, 0
      %vm1647 = vcmp.ge.s32.totalorder %v655, 0
      %vm1648 = vcmp.ge.s32.totalorder %v656, 0
      %vm1649 = vcmp.ge.s32.totalorder %v657, 0
      %vm1650 = vcmp.ge.s32.totalorder %v658, 0
      %vm1651 = vcmp.ge.s32.totalorder %v659, 0
      %vm1652 = vcmp.ge.s32.totalorder %v660, 0
      %vm1653 = vcmp.lt.s32.totalorder %v653, 32
      %vm1654 = vcmp.lt.s32.totalorder %v654, 32
      %vm1655 = vcmp.lt.s32.totalorder %v655, 32
      %vm1656 = vcmp.lt.s32.totalorder %v656, 32
      %vm1657 = vcmp.lt.s32.totalorder %v657, 32
      %vm1658 = vcmp.lt.s32.totalorder %v658, 32
      %vm1659 = vcmp.lt.s32.totalorder %v659, 32
      %vm1660 = vcmp.lt.s32.totalorder %v660, 32
      %vm1661 = vmand %vm1645, %vm1653
      %vm1662 = vmand %vm1646, %vm1654
      %vm1663 = vmand %vm1647, %vm1655
      %vm1664 = vmand %vm1648, %vm1656
      %vm1665 = vmand %vm1649, %vm1657
      %vm1666 = vmand %vm1650, %vm1658
      %vm1667 = vmand %vm1651, %vm1659
      %vm1668 = vmand %vm1652, %vm1660
      %v1669 = vld [vmem:[%s320] sm:$0x77]
      %v1670 = vld [vmem:[%s320 + $0x8] sm:$0x77]
      %v1671 = vld [vmem:[%s320 + $0x10] sm:$0x77]
      %v1672 = vld [vmem:[%s320 + $0x18] sm:$0x77]
      %v1673 = vld [vmem:[%s320 + $0x20] sm:$0x7]
      %v1674 = vsel %vm1661, 1, 0
      %v1675 = vsel %vm1662, 1, 0
      %v1676 = vsel %vm1663, 1, 0
      %v1677 = vsel %vm1664, 1, 0
      %v1678 = vsel %vm1665, 1, 0
      %v1679 = vsel %vm1666, 1, 0
      %v1680 = vsel %vm1667, 1, 0
      %v1681 = vsel %vm1668, 1, 0
      %vm1682 = vcmp.eq.s32.totalorder %v1674, 1
      %vm1683 = vcmp.eq.s32.totalorder %v1675, 1
      %vm1684 = vcmp.eq.s32.totalorder %v1676, 1
      %vm1685 = vcmp.eq.s32.totalorder %v1677, 1
      %vm1686 = vcmp.eq.s32.totalorder %v1678, 1
      %vm1687 = vcmp.eq.s32.totalorder %v1679, 1
      %vm1688 = vcmp.eq.s32.totalorder %v1680, 1
      %vm1689 = vcmp.eq.s32.totalorder %v1681, 1
      %v1695 = vcombine.high %v1669, %v1669
      %v1696 = vcombine.high %v1670, %v1670
      %v1697 = vcombine.high %v1671, %v1671
      %v1698 = vcombine.high %v1672, %v1672
      %1699 = vrot.lane.b32.xlu0 %v1669, 64
      %v1700 = vpop.permute.xlu0 %1699
      %1701 = vrot.lane.b32.xlu0 %v1695, 64
      %v1702 = vpop.permute.xlu0 %1701
      %1703 = vrot.lane.b32.xlu0 %v1670, 64
      %v1704 = vpop.permute.xlu0 %1703
      %1705 = vrot.lane.b32.xlu0 %v1696, 64
      %v1706 = vpop.permute.xlu0 %1705
      %1707 = vrot.lane.b32.xlu0 %v1671, 64
      %v1708 = vpop.permute.xlu0 %1707
      %1709 = vrot.lane.b32.xlu0 %v1697, 64
      %v1710 = vpop.permute.xlu0 %1709
      %1711 = vrot.lane.b32.xlu0 %v1672, 64
      %v1712 = vpop.permute.xlu0 %1711
      %1713 = vrot.lane.b32.xlu0 %v1698, 64
      %v1714 = vpop.permute.xlu0 %1713
      %1715 = vrot.lane.b32.xlu0 %v1673, 64
      %v1716 = vpop.permute.xlu0 %1715
      %vm1717 = vcmask 523264
      %v1718 = vsel %vm1717, %v1700, %v1702
      %v1719 = vsel %vm1717, %v1702, %v1704
      %v1720 = vsel %vm1717, %v1704, %v1706
      %v1721 = vsel %vm1717, %v1706, %v1708
      %v1722 = vsel %vm1717, %v1708, %v1710
      %v1723 = vsel %vm1717, %v1710, %v1712
      %v1724 = vsel %vm1717, %v1712, %v1714
      %v1725 = vsel %vm1717, %v1714, %v1716
      %v1734 = vsel %vm1682, %v1718, 0.0
      %v1735 = vsel %vm1683, %v1719, 0.0
      %v1736 = vsel %vm1684, %v1720, 0.0
      %v1737 = vsel %vm1685, %v1721, 0.0
      %v1738 = vsel %vm1686, %v1722, 0.0
      %v1739 = vsel %vm1687, %v1723, 0.0
      %v1740 = vsel %vm1688, %v1724, 0.0
      %v1741 = vsel %vm1689, %v1725, 0.0
      %v1750 = vrot.slane %v1734, 3
      %v1751 = vrot.slane %v1735, 3
      %v1752 = vrot.slane %v1736, 3
      %v1753 = vrot.slane %v1737, 3
      %v1754 = vrot.slane %v1738, 3
      %v1755 = vrot.slane %v1739, 3
      %v1756 = vrot.slane %v1740, 3
      %v1757 = vrot.slane %v1741, 3
      %1766 = vst [vmem:[#allocation4 + $0x80] sm:$0xe0] %v1750
      %1767 = vst [vmem:[#allocation4 + $0x88] sm:$0xe0] %v1751
      %1768 = vst [vmem:[#allocation4 + $0x90] sm:$0xe0] %v1752
      %1769 = vst [vmem:[#allocation4 + $0x98] sm:$0xe0] %v1753
      %1770 = vst [vmem:[#allocation4 + $0xa0] sm:$0xe0] %v1754
      %1771 = vst [vmem:[#allocation4 + $0xa8] sm:$0xe0] %v1755
      %1772 = vst [vmem:[#allocation4 + $0xb0] sm:$0xe0] %v1756
      %1773 = vst [vmem:[#allocation4 + $0xb8] sm:$0xe0] %v1757
      %v1774 = vld [vmem:[%s320] sm:$0x77]
      %v1775 = vld [vmem:[%s320 + $0x8] sm:$0x77]
      %v1776 = vld [vmem:[%s320 + $0x10] sm:$0x77]
      %v1777 = vld [vmem:[%s320 + $0x18] sm:$0x77]
      %v1778 = vld [vmem:[%s320 + $0x20] sm:$0x7]
      %v1784 = vcombine.high %v1774, %v1774
      %v1785 = vcombine.high %v1775, %v1775
      %v1786 = vcombine.high %v1776, %v1776
      %v1787 = vcombine.high %v1777, %v1777
      %1788 = vrot.lane.b32.xlu0 %v1774, 32
      %v1789 = vpop.permute.xlu0 %1788
      %1790 = vrot.lane.b32.xlu0 %v1784, 32
      %v1791 = vpop.permute.xlu0 %1790
      %1792 = vrot.lane.b32.xlu0 %v1775, 32
      %v1793 = vpop.permute.xlu0 %1792
      %1794 = vrot.lane.b32.xlu0 %v1785, 32
      %v1795 = vpop.permute.xlu0 %1794
      %1796 = vrot.lane.b32.xlu0 %v1776, 32
      %v1797 = vpop.permute.xlu0 %1796
      %1798 = vrot.lane.b32.xlu0 %v1786, 32
      %v1799 = vpop.permute.xlu0 %1798
      %1800 = vrot.lane.b32.xlu0 %v1777, 32
      %v1801 = vpop.permute.xlu0 %1800
      %1802 = vrot.lane.b32.xlu0 %v1787, 32
      %v1803 = vpop.permute.xlu0 %1802
      %1804 = vrot.lane.b32.xlu0 %v1778, 32
      %v1805 = vpop.permute.xlu0 %1804
      %vm1806 = vcmask 261120
      %v1807 = vsel %vm1806, %v1789, %v1791
      %v1808 = vsel %vm1806, %v1791, %v1793
      %v1809 = vsel %vm1806, %v1793, %v1795
      %v1810 = vsel %vm1806, %v1795, %v1797
      %v1811 = vsel %vm1806, %v1797, %v1799
      %v1812 = vsel %vm1806, %v1799, %v1801
      %v1813 = vsel %vm1806, %v1801, %v1803
      %v1814 = vsel %vm1806, %v1803, %v1805
      %v1823 = vsel %vm1682, %v1807, 0.0
      %v1824 = vsel %vm1683, %v1808, 0.0
      %v1825 = vsel %vm1684, %v1809, 0.0
      %v1826 = vsel %vm1685, %v1810, 0.0
      %v1827 = vsel %vm1686, %v1811, 0.0
      %v1828 = vsel %vm1687, %v1812, 0.0
      %v1829 = vsel %vm1688, %v1813, 0.0
      %v1830 = vsel %vm1689, %v1814, 0.0
      %v1839 = vrot.slane %v1823, 3
      %v1840 = vrot.slane %v1824, 3
      %v1841 = vrot.slane %v1825, 3
      %v1842 = vrot.slane %v1826, 3
      %v1843 = vrot.slane %v1827, 3
      %v1844 = vrot.slane %v1828, 3
      %v1845 = vrot.slane %v1829, 3
      %v1846 = vrot.slane %v1830, 3
      %1855 = vst [vmem:[#allocation4 + $0x1c0] sm:$0xe0] %v1839
      %1856 = vst [vmem:[#allocation4 + $0x1c8] sm:$0xe0] %v1840
      %1857 = vst [vmem:[#allocation4 + $0x1d0] sm:$0xe0] %v1841
      %1858 = vst [vmem:[#allocation4 + $0x1d8] sm:$0xe0] %v1842
      %1859 = vst [vmem:[#allocation4 + $0x1e0] sm:$0xe0] %v1843
      %1860 = vst [vmem:[#allocation4 + $0x1e8] sm:$0xe0] %v1844
      %1861 = vst [vmem:[#allocation4 + $0x1f0] sm:$0xe0] %v1845
      %1862 = vst [vmem:[#allocation4 + $0x1f8] sm:$0xe0] %v1846
      %v1863 = vld [vmem:[%s320 + $0x4] sm:$0x77]
      %v1864 = vld [vmem:[%s320 + $0xc] sm:$0x77]
      %v1865 = vld [vmem:[%s320 + $0x14] sm:$0x77]
      %v1866 = vld [vmem:[%s320 + $0x1c] sm:$0x77]
      %v1871 = vcombine.high %v1863, %v1863
      %v1872 = vcombine.high %v1864, %v1864
      %v1873 = vcombine.high %v1865, %v1865
      %v1874 = vcombine.high %v1866, %v1866
      %v1879 = vsel %vm1682, %v1863, 0.0
      %v1880 = vsel %vm1683, %v1871, 0.0
      %v1881 = vsel %vm1684, %v1864, 0.0
      %v1882 = vsel %vm1685, %v1872, 0.0
      %v1883 = vsel %vm1686, %v1865, 0.0
      %v1884 = vsel %vm1687, %v1873, 0.0
      %v1885 = vsel %vm1688, %v1866, 0.0
      %v1886 = vsel %vm1689, %v1874, 0.0
      %v1895 = vrot.slane %v1879, 3
      %v1896 = vrot.slane %v1880, 3
      %v1897 = vrot.slane %v1881, 3
      %v1898 = vrot.slane %v1882, 3
      %v1899 = vrot.slane %v1883, 3
      %v1900 = vrot.slane %v1884, 3
      %v1901 = vrot.slane %v1885, 3
      %v1902 = vrot.slane %v1886, 3
      %1911 = vst [vmem:[#allocation4 + $0x300] sm:$0xe0] %v1895
      %1912 = vst [vmem:[#allocation4 + $0x308] sm:$0xe0] %v1896
      %1913 = vst [vmem:[#allocation4 + $0x310] sm:$0xe0] %v1897
      %1914 = vst [vmem:[#allocation4 + $0x318] sm:$0xe0] %v1898
      %1915 = vst [vmem:[#allocation4 + $0x320] sm:$0xe0] %v1899
      %1916 = vst [vmem:[#allocation4 + $0x328] sm:$0xe0] %v1900
      %1917 = vst [vmem:[#allocation4 + $0x330] sm:$0xe0] %v1901
      %1918 = vst [vmem:[#allocation4 + $0x338] sm:$0xe0] %v1902
      %v1919 = vld [vmem:[%s320 + $0x4] sm:$0x77]
      %v1920 = vld [vmem:[%s320 + $0xc] sm:$0x77]
      %v1921 = vld [vmem:[%s320 + $0x14] sm:$0x77]
      %v1922 = vld [vmem:[%s320 + $0x1c] sm:$0x77]
      %v1923 = vld [vmem:[%s320 + $0x24] sm:$0x7]
      %v1929 = vcombine.high %v1919, %v1919
      %v1930 = vcombine.high %v1920, %v1920
      %v1931 = vcombine.high %v1921, %v1921
      %v1932 = vcombine.high %v1922, %v1922
      %1933 = vrot.lane.b32.xlu0 %v1919, 96
      %v1934 = vpop.permute.xlu0 %1933
      %1935 = vrot.lane.b32.xlu0 %v1929, 96
      %v1936 = vpop.permute.xlu0 %1935
      %1937 = vrot.lane.b32.xlu0 %v1920, 96
      %v1938 = vpop.permute.xlu0 %1937
      %1939 = vrot.lane.b32.xlu0 %v1930, 96
      %v1940 = vpop.permute.xlu0 %1939
      %1941 = vrot.lane.b32.xlu0 %v1921, 96
      %v1942 = vpop.permute.xlu0 %1941
      %1943 = vrot.lane.b32.xlu0 %v1931, 96
      %v1944 = vpop.permute.xlu0 %1943
      %1945 = vrot.lane.b32.xlu0 %v1922, 96
      %v1946 = vpop.permute.xlu0 %1945
      %1947 = vrot.lane.b32.xlu0 %v1932, 96
      %v1948 = vpop.permute.xlu0 %1947
      %1949 = vrot.lane.b32.xlu0 %v1923, 96
      %v1950 = vpop.permute.xlu0 %1949
      %vm1951 = vcmask 785408
      %v1952 = vsel %vm1951, %v1934, %v1936
      %v1953 = vsel %vm1951, %v1936, %v1938
      %v1954 = vsel %vm1951, %v1938, %v1940
      %v1955 = vsel %vm1951, %v1940, %v1942
      %v1956 = vsel %vm1951, %v1942, %v1944
      %v1957 = vsel %vm1951, %v1944, %v1946
      %v1958 = vsel %vm1951, %v1946, %v1948
      %v1959 = vsel %vm1951, %v1948, %v1950
      %v1968 = vsel %vm1682, %v1952, 0.0
      %v1969 = vsel %vm1683, %v1953, 0.0
      %v1970 = vsel %vm1684, %v1954, 0.0
      %v1971 = vsel %vm1685, %v1955, 0.0
      %v1972 = vsel %vm1686, %v1956, 0.0
      %v1973 = vsel %vm1687, %v1957, 0.0
      %v1974 = vsel %vm1688, %v1958, 0.0
      %v1975 = vsel %vm1689, %v1959, 0.0
      %v1984 = vrot.slane %v1968, 3
      %v1985 = vrot.slane %v1969, 3
      %v1986 = vrot.slane %v1970, 3
      %v1987 = vrot.slane %v1971, 3
      %v1988 = vrot.slane %v1972, 3
      %v1989 = vrot.slane %v1973, 3
      %v1990 = vrot.slane %v1974, 3
      %v1991 = vrot.slane %v1975, 3
      %2000 = vst [vmem:[#allocation4 + $0x440] sm:$0xe0] %v1984
      %2001 = vst [vmem:[#allocation4 + $0x448] sm:$0xe0] %v1985
      %2002 = vst [vmem:[#allocation4 + $0x450] sm:$0xe0] %v1986
      %2003 = vst [vmem:[#allocation4 + $0x458] sm:$0xe0] %v1987
      %2004 = vst [vmem:[#allocation4 + $0x460] sm:$0xe0] %v1988
      %2005 = vst [vmem:[#allocation4 + $0x468] sm:$0xe0] %v1989
      %2006 = vst [vmem:[#allocation4 + $0x470] sm:$0xe0] %v1990
      %2007 = vst [vmem:[#allocation4 + $0x478] sm:$0xe0] %v1991
      %v2008 = vld [vmem:[%s320 + $0x4] sm:$0x77]
      %v2009 = vld [vmem:[%s320 + $0xc] sm:$0x77]
      %v2010 = vld [vmem:[%s320 + $0x14] sm:$0x77]
      %v2011 = vld [vmem:[%s320 + $0x1c] sm:$0x77]
      %v2012 = vld [vmem:[%s320 + $0x24] sm:$0x7]
      %v2018 = vcombine.high %v2008, %v2008
      %v2019 = vcombine.high %v2009, %v2009
      %v2020 = vcombine.high %v2010, %v2010
      %v2021 = vcombine.high %v2011, %v2011
      %2022 = vrot.lane.b32.xlu0 %v2008, 64
      %v2023 = vpop.permute.xlu0 %2022
      %2024 = vrot.lane.b32.xlu0 %v2018, 64
      %v2025 = vpop.permute.xlu0 %2024
      %2026 = vrot.lane.b32.xlu0 %v2009, 64
      %v2027 = vpop.permute.xlu0 %2026
      %2028 = vrot.lane.b32.xlu0 %v2019, 64
      %v2029 = vpop.permute.xlu0 %2028
      %2030 = vrot.lane.b32.xlu0 %v2010, 64
      %v2031 = vpop.permute.xlu0 %2030
      %2032 = vrot.lane.b32.xlu0 %v2020, 64
      %v2033 = vpop.permute.xlu0 %2032
      %2034 = vrot.lane.b32.xlu0 %v2011, 64
      %v2035 = vpop.permute.xlu0 %2034
      %2036 = vrot.lane.b32.xlu0 %v2021, 64
      %v2037 = vpop.permute.xlu0 %2036
      %2038 = vrot.lane.b32.xlu0 %v2012, 64
      %v2039 = vpop.permute.xlu0 %2038
      %v2040 = vsel %vm1717, %v2023, %v2025
      %v2041 = vsel %vm1717, %v2025, %v2027
      %v2042 = vsel %vm1717, %v2027, %v2029
      %v2043 = vsel %vm1717, %v2029, %v2031
      %v2044 = vsel %vm1717, %v2031, %v2033
      %v2045 = vsel %vm1717, %v2033, %v2035
      %v2046 = vsel %vm1717, %v2035, %v2037
      %v2047 = vsel %vm1717, %v2037, %v2039
      %v2056 = vsel %vm1682, %v2040, 0.0
      %v2057 = vsel %vm1683, %v2041, 0.0
      %v2058 = vsel %vm1684, %v2042, 0.0
      %v2059 = vsel %vm1685, %v2043, 0.0
      %v2060 = vsel %vm1686, %v2044, 0.0
      %v2061 = vsel %vm1687, %v2045, 0.0
      %v2062 = vsel %vm1688, %v2046, 0.0
      %v2063 = vsel %vm1689, %v2047, 0.0
      %v2072 = vrot.slane %v2056, 3
      %v2073 = vrot.slane %v2057, 3
      %v2074 = vrot.slane %v2058, 3
      %v2075 = vrot.slane %v2059, 3
      %v2076 = vrot.slane %v2060, 3
      %v2077 = vrot.slane %v2061, 3
      %v2078 = vrot.slane %v2062, 3
      %v2079 = vrot.slane %v2063, 3
      %2088 = vst [vmem:[#allocation4 + $0x580] sm:$0xe0] %v2072
      %2089 = vst [vmem:[#allocation4 + $0x588] sm:$0xe0] %v2073
      %2090 = vst [vmem:[#allocation4 + $0x590] sm:$0xe0] %v2074
      %2091 = vst [vmem:[#allocation4 + $0x598] sm:$0xe0] %v2075
      %2092 = vst [vmem:[#allocation4 + $0x5a0] sm:$0xe0] %v2076
      %2093 = vst [vmem:[#allocation4 + $0x5a8] sm:$0xe0] %v2077
      %2094 = vst [vmem:[#allocation4 + $0x5b0] sm:$0xe0] %v2078
      %2095 = vst [vmem:[#allocation4 + $0x5b8] sm:$0xe0] %v2079
      %v2096 = vadd.s32 %v653, 1
      %v2097 = vadd.s32 %v654, 1
      %v2098 = vadd.s32 %v655, 1
      %v2099 = vadd.s32 %v656, 1
      %v2100 = vadd.s32 %v657, 1
      %v2101 = vadd.s32 %v658, 1
      %v2102 = vadd.s32 %v659, 1
      %v2103 = vadd.s32 %v660, 1
      %vm2104 = vcmp.ge.s32.totalorder %v2096, 0
      %vm2105 = vcmp.ge.s32.totalorder %v2097, 0
      %vm2106 = vcmp.ge.s32.totalorder %v2098, 0
      %vm2107 = vcmp.ge.s32.totalorder %v2099, 0
      %vm2108 = vcmp.ge.s32.totalorder %v2100, 0
      %vm2109 = vcmp.ge.s32.totalorder %v2101, 0
      %vm2110 = vcmp.ge.s32.totalorder %v2102, 0
      %vm2111 = vcmp.ge.s32.totalorder %v2103, 0
      %vm2112 = vcmp.lt.s32.totalorder %v2096, 32
      %vm2113 = vcmp.lt.s32.totalorder %v2097, 32
      %vm2114 = vcmp.lt.s32.totalorder %v2098, 32
      %vm2115 = vcmp.lt.s32.totalorder %v2099, 32
      %vm2116 = vcmp.lt.s32.totalorder %v2100, 32
      %vm2117 = vcmp.lt.s32.totalorder %v2101, 32
      %vm2118 = vcmp.lt.s32.totalorder %v2102, 32
      %vm2119 = vcmp.lt.s32.totalorder %v2103, 32
      %vm2120 = vmand %vm2104, %vm2112
      %vm2121 = vmand %vm2105, %vm2113
      %vm2122 = vmand %vm2106, %vm2114
      %vm2123 = vmand %vm2107, %vm2115
      %vm2124 = vmand %vm2108, %vm2116
      %vm2125 = vmand %vm2109, %vm2117
      %vm2126 = vmand %vm2110, %vm2118
      %vm2127 = vmand %vm2111, %vm2119
      %v2128 = vld [vmem:[%s320] sm:$0x77]
      %v2129 = vld [vmem:[%s320 + $0x8] sm:$0x77]
      %v2130 = vld [vmem:[%s320 + $0x10] sm:$0x77]
      %v2131 = vld [vmem:[%s320 + $0x18] sm:$0x77]
      %v2132 = vld [vmem:[%s320 + $0x20] sm:$0x7]
      %v2133 = vsel %vm2120, 1, 0
      %v2134 = vsel %vm2121, 1, 0
      %v2135 = vsel %vm2122, 1, 0
      %v2136 = vsel %vm2123, 1, 0
      %v2137 = vsel %vm2124, 1, 0
      %v2138 = vsel %vm2125, 1, 0
      %v2139 = vsel %vm2126, 1, 0
      %v2140 = vsel %vm2127, 1, 0
      %vm2141 = vcmp.eq.s32.totalorder %v2133, 1
      %vm2142 = vcmp.eq.s32.totalorder %v2134, 1
      %vm2143 = vcmp.eq.s32.totalorder %v2135, 1
      %vm2144 = vcmp.eq.s32.totalorder %v2136, 1
      %vm2145 = vcmp.eq.s32.totalorder %v2137, 1
      %vm2146 = vcmp.eq.s32.totalorder %v2138, 1
      %vm2147 = vcmp.eq.s32.totalorder %v2139, 1
      %vm2148 = vcmp.eq.s32.totalorder %v2140, 1
      %v2154 = vcombine.high %v2128, %v2128
      %v2155 = vcombine.high %v2129, %v2129
      %v2156 = vcombine.high %v2130, %v2130
      %v2157 = vcombine.high %v2131, %v2131
      %2158 = vrot.lane.b32.xlu0 %v2128, 63
      %v2159 = vpop.permute.xlu0 %2158
      %2160 = vrot.lane.b32.xlu0 %v2154, 63
      %v2161 = vpop.permute.xlu0 %2160
      %2162 = vrot.lane.b32.xlu0 %v2129, 63
      %v2163 = vpop.permute.xlu0 %2162
      %2164 = vrot.lane.b32.xlu0 %v2155, 63
      %v2165 = vpop.permute.xlu0 %2164
      %2166 = vrot.lane.b32.xlu0 %v2130, 63
      %v2167 = vpop.permute.xlu0 %2166
      %2168 = vrot.lane.b32.xlu0 %v2156, 63
      %v2169 = vpop.permute.xlu0 %2168
      %2170 = vrot.lane.b32.xlu0 %v2131, 63
      %v2171 = vpop.permute.xlu0 %2170
      %2172 = vrot.lane.b32.xlu0 %v2157, 63
      %v2173 = vpop.permute.xlu0 %2172
      %2174 = vrot.lane.b32.xlu0 %v2132, 63
      %v2175 = vpop.permute.xlu0 %2174
      %vm2176 = vcmask 515072
      %v2177 = vsel %vm2176, %v2159, %v2161
      %v2178 = vsel %vm2176, %v2161, %v2163
      %v2179 = vsel %vm2176, %v2163, %v2165
      %v2180 = vsel %vm2176, %v2165, %v2167
      %v2181 = vsel %vm2176, %v2167, %v2169
      %v2182 = vsel %vm2176, %v2169, %v2171
      %v2183 = vsel %vm2176, %v2171, %v2173
      %v2184 = vsel %vm2176, %v2173, %v2175
      %v2193 = vsel %vm2141, %v2177, 0.0
      %v2194 = vsel %vm2142, %v2178, 0.0
      %v2195 = vsel %vm2143, %v2179, 0.0
      %v2196 = vsel %vm2144, %v2180, 0.0
      %v2197 = vsel %vm2145, %v2181, 0.0
      %v2198 = vsel %vm2146, %v2182, 0.0
      %v2199 = vsel %vm2147, %v2183, 0.0
      %v2200 = vsel %vm2148, %v2184, 0.0
      %v2209 = vrot.slane %v2193, 3
      %v2210 = vrot.slane %v2194, 3
      %v2211 = vrot.slane %v2195, 3
      %v2212 = vrot.slane %v2196, 3
      %v2213 = vrot.slane %v2197, 3
      %v2214 = vrot.slane %v2198, 3
      %v2215 = vrot.slane %v2199, 3
      %v2216 = vrot.slane %v2200, 3
      %2225 = vst [vmem:[#allocation4 + $0xc0] sm:$0xe0] %v2209
      %2226 = vst [vmem:[#allocation4 + $0xc8] sm:$0xe0] %v2210
      %2227 = vst [vmem:[#allocation4 + $0xd0] sm:$0xe0] %v2211
      %2228 = vst [vmem:[#allocation4 + $0xd8] sm:$0xe0] %v2212
      %2229 = vst [vmem:[#allocation4 + $0xe0] sm:$0xe0] %v2213
      %2230 = vst [vmem:[#allocation4 + $0xe8] sm:$0xe0] %v2214
      %2231 = vst [vmem:[#allocation4 + $0xf0] sm:$0xe0] %v2215
      %2232 = vst [vmem:[#allocation4 + $0xf8] sm:$0xe0] %v2216
      %v2233 = vld [vmem:[%s320] sm:$0x77]
      %v2234 = vld [vmem:[%s320 + $0x8] sm:$0x77]
      %v2235 = vld [vmem:[%s320 + $0x10] sm:$0x77]
      %v2236 = vld [vmem:[%s320 + $0x18] sm:$0x77]
      %v2237 = vld [vmem:[%s320 + $0x20] sm:$0x7]
      %v2243 = vcombine.high %v2233, %v2233
      %v2244 = vcombine.high %v2234, %v2234
      %v2245 = vcombine.high %v2235, %v2235
      %v2246 = vcombine.high %v2236, %v2236
      %2247 = vrot.lane.b32.xlu0 %v2233, 31
      %v2248 = vpop.permute.xlu0 %2247
      %2249 = vrot.lane.b32.xlu0 %v2243, 31
      %v2250 = vpop.permute.xlu0 %2249
      %2251 = vrot.lane.b32.xlu0 %v2234, 31
      %v2252 = vpop.permute.xlu0 %2251
      %2253 = vrot.lane.b32.xlu0 %v2244, 31
      %v2254 = vpop.permute.xlu0 %2253
      %2255 = vrot.lane.b32.xlu0 %v2235, 31
      %v2256 = vpop.permute.xlu0 %2255
      %2257 = vrot.lane.b32.xlu0 %v2245, 31
      %v2258 = vpop.permute.xlu0 %2257
      %2259 = vrot.lane.b32.xlu0 %v2236, 31
      %v2260 = vpop.permute.xlu0 %2259
      %2261 = vrot.lane.b32.xlu0 %v2246, 31
      %v2262 = vpop.permute.xlu0 %2261
      %2263 = vrot.lane.b32.xlu0 %v2237, 31
      %v2264 = vpop.permute.xlu0 %2263
      %vm2265 = vcmask 252928
      %v2266 = vsel %vm2265, %v2248, %v2250
      %v2267 = vsel %vm2265, %v2250, %v2252
      %v2268 = vsel %vm2265, %v2252, %v2254
      %v2269 = vsel %vm2265, %v2254, %v2256
      %v2270 = vsel %vm2265, %v2256, %v2258
      %v2271 = vsel %vm2265, %v2258, %v2260
      %v2272 = vsel %vm2265, %v2260, %v2262
      %v2273 = vsel %vm2265, %v2262, %v2264
      %v2282 = vsel %vm2141, %v2266, 0.0
      %v2283 = vsel %vm2142, %v2267, 0.0
      %v2284 = vsel %vm2143, %v2268, 0.0
      %v2285 = vsel %vm2144, %v2269, 0.0
      %v2286 = vsel %vm2145, %v2270, 0.0
      %v2287 = vsel %vm2146, %v2271, 0.0
      %v2288 = vsel %vm2147, %v2272, 0.0
      %v2289 = vsel %vm2148, %v2273, 0.0
      %v2298 = vrot.slane %v2282, 3
      %v2299 = vrot.slane %v2283, 3
      %v2300 = vrot.slane %v2284, 3
      %v2301 = vrot.slane %v2285, 3
      %v2302 = vrot.slane %v2286, 3
      %v2303 = vrot.slane %v2287, 3
      %v2304 = vrot.slane %v2288, 3
      %v2305 = vrot.slane %v2289, 3
      %2314 = vst [vmem:[#allocation4 + $0x200] sm:$0xe0] %v2298
      %2315 = vst [vmem:[#allocation4 + $0x208] sm:$0xe0] %v2299
      %2316 = vst [vmem:[#allocation4 + $0x210] sm:$0xe0] %v2300
      %2317 = vst [vmem:[#allocation4 + $0x218] sm:$0xe0] %v2301
      %2318 = vst [vmem:[#allocation4 + $0x220] sm:$0xe0] %v2302
      %2319 = vst [vmem:[#allocation4 + $0x228] sm:$0xe0] %v2303
      %2320 = vst [vmem:[#allocation4 + $0x230] sm:$0xe0] %v2304
      %2321 = vst [vmem:[#allocation4 + $0x238] sm:$0xe0] %v2305
      %v2322 = vld [vmem:[%s320 + $0x4] sm:$0x77]
      %v2323 = vld [vmem:[%s320 + $0xc] sm:$0x77]
      %v2324 = vld [vmem:[%s320 + $0x14] sm:$0x77]
      %v2325 = vld [vmem:[%s320 + $0x1c] sm:$0x77]
      %v2326 = vld [vmem:[%s320 + $0x24] sm:$0x7]
      %v2332 = vcombine.high %v2322, %v2322
      %v2333 = vcombine.high %v2323, %v2323
      %v2334 = vcombine.high %v2324, %v2324
      %v2335 = vcombine.high %v2325, %v2325
      %2336 = vrot.lane.b32.xlu0 %v2322, 127
      %v2337 = vpop.permute.xlu0 %2336
      %2338 = vrot.lane.b32.xlu0 %v2332, 127
      %v2339 = vpop.permute.xlu0 %2338
      %2340 = vrot.lane.b32.xlu0 %v2323, 127
      %v2341 = vpop.permute.xlu0 %2340
      %2342 = vrot.lane.b32.xlu0 %v2333, 127
      %v2343 = vpop.permute.xlu0 %2342
      %2344 = vrot.lane.b32.xlu0 %v2324, 127
      %v2345 = vpop.permute.xlu0 %2344
      %2346 = vrot.lane.b32.xlu0 %v2334, 127
      %v2347 = vpop.permute.xlu0 %2346
      %2348 = vrot.lane.b32.xlu0 %v2325, 127
      %v2349 = vpop.permute.xlu0 %2348
      %2350 = vrot.lane.b32.xlu0 %v2335, 127
      %v2351 = vpop.permute.xlu0 %2350
      %2352 = vrot.lane.b32.xlu0 %v2326, 127
      %v2353 = vpop.permute.xlu0 %2352
      %vm2354 = vcmask 1039360
      %v2355 = vsel %vm2354, %v2337, %v2339
      %v2356 = vsel %vm2354, %v2339, %v2341
      %v2357 = vsel %vm2354, %v2341, %v2343
      %v2358 = vsel %vm2354, %v2343, %v2345
      %v2359 = vsel %vm2354, %v2345, %v2347
      %v2360 = vsel %vm2354, %v2347, %v2349
      %v2361 = vsel %vm2354, %v2349, %v2351
      %v2362 = vsel %vm2354, %v2351, %v2353
      %v2371 = vsel %vm2141, %v2355, 0.0
      %v2372 = vsel %vm2142, %v2356, 0.0
      %v2373 = vsel %vm2143, %v2357, 0.0
      %v2374 = vsel %vm2144, %v2358, 0.0
      %v2375 = vsel %vm2145, %v2359, 0.0
      %v2376 = vsel %vm2146, %v2360, 0.0
      %v2377 = vsel %vm2147, %v2361, 0.0
      %v2378 = vsel %vm2148, %v2362, 0.0
      %v2387 = vrot.slane %v2371, 3
      %v2388 = vrot.slane %v2372, 3
      %v2389 = vrot.slane %v2373, 3
      %v2390 = vrot.slane %v2374, 3
      %v2391 = vrot.slane %v2375, 3
      %v2392 = vrot.slane %v2376, 3
      %v2393 = vrot.slane %v2377, 3
      %v2394 = vrot.slane %v2378, 3
      %2403 = vst [vmem:[#allocation4 + $0x340] sm:$0xe0] %v2387
      %2404 = vst [vmem:[#allocation4 + $0x348] sm:$0xe0] %v2388
      %2405 = vst [vmem:[#allocation4 + $0x350] sm:$0xe0] %v2389
      %2406 = vst [vmem:[#allocation4 + $0x358] sm:$0xe0] %v2390
      %2407 = vst [vmem:[#allocation4 + $0x360] sm:$0xe0] %v2391
      %2408 = vst [vmem:[#allocation4 + $0x368] sm:$0xe0] %v2392
      %2409 = vst [vmem:[#allocation4 + $0x370] sm:$0xe0] %v2393
      %2410 = vst [vmem:[#allocation4 + $0x378] sm:$0xe0] %v2394
      %v2411 = vld [vmem:[%s320 + $0x4] sm:$0x77]
      %v2412 = vld [vmem:[%s320 + $0xc] sm:$0x77]
      %v2413 = vld [vmem:[%s320 + $0x14] sm:$0x77]
      %v2414 = vld [vmem:[%s320 + $0x1c] sm:$0x77]
      %v2415 = vld [vmem:[%s320 + $0x24] sm:$0x7]
      %v2421 = vcombine.high %v2411, %v2411
      %v2422 = vcombine.high %v2412, %v2412
      %v2423 = vcombine.high %v2413, %v2413
      %v2424 = vcombine.high %v2414, %v2414
      %2425 = vrot.lane.b32.xlu0 %v2411, 95
      %v2426 = vpop.permute.xlu0 %2425
      %2427 = vrot.lane.b32.xlu0 %v2421, 95
      %v2428 = vpop.permute.xlu0 %2427
      %2429 = vrot.lane.b32.xlu0 %v2412, 95
      %v2430 = vpop.permute.xlu0 %2429
      %2431 = vrot.lane.b32.xlu0 %v2422, 95
      %v2432 = vpop.permute.xlu0 %2431
      %2433 = vrot.lane.b32.xlu0 %v2413, 95
      %v2434 = vpop.permute.xlu0 %2433
      %2435 = vrot.lane.b32.xlu0 %v2423, 95
      %v2436 = vpop.permute.xlu0 %2435
      %2437 = vrot.lane.b32.xlu0 %v2414, 95
      %v2438 = vpop.permute.xlu0 %2437
      %2439 = vrot.lane.b32.xlu0 %v2424, 95
      %v2440 = vpop.permute.xlu0 %2439
      %2441 = vrot.lane.b32.xlu0 %v2415, 95
      %v2442 = vpop.permute.xlu0 %2441
      %vm2443 = vcmask 777216
      %v2444 = vsel %vm2443, %v2426, %v2428
      %v2445 = vsel %vm2443, %v2428, %v2430
      %v2446 = vsel %vm2443, %v2430, %v2432
      %v2447 = vsel %vm2443, %v2432, %v2434
      %v2448 = vsel %vm2443, %v2434, %v2436
      %v2449 = vsel %vm2443, %v2436, %v2438
      %v2450 = vsel %vm2443, %v2438, %v2440
      %v2451 = vsel %vm2443, %v2440, %v2442
      %v2460 = vsel %vm2141, %v2444, 0.0
      %v2461 = vsel %vm2142, %v2445, 0.0
      %v2462 = vsel %vm2143, %v2446, 0.0
      %v2463 = vsel %vm2144, %v2447, 0.0
      %v2464 = vsel %vm2145, %v2448, 0.0
      %v2465 = vsel %vm2146, %v2449, 0.0
      %v2466 = vsel %vm2147, %v2450, 0.0
      %v2467 = vsel %vm2148, %v2451, 0.0
      %v2476 = vrot.slane %v2460, 3
      %v2477 = vrot.slane %v2461, 3
      %v2478 = vrot.slane %v2462, 3
      %v2479 = vrot.slane %v2463, 3
      %v2480 = vrot.slane %v2464, 3
      %v2481 = vrot.slane %v2465, 3
      %v2482 = vrot.slane %v2466, 3
      %v2483 = vrot.slane %v2467, 3
      %2492 = vst [vmem:[#allocation4 + $0x480] sm:$0xe0] %v2476
      %2493 = vst [vmem:[#allocation4 + $0x488] sm:$0xe0] %v2477
      %2494 = vst [vmem:[#allocation4 + $0x490] sm:$0xe0] %v2478
      %2495 = vst [vmem:[#allocation4 + $0x498] sm:$0xe0] %v2479
      %2496 = vst [vmem:[#allocation4 + $0x4a0] sm:$0xe0] %v2480
      %2497 = vst [vmem:[#allocation4 + $0x4a8] sm:$0xe0] %v2481
      %2498 = vst [vmem:[#allocation4 + $0x4b0] sm:$0xe0] %v2482
      %2499 = vst [vmem:[#allocation4 + $0x4b8] sm:$0xe0] %v2483
      %v2500 = vld [vmem:[%s320 + $0x4] sm:$0x77]
      %v2501 = vld [vmem:[%s320 + $0xc] sm:$0x77]
      %v2502 = vld [vmem:[%s320 + $0x14] sm:$0x77]
      %v2503 = vld [vmem:[%s320 + $0x1c] sm:$0x77]
      %v2504 = vld [vmem:[%s320 + $0x24] sm:$0x7]
      %v2510 = vcombine.high %v2500, %v2500
      %v2511 = vcombine.high %v2501, %v2501
      %v2512 = vcombine.high %v2502, %v2502
      %v2513 = vcombine.high %v2503, %v2503
      %2514 = vrot.lane.b32.xlu0 %v2500, 63
      %v2515 = vpop.permute.xlu0 %2514
      %2516 = vrot.lane.b32.xlu0 %v2510, 63
      %v2517 = vpop.permute.xlu0 %2516
      %2518 = vrot.lane.b32.xlu0 %v2501, 63
      %v2519 = vpop.permute.xlu0 %2518
      %2520 = vrot.lane.b32.xlu0 %v2511, 63
      %v2521 = vpop.permute.xlu0 %2520
      %2522 = vrot.lane.b32.xlu0 %v2502, 63
      %v2523 = vpop.permute.xlu0 %2522
      %2524 = vrot.lane.b32.xlu0 %v2512, 63
      %v2525 = vpop.permute.xlu0 %2524
      %2526 = vrot.lane.b32.xlu0 %v2503, 63
      %v2527 = vpop.permute.xlu0 %2526
      %2528 = vrot.lane.b32.xlu0 %v2513, 63
      %v2529 = vpop.permute.xlu0 %2528
      %2530 = vrot.lane.b32.xlu0 %v2504, 63
      %v2531 = vpop.permute.xlu0 %2530
      %v2532 = vsel %vm2176, %v2515, %v2517
      %v2533 = vsel %vm2176, %v2517, %v2519
      %v2534 = vsel %vm2176, %v2519, %v2521
      %v2535 = vsel %vm2176, %v2521, %v2523
      %v2536 = vsel %vm2176, %v2523, %v2525
      %v2537 = vsel %vm2176, %v2525, %v2527
      %v2538 = vsel %vm2176, %v2527, %v2529
      %v2539 = vsel %vm2176, %v2529, %v2531
      %v2548 = vsel %vm2141, %v2532, 0.0
      %v2549 = vsel %vm2142, %v2533, 0.0
      %v2550 = vsel %vm2143, %v2534, 0.0
      %v2551 = vsel %vm2144, %v2535, 0.0
      %v2552 = vsel %vm2145, %v2536, 0.0
      %v2553 = vsel %vm2146, %v2537, 0.0
      %v2554 = vsel %vm2147, %v2538, 0.0
      %v2555 = vsel %vm2148, %v2539, 0.0
      %v2564 = vrot.slane %v2548, 3
      %v2565 = vrot.slane %v2549, 3
      %v2566 = vrot.slane %v2550, 3
      %v2567 = vrot.slane %v2551, 3
      %v2568 = vrot.slane %v2552, 3
      %v2569 = vrot.slane %v2553, 3
      %v2570 = vrot.slane %v2554, 3
      %v2571 = vrot.slane %v2555, 3
      %2580 = vst [vmem:[#allocation4 + $0x5c0] sm:$0xe0] %v2564
      %2581 = vst [vmem:[#allocation4 + $0x5c8] sm:$0xe0] %v2565
      %2582 = vst [vmem:[#allocation4 + $0x5d0] sm:$0xe0] %v2566
      %2583 = vst [vmem:[#allocation4 + $0x5d8] sm:$0xe0] %v2567
      %2584 = vst [vmem:[#allocation4 + $0x5e0] sm:$0xe0] %v2568
      %2585 = vst [vmem:[#allocation4 + $0x5e8] sm:$0xe0] %v2569
      %2586 = vst [vmem:[#allocation4 + $0x5f0] sm:$0xe0] %v2570
      %2587 = vst [vmem:[#allocation4 + $0x5f8] sm:$0xe0] %v2571
      %v2588 = vadd.s32 %v653, 2
      %v2589 = vadd.s32 %v654, 2
      %v2590 = vadd.s32 %v655, 2
      %v2591 = vadd.s32 %v656, 2
      %v2592 = vadd.s32 %v657, 2
      %v2593 = vadd.s32 %v658, 2
      %v2594 = vadd.s32 %v659, 2
      %v2595 = vadd.s32 %v660, 2
      %vm2596 = vcmp.ge.s32.totalorder %v2588, 0
      %vm2597 = vcmp.ge.s32.totalorder %v2589, 0
      %vm2598 = vcmp.ge.s32.totalorder %v2590, 0
      %vm2599 = vcmp.ge.s32.totalorder %v2591, 0
      %vm2600 = vcmp.ge.s32.totalorder %v2592, 0
      %vm2601 = vcmp.ge.s32.totalorder %v2593, 0
      %vm2602 = vcmp.ge.s32.totalorder %v2594, 0
      %vm2603 = vcmp.ge.s32.totalorder %v2595, 0
      %vm2604 = vcmp.lt.s32.totalorder %v2588, 32
      %vm2605 = vcmp.lt.s32.totalorder %v2589, 32
      %vm2606 = vcmp.lt.s32.totalorder %v2590, 32
      %vm2607 = vcmp.lt.s32.totalorder %v2591, 32
      %vm2608 = vcmp.lt.s32.totalorder %v2592, 32
      %vm2609 = vcmp.lt.s32.totalorder %v2593, 32
      %vm2610 = vcmp.lt.s32.totalorder %v2594, 32
      %vm2611 = vcmp.lt.s32.totalorder %v2595, 32
      %vm2612 = vmand %vm2596, %vm2604
      %vm2613 = vmand %vm2597, %vm2605
      %vm2614 = vmand %vm2598, %vm2606
      %vm2615 = vmand %vm2599, %vm2607
      %vm2616 = vmand %vm2600, %vm2608
      %vm2617 = vmand %vm2601, %vm2609
      %vm2618 = vmand %vm2602, %vm2610
      %vm2619 = vmand %vm2603, %vm2611
      %v2620 = vld [vmem:[%s320] sm:$0x77]
      %v2621 = vld [vmem:[%s320 + $0x8] sm:$0x77]
      %v2622 = vld [vmem:[%s320 + $0x10] sm:$0x77]
      %v2623 = vld [vmem:[%s320 + $0x18] sm:$0x77]
      %v2624 = vld [vmem:[%s320 + $0x20] sm:$0x7]
      %v2625 = vsel %vm2612, 1, 0
      %v2626 = vsel %vm2613, 1, 0
      %v2627 = vsel %vm2614, 1, 0
      %v2628 = vsel %vm2615, 1, 0
      %v2629 = vsel %vm2616, 1, 0
      %v2630 = vsel %vm2617, 1, 0
      %v2631 = vsel %vm2618, 1, 0
      %v2632 = vsel %vm2619, 1, 0
      %vm2633 = vcmp.eq.s32.totalorder %v2625, 1
      %vm2634 = vcmp.eq.s32.totalorder %v2626, 1
      %vm2635 = vcmp.eq.s32.totalorder %v2627, 1
      %vm2636 = vcmp.eq.s32.totalorder %v2628, 1
      %vm2637 = vcmp.eq.s32.totalorder %v2629, 1
      %vm2638 = vcmp.eq.s32.totalorder %v2630, 1
      %vm2639 = vcmp.eq.s32.totalorder %v2631, 1
      %vm2640 = vcmp.eq.s32.totalorder %v2632, 1
      %v2646 = vcombine.high %v2620, %v2620
      %v2647 = vcombine.high %v2621, %v2621
      %v2648 = vcombine.high %v2622, %v2622
      %v2649 = vcombine.high %v2623, %v2623
      %2650 = vrot.lane.b32.xlu0 %v2620, 62
      %v2651 = vpop.permute.xlu0 %2650
      %2652 = vrot.lane.b32.xlu0 %v2646, 62
      %v2653 = vpop.permute.xlu0 %2652
      %2654 = vrot.lane.b32.xlu0 %v2621, 62
      %v2655 = vpop.permute.xlu0 %2654
      %2656 = vrot.lane.b32.xlu0 %v2647, 62
      %v2657 = vpop.permute.xlu0 %2656
      %2658 = vrot.lane.b32.xlu0 %v2622, 62
      %v2659 = vpop.permute.xlu0 %2658
      %2660 = vrot.lane.b32.xlu0 %v2648, 62
      %v2661 = vpop.permute.xlu0 %2660
      %2662 = vrot.lane.b32.xlu0 %v2623, 62
      %v2663 = vpop.permute.xlu0 %2662
      %2664 = vrot.lane.b32.xlu0 %v2649, 62
      %v2665 = vpop.permute.xlu0 %2664
      %2666 = vrot.lane.b32.xlu0 %v2624, 62
      %v2667 = vpop.permute.xlu0 %2666
      %vm2668 = vcmask 506880
      %v2669 = vsel %vm2668, %v2651, %v2653
      %v2670 = vsel %vm2668, %v2653, %v2655
      %v2671 = vsel %vm2668, %v2655, %v2657
      %v2672 = vsel %vm2668, %v2657, %v2659
      %v2673 = vsel %vm2668, %v2659, %v2661
      %v2674 = vsel %vm2668, %v2661, %v2663
      %v2675 = vsel %vm2668, %v2663, %v2665
      %v2676 = vsel %vm2668, %v2665, %v2667
      %v2685 = vsel %vm2633, %v2669, 0.0
      %v2686 = vsel %vm2634, %v2670, 0.0
      %v2687 = vsel %vm2635, %v2671, 0.0
      %v2688 = vsel %vm2636, %v2672, 0.0
      %v2689 = vsel %vm2637, %v2673, 0.0
      %v2690 = vsel %vm2638, %v2674, 0.0
      %v2691 = vsel %vm2639, %v2675, 0.0
      %v2692 = vsel %vm2640, %v2676, 0.0
      %v2701 = vrot.slane %v2685, 3
      %v2702 = vrot.slane %v2686, 3
      %v2703 = vrot.slane %v2687, 3
      %v2704 = vrot.slane %v2688, 3
      %v2705 = vrot.slane %v2689, 3
      %v2706 = vrot.slane %v2690, 3
      %v2707 = vrot.slane %v2691, 3
      %v2708 = vrot.slane %v2692, 3
      %2717 = vst [vmem:[#allocation4 + $0x100] sm:$0xe0] %v2701
      %2718 = vst [vmem:[#allocation4 + $0x108] sm:$0xe0] %v2702
      %2719 = vst [vmem:[#allocation4 + $0x110] sm:$0xe0] %v2703
      %2720 = vst [vmem:[#allocation4 + $0x118] sm:$0xe0] %v2704
      %2721 = vst [vmem:[#allocation4 + $0x120] sm:$0xe0] %v2705
      %2722 = vst [vmem:[#allocation4 + $0x128] sm:$0xe0] %v2706
      %2723 = vst [vmem:[#allocation4 + $0x130] sm:$0xe0] %v2707
      %2724 = vst [vmem:[#allocation4 + $0x138] sm:$0xe0] %v2708
      %v2725 = vld [vmem:[%s320] sm:$0x77]
      %v2726 = vld [vmem:[%s320 + $0x8] sm:$0x77]
      %v2727 = vld [vmem:[%s320 + $0x10] sm:$0x77]
      %v2728 = vld [vmem:[%s320 + $0x18] sm:$0x77]
      %v2729 = vld [vmem:[%s320 + $0x20] sm:$0x7]
      %v2735 = vcombine.high %v2725, %v2725
      %v2736 = vcombine.high %v2726, %v2726
      %v2737 = vcombine.high %v2727, %v2727
      %v2738 = vcombine.high %v2728, %v2728
      %2739 = vrot.lane.b32.xlu0 %v2725, 30
      %v2740 = vpop.permute.xlu0 %2739
      %2741 = vrot.lane.b32.xlu0 %v2735, 30
      %v2742 = vpop.permute.xlu0 %2741
      %2743 = vrot.lane.b32.xlu0 %v2726, 30
      %v2744 = vpop.permute.xlu0 %2743
      %2745 = vrot.lane.b32.xlu0 %v2736, 30
      %v2746 = vpop.permute.xlu0 %2745
      %2747 = vrot.lane.b32.xlu0 %v2727, 30
      %v2748 = vpop.permute.xlu0 %2747
      %2749 = vrot.lane.b32.xlu0 %v2737, 30
      %v2750 = vpop.permute.xlu0 %2749
      %2751 = vrot.lane.b32.xlu0 %v2728, 30
      %v2752 = vpop.permute.xlu0 %2751
      %2753 = vrot.lane.b32.xlu0 %v2738, 30
      %v2754 = vpop.permute.xlu0 %2753
      %2755 = vrot.lane.b32.xlu0 %v2729, 30
      %v2756 = vpop.permute.xlu0 %2755
      %vm2757 = vcmask 244736
      %v2758 = vsel %vm2757, %v2740, %v2742
      %v2759 = vsel %vm2757, %v2742, %v2744
      %v2760 = vsel %vm2757, %v2744, %v2746
      %v2761 = vsel %vm2757, %v2746, %v2748
      %v2762 = vsel %vm2757, %v2748, %v2750
      %v2763 = vsel %vm2757, %v2750, %v2752
      %v2764 = vsel %vm2757, %v2752, %v2754
      %v2765 = vsel %vm2757, %v2754, %v2756
      %v2774 = vsel %vm2633, %v2758, 0.0
      %v2775 = vsel %vm2634, %v2759, 0.0
      %v2776 = vsel %vm2635, %v2760, 0.0
      %v2777 = vsel %vm2636, %v2761, 0.0
      %v2778 = vsel %vm2637, %v2762, 0.0
      %v2779 = vsel %vm2638, %v2763, 0.0
      %v2780 = vsel %vm2639, %v2764, 0.0
      %v2781 = vsel %vm2640, %v2765, 0.0
      %v2790 = vrot.slane %v2774, 3
      %v2791 = vrot.slane %v2775, 3
      %v2792 = vrot.slane %v2776, 3
      %v2793 = vrot.slane %v2777, 3
      %v2794 = vrot.slane %v2778, 3
      %v2795 = vrot.slane %v2779, 3
      %v2796 = vrot.slane %v2780, 3
      %v2797 = vrot.slane %v2781, 3
      %2806 = vst [vmem:[#allocation4 + $0x240] sm:$0xe0] %v2790
      %2807 = vst [vmem:[#allocation4 + $0x248] sm:$0xe0] %v2791
      %2808 = vst [vmem:[#allocation4 + $0x250] sm:$0xe0] %v2792
      %2809 = vst [vmem:[#allocation4 + $0x258] sm:$0xe0] %v2793
      %2810 = vst [vmem:[#allocation4 + $0x260] sm:$0xe0] %v2794
      %2811 = vst [vmem:[#allocation4 + $0x268] sm:$0xe0] %v2795
      %2812 = vst [vmem:[#allocation4 + $0x270] sm:$0xe0] %v2796
      %2813 = vst [vmem:[#allocation4 + $0x278] sm:$0xe0] %v2797
      %v2814 = vld [vmem:[%s320 + $0x4] sm:$0x77]
      %v2815 = vld [vmem:[%s320 + $0xc] sm:$0x77]
      %v2816 = vld [vmem:[%s320 + $0x14] sm:$0x77]
      %v2817 = vld [vmem:[%s320 + $0x1c] sm:$0x77]
      %v2818 = vld [vmem:[%s320 + $0x24] sm:$0x7]
      %v2824 = vcombine.high %v2814, %v2814
      %v2825 = vcombine.high %v2815, %v2815
      %v2826 = vcombine.high %v2816, %v2816
      %v2827 = vcombine.high %v2817, %v2817
      %2828 = vrot.lane.b32.xlu0 %v2814, 126
      %v2829 = vpop.permute.xlu0 %2828
      %2830 = vrot.lane.b32.xlu0 %v2824, 126
      %v2831 = vpop.permute.xlu0 %2830
      %2832 = vrot.lane.b32.xlu0 %v2815, 126
      %v2833 = vpop.permute.xlu0 %2832
      %2834 = vrot.lane.b32.xlu0 %v2825, 126
      %v2835 = vpop.permute.xlu0 %2834
      %2836 = vrot.lane.b32.xlu0 %v2816, 126
      %v2837 = vpop.permute.xlu0 %2836
      %2838 = vrot.lane.b32.xlu0 %v2826, 126
      %v2839 = vpop.permute.xlu0 %2838
      %2840 = vrot.lane.b32.xlu0 %v2817, 126
      %v2841 = vpop.permute.xlu0 %2840
      %2842 = vrot.lane.b32.xlu0 %v2827, 126
      %v2843 = vpop.permute.xlu0 %2842
      %2844 = vrot.lane.b32.xlu0 %v2818, 126
      %v2845 = vpop.permute.xlu0 %2844
      %vm2846 = vcmask 1031168
      %v2847 = vsel %vm2846, %v2829, %v2831
      %v2848 = vsel %vm2846, %v2831, %v2833
      %v2849 = vsel %vm2846, %v2833, %v2835
      %v2850 = vsel %vm2846, %v2835, %v2837
      %v2851 = vsel %vm2846, %v2837, %v2839
      %v2852 = vsel %vm2846, %v2839, %v2841
      %v2853 = vsel %vm2846, %v2841, %v2843
      %v2854 = vsel %vm2846, %v2843, %v2845
      %v2863 = vsel %vm2633, %v2847, 0.0
      %v2864 = vsel %vm2634, %v2848, 0.0
      %v2865 = vsel %vm2635, %v2849, 0.0
      %v2866 = vsel %vm2636, %v2850, 0.0
      %v2867 = vsel %vm2637, %v2851, 0.0
      %v2868 = vsel %vm2638, %v2852, 0.0
      %v2869 = vsel %vm2639, %v2853, 0.0
      %v2870 = vsel %vm2640, %v2854, 0.0
      %v2879 = vrot.slane %v2863, 3
      %v2880 = vrot.slane %v2864, 3
      %v2881 = vrot.slane %v2865, 3
      %v2882 = vrot.slane %v2866, 3
      %v2883 = vrot.slane %v2867, 3
      %v2884 = vrot.slane %v2868, 3
      %v2885 = vrot.slane %v2869, 3
      %v2886 = vrot.slane %v2870, 3
      %2895 = vst [vmem:[#allocation4 + $0x380] sm:$0xe0] %v2879
      %2896 = vst [vmem:[#allocation4 + $0x388] sm:$0xe0] %v2880
      %2897 = vst [vmem:[#allocation4 + $0x390] sm:$0xe0] %v2881
      %2898 = vst [vmem:[#allocation4 + $0x398] sm:$0xe0] %v2882
      %2899 = vst [vmem:[#allocation4 + $0x3a0] sm:$0xe0] %v2883
      %2900 = vst [vmem:[#allocation4 + $0x3a8] sm:$0xe0] %v2884
      %2901 = vst [vmem:[#allocation4 + $0x3b0] sm:$0xe0] %v2885
      %2902 = vst [vmem:[#allocation4 + $0x3b8] sm:$0xe0] %v2886
      %v2903 = vld [vmem:[%s320 + $0x4] sm:$0x77]
      %v2904 = vld [vmem:[%s320 + $0xc] sm:$0x77]
      %v2905 = vld [vmem:[%s320 + $0x14] sm:$0x77]
      %v2906 = vld [vmem:[%s320 + $0x1c] sm:$0x77]
      %v2907 = vld [vmem:[%s320 + $0x24] sm:$0x7]
      %v2913 = vcombine.high %v2903, %v2903
      %v2914 = vcombine.high %v2904, %v2904
      %v2915 = vcombine.high %v2905, %v2905
      %v2916 = vcombine.high %v2906, %v2906
      %2917 = vrot.lane.b32.xlu0 %v2903, 94
      %v2918 = vpop.permute.xlu0 %2917
      %2919 = vrot.lane.b32.xlu0 %v2913, 94
      %v2920 = vpop.permute.xlu0 %2919
      %2921 = vrot.lane.b32.xlu0 %v2904, 94
      %v2922 = vpop.permute.xlu0 %2921
      %2923 = vrot.lane.b32.xlu0 %v2914, 94
      %v2924 = vpop.permute.xlu0 %2923
      %2925 = vrot.lane.b32.xlu0 %v2905, 94
      %v2926 = vpop.permute.xlu0 %2925
      %2927 = vrot.lane.b32.xlu0 %v2915, 94
      %v2928 = vpop.permute.xlu0 %2927
      %2929 = vrot.lane.b32.xlu0 %v2906, 94
      %v2930 = vpop.permute.xlu0 %2929
      %2931 = vrot.lane.b32.xlu0 %v2916, 94
      %v2932 = vpop.permute.xlu0 %2931
      %2933 = vrot.lane.b32.xlu0 %v2907, 94
      %v2934 = vpop.permute.xlu0 %2933
      %vm2935 = vcmask 769024
      %v2936 = vsel %vm2935, %v2918, %v2920
      %v2937 = vsel %vm2935, %v2920, %v2922
      %v2938 = vsel %vm2935, %v2922, %v2924
      %v2939 = vsel %vm2935, %v2924, %v2926
      %v2940 = vsel %vm2935, %v2926, %v2928
      %v2941 = vsel %vm2935, %v2928, %v2930
      %v2942 = vsel %vm2935, %v2930, %v2932
      %v2943 = vsel %vm2935, %v2932, %v2934
      %v2952 = vsel %vm2633, %v2936, 0.0
      %v2953 = vsel %vm2634, %v2937, 0.0
      %v2954 = vsel %vm2635, %v2938, 0.0
      %v2955 = vsel %vm2636, %v2939, 0.0
      %v2956 = vsel %vm2637, %v2940, 0.0
      %v2957 = vsel %vm2638, %v2941, 0.0
      %v2958 = vsel %vm2639, %v2942, 0.0
      %v2959 = vsel %vm2640, %v2943, 0.0
      %v2968 = vrot.slane %v2952, 3
      %v2969 = vrot.slane %v2953, 3
      %v2970 = vrot.slane %v2954, 3
      %v2971 = vrot.slane %v2955, 3
      %v2972 = vrot.slane %v2956, 3
      %v2973 = vrot.slane %v2957, 3
      %v2974 = vrot.slane %v2958, 3
      %v2975 = vrot.slane %v2959, 3
      %2984 = vst [vmem:[#allocation4 + $0x4c0] sm:$0xe0] %v2968
      %2985 = vst [vmem:[#allocation4 + $0x4c8] sm:$0xe0] %v2969
      %2986 = vst [vmem:[#allocation4 + $0x4d0] sm:$0xe0] %v2970
      %2987 = vst [vmem:[#allocation4 + $0x4d8] sm:$0xe0] %v2971
      %2988 = vst [vmem:[#allocation4 + $0x4e0] sm:$0xe0] %v2972
      %2989 = vst [vmem:[#allocation4 + $0x4e8] sm:$0xe0] %v2973
      %2990 = vst [vmem:[#allocation4 + $0x4f0] sm:$0xe0] %v2974
      %2991 = vst [vmem:[#allocation4 + $0x4f8] sm:$0xe0] %v2975
      %v2992 = vld [vmem:[%s320 + $0x4] sm:$0x77]
      %v2993 = vld [vmem:[%s320 + $0xc] sm:$0x77]
      %v2994 = vld [vmem:[%s320 + $0x14] sm:$0x77]
      %v2995 = vld [vmem:[%s320 + $0x1c] sm:$0x77]
      %v2996 = vld [vmem:[%s320 + $0x24] sm:$0x7]
      %v3002 = vcombine.high %v2992, %v2992
      %v3003 = vcombine.high %v2993, %v2993
      %v3004 = vcombine.high %v2994, %v2994
      %v3005 = vcombine.high %v2995, %v2995
      %3006 = vrot.lane.b32.xlu0 %v2992, 62
      %v3007 = vpop.permute.xlu0 %3006
      %3008 = vrot.lane.b32.xlu0 %v3002, 62
      %v3009 = vpop.permute.xlu0 %3008
      %3010 = vrot.lane.b32.xlu0 %v2993, 62
      %v3011 = vpop.permute.xlu0 %3010
      %3012 = vrot.lane.b32.xlu0 %v3003, 62
      %v3013 = vpop.permute.xlu0 %3012
      %3014 = vrot.lane.b32.xlu0 %v2994, 62
      %v3015 = vpop.permute.xlu0 %3014
      %3016 = vrot.lane.b32.xlu0 %v3004, 62
      %v3017 = vpop.permute.xlu0 %3016
      %3018 = vrot.lane.b32.xlu0 %v2995, 62
      %v3019 = vpop.permute.xlu0 %3018
      %3020 = vrot.lane.b32.xlu0 %v3005, 62
      %v3021 = vpop.permute.xlu0 %3020
      %3022 = vrot.lane.b32.xlu0 %v2996, 62
      %v3023 = vpop.permute.xlu0 %3022
      %v3024 = vsel %vm2668, %v3007, %v3009
      %v3025 = vsel %vm2668, %v3009, %v3011
      %v3026 = vsel %vm2668, %v3011, %v3013
      %v3027 = vsel %vm2668, %v3013, %v3015
      %v3028 = vsel %vm2668, %v3015, %v3017
      %v3029 = vsel %vm2668, %v3017, %v3019
      %v3030 = vsel %vm2668, %v3019, %v3021
      %v3031 = vsel %vm2668, %v3021, %v3023
      %v3040 = vsel %vm2633, %v3024, 0.0
      %v3041 = vsel %vm2634, %v3025, 0.0
      %v3042 = vsel %vm2635, %v3026, 0.0
      %v3043 = vsel %vm2636, %v3027, 0.0
      %v3044 = vsel %vm2637, %v3028, 0.0
      %v3045 = vsel %vm2638, %v3029, 0.0
      %v3046 = vsel %vm2639, %v3030, 0.0
      %v3047 = vsel %vm2640, %v3031, 0.0
      %v3056 = vrot.slane %v3040, 3
      %v3057 = vrot.slane %v3041, 3
      %v3058 = vrot.slane %v3042, 3
      %v3059 = vrot.slane %v3043, 3
      %v3060 = vrot.slane %v3044, 3
      %v3061 = vrot.slane %v3045, 3
      %v3062 = vrot.slane %v3046, 3
      %v3063 = vrot.slane %v3047, 3
      %3072 = vst [vmem:[#allocation4 + $0x600] sm:$0xe0] %v3056
      %3073 = vst [vmem:[#allocation4 + $0x608] sm:$0xe0] %v3057
      %3074 = vst [vmem:[#allocation4 + $0x610] sm:$0xe0] %v3058
      %3075 = vst [vmem:[#allocation4 + $0x618] sm:$0xe0] %v3059
      %3076 = vst [vmem:[#allocation4 + $0x620] sm:$0xe0] %v3060
      %3077 = vst [vmem:[#allocation4 + $0x628] sm:$0xe0] %v3061
      %3078 = vst [vmem:[#allocation4 + $0x630] sm:$0xe0] %v3062
      %3079 = vst [vmem:[#allocation4 + $0x638] sm:$0xe0] %v3063
      %s3080 = scalar_lea.smem [#allocation6], 0
      %3081 = sst [smem:[%s3080]] 1
      %s3082 = sld [smem:[#allocation6]]
      %p3083 = scmp.gt.s32.totalorder %s3082, 0
      // Predicated region
      $region53: #{unit_forward.1} parent=51 // pred_check
        %p3084 = pneg %p3083
      $region54: #{unit_forward.1} parent=51 // pred_check_branch
        %3086 = sbr.rel (%p3084) target = $region56
      $region55: #{unit_forward.1} parent=51 // pred_region
        %v3087 = vld [vmem:[#allocation2] sm:$0x1f]
        %v3088 = vld [vmem:[#allocation2 + $0x8] sm:$0x1f]
        %v3089 = vld [vmem:[#allocation2 + $0x10] sm:$0x1f]
        %v3090 = vld [vmem:[#allocation2 + $0x18] sm:$0x1f]
        %v3091 = vld [vmem:[#allocation2 + $0x20] sm:$0x1f]
        %v3092 = vld [vmem:[#allocation2 + $0x28] sm:$0x1f]
        %v3093 = vld [vmem:[#allocation2 + $0x30] sm:$0x1f]
        %v3094 = vld [vmem:[#allocation2 + $0x38] sm:$0x1f]
        %v3095 = vld [vmem:[#allocation2 + $0x40] sm:$0x1f]
        %3105 = vrot.lane.b32.xlu0 %v3087, 66
        %v3106 = vpop.permute.xlu0 %3105
        %3107 = vrot.lane.b32.xlu0 %v3088, 66
        %v3108 = vpop.permute.xlu0 %3107
        %3109 = vrot.lane.b32.xlu0 %v3089, 66
        %v3110 = vpop.permute.xlu0 %3109
        %3111 = vrot.lane.b32.xlu0 %v3090, 66
        %v3112 = vpop.permute.xlu0 %3111
        %3113 = vrot.lane.b32.xlu0 %v3091, 66
        %v3114 = vpop.permute.xlu0 %3113
        %3115 = vrot.lane.b32.xlu0 %v3092, 66
        %v3116 = vpop.permute.xlu0 %3115
        %3117 = vrot.lane.b32.xlu0 %v3093, 66
        %v3118 = vpop.permute.xlu0 %3117
        %3119 = vrot.lane.b32.xlu0 %v3094, 66
        %v3120 = vpop.permute.xlu0 %3119
        %3121 = vrot.lane.b32.xlu0 %v3095, 66
        %v3122 = vpop.permute.xlu0 %3121
        %v3123 = vsel %vm741, %v3106, %v3108
        %v3124 = vsel %vm741, %v3108, %v3110
        %v3125 = vsel %vm741, %v3110, %v3112
        %v3126 = vsel %vm741, %v3112, %v3114
        %v3127 = vsel %vm741, %v3114, %v3116
        %v3128 = vsel %vm741, %v3116, %v3118
        %v3129 = vsel %vm741, %v3118, %v3120
        %v3130 = vsel %vm741, %v3120, %v3122
        %v3139 = vsel %vm706, %v3123, 0.0
        %v3140 = vsel %vm707, %v3124, 0.0
        %v3141 = vsel %vm708, %v3125, 0.0
        %v3142 = vsel %vm709, %v3126, 0.0
        %v3143 = vsel %vm710, %v3127, 0.0
        %v3144 = vsel %vm711, %v3128, 0.0
        %v3145 = vsel %vm712, %v3129, 0.0
        %v3146 = vsel %vm713, %v3130, 0.0
        %3147 = vst [vmem:[#allocation4] sm:$0x1f] %v3139
        %3148 = vst [vmem:[#allocation4 + $0x8] sm:$0x1f] %v3140
        %3149 = vst [vmem:[#allocation4 + $0x10] sm:$0x1f] %v3141
        %3150 = vst [vmem:[#allocation4 + $0x18] sm:$0x1f] %v3142
        %3151 = vst [vmem:[#allocation4 + $0x20] sm:$0x1f] %v3143
        %3152 = vst [vmem:[#allocation4 + $0x28] sm:$0x1f] %v3144
        %3153 = vst [vmem:[#allocation4 + $0x30] sm:$0x1f] %v3145
        %3154 = vst [vmem:[#allocation4 + $0x38] sm:$0x1f] %v3146
        %v3155 = vld [vmem:[#allocation2] sm:$0x1f]
        %v3156 = vld [vmem:[#allocation2 + $0x8] sm:$0x1f]
        %v3157 = vld [vmem:[#allocation2 + $0x10] sm:$0x1f]
        %v3158 = vld [vmem:[#allocation2 + $0x18] sm:$0x1f]
        %v3159 = vld [vmem:[#allocation2 + $0x20] sm:$0x1f]
        %v3160 = vld [vmem:[#allocation2 + $0x28] sm:$0x1f]
        %v3161 = vld [vmem:[#allocation2 + $0x30] sm:$0x1f]
        %v3162 = vld [vmem:[#allocation2 + $0x38] sm:$0x1f]
        %v3163 = vld [vmem:[#allocation2 + $0x40] sm:$0x1f]
        %3173 = vrot.lane.b32.xlu0 %v3155, 34
        %v3174 = vpop.permute.xlu0 %3173
        %3175 = vrot.lane.b32.xlu0 %v3156, 34
        %v3176 = vpop.permute.xlu0 %3175
        %3177 = vrot.lane.b32.xlu0 %v3157, 34
        %v3178 = vpop.permute.xlu0 %3177
        %3179 = vrot.lane.b32.xlu0 %v3158, 34
        %v3180 = vpop.permute.xlu0 %3179
        %3181 = vrot.lane.b32.xlu0 %v3159, 34
        %v3182 = vpop.permute.xlu0 %3181
        %3183 = vrot.lane.b32.xlu0 %v3160, 34
        %v3184 = vpop.permute.xlu0 %3183
        %3185 = vrot.lane.b32.xlu0 %v3161, 34
        %v3186 = vpop.permute.xlu0 %3185
        %3187 = vrot.lane.b32.xlu0 %v3162, 34
        %v3188 = vpop.permute.xlu0 %3187
        %3189 = vrot.lane.b32.xlu0 %v3163, 34
        %v3190 = vpop.permute.xlu0 %3189
        %v3191 = vsel %vm830, %v3174, %v3176
        %v3192 = vsel %vm830, %v3176, %v3178
        %v3193 = vsel %vm830, %v3178, %v3180
        %v3194 = vsel %vm830, %v3180, %v3182
        %v3195 = vsel %vm830, %v3182, %v3184
        %v3196 = vsel %vm830, %v3184, %v3186
        %v3197 = vsel %vm830, %v3186, %v3188
        %v3198 = vsel %vm830, %v3188, %v3190
        %v3207 = vsel %vm706, %v3191, 0.0
        %v3208 = vsel %vm707, %v3192, 0.0
        %v3209 = vsel %vm708, %v3193, 0.0
        %v3210 = vsel %vm709, %v3194, 0.0
        %v3211 = vsel %vm710, %v3195, 0.0
        %v3212 = vsel %vm711, %v3196, 0.0
        %v3213 = vsel %vm712, %v3197, 0.0
        %v3214 = vsel %vm713, %v3198, 0.0
        %3215 = vst [vmem:[#allocation4 + $0x140] sm:$0x1f] %v3207
        %3216 = vst [vmem:[#allocation4 + $0x148] sm:$0x1f] %v3208
        %3217 = vst [vmem:[#allocation4 + $0x150] sm:$0x1f] %v3209
        %3218 = vst [vmem:[#allocation4 + $0x158] sm:$0x1f] %v3210
        %3219 = vst [vmem:[#allocation4 + $0x160] sm:$0x1f] %v3211
        %3220 = vst [vmem:[#allocation4 + $0x168] sm:$0x1f] %v3212
        %3221 = vst [vmem:[#allocation4 + $0x170] sm:$0x1f] %v3213
        %3222 = vst [vmem:[#allocation4 + $0x178] sm:$0x1f] %v3214
        %v3223 = vld [vmem:[#allocation2] sm:$0x1f]
        %v3224 = vld [vmem:[#allocation2 + $0x8] sm:$0x1f]
        %v3225 = vld [vmem:[#allocation2 + $0x10] sm:$0x1f]
        %v3226 = vld [vmem:[#allocation2 + $0x18] sm:$0x1f]
        %v3227 = vld [vmem:[#allocation2 + $0x20] sm:$0x1f]
        %v3228 = vld [vmem:[#allocation2 + $0x28] sm:$0x1f]
        %v3229 = vld [vmem:[#allocation2 + $0x30] sm:$0x1f]
        %v3230 = vld [vmem:[#allocation2 + $0x38] sm:$0x1f]
        %v3231 = vld [vmem:[#allocation2 + $0x40] sm:$0x1f]
        %3241 = vrot.lane.b32.xlu0 %v3223, 2
        %v3242 = vpop.permute.xlu0 %3241
        %3243 = vrot.lane.b32.xlu0 %v3224, 2
        %v3244 = vpop.permute.xlu0 %3243
        %3245 = vrot.lane.b32.xlu0 %v3225, 2
        %v3246 = vpop.permute.xlu0 %3245
        %3247 = vrot.lane.b32.xlu0 %v3226, 2
        %v3248 = vpop.permute.xlu0 %3247
        %3249 = vrot.lane.b32.xlu0 %v3227, 2
        %v3250 = vpop.permute.xlu0 %3249
        %3251 = vrot.lane.b32.xlu0 %v3228, 2
        %v3252 = vpop.permute.xlu0 %3251
        %3253 = vrot.lane.b32.xlu0 %v3229, 2
        %v3254 = vpop.permute.xlu0 %3253
        %3255 = vrot.lane.b32.xlu0 %v3230, 2
        %v3256 = vpop.permute.xlu0 %3255
        %3257 = vrot.lane.b32.xlu0 %v3231, 2
        %v3258 = vpop.permute.xlu0 %3257
        %v3259 = vsel %vm919, %v3242, %v3244
        %v3260 = vsel %vm919, %v3244, %v3246
        %v3261 = vsel %vm919, %v3246, %v3248
        %v3262 = vsel %vm919, %v3248, %v3250
        %v3263 = vsel %vm919, %v3250, %v3252
        %v3264 = vsel %vm919, %v3252, %v3254
        %v3265 = vsel %vm919, %v3254, %v3256
        %v3266 = vsel %vm919, %v3256, %v3258
        %v3275 = vsel %vm706, %v3259, 0.0
        %v3276 = vsel %vm707, %v3260, 0.0
        %v3277 = vsel %vm708, %v3261, 0.0
        %v3278 = vsel %vm709, %v3262, 0.0
        %v3279 = vsel %vm710, %v3263, 0.0
        %v3280 = vsel %vm711, %v3264, 0.0
        %v3281 = vsel %vm712, %v3265, 0.0
        %v3282 = vsel %vm713, %v3266, 0.0
        %3283 = vst [vmem:[#allocation4 + $0x280] sm:$0x1f] %v3275
        %3284 = vst [vmem:[#allocation4 + $0x288] sm:$0x1f] %v3276
        %3285 = vst [vmem:[#allocation4 + $0x290] sm:$0x1f] %v3277
        %3286 = vst [vmem:[#allocation4 + $0x298] sm:$0x1f] %v3278
        %3287 = vst [vmem:[#allocation4 + $0x2a0] sm:$0x1f] %v3279
        %3288 = vst [vmem:[#allocation4 + $0x2a8] sm:$0x1f] %v3280
        %3289 = vst [vmem:[#allocation4 + $0x2b0] sm:$0x1f] %v3281
        %3290 = vst [vmem:[#allocation4 + $0x2b8] sm:$0x1f] %v3282
        %v3291 = vld [vmem:[#allocation2 + $0x8] sm:$0x1f]
        %v3292 = vld [vmem:[#allocation2 + $0x10] sm:$0x1f]
        %v3293 = vld [vmem:[#allocation2 + $0x18] sm:$0x1f]
        %v3294 = vld [vmem:[#allocation2 + $0x20] sm:$0x1f]
        %v3295 = vld [vmem:[#allocation2 + $0x28] sm:$0x1f]
        %v3296 = vld [vmem:[#allocation2 + $0x30] sm:$0x1f]
        %v3297 = vld [vmem:[#allocation2 + $0x38] sm:$0x1f]
        %v3298 = vld [vmem:[#allocation2 + $0x40] sm:$0x1f]
        %v3299 = vld [vmem:[#allocation2 + $0x48] sm:$0x1f]
        %3309 = vrot.lane.b32.xlu0 %v3291, 98
        %v3310 = vpop.permute.xlu0 %3309
        %3311 = vrot.lane.b32.xlu0 %v3292, 98
        %v3312 = vpop.permute.xlu0 %3311
        %3313 = vrot.lane.b32.xlu0 %v3293, 98
        %v3314 = vpop.permute.xlu0 %3313
        %3315 = vrot.lane.b32.xlu0 %v3294, 98
        %v3316 = vpop.permute.xlu0 %3315
        %3317 = vrot.lane.b32.xlu0 %v3295, 98
        %v3318 = vpop.permute.xlu0 %3317
        %3319 = vrot.lane.b32.xlu0 %v3296, 98
        %v3320 = vpop.permute.xlu0 %3319
        %3321 = vrot.lane.b32.xlu0 %v3297, 98
        %v3322 = vpop.permute.xlu0 %3321
        %3323 = vrot.lane.b32.xlu0 %v3298, 98
        %v3324 = vpop.permute.xlu0 %3323
        %3325 = vrot.lane.b32.xlu0 %v3299, 98
        %v3326 = vpop.permute.xlu0 %3325
        %v3327 = vsel %vm1008, %v3310, %v3312
        %v3328 = vsel %vm1008, %v3312, %v3314
        %v3329 = vsel %vm1008, %v3314, %v3316
        %v3330 = vsel %vm1008, %v3316, %v3318
        %v3331 = vsel %vm1008, %v3318, %v3320
        %v3332 = vsel %vm1008, %v3320, %v3322
        %v3333 = vsel %vm1008, %v3322, %v3324
        %v3334 = vsel %vm1008, %v3324, %v3326
        %v3343 = vsel %vm706, %v3327, 0.0
        %v3344 = vsel %vm707, %v3328, 0.0
        %v3345 = vsel %vm708, %v3329, 0.0
        %v3346 = vsel %vm709, %v3330, 0.0
        %v3347 = vsel %vm710, %v3331, 0.0
        %v3348 = vsel %vm711, %v3332, 0.0
        %v3349 = vsel %vm712, %v3333, 0.0
        %v3350 = vsel %vm713, %v3334, 0.0
        %3351 = vst [vmem:[#allocation4 + $0x3c0] sm:$0x1f] %v3343
        %3352 = vst [vmem:[#allocation4 + $0x3c8] sm:$0x1f] %v3344
        %3353 = vst [vmem:[#allocation4 + $0x3d0] sm:$0x1f] %v3345
        %3354 = vst [vmem:[#allocation4 + $0x3d8] sm:$0x1f] %v3346
        %3355 = vst [vmem:[#allocation4 + $0x3e0] sm:$0x1f] %v3347
        %3356 = vst [vmem:[#allocation4 + $0x3e8] sm:$0x1f] %v3348
        %3357 = vst [vmem:[#allocation4 + $0x3f0] sm:$0x1f] %v3349
        %3358 = vst [vmem:[#allocation4 + $0x3f8] sm:$0x1f] %v3350
        %v3359 = vld [vmem:[#allocation2 + $0x8] sm:$0x1f]
        %v3360 = vld [vmem:[#allocation2 + $0x10] sm:$0x1f]
        %v3361 = vld [vmem:[#allocation2 + $0x18] sm:$0x1f]
        %v3362 = vld [vmem:[#allocation2 + $0x20] sm:$0x1f]
        %v3363 = vld [vmem:[#allocation2 + $0x28] sm:$0x1f]
        %v3364 = vld [vmem:[#allocation2 + $0x30] sm:$0x1f]
        %v3365 = vld [vmem:[#allocation2 + $0x38] sm:$0x1f]
        %v3366 = vld [vmem:[#allocation2 + $0x40] sm:$0x1f]
        %v3367 = vld [vmem:[#allocation2 + $0x48] sm:$0x1f]
        %3377 = vrot.lane.b32.xlu0 %v3359, 66
        %v3378 = vpop.permute.xlu0 %3377
        %3379 = vrot.lane.b32.xlu0 %v3360, 66
        %v3380 = vpop.permute.xlu0 %3379
        %3381 = vrot.lane.b32.xlu0 %v3361, 66
        %v3382 = vpop.permute.xlu0 %3381
        %3383 = vrot.lane.b32.xlu0 %v3362, 66
        %v3384 = vpop.permute.xlu0 %3383
        %3385 = vrot.lane.b32.xlu0 %v3363, 66
        %v3386 = vpop.permute.xlu0 %3385
        %3387 = vrot.lane.b32.xlu0 %v3364, 66
        %v3388 = vpop.permute.xlu0 %3387
        %3389 = vrot.lane.b32.xlu0 %v3365, 66
        %v3390 = vpop.permute.xlu0 %3389
        %3391 = vrot.lane.b32.xlu0 %v3366, 66
        %v3392 = vpop.permute.xlu0 %3391
        %3393 = vrot.lane.b32.xlu0 %v3367, 66
        %v3394 = vpop.permute.xlu0 %3393
        %v3395 = vsel %vm741, %v3378, %v3380
        %v3396 = vsel %vm741, %v3380, %v3382
        %v3397 = vsel %vm741, %v3382, %v3384
        %v3398 = vsel %vm741, %v3384, %v3386
        %v3399 = vsel %vm741, %v3386, %v3388
        %v3400 = vsel %vm741, %v3388, %v3390
        %v3401 = vsel %vm741, %v3390, %v3392
        %v3402 = vsel %vm741, %v3392, %v3394
        %v3411 = vsel %vm706, %v3395, 0.0
        %v3412 = vsel %vm707, %v3396, 0.0
        %v3413 = vsel %vm708, %v3397, 0.0
        %v3414 = vsel %vm709, %v3398, 0.0
        %v3415 = vsel %vm710, %v3399, 0.0
        %v3416 = vsel %vm711, %v3400, 0.0
        %v3417 = vsel %vm712, %v3401, 0.0
        %v3418 = vsel %vm713, %v3402, 0.0
        %3419 = vst [vmem:[#allocation4 + $0x500] sm:$0x1f] %v3411
        %3420 = vst [vmem:[#allocation4 + $0x508] sm:$0x1f] %v3412
        %3421 = vst [vmem:[#allocation4 + $0x510] sm:$0x1f] %v3413
        %3422 = vst [vmem:[#allocation4 + $0x518] sm:$0x1f] %v3414
        %3423 = vst [vmem:[#allocation4 + $0x520] sm:$0x1f] %v3415
        %3424 = vst [vmem:[#allocation4 + $0x528] sm:$0x1f] %v3416
        %3425 = vst [vmem:[#allocation4 + $0x530] sm:$0x1f] %v3417
        %3426 = vst [vmem:[#allocation4 + $0x538] sm:$0x1f] %v3418
        %v3427 = vld [vmem:[#allocation2] sm:$0x1f]
        %v3428 = vld [vmem:[#allocation2 + $0x8] sm:$0x1f]
        %v3429 = vld [vmem:[#allocation2 + $0x10] sm:$0x1f]
        %v3430 = vld [vmem:[#allocation2 + $0x18] sm:$0x1f]
        %v3431 = vld [vmem:[#allocation2 + $0x20] sm:$0x1f]
        %v3432 = vld [vmem:[#allocation2 + $0x28] sm:$0x1f]
        %v3433 = vld [vmem:[#allocation2 + $0x30] sm:$0x1f]
        %v3434 = vld [vmem:[#allocation2 + $0x38] sm:$0x1f]
        %v3435 = vld [vmem:[#allocation2 + $0x40] sm:$0x1f]
        %3445 = vrot.lane.b32.xlu0 %v3427, 65
        %v3446 = vpop.permute.xlu0 %3445
        %3447 = vrot.lane.b32.xlu0 %v3428, 65
        %v3448 = vpop.permute.xlu0 %3447
        %3449 = vrot.lane.b32.xlu0 %v3429, 65
        %v3450 = vpop.permute.xlu0 %3449
        %3451 = vrot.lane.b32.xlu0 %v3430, 65
        %v3452 = vpop.permute.xlu0 %3451
        %3453 = vrot.lane.b32.xlu0 %v3431, 65
        %v3454 = vpop.permute.xlu0 %3453
        %3455 = vrot.lane.b32.xlu0 %v3432, 65
        %v3456 = vpop.permute.xlu0 %3455
        %3457 = vrot.lane.b32.xlu0 %v3433, 65
        %v3458 = vpop.permute.xlu0 %3457
        %3459 = vrot.lane.b32.xlu0 %v3434, 65
        %v3460 = vpop.permute.xlu0 %3459
        %3461 = vrot.lane.b32.xlu0 %v3435, 65
        %v3462 = vpop.permute.xlu0 %3461
        %v3463 = vsel %vm1233, %v3446, %v3448
        %v3464 = vsel %vm1233, %v3448, %v3450
        %v3465 = vsel %vm1233, %v3450, %v3452
        %v3466 = vsel %vm1233, %v3452, %v3454
        %v3467 = vsel %vm1233, %v3454, %v3456
        %v3468 = vsel %vm1233, %v3456, %v3458
        %v3469 = vsel %vm1233, %v3458, %v3460
        %v3470 = vsel %vm1233, %v3460, %v3462
        %v3479 = vsel %vm1198, %v3463, 0.0
        %v3480 = vsel %vm1199, %v3464, 0.0
        %v3481 = vsel %vm1200, %v3465, 0.0
        %v3482 = vsel %vm1201, %v3466, 0.0
        %v3483 = vsel %vm1202, %v3467, 0.0
        %v3484 = vsel %vm1203, %v3468, 0.0
        %v3485 = vsel %vm1204, %v3469, 0.0
        %v3486 = vsel %vm1205, %v3470, 0.0
        %3487 = vst [vmem:[#allocation4 + $0x40] sm:$0x1f] %v3479
        %3488 = vst [vmem:[#allocation4 + $0x48] sm:$0x1f] %v3480
        %3489 = vst [vmem:[#allocation4 + $0x50] sm:$0x1f] %v3481
        %3490 = vst [vmem:[#allocation4 + $0x58] sm:$0x1f] %v3482
        %3491 = vst [vmem:[#allocation4 + $0x60] sm:$0x1f] %v3483
        %3492 = vst [vmem:[#allocation4 + $0x68] sm:$0x1f] %v3484
        %3493 = vst [vmem:[#allocation4 + $0x70] sm:$0x1f] %v3485
        %3494 = vst [vmem:[#allocation4 + $0x78] sm:$0x1f] %v3486
        %v3495 = vld [vmem:[#allocation2] sm:$0x1f]
        %v3496 = vld [vmem:[#allocation2 + $0x8] sm:$0x1f]
        %v3497 = vld [vmem:[#allocation2 + $0x10] sm:$0x1f]
        %v3498 = vld [vmem:[#allocation2 + $0x18] sm:$0x1f]
        %v3499 = vld [vmem:[#allocation2 + $0x20] sm:$0x1f]
        %v3500 = vld [vmem:[#allocation2 + $0x28] sm:$0x1f]
        %v3501 = vld [vmem:[#allocation2 + $0x30] sm:$0x1f]
        %v3502 = vld [vmem:[#allocation2 + $0x38] sm:$0x1f]
        %v3503 = vld [vmem:[#allocation2 + $0x40] sm:$0x1f]
        %3513 = vrot.lane.b32.xlu0 %v3495, 33
        %v3514 = vpop.permute.xlu0 %3513
        %3515 = vrot.lane.b32.xlu0 %v3496, 33
        %v3516 = vpop.permute.xlu0 %3515
        %3517 = vrot.lane.b32.xlu0 %v3497, 33
        %v3518 = vpop.permute.xlu0 %3517
        %3519 = vrot.lane.b32.xlu0 %v3498, 33
        %v3520 = vpop.permute.xlu0 %3519
        %3521 = vrot.lane.b32.xlu0 %v3499, 33
        %v3522 = vpop.permute.xlu0 %3521
        %3523 = vrot.lane.b32.xlu0 %v3500, 33
        %v3524 = vpop.permute.xlu0 %3523
        %3525 = vrot.lane.b32.xlu0 %v3501, 33
        %v3526 = vpop.permute.xlu0 %3525
        %3527 = vrot.lane.b32.xlu0 %v3502, 33
        %v3528 = vpop.permute.xlu0 %3527
        %3529 = vrot.lane.b32.xlu0 %v3503, 33
        %v3530 = vpop.permute.xlu0 %3529
        %v3531 = vsel %vm1322, %v3514, %v3516
        %v3532 = vsel %vm1322, %v3516, %v3518
        %v3533 = vsel %vm1322, %v3518, %v3520
        %v3534 = vsel %vm1322, %v3520, %v3522
        %v3535 = vsel %vm1322, %v3522, %v3524
        %v3536 = vsel %vm1322, %v3524, %v3526
        %v3537 = vsel %vm1322, %v3526, %v3528
        %v3538 = vsel %vm1322, %v3528, %v3530
        %v3547 = vsel %vm1198, %v3531, 0.0
        %v3548 = vsel %vm1199, %v3532, 0.0
        %v3549 = vsel %vm1200, %v3533, 0.0
        %v3550 = vsel %vm1201, %v3534, 0.0
        %v3551 = vsel %vm1202, %v3535, 0.0
        %v3552 = vsel %vm1203, %v3536, 0.0
        %v3553 = vsel %vm1204, %v3537, 0.0
        %v3554 = vsel %vm1205, %v3538, 0.0
        %3555 = vst [vmem:[#allocation4 + $0x180] sm:$0x1f] %v3547
        %3556 = vst [vmem:[#allocation4 + $0x188] sm:$0x1f] %v3548
        %3557 = vst [vmem:[#allocation4 + $0x190] sm:$0x1f] %v3549
        %3558 = vst [vmem:[#allocation4 + $0x198] sm:$0x1f] %v3550
        %3559 = vst [vmem:[#allocation4 + $0x1a0] sm:$0x1f] %v3551
        %3560 = vst [vmem:[#allocation4 + $0x1a8] sm:$0x1f] %v3552
        %3561 = vst [vmem:[#allocation4 + $0x1b0] sm:$0x1f] %v3553
        %3562 = vst [vmem:[#allocation4 + $0x1b8] sm:$0x1f] %v3554
        %v3563 = vld [vmem:[#allocation2] sm:$0x1f]
        %v3564 = vld [vmem:[#allocation2 + $0x8] sm:$0x1f]
        %v3565 = vld [vmem:[#allocation2 + $0x10] sm:$0x1f]
        %v3566 = vld [vmem:[#allocation2 + $0x18] sm:$0x1f]
        %v3567 = vld [vmem:[#allocation2 + $0x20] sm:$0x1f]
        %v3568 = vld [vmem:[#allocation2 + $0x28] sm:$0x1f]
        %v3569 = vld [vmem:[#allocation2 + $0x30] sm:$0x1f]
        %v3570 = vld [vmem:[#allocation2 + $0x38] sm:$0x1f]
        %v3571 = vld [vmem:[#allocation2 + $0x40] sm:$0x1f]
        %3581 = vrot.lane.b32.xlu0 %v3563, 1
        %v3582 = vpop.permute.xlu0 %3581
        %3583 = vrot.lane.b32.xlu0 %v3564, 1
        %v3584 = vpop.permute.xlu0 %3583
        %3585 = vrot.lane.b32.xlu0 %v3565, 1
        %v3586 = vpop.permute.xlu0 %3585
        %3587 = vrot.lane.b32.xlu0 %v3566, 1
        %v3588 = vpop.permute.xlu0 %3587
        %3589 = vrot.lane.b32.xlu0 %v3567, 1
        %v3590 = vpop.permute.xlu0 %3589
        %3591 = vrot.lane.b32.xlu0 %v3568, 1
        %v3592 = vpop.permute.xlu0 %3591
        %3593 = vrot.lane.b32.xlu0 %v3569, 1
        %v3594 = vpop.permute.xlu0 %3593
        %3595 = vrot.lane.b32.xlu0 %v3570, 1
        %v3596 = vpop.permute.xlu0 %3595
        %3597 = vrot.lane.b32.xlu0 %v3571, 1
        %v3598 = vpop.permute.xlu0 %3597
        %v3599 = vsel %vm1411, %v3582, %v3584
        %v3600 = vsel %vm1411, %v3584, %v3586
        %v3601 = vsel %vm1411, %v3586, %v3588
        %v3602 = vsel %vm1411, %v3588, %v3590
        %v3603 = vsel %vm1411, %v3590, %v3592
        %v3604 = vsel %vm1411, %v3592, %v3594
        %v3605 = vsel %vm1411, %v3594, %v3596
        %v3606 = vsel %vm1411, %v3596, %v3598
        %v3615 = vsel %vm1198, %v3599, 0.0
        %v3616 = vsel %vm1199, %v3600, 0.0
        %v3617 = vsel %vm1200, %v3601, 0.0
        %v3618 = vsel %vm1201, %v3602, 0.0
        %v3619 = vsel %vm1202, %v3603, 0.0
        %v3620 = vsel %vm1203, %v3604, 0.0
        %v3621 = vsel %vm1204, %v3605, 0.0
        %v3622 = vsel %vm1205, %v3606, 0.0
        %3623 = vst [vmem:[#allocation4 + $0x2c0] sm:$0x1f] %v3615
        %3624 = vst [vmem:[#allocation4 + $0x2c8] sm:$0x1f] %v3616
        %3625 = vst [vmem:[#allocation4 + $0x2d0] sm:$0x1f] %v3617
        %3626 = vst [vmem:[#allocation4 + $0x2d8] sm:$0x1f] %v3618
        %3627 = vst [vmem:[#allocation4 + $0x2e0] sm:$0x1f] %v3619
        %3628 = vst [vmem:[#allocation4 + $0x2e8] sm:$0x1f] %v3620
        %3629 = vst [vmem:[#allocation4 + $0x2f0] sm:$0x1f] %v3621
        %3630 = vst [vmem:[#allocation4 + $0x2f8] sm:$0x1f] %v3622
        %v3631 = vld [vmem:[#allocation2 + $0x8] sm:$0x1f]
        %v3632 = vld [vmem:[#allocation2 + $0x10] sm:$0x1f]
        %v3633 = vld [vmem:[#allocation2 + $0x18] sm:$0x1f]
        %v3634 = vld [vmem:[#allocation2 + $0x20] sm:$0x1f]
        %v3635 = vld [vmem:[#allocation2 + $0x28] sm:$0x1f]
        %v3636 = vld [vmem:[#allocation2 + $0x30] sm:$0x1f]
        %v3637 = vld [vmem:[#allocation2 + $0x38] sm:$0x1f]
        %v3638 = vld [vmem:[#allocation2 + $0x40] sm:$0x1f]
        %v3639 = vld [vmem:[#allocation2 + $0x48] sm:$0x1f]
        %3649 = vrot.lane.b32.xlu0 %v3631, 97
        %v3650 = vpop.permute.xlu0 %3649
        %3651 = vrot.lane.b32.xlu0 %v3632, 97
        %v3652 = vpop.permute.xlu0 %3651
        %3653 = vrot.lane.b32.xlu0 %v3633, 97
        %v3654 = vpop.permute.xlu0 %3653
        %3655 = vrot.lane.b32.xlu0 %v3634, 97
        %v3656 = vpop.permute.xlu0 %3655
        %3657 = vrot.lane.b32.xlu0 %v3635, 97
        %v3658 = vpop.permute.xlu0 %3657
        %3659 = vrot.lane.b32.xlu0 %v3636, 97
        %v3660 = vpop.permute.xlu0 %3659
        %3661 = vrot.lane.b32.xlu0 %v3637, 97
        %v3662 = vpop.permute.xlu0 %3661
        %3663 = vrot.lane.b32.xlu0 %v3638, 97
        %v3664 = vpop.permute.xlu0 %3663
        %3665 = vrot.lane.b32.xlu0 %v3639, 97
        %v3666 = vpop.permute.xlu0 %3665
        %v3667 = vsel %vm1500, %v3650, %v3652
        %v3668 = vsel %vm1500, %v3652, %v3654
        %v3669 = vsel %vm1500, %v3654, %v3656
        %v3670 = vsel %vm1500, %v3656, %v3658
        %v3671 = vsel %vm1500, %v3658, %v3660
        %v3672 = vsel %vm1500, %v3660, %v3662
        %v3673 = vsel %vm1500, %v3662, %v3664
        %v3674 = vsel %vm1500, %v3664, %v3666
        %v3683 = vsel %vm1198, %v3667, 0.0
        %v3684 = vsel %vm1199, %v3668, 0.0
        %v3685 = vsel %vm1200, %v3669, 0.0
        %v3686 = vsel %vm1201, %v3670, 0.0
        %v3687 = vsel %vm1202, %v3671, 0.0
        %v3688 = vsel %vm1203, %v3672, 0.0
        %v3689 = vsel %vm1204, %v3673, 0.0
        %v3690 = vsel %vm1205, %v3674, 0.0
        %3691 = vst [vmem:[#allocation4 + $0x400] sm:$0x1f] %v3683
        %3692 = vst [vmem:[#allocation4 + $0x408] sm:$0x1f] %v3684
        %3693 = vst [vmem:[#allocation4 + $0x410] sm:$0x1f] %v3685
        %3694 = vst [vmem:[#allocation4 + $0x418] sm:$0x1f] %v3686
        %3695 = vst [vmem:[#allocation4 + $0x420] sm:$0x1f] %v3687
        %3696 = vst [vmem:[#allocation4 + $0x428] sm:$0x1f] %v3688
        %3697 = vst [vmem:[#allocation4 + $0x430] sm:$0x1f] %v3689
        %3698 = vst [vmem:[#allocation4 + $0x438] sm:$0x1f] %v3690
        %v3699 = vld [vmem:[#allocation2 + $0x8] sm:$0x1f]
        %v3700 = vld [vmem:[#allocation2 + $0x10] sm:$0x1f]
        %v3701 = vld [vmem:[#allocation2 + $0x18] sm:$0x1f]
        %v3702 = vld [vmem:[#allocation2 + $0x20] sm:$0x1f]
        %v3703 = vld [vmem:[#allocation2 + $0x28] sm:$0x1f]
        %v3704 = vld [vmem:[#allocation2 + $0x30] sm:$0x1f]
        %v3705 = vld [vmem:[#allocation2 + $0x38] sm:$0x1f]
        %v3706 = vld [vmem:[#allocation2 + $0x40] sm:$0x1f]
        %v3707 = vld [vmem:[#allocation2 + $0x48] sm:$0x1f]
        %3717 = vrot.lane.b32.xlu0 %v3699, 65
        %v3718 = vpop.permute.xlu0 %3717
        %3719 = vrot.lane.b32.xlu0 %v3700, 65
        %v3720 = vpop.permute.xlu0 %3719
        %3721 = vrot.lane.b32.xlu0 %v3701, 65
        %v3722 = vpop.permute.xlu0 %3721
        %3723 = vrot.lane.b32.xlu0 %v3702, 65
        %v3724 = vpop.permute.xlu0 %3723
        %3725 = vrot.lane.b32.xlu0 %v3703, 65
        %v3726 = vpop.permute.xlu0 %3725
        %3727 = vrot.lane.b32.xlu0 %v3704, 65
        %v3728 = vpop.permute.xlu0 %3727
        %3729 = vrot.lane.b32.xlu0 %v3705, 65
        %v3730 = vpop.permute.xlu0 %3729
        %3731 = vrot.lane.b32.xlu0 %v3706, 65
        %v3732 = vpop.permute.xlu0 %3731
        %3733 = vrot.lane.b32.xlu0 %v3707, 65
        %v3734 = vpop.permute.xlu0 %3733
        %v3735 = vsel %vm1233, %v3718, %v3720
        %v3736 = vsel %vm1233, %v3720, %v3722
        %v3737 = vsel %vm1233, %v3722, %v3724
        %v3738 = vsel %vm1233, %v3724, %v3726
        %v3739 = vsel %vm1233, %v3726, %v3728
        %v3740 = vsel %vm1233, %v3728, %v3730
        %v3741 = vsel %vm1233, %v3730, %v3732
        %v3742 = vsel %vm1233, %v3732, %v3734
        %v3751 = vsel %vm1198, %v3735, 0.0
        %v3752 = vsel %vm1199, %v3736, 0.0
        %v3753 = vsel %vm1200, %v3737, 0.0
        %v3754 = vsel %vm1201, %v3738, 0.0
        %v3755 = vsel %vm1202, %v3739, 0.0
        %v3756 = vsel %vm1203, %v3740, 0.0
        %v3757 = vsel %vm1204, %v3741, 0.0
        %v3758 = vsel %vm1205, %v3742, 0.0
        %3759 = vst [vmem:[#allocation4 + $0x540] sm:$0x1f] %v3751
        %3760 = vst [vmem:[#allocation4 + $0x548] sm:$0x1f] %v3752
        %3761 = vst [vmem:[#allocation4 + $0x550] sm:$0x1f] %v3753
        %3762 = vst [vmem:[#allocation4 + $0x558] sm:$0x1f] %v3754
        %3763 = vst [vmem:[#allocation4 + $0x560] sm:$0x1f] %v3755
        %3764 = vst [vmem:[#allocation4 + $0x568] sm:$0x1f] %v3756
        %3765 = vst [vmem:[#allocation4 + $0x570] sm:$0x1f] %v3757
        %3766 = vst [vmem:[#allocation4 + $0x578] sm:$0x1f] %v3758
        %v3767 = vld [vmem:[#allocation2] sm:$0x1f]
        %v3768 = vld [vmem:[#allocation2 + $0x8] sm:$0x1f]
        %v3769 = vld [vmem:[#allocation2 + $0x10] sm:$0x1f]
        %v3770 = vld [vmem:[#allocation2 + $0x18] sm:$0x1f]
        %v3771 = vld [vmem:[#allocation2 + $0x20] sm:$0x1f]
        %v3772 = vld [vmem:[#allocation2 + $0x28] sm:$0x1f]
        %v3773 = vld [vmem:[#allocation2 + $0x30] sm:$0x1f]
        %v3774 = vld [vmem:[#allocation2 + $0x38] sm:$0x1f]
        %v3775 = vld [vmem:[#allocation2 + $0x40] sm:$0x1f]
        %3785 = vrot.lane.b32.xlu0 %v3767, 64
        %v3786 = vpop.permute.xlu0 %3785
        %3787 = vrot.lane.b32.xlu0 %v3768, 64
        %v3788 = vpop.permute.xlu0 %3787
        %3789 = vrot.lane.b32.xlu0 %v3769, 64
        %v3790 = vpop.permute.xlu0 %3789
        %3791 = vrot.lane.b32.xlu0 %v3770, 64
        %v3792 = vpop.permute.xlu0 %3791
        %3793 = vrot.lane.b32.xlu0 %v3771, 64
        %v3794 = vpop.permute.xlu0 %3793
        %3795 = vrot.lane.b32.xlu0 %v3772, 64
        %v3796 = vpop.permute.xlu0 %3795
        %3797 = vrot.lane.b32.xlu0 %v3773, 64
        %v3798 = vpop.permute.xlu0 %3797
        %3799 = vrot.lane.b32.xlu0 %v3774, 64
        %v3800 = vpop.permute.xlu0 %3799
        %3801 = vrot.lane.b32.xlu0 %v3775, 64
        %v3802 = vpop.permute.xlu0 %3801
        %v3803 = vsel %vm1717, %v3786, %v3788
        %v3804 = vsel %vm1717, %v3788, %v3790
        %v3805 = vsel %vm1717, %v3790, %v3792
        %v3806 = vsel %vm1717, %v3792, %v3794
        %v3807 = vsel %vm1717, %v3794, %v3796
        %v3808 = vsel %vm1717, %v3796, %v3798
        %v3809 = vsel %vm1717, %v3798, %v3800
        %v3810 = vsel %vm1717, %v3800, %v3802
        %v3819 = vsel %vm1682, %v3803, 0.0
        %v3820 = vsel %vm1683, %v3804, 0.0
        %v3821 = vsel %vm1684, %v3805, 0.0
        %v3822 = vsel %vm1685, %v3806, 0.0
        %v3823 = vsel %vm1686, %v3807, 0.0
        %v3824 = vsel %vm1687, %v3808, 0.0
        %v3825 = vsel %vm1688, %v3809, 0.0
        %v3826 = vsel %vm1689, %v3810, 0.0
        %3827 = vst [vmem:[#allocation4 + $0x80] sm:$0x1f] %v3819
        %3828 = vst [vmem:[#allocation4 + $0x88] sm:$0x1f] %v3820
        %3829 = vst [vmem:[#allocation4 + $0x90] sm:$0x1f] %v3821
        %3830 = vst [vmem:[#allocation4 + $0x98] sm:$0x1f] %v3822
        %3831 = vst [vmem:[#allocation4 + $0xa0] sm:$0x1f] %v3823
        %3832 = vst [vmem:[#allocation4 + $0xa8] sm:$0x1f] %v3824
        %3833 = vst [vmem:[#allocation4 + $0xb0] sm:$0x1f] %v3825
        %3834 = vst [vmem:[#allocation4 + $0xb8] sm:$0x1f] %v3826
        %v3835 = vld [vmem:[#allocation2] sm:$0x1f]
        %v3836 = vld [vmem:[#allocation2 + $0x8] sm:$0x1f]
        %v3837 = vld [vmem:[#allocation2 + $0x10] sm:$0x1f]
        %v3838 = vld [vmem:[#allocation2 + $0x18] sm:$0x1f]
        %v3839 = vld [vmem:[#allocation2 + $0x20] sm:$0x1f]
        %v3840 = vld [vmem:[#allocation2 + $0x28] sm:$0x1f]
        %v3841 = vld [vmem:[#allocation2 + $0x30] sm:$0x1f]
        %v3842 = vld [vmem:[#allocation2 + $0x38] sm:$0x1f]
        %v3843 = vld [vmem:[#allocation2 + $0x40] sm:$0x1f]
        %3853 = vrot.lane.b32.xlu0 %v3835, 32
        %v3854 = vpop.permute.xlu0 %3853
        %3855 = vrot.lane.b32.xlu0 %v3836, 32
        %v3856 = vpop.permute.xlu0 %3855
        %3857 = vrot.lane.b32.xlu0 %v3837, 32
        %v3858 = vpop.permute.xlu0 %3857
        %3859 = vrot.lane.b32.xlu0 %v3838, 32
        %v3860 = vpop.permute.xlu0 %3859
        %3861 = vrot.lane.b32.xlu0 %v3839, 32
        %v3862 = vpop.permute.xlu0 %3861
        %3863 = vrot.lane.b32.xlu0 %v3840, 32
        %v3864 = vpop.permute.xlu0 %3863
        %3865 = vrot.lane.b32.xlu0 %v3841, 32
        %v3866 = vpop.permute.xlu0 %3865
        %3867 = vrot.lane.b32.xlu0 %v3842, 32
        %v3868 = vpop.permute.xlu0 %3867
        %3869 = vrot.lane.b32.xlu0 %v3843, 32
        %v3870 = vpop.permute.xlu0 %3869
        %v3871 = vsel %vm1806, %v3854, %v3856
        %v3872 = vsel %vm1806, %v3856, %v3858
        %v3873 = vsel %vm1806, %v3858, %v3860
        %v3874 = vsel %vm1806, %v3860, %v3862
        %v3875 = vsel %vm1806, %v3862, %v3864
        %v3876 = vsel %vm1806, %v3864, %v3866
        %v3877 = vsel %vm1806, %v3866, %v3868
        %v3878 = vsel %vm1806, %v3868, %v3870
        %v3887 = vsel %vm1682, %v3871, 0.0
        %v3888 = vsel %vm1683, %v3872, 0.0
        %v3889 = vsel %vm1684, %v3873, 0.0
        %v3890 = vsel %vm1685, %v3874, 0.0
        %v3891 = vsel %vm1686, %v3875, 0.0
        %v3892 = vsel %vm1687, %v3876, 0.0
        %v3893 = vsel %vm1688, %v3877, 0.0
        %v3894 = vsel %vm1689, %v3878, 0.0
        %3895 = vst [vmem:[#allocation4 + $0x1c0] sm:$0x1f] %v3887
        %3896 = vst [vmem:[#allocation4 + $0x1c8] sm:$0x1f] %v3888
        %3897 = vst [vmem:[#allocation4 + $0x1d0] sm:$0x1f] %v3889
        %3898 = vst [vmem:[#allocation4 + $0x1d8] sm:$0x1f] %v3890
        %3899 = vst [vmem:[#allocation4 + $0x1e0] sm:$0x1f] %v3891
        %3900 = vst [vmem:[#allocation4 + $0x1e8] sm:$0x1f] %v3892
        %3901 = vst [vmem:[#allocation4 + $0x1f0] sm:$0x1f] %v3893
        %3902 = vst [vmem:[#allocation4 + $0x1f8] sm:$0x1f] %v3894
        %v3903 = vld [vmem:[#allocation2 + $0x8] sm:$0x1f]
        %v3904 = vld [vmem:[#allocation2 + $0x10] sm:$0x1f]
        %v3905 = vld [vmem:[#allocation2 + $0x18] sm:$0x1f]
        %v3906 = vld [vmem:[#allocation2 + $0x20] sm:$0x1f]
        %v3907 = vld [vmem:[#allocation2 + $0x28] sm:$0x1f]
        %v3908 = vld [vmem:[#allocation2 + $0x30] sm:$0x1f]
        %v3909 = vld [vmem:[#allocation2 + $0x38] sm:$0x1f]
        %v3910 = vld [vmem:[#allocation2 + $0x40] sm:$0x1f]
        %v3911 = vsel %vm1682, %v3903, 0.0
        %v3912 = vsel %vm1683, %v3904, 0.0
        %v3913 = vsel %vm1684, %v3905, 0.0
        %v3914 = vsel %vm1685, %v3906, 0.0
        %v3915 = vsel %vm1686, %v3907, 0.0
        %v3916 = vsel %vm1687, %v3908, 0.0
        %v3917 = vsel %vm1688, %v3909, 0.0
        %v3918 = vsel %vm1689, %v3910, 0.0
        %3919 = vst [vmem:[#allocation4 + $0x300] sm:$0x1f] %v3911
        %3920 = vst [vmem:[#allocation4 + $0x308] sm:$0x1f] %v3912
        %3921 = vst [vmem:[#allocation4 + $0x310] sm:$0x1f] %v3913
        %3922 = vst [vmem:[#allocation4 + $0x318] sm:$0x1f] %v3914
        %3923 = vst [vmem:[#allocation4 + $0x320] sm:$0x1f] %v3915
        %3924 = vst [vmem:[#allocation4 + $0x328] sm:$0x1f] %v3916
        %3925 = vst [vmem:[#allocation4 + $0x330] sm:$0x1f] %v3917
        %3926 = vst [vmem:[#allocation4 + $0x338] sm:$0x1f] %v3918
        %v3927 = vld [vmem:[#allocation2 + $0x8] sm:$0x1f]
        %v3928 = vld [vmem:[#allocation2 + $0x10] sm:$0x1f]
        %v3929 = vld [vmem:[#allocation2 + $0x18] sm:$0x1f]
        %v3930 = vld [vmem:[#allocation2 + $0x20] sm:$0x1f]
        %v3931 = vld [vmem:[#allocation2 + $0x28] sm:$0x1f]
        %v3932 = vld [vmem:[#allocation2 + $0x30] sm:$0x1f]
        %v3933 = vld [vmem:[#allocation2 + $0x38] sm:$0x1f]
        %v3934 = vld [vmem:[#allocation2 + $0x40] sm:$0x1f]
        %v3935 = vld [vmem:[#allocation2 + $0x48] sm:$0x1f]
        %3945 = vrot.lane.b32.xlu0 %v3927, 96
        %v3946 = vpop.permute.xlu0 %3945
        %3947 = vrot.lane.b32.xlu0 %v3928, 96
        %v3948 = vpop.permute.xlu0 %3947
        %3949 = vrot.lane.b32.xlu0 %v3929, 96
        %v3950 = vpop.permute.xlu0 %3949
        %3951 = vrot.lane.b32.xlu0 %v3930, 96
        %v3952 = vpop.permute.xlu0 %3951
        %3953 = vrot.lane.b32.xlu0 %v3931, 96
        %v3954 = vpop.permute.xlu0 %3953
        %3955 = vrot.lane.b32.xlu0 %v3932, 96
        %v3956 = vpop.permute.xlu0 %3955
        %3957 = vrot.lane.b32.xlu0 %v3933, 96
        %v3958 = vpop.permute.xlu0 %3957
        %3959 = vrot.lane.b32.xlu0 %v3934, 96
        %v3960 = vpop.permute.xlu0 %3959
        %3961 = vrot.lane.b32.xlu0 %v3935, 96
        %v3962 = vpop.permute.xlu0 %3961
        %v3963 = vsel %vm1951, %v3946, %v3948
        %v3964 = vsel %vm1951, %v3948, %v3950
        %v3965 = vsel %vm1951, %v3950, %v3952
        %v3966 = vsel %vm1951, %v3952, %v3954
        %v3967 = vsel %vm1951, %v3954, %v3956
        %v3968 = vsel %vm1951, %v3956, %v3958
        %v3969 = vsel %vm1951, %v3958, %v3960
        %v3970 = vsel %vm1951, %v3960, %v3962
        %v3979 = vsel %vm1682, %v3963, 0.0
        %v3980 = vsel %vm1683, %v3964, 0.0
        %v3981 = vsel %vm1684, %v3965, 0.0
        %v3982 = vsel %vm1685, %v3966, 0.0
        %v3983 = vsel %vm1686, %v3967, 0.0
        %v3984 = vsel %vm1687, %v3968, 0.0
        %v3985 = vsel %vm1688, %v3969, 0.0
        %v3986 = vsel %vm1689, %v3970, 0.0
        %3987 = vst [vmem:[#allocation4 + $0x440] sm:$0x1f] %v3979
        %3988 = vst [vmem:[#allocation4 + $0x448] sm:$0x1f] %v3980
        %3989 = vst [vmem:[#allocation4 + $0x450] sm:$0x1f] %v3981
        %3990 = vst [vmem:[#allocation4 + $0x458] sm:$0x1f] %v3982
        %3991 = vst [vmem:[#allocation4 + $0x460] sm:$0x1f] %v3983
        %3992 = vst [vmem:[#allocation4 + $0x468] sm:$0x1f] %v3984
        %3993 = vst [vmem:[#allocation4 + $0x470] sm:$0x1f] %v3985
        %3994 = vst [vmem:[#allocation4 + $0x478] sm:$0x1f] %v3986
        %v3995 = vld [vmem:[#allocation2 + $0x8] sm:$0x1f]
        %v3996 = vld [vmem:[#allocation2 + $0x10] sm:$0x1f]
        %v3997 = vld [vmem:[#allocation2 + $0x18] sm:$0x1f]
        %v3998 = vld [vmem:[#allocation2 + $0x20] sm:$0x1f]
        %v3999 = vld [vmem:[#allocation2 + $0x28] sm:$0x1f]
        %v4000 = vld [vmem:[#allocation2 + $0x30] sm:$0x1f]
        %v4001 = vld [vmem:[#allocation2 + $0x38] sm:$0x1f]
        %v4002 = vld [vmem:[#allocation2 + $0x40] sm:$0x1f]
        %v4003 = vld [vmem:[#allocation2 + $0x48] sm:$0x1f]
        %4013 = vrot.lane.b32.xlu0 %v3995, 64
        %v4014 = vpop.permute.xlu0 %4013
        %4015 = vrot.lane.b32.xlu0 %v3996, 64
        %v4016 = vpop.permute.xlu0 %4015
        %4017 = vrot.lane.b32.xlu0 %v3997, 64
        %v4018 = vpop.permute.xlu0 %4017
        %4019 = vrot.lane.b32.xlu0 %v3998, 64
        %v4020 = vpop.permute.xlu0 %4019
        %4021 = vrot.lane.b32.xlu0 %v3999, 64
        %v4022 = vpop.permute.xlu0 %4021
        %4023 = vrot.lane.b32.xlu0 %v4000, 64
        %v4024 = vpop.permute.xlu0 %4023
        %4025 = vrot.lane.b32.xlu0 %v4001, 64
        %v4026 = vpop.permute.xlu0 %4025
        %4027 = vrot.lane.b32.xlu0 %v4002, 64
        %v4028 = vpop.permute.xlu0 %4027
        %4029 = vrot.lane.b32.xlu0 %v4003, 64
        %v4030 = vpop.permute.xlu0 %4029
        %v4031 = vsel %vm1717, %v4014, %v4016
        %v4032 = vsel %vm1717, %v4016, %v4018
        %v4033 = vsel %vm1717, %v4018, %v4020
        %v4034 = vsel %vm1717, %v4020, %v4022
        %v4035 = vsel %vm1717, %v4022, %v4024
        %v4036 = vsel %vm1717, %v4024, %v4026
        %v4037 = vsel %vm1717, %v4026, %v4028
        %v4038 = vsel %vm1717, %v4028, %v4030
        %v4047 = vsel %vm1682, %v4031, 0.0
        %v4048 = vsel %vm1683, %v4032, 0.0
        %v4049 = vsel %vm1684, %v4033, 0.0
        %v4050 = vsel %vm1685, %v4034, 0.0
        %v4051 = vsel %vm1686, %v4035, 0.0
        %v4052 = vsel %vm1687, %v4036, 0.0
        %v4053 = vsel %vm1688, %v4037, 0.0
        %v4054 = vsel %vm1689, %v4038, 0.0
        %4055 = vst [vmem:[#allocation4 + $0x580] sm:$0x1f] %v4047
        %4056 = vst [vmem:[#allocation4 + $0x588] sm:$0x1f] %v4048
        %4057 = vst [vmem:[#allocation4 + $0x590] sm:$0x1f] %v4049
        %4058 = vst [vmem:[#allocation4 + $0x598] sm:$0x1f] %v4050
        %4059 = vst [vmem:[#allocation4 + $0x5a0] sm:$0x1f] %v4051
        %4060 = vst [vmem:[#allocation4 + $0x5a8] sm:$0x1f] %v4052
        %4061 = vst [vmem:[#allocation4 + $0x5b0] sm:$0x1f] %v4053
        %4062 = vst [vmem:[#allocation4 + $0x5b8] sm:$0x1f] %v4054
        %v4063 = vld [vmem:[#allocation2] sm:$0x1f]
        %v4064 = vld [vmem:[#allocation2 + $0x8] sm:$0x1f]
        %v4065 = vld [vmem:[#allocation2 + $0x10] sm:$0x1f]
        %v4066 = vld [vmem:[#allocation2 + $0x18] sm:$0x1f]
        %v4067 = vld [vmem:[#allocation2 + $0x20] sm:$0x1f]
        %v4068 = vld [vmem:[#allocation2 + $0x28] sm:$0x1f]
        %v4069 = vld [vmem:[#allocation2 + $0x30] sm:$0x1f]
        %v4070 = vld [vmem:[#allocation2 + $0x38] sm:$0x1f]
        %v4071 = vld [vmem:[#allocation2 + $0x40] sm:$0x1f]
        %4081 = vrot.lane.b32.xlu0 %v4063, 63
        %v4082 = vpop.permute.xlu0 %4081
        %4083 = vrot.lane.b32.xlu0 %v4064, 63
        %v4084 = vpop.permute.xlu0 %4083
        %4085 = vrot.lane.b32.xlu0 %v4065, 63
        %v4086 = vpop.permute.xlu0 %4085
        %4087 = vrot.lane.b32.xlu0 %v4066, 63
        %v4088 = vpop.permute.xlu0 %4087
        %4089 = vrot.lane.b32.xlu0 %v4067, 63
        %v4090 = vpop.permute.xlu0 %4089
        %4091 = vrot.lane.b32.xlu0 %v4068, 63
        %v4092 = vpop.permute.xlu0 %4091
        %4093 = vrot.lane.b32.xlu0 %v4069, 63
        %v4094 = vpop.permute.xlu0 %4093
        %4095 = vrot.lane.b32.xlu0 %v4070, 63
        %v4096 = vpop.permute.xlu0 %4095
        %4097 = vrot.lane.b32.xlu0 %v4071, 63
        %v4098 = vpop.permute.xlu0 %4097
        %v4099 = vsel %vm2176, %v4082, %v4084
        %v4100 = vsel %vm2176, %v4084, %v4086
        %v4101 = vsel %vm2176, %v4086, %v4088
        %v4102 = vsel %vm2176, %v4088, %v4090
        %v4103 = vsel %vm2176, %v4090, %v4092
        %v4104 = vsel %vm2176, %v4092, %v4094
        %v4105 = vsel %vm2176, %v4094, %v4096
        %v4106 = vsel %vm2176, %v4096, %v4098
        %v4115 = vsel %vm2141, %v4099, 0.0
        %v4116 = vsel %vm2142, %v4100, 0.0
        %v4117 = vsel %vm2143, %v4101, 0.0
        %v4118 = vsel %vm2144, %v4102, 0.0
        %v4119 = vsel %vm2145, %v4103, 0.0
        %v4120 = vsel %vm2146, %v4104, 0.0
        %v4121 = vsel %vm2147, %v4105, 0.0
        %v4122 = vsel %vm2148, %v4106, 0.0
        %4123 = vst [vmem:[#allocation4 + $0xc0] sm:$0x1f] %v4115
        %4124 = vst [vmem:[#allocation4 + $0xc8] sm:$0x1f] %v4116
        %4125 = vst [vmem:[#allocation4 + $0xd0] sm:$0x1f] %v4117
        %4126 = vst [vmem:[#allocation4 + $0xd8] sm:$0x1f] %v4118
        %4127 = vst [vmem:[#allocation4 + $0xe0] sm:$0x1f] %v4119
        %4128 = vst [vmem:[#allocation4 + $0xe8] sm:$0x1f] %v4120
        %4129 = vst [vmem:[#allocation4 + $0xf0] sm:$0x1f] %v4121
        %4130 = vst [vmem:[#allocation4 + $0xf8] sm:$0x1f] %v4122
        %v4131 = vld [vmem:[#allocation2] sm:$0x1f]
        %v4132 = vld [vmem:[#allocation2 + $0x8] sm:$0x1f]
        %v4133 = vld [vmem:[#allocation2 + $0x10] sm:$0x1f]
        %v4134 = vld [vmem:[#allocation2 + $0x18] sm:$0x1f]
        %v4135 = vld [vmem:[#allocation2 + $0x20] sm:$0x1f]
        %v4136 = vld [vmem:[#allocation2 + $0x28] sm:$0x1f]
        %v4137 = vld [vmem:[#allocation2 + $0x30] sm:$0x1f]
        %v4138 = vld [vmem:[#allocation2 + $0x38] sm:$0x1f]
        %v4139 = vld [vmem:[#allocation2 + $0x40] sm:$0x1f]
        %4149 = vrot.lane.b32.xlu0 %v4131, 31
        %v4150 = vpop.permute.xlu0 %4149
        %4151 = vrot.lane.b32.xlu0 %v4132, 31
        %v4152 = vpop.permute.xlu0 %4151
        %4153 = vrot.lane.b32.xlu0 %v4133, 31
        %v4154 = vpop.permute.xlu0 %4153
        %4155 = vrot.lane.b32.xlu0 %v4134, 31
        %v4156 = vpop.permute.xlu0 %4155
        %4157 = vrot.lane.b32.xlu0 %v4135, 31
        %v4158 = vpop.permute.xlu0 %4157
        %4159 = vrot.lane.b32.xlu0 %v4136, 31
        %v4160 = vpop.permute.xlu0 %4159
        %4161 = vrot.lane.b32.xlu0 %v4137, 31
        %v4162 = vpop.permute.xlu0 %4161
        %4163 = vrot.lane.b32.xlu0 %v4138, 31
        %v4164 = vpop.permute.xlu0 %4163
        %4165 = vrot.lane.b32.xlu0 %v4139, 31
        %v4166 = vpop.permute.xlu0 %4165
        %v4167 = vsel %vm2265, %v4150, %v4152
        %v4168 = vsel %vm2265, %v4152, %v4154
        %v4169 = vsel %vm2265, %v4154, %v4156
        %v4170 = vsel %vm2265, %v4156, %v4158
        %v4171 = vsel %vm2265, %v4158, %v4160
        %v4172 = vsel %vm2265, %v4160, %v4162
        %v4173 = vsel %vm2265, %v4162, %v4164
        %v4174 = vsel %vm2265, %v4164, %v4166
        %v4183 = vsel %vm2141, %v4167, 0.0
        %v4184 = vsel %vm2142, %v4168, 0.0
        %v4185 = vsel %vm2143, %v4169, 0.0
        %v4186 = vsel %vm2144, %v4170, 0.0
        %v4187 = vsel %vm2145, %v4171, 0.0
        %v4188 = vsel %vm2146, %v4172, 0.0
        %v4189 = vsel %vm2147, %v4173, 0.0
        %v4190 = vsel %vm2148, %v4174, 0.0
        %4191 = vst [vmem:[#allocation4 + $0x200] sm:$0x1f] %v4183
        %4192 = vst [vmem:[#allocation4 + $0x208] sm:$0x1f] %v4184
        %4193 = vst [vmem:[#allocation4 + $0x210] sm:$0x1f] %v4185
        %4194 = vst [vmem:[#allocation4 + $0x218] sm:$0x1f] %v4186
        %4195 = vst [vmem:[#allocation4 + $0x220] sm:$0x1f] %v4187
        %4196 = vst [vmem:[#allocation4 + $0x228] sm:$0x1f] %v4188
        %4197 = vst [vmem:[#allocation4 + $0x230] sm:$0x1f] %v4189
        %4198 = vst [vmem:[#allocation4 + $0x238] sm:$0x1f] %v4190
        %v4199 = vld [vmem:[#allocation2 + $0x8] sm:$0x1f]
        %v4200 = vld [vmem:[#allocation2 + $0x10] sm:$0x1f]
        %v4201 = vld [vmem:[#allocation2 + $0x18] sm:$0x1f]
        %v4202 = vld [vmem:[#allocation2 + $0x20] sm:$0x1f]
        %v4203 = vld [vmem:[#allocation2 + $0x28] sm:$0x1f]
        %v4204 = vld [vmem:[#allocation2 + $0x30] sm:$0x1f]
        %v4205 = vld [vmem:[#allocation2 + $0x38] sm:$0x1f]
        %v4206 = vld [vmem:[#allocation2 + $0x40] sm:$0x1f]
        %v4207 = vld [vmem:[#allocation2 + $0x48] sm:$0x1f]
        %4217 = vrot.lane.b32.xlu0 %v4199, 127
        %v4218 = vpop.permute.xlu0 %4217
        %4219 = vrot.lane.b32.xlu0 %v4200, 127
        %v4220 = vpop.permute.xlu0 %4219
        %4221 = vrot.lane.b32.xlu0 %v4201, 127
        %v4222 = vpop.permute.xlu0 %4221
        %4223 = vrot.lane.b32.xlu0 %v4202, 127
        %v4224 = vpop.permute.xlu0 %4223
        %4225 = vrot.lane.b32.xlu0 %v4203, 127
        %v4226 = vpop.permute.xlu0 %4225
        %4227 = vrot.lane.b32.xlu0 %v4204, 127
        %v4228 = vpop.permute.xlu0 %4227
        %4229 = vrot.lane.b32.xlu0 %v4205, 127
        %v4230 = vpop.permute.xlu0 %4229
        %4231 = vrot.lane.b32.xlu0 %v4206, 127
        %v4232 = vpop.permute.xlu0 %4231
        %4233 = vrot.lane.b32.xlu0 %v4207, 127
        %v4234 = vpop.permute.xlu0 %4233
        %v4235 = vsel %vm2354, %v4218, %v4220
        %v4236 = vsel %vm2354, %v4220, %v4222
        %v4237 = vsel %vm2354, %v4222, %v4224
        %v4238 = vsel %vm2354, %v4224, %v4226
        %v4239 = vsel %vm2354, %v4226, %v4228
        %v4240 = vsel %vm2354, %v4228, %v4230
        %v4241 = vsel %vm2354, %v4230, %v4232
        %v4242 = vsel %vm2354, %v4232, %v4234
        %v4251 = vsel %vm2141, %v4235, 0.0
        %v4252 = vsel %vm2142, %v4236, 0.0
        %v4253 = vsel %vm2143, %v4237, 0.0
        %v4254 = vsel %vm2144, %v4238, 0.0
        %v4255 = vsel %vm2145, %v4239, 0.0
        %v4256 = vsel %vm2146, %v4240, 0.0
        %v4257 = vsel %vm2147, %v4241, 0.0
        %v4258 = vsel %vm2148, %v4242, 0.0
        %4259 = vst [vmem:[#allocation4 + $0x340] sm:$0x1f] %v4251
        %4260 = vst [vmem:[#allocation4 + $0x348] sm:$0x1f] %v4252
        %4261 = vst [vmem:[#allocation4 + $0x350] sm:$0x1f] %v4253
        %4262 = vst [vmem:[#allocation4 + $0x358] sm:$0x1f] %v4254
        %4263 = vst [vmem:[#allocation4 + $0x360] sm:$0x1f] %v4255
        %4264 = vst [vmem:[#allocation4 + $0x368] sm:$0x1f] %v4256
        %4265 = vst [vmem:[#allocation4 + $0x370] sm:$0x1f] %v4257
        %4266 = vst [vmem:[#allocation4 + $0x378] sm:$0x1f] %v4258
        %v4267 = vld [vmem:[#allocation2 + $0x8] sm:$0x1f]
        %v4268 = vld [vmem:[#allocation2 + $0x10] sm:$0x1f]
        %v4269 = vld [vmem:[#allocation2 + $0x18] sm:$0x1f]
        %v4270 = vld [vmem:[#allocation2 + $0x20] sm:$0x1f]
        %v4271 = vld [vmem:[#allocation2 + $0x28] sm:$0x1f]
        %v4272 = vld [vmem:[#allocation2 + $0x30] sm:$0x1f]
        %v4273 = vld [vmem:[#allocation2 + $0x38] sm:$0x1f]
        %v4274 = vld [vmem:[#allocation2 + $0x40] sm:$0x1f]
        %v4275 = vld [vmem:[#allocation2 + $0x48] sm:$0x1f]
        %4285 = vrot.lane.b32.xlu0 %v4267, 95
        %v4286 = vpop.permute.xlu0 %4285
        %4287 = vrot.lane.b32.xlu0 %v4268, 95
        %v4288 = vpop.permute.xlu0 %4287
        %4289 = vrot.lane.b32.xlu0 %v4269, 95
        %v4290 = vpop.permute.xlu0 %4289
        %4291 = vrot.lane.b32.xlu0 %v4270, 95
        %v4292 = vpop.permute.xlu0 %4291
        %4293 = vrot.lane.b32.xlu0 %v4271, 95
        %v4294 = vpop.permute.xlu0 %4293
        %4295 = vrot.lane.b32.xlu0 %v4272, 95
        %v4296 = vpop.permute.xlu0 %4295
        %4297 = vrot.lane.b32.xlu0 %v4273, 95
        %v4298 = vpop.permute.xlu0 %4297
        %4299 = vrot.lane.b32.xlu0 %v4274, 95
        %v4300 = vpop.permute.xlu0 %4299
        %4301 = vrot.lane.b32.xlu0 %v4275, 95
        %v4302 = vpop.permute.xlu0 %4301
        %v4303 = vsel %vm2443, %v4286, %v4288
        %v4304 = vsel %vm2443, %v4288, %v4290
        %v4305 = vsel %vm2443, %v4290, %v4292
        %v4306 = vsel %vm2443, %v4292, %v4294
        %v4307 = vsel %vm2443, %v4294, %v4296
        %v4308 = vsel %vm2443, %v4296, %v4298
        %v4309 = vsel %vm2443, %v4298, %v4300
        %v4310 = vsel %vm2443, %v4300, %v4302
        %v4319 = vsel %vm2141, %v4303, 0.0
        %v4320 = vsel %vm2142, %v4304, 0.0
        %v4321 = vsel %vm2143, %v4305, 0.0
        %v4322 = vsel %vm2144, %v4306, 0.0
        %v4323 = vsel %vm2145, %v4307, 0.0
        %v4324 = vsel %vm2146, %v4308, 0.0
        %v4325 = vsel %vm2147, %v4309, 0.0
        %v4326 = vsel %vm2148, %v4310, 0.0
        %4327 = vst [vmem:[#allocation4 + $0x480] sm:$0x1f] %v4319
        %4328 = vst [vmem:[#allocation4 + $0x488] sm:$0x1f] %v4320
        %4329 = vst [vmem:[#allocation4 + $0x490] sm:$0x1f] %v4321
        %4330 = vst [vmem:[#allocation4 + $0x498] sm:$0x1f] %v4322
        %4331 = vst [vmem:[#allocation4 + $0x4a0] sm:$0x1f] %v4323
        %4332 = vst [vmem:[#allocation4 + $0x4a8] sm:$0x1f] %v4324
        %4333 = vst [vmem:[#allocation4 + $0x4b0] sm:$0x1f] %v4325
        %4334 = vst [vmem:[#allocation4 + $0x4b8] sm:$0x1f] %v4326
        %v4335 = vld [vmem:[#allocation2 + $0x8] sm:$0x1f]
        %v4336 = vld [vmem:[#allocation2 + $0x10] sm:$0x1f]
        %v4337 = vld [vmem:[#allocation2 + $0x18] sm:$0x1f]
        %v4338 = vld [vmem:[#allocation2 + $0x20] sm:$0x1f]
        %v4339 = vld [vmem:[#allocation2 + $0x28] sm:$0x1f]
        %v4340 = vld [vmem:[#allocation2 + $0x30] sm:$0x1f]
        %v4341 = vld [vmem:[#allocation2 + $0x38] sm:$0x1f]
        %v4342 = vld [vmem:[#allocation2 + $0x40] sm:$0x1f]
        %v4343 = vld [vmem:[#allocation2 + $0x48] sm:$0x1f]
        %4353 = vrot.lane.b32.xlu0 %v4335, 63
        %v4354 = vpop.permute.xlu0 %4353
        %4355 = vrot.lane.b32.xlu0 %v4336, 63
        %v4356 = vpop.permute.xlu0 %4355
        %4357 = vrot.lane.b32.xlu0 %v4337, 63
        %v4358 = vpop.permute.xlu0 %4357
        %4359 = vrot.lane.b32.xlu0 %v4338, 63
        %v4360 = vpop.permute.xlu0 %4359
        %4361 = vrot.lane.b32.xlu0 %v4339, 63
        %v4362 = vpop.permute.xlu0 %4361
        %4363 = vrot.lane.b32.xlu0 %v4340, 63
        %v4364 = vpop.permute.xlu0 %4363
        %4365 = vrot.lane.b32.xlu0 %v4341, 63
        %v4366 = vpop.permute.xlu0 %4365
        %4367 = vrot.lane.b32.xlu0 %v4342, 63
        %v4368 = vpop.permute.xlu0 %4367
        %4369 = vrot.lane.b32.xlu0 %v4343, 63
        %v4370 = vpop.permute.xlu0 %4369
        %v4371 = vsel %vm2176, %v4354, %v4356
        %v4372 = vsel %vm2176, %v4356, %v4358
        %v4373 = vsel %vm2176, %v4358, %v4360
        %v4374 = vsel %vm2176, %v4360, %v4362
        %v4375 = vsel %vm2176, %v4362, %v4364
        %v4376 = vsel %vm2176, %v4364, %v4366
        %v4377 = vsel %vm2176, %v4366, %v4368
        %v4378 = vsel %vm2176, %v4368, %v4370
        %v4387 = vsel %vm2141, %v4371, 0.0
        %v4388 = vsel %vm2142, %v4372, 0.0
        %v4389 = vsel %vm2143, %v4373, 0.0
        %v4390 = vsel %vm2144, %v4374, 0.0
        %v4391 = vsel %vm2145, %v4375, 0.0
        %v4392 = vsel %vm2146, %v4376, 0.0
        %v4393 = vsel %vm2147, %v4377, 0.0
        %v4394 = vsel %vm2148, %v4378, 0.0
        %4395 = vst [vmem:[#allocation4 + $0x5c0] sm:$0x1f] %v4387
        %4396 = vst [vmem:[#allocation4 + $0x5c8] sm:$0x1f] %v4388
        %4397 = vst [vmem:[#allocation4 + $0x5d0] sm:$0x1f] %v4389
        %4398 = vst [vmem:[#allocation4 + $0x5d8] sm:$0x1f] %v4390
        %4399 = vst [vmem:[#allocation4 + $0x5e0] sm:$0x1f] %v4391
        %4400 = vst [vmem:[#allocation4 + $0x5e8] sm:$0x1f] %v4392
        %4401 = vst [vmem:[#allocation4 + $0x5f0] sm:$0x1f] %v4393
        %4402 = vst [vmem:[#allocation4 + $0x5f8] sm:$0x1f] %v4394
        %v4403 = vld [vmem:[#allocation2] sm:$0x1f]
        %v4404 = vld [vmem:[#allocation2 + $0x8] sm:$0x1f]
        %v4405 = vld [vmem:[#allocation2 + $0x10] sm:$0x1f]
        %v4406 = vld [vmem:[#allocation2 + $0x18] sm:$0x1f]
        %v4407 = vld [vmem:[#allocation2 + $0x20] sm:$0x1f]
        %v4408 = vld [vmem:[#allocation2 + $0x28] sm:$0x1f]
        %v4409 = vld [vmem:[#allocation2 + $0x30] sm:$0x1f]
        %v4410 = vld [vmem:[#allocation2 + $0x38] sm:$0x1f]
        %v4411 = vld [vmem:[#allocation2 + $0x40] sm:$0x1f]
        %4421 = vrot.lane.b32.xlu0 %v4403, 62
        %v4422 = vpop.permute.xlu0 %4421
        %4423 = vrot.lane.b32.xlu0 %v4404, 62
        %v4424 = vpop.permute.xlu0 %4423
        %4425 = vrot.lane.b32.xlu0 %v4405, 62
        %v4426 = vpop.permute.xlu0 %4425
        %4427 = vrot.lane.b32.xlu0 %v4406, 62
        %v4428 = vpop.permute.xlu0 %4427
        %4429 = vrot.lane.b32.xlu0 %v4407, 62
        %v4430 = vpop.permute.xlu0 %4429
        %4431 = vrot.lane.b32.xlu0 %v4408, 62
        %v4432 = vpop.permute.xlu0 %4431
        %4433 = vrot.lane.b32.xlu0 %v4409, 62
        %v4434 = vpop.permute.xlu0 %4433
        %4435 = vrot.lane.b32.xlu0 %v4410, 62
        %v4436 = vpop.permute.xlu0 %4435
        %4437 = vrot.lane.b32.xlu0 %v4411, 62
        %v4438 = vpop.permute.xlu0 %4437
        %v4439 = vsel %vm2668, %v4422, %v4424
        %v4440 = vsel %vm2668, %v4424, %v4426
        %v4441 = vsel %vm2668, %v4426, %v4428
        %v4442 = vsel %vm2668, %v4428, %v4430
        %v4443 = vsel %vm2668, %v4430, %v4432
        %v4444 = vsel %vm2668, %v4432, %v4434
        %v4445 = vsel %vm2668, %v4434, %v4436
        %v4446 = vsel %vm2668, %v4436, %v4438
        %v4455 = vsel %vm2633, %v4439, 0.0
        %v4456 = vsel %vm2634, %v4440, 0.0
        %v4457 = vsel %vm2635, %v4441, 0.0
        %v4458 = vsel %vm2636, %v4442, 0.0
        %v4459 = vsel %vm2637, %v4443, 0.0
        %v4460 = vsel %vm2638, %v4444, 0.0
        %v4461 = vsel %vm2639, %v4445, 0.0
        %v4462 = vsel %vm2640, %v4446, 0.0
        %4463 = vst [vmem:[#allocation4 + $0x100] sm:$0x1f] %v4455
        %4464 = vst [vmem:[#allocation4 + $0x108] sm:$0x1f] %v4456
        %4465 = vst [vmem:[#allocation4 + $0x110] sm:$0x1f] %v4457
        %4466 = vst [vmem:[#allocation4 + $0x118] sm:$0x1f] %v4458
        %4467 = vst [vmem:[#allocation4 + $0x120] sm:$0x1f] %v4459
        %4468 = vst [vmem:[#allocation4 + $0x128] sm:$0x1f] %v4460
        %4469 = vst [vmem:[#allocation4 + $0x130] sm:$0x1f] %v4461
        %4470 = vst [vmem:[#allocation4 + $0x138] sm:$0x1f] %v4462
        %v4471 = vld [vmem:[#allocation2] sm:$0x1f]
        %v4472 = vld [vmem:[#allocation2 + $0x8] sm:$0x1f]
        %v4473 = vld [vmem:[#allocation2 + $0x10] sm:$0x1f]
        %v4474 = vld [vmem:[#allocation2 + $0x18] sm:$0x1f]
        %v4475 = vld [vmem:[#allocation2 + $0x20] sm:$0x1f]
        %v4476 = vld [vmem:[#allocation2 + $0x28] sm:$0x1f]
        %v4477 = vld [vmem:[#allocation2 + $0x30] sm:$0x1f]
        %v4478 = vld [vmem:[#allocation2 + $0x38] sm:$0x1f]
        %v4479 = vld [vmem:[#allocation2 + $0x40] sm:$0x1f]
        %4489 = vrot.lane.b32.xlu0 %v4471, 30
        %v4490 = vpop.permute.xlu0 %4489
        %4491 = vrot.lane.b32.xlu0 %v4472, 30
        %v4492 = vpop.permute.xlu0 %4491
        %4493 = vrot.lane.b32.xlu0 %v4473, 30
        %v4494 = vpop.permute.xlu0 %4493
        %4495 = vrot.lane.b32.xlu0 %v4474, 30
        %v4496 = vpop.permute.xlu0 %4495
        %4497 = vrot.lane.b32.xlu0 %v4475, 30
        %v4498 = vpop.permute.xlu0 %4497
        %4499 = vrot.lane.b32.xlu0 %v4476, 30
        %v4500 = vpop.permute.xlu0 %4499
        %4501 = vrot.lane.b32.xlu0 %v4477, 30
        %v4502 = vpop.permute.xlu0 %4501
        %4503 = vrot.lane.b32.xlu0 %v4478, 30
        %v4504 = vpop.permute.xlu0 %4503
        %4505 = vrot.lane.b32.xlu0 %v4479, 30
        %v4506 = vpop.permute.xlu0 %4505
        %v4507 = vsel %vm2757, %v4490, %v4492
        %v4508 = vsel %vm2757, %v4492, %v4494
        %v4509 = vsel %vm2757, %v4494, %v4496
        %v4510 = vsel %vm2757, %v4496, %v4498
        %v4511 = vsel %vm2757, %v4498, %v4500
        %v4512 = vsel %vm2757, %v4500, %v4502
        %v4513 = vsel %vm2757, %v4502, %v4504
        %v4514 = vsel %vm2757, %v4504, %v4506
        %v4523 = vsel %vm2633, %v4507, 0.0
        %v4524 = vsel %vm2634, %v4508, 0.0
        %v4525 = vsel %vm2635, %v4509, 0.0
        %v4526 = vsel %vm2636, %v4510, 0.0
        %v4527 = vsel %vm2637, %v4511, 0.0
        %v4528 = vsel %vm2638, %v4512, 0.0
        %v4529 = vsel %vm2639, %v4513, 0.0
        %v4530 = vsel %vm2640, %v4514, 0.0
        %4531 = vst [vmem:[#allocation4 + $0x240] sm:$0x1f] %v4523
        %4532 = vst [vmem:[#allocation4 + $0x248] sm:$0x1f] %v4524
        %4533 = vst [vmem:[#allocation4 + $0x250] sm:$0x1f] %v4525
        %4534 = vst [vmem:[#allocation4 + $0x258] sm:$0x1f] %v4526
        %4535 = vst [vmem:[#allocation4 + $0x260] sm:$0x1f] %v4527
        %4536 = vst [vmem:[#allocation4 + $0x268] sm:$0x1f] %v4528
        %4537 = vst [vmem:[#allocation4 + $0x270] sm:$0x1f] %v4529
        %4538 = vst [vmem:[#allocation4 + $0x278] sm:$0x1f] %v4530
        %v4539 = vld [vmem:[#allocation2 + $0x8] sm:$0x1f]
        %v4540 = vld [vmem:[#allocation2 + $0x10] sm:$0x1f]
        %v4541 = vld [vmem:[#allocation2 + $0x18] sm:$0x1f]
        %v4542 = vld [vmem:[#allocation2 + $0x20] sm:$0x1f]
        %v4543 = vld [vmem:[#allocation2 + $0x28] sm:$0x1f]
        %v4544 = vld [vmem:[#allocation2 + $0x30] sm:$0x1f]
        %v4545 = vld [vmem:[#allocation2 + $0x38] sm:$0x1f]
        %v4546 = vld [vmem:[#allocation2 + $0x40] sm:$0x1f]
        %v4547 = vld [vmem:[#allocation2 + $0x48] sm:$0x1f]
        %4557 = vrot.lane.b32.xlu0 %v4539, 126
        %v4558 = vpop.permute.xlu0 %4557
        %4559 = vrot.lane.b32.xlu0 %v4540, 126
        %v4560 = vpop.permute.xlu0 %4559
        %4561 = vrot.lane.b32.xlu0 %v4541, 126
        %v4562 = vpop.permute.xlu0 %4561
        %4563 = vrot.lane.b32.xlu0 %v4542, 126
        %v4564 = vpop.permute.xlu0 %4563
        %4565 = vrot.lane.b32.xlu0 %v4543, 126
        %v4566 = vpop.permute.xlu0 %4565
        %4567 = vrot.lane.b32.xlu0 %v4544, 126
        %v4568 = vpop.permute.xlu0 %4567
        %4569 = vrot.lane.b32.xlu0 %v4545, 126
        %v4570 = vpop.permute.xlu0 %4569
        %4571 = vrot.lane.b32.xlu0 %v4546, 126
        %v4572 = vpop.permute.xlu0 %4571
        %4573 = vrot.lane.b32.xlu0 %v4547, 126
        %v4574 = vpop.permute.xlu0 %4573
        %v4575 = vsel %vm2846, %v4558, %v4560
        %v4576 = vsel %vm2846, %v4560, %v4562
        %v4577 = vsel %vm2846, %v4562, %v4564
        %v4578 = vsel %vm2846, %v4564, %v4566
        %v4579 = vsel %vm2846, %v4566, %v4568
        %v4580 = vsel %vm2846, %v4568, %v4570
        %v4581 = vsel %vm2846, %v4570, %v4572
        %v4582 = vsel %vm2846, %v4572, %v4574
        %v4591 = vsel %vm2633, %v4575, 0.0
        %v4592 = vsel %vm2634, %v4576, 0.0
        %v4593 = vsel %vm2635, %v4577, 0.0
        %v4594 = vsel %vm2636, %v4578, 0.0
        %v4595 = vsel %vm2637, %v4579, 0.0
        %v4596 = vsel %vm2638, %v4580, 0.0
        %v4597 = vsel %vm2639, %v4581, 0.0
        %v4598 = vsel %vm2640, %v4582, 0.0
        %4599 = vst [vmem:[#allocation4 + $0x380] sm:$0x1f] %v4591
        %4600 = vst [vmem:[#allocation4 + $0x388] sm:$0x1f] %v4592
        %4601 = vst [vmem:[#allocation4 + $0x390] sm:$0x1f] %v4593
        %4602 = vst [vmem:[#allocation4 + $0x398] sm:$0x1f] %v4594
        %4603 = vst [vmem:[#allocation4 + $0x3a0] sm:$0x1f] %v4595
        %4604 = vst [vmem:[#allocation4 + $0x3a8] sm:$0x1f] %v4596
        %4605 = vst [vmem:[#allocation4 + $0x3b0] sm:$0x1f] %v4597
        %4606 = vst [vmem:[#allocation4 + $0x3b8] sm:$0x1f] %v4598
        %v4607 = vld [vmem:[#allocation2 + $0x8] sm:$0x1f]
        %v4608 = vld [vmem:[#allocation2 + $0x10] sm:$0x1f]
        %v4609 = vld [vmem:[#allocation2 + $0x18] sm:$0x1f]
        %v4610 = vld [vmem:[#allocation2 + $0x20] sm:$0x1f]
        %v4611 = vld [vmem:[#allocation2 + $0x28] sm:$0x1f]
        %v4612 = vld [vmem:[#allocation2 + $0x30] sm:$0x1f]
        %v4613 = vld [vmem:[#allocation2 + $0x38] sm:$0x1f]
        %v4614 = vld [vmem:[#allocation2 + $0x40] sm:$0x1f]
        %v4615 = vld [vmem:[#allocation2 + $0x48] sm:$0x1f]
        %4625 = vrot.lane.b32.xlu0 %v4607, 94
        %v4626 = vpop.permute.xlu0 %4625
        %4627 = vrot.lane.b32.xlu0 %v4608, 94
        %v4628 = vpop.permute.xlu0 %4627
        %4629 = vrot.lane.b32.xlu0 %v4609, 94
        %v4630 = vpop.permute.xlu0 %4629
        %4631 = vrot.lane.b32.xlu0 %v4610, 94
        %v4632 = vpop.permute.xlu0 %4631
        %4633 = vrot.lane.b32.xlu0 %v4611, 94
        %v4634 = vpop.permute.xlu0 %4633
        %4635 = vrot.lane.b32.xlu0 %v4612, 94
        %v4636 = vpop.permute.xlu0 %4635
        %4637 = vrot.lane.b32.xlu0 %v4613, 94
        %v4638 = vpop.permute.xlu0 %4637
        %4639 = vrot.lane.b32.xlu0 %v4614, 94
        %v4640 = vpop.permute.xlu0 %4639
        %4641 = vrot.lane.b32.xlu0 %v4615, 94
        %v4642 = vpop.permute.xlu0 %4641
        %v4643 = vsel %vm2935, %v4626, %v4628
        %v4644 = vsel %vm2935, %v4628, %v4630
        %v4645 = vsel %vm2935, %v4630, %v4632
        %v4646 = vsel %vm2935, %v4632, %v4634
        %v4647 = vsel %vm2935, %v4634, %v4636
        %v4648 = vsel %vm2935, %v4636, %v4638
        %v4649 = vsel %vm2935, %v4638, %v4640
        %v4650 = vsel %vm2935, %v4640, %v4642
        %v4659 = vsel %vm2633, %v4643, 0.0
        %v4660 = vsel %vm2634, %v4644, 0.0
        %v4661 = vsel %vm2635, %v4645, 0.0
        %v4662 = vsel %vm2636, %v4646, 0.0
        %v4663 = vsel %vm2637, %v4647, 0.0
        %v4664 = vsel %vm2638, %v4648, 0.0
        %v4665 = vsel %vm2639, %v4649, 0.0
        %v4666 = vsel %vm2640, %v4650, 0.0
        %4667 = vst [vmem:[#allocation4 + $0x4c0] sm:$0x1f] %v4659
        %4668 = vst [vmem:[#allocation4 + $0x4c8] sm:$0x1f] %v4660
        %4669 = vst [vmem:[#allocation4 + $0x4d0] sm:$0x1f] %v4661
        %4670 = vst [vmem:[#allocation4 + $0x4d8] sm:$0x1f] %v4662
        %4671 = vst [vmem:[#allocation4 + $0x4e0] sm:$0x1f] %v4663
        %4672 = vst [vmem:[#allocation4 + $0x4e8] sm:$0x1f] %v4664
        %4673 = vst [vmem:[#allocation4 + $0x4f0] sm:$0x1f] %v4665
        %4674 = vst [vmem:[#allocation4 + $0x4f8] sm:$0x1f] %v4666
        %v4675 = vld [vmem:[#allocation2 + $0x8] sm:$0x1f]
        %v4676 = vld [vmem:[#allocation2 + $0x10] sm:$0x1f]
        %v4677 = vld [vmem:[#allocation2 + $0x18] sm:$0x1f]
        %v4678 = vld [vmem:[#allocation2 + $0x20] sm:$0x1f]
        %v4679 = vld [vmem:[#allocation2 + $0x28] sm:$0x1f]
        %v4680 = vld [vmem:[#allocation2 + $0x30] sm:$0x1f]
        %v4681 = vld [vmem:[#allocation2 + $0x38] sm:$0x1f]
        %v4682 = vld [vmem:[#allocation2 + $0x40] sm:$0x1f]
        %v4683 = vld [vmem:[#allocation2 + $0x48] sm:$0x1f]
        %4693 = vrot.lane.b32.xlu0 %v4675, 62
        %v4694 = vpop.permute.xlu0 %4693
        %4695 = vrot.lane.b32.xlu0 %v4676, 62
        %v4696 = vpop.permute.xlu0 %4695
        %4697 = vrot.lane.b32.xlu0 %v4677, 62
        %v4698 = vpop.permute.xlu0 %4697
        %4699 = vrot.lane.b32.xlu0 %v4678, 62
        %v4700 = vpop.permute.xlu0 %4699
        %4701 = vrot.lane.b32.xlu0 %v4679, 62
        %v4702 = vpop.permute.xlu0 %4701
        %4703 = vrot.lane.b32.xlu0 %v4680, 62
        %v4704 = vpop.permute.xlu0 %4703
        %4705 = vrot.lane.b32.xlu0 %v4681, 62
        %v4706 = vpop.permute.xlu0 %4705
        %4707 = vrot.lane.b32.xlu0 %v4682, 62
        %v4708 = vpop.permute.xlu0 %4707
        %4709 = vrot.lane.b32.xlu0 %v4683, 62
        %v4710 = vpop.permute.xlu0 %4709
        %v4711 = vsel %vm2668, %v4694, %v4696
        %v4712 = vsel %vm2668, %v4696, %v4698
        %v4713 = vsel %vm2668, %v4698, %v4700
        %v4714 = vsel %vm2668, %v4700, %v4702
        %v4715 = vsel %vm2668, %v4702, %v4704
        %v4716 = vsel %vm2668, %v4704, %v4706
        %v4717 = vsel %vm2668, %v4706, %v4708
        %v4718 = vsel %vm2668, %v4708, %v4710
        %v4727 = vsel %vm2633, %v4711, 0.0
        %v4728 = vsel %vm2634, %v4712, 0.0
        %v4729 = vsel %vm2635, %v4713, 0.0
        %v4730 = vsel %vm2636, %v4714, 0.0
        %v4731 = vsel %vm2637, %v4715, 0.0
        %v4732 = vsel %vm2638, %v4716, 0.0
        %v4733 = vsel %vm2639, %v4717, 0.0
        %v4734 = vsel %vm2640, %v4718, 0.0
        %4735 = vst [vmem:[#allocation4 + $0x600] sm:$0x1f] %v4727
        %4736 = vst [vmem:[#allocation4 + $0x608] sm:$0x1f] %v4728
        %4737 = vst [vmem:[#allocation4 + $0x610] sm:$0x1f] %v4729
        %4738 = vst [vmem:[#allocation4 + $0x618] sm:$0x1f] %v4730
        %4739 = vst [vmem:[#allocation4 + $0x620] sm:$0x1f] %v4731
        %4740 = vst [vmem:[#allocation4 + $0x628] sm:$0x1f] %v4732
        %4741 = vst [vmem:[#allocation4 + $0x630] sm:$0x1f] %v4733
        %4742 = vst [vmem:[#allocation4 + $0x638] sm:$0x1f] %v4734
        %v4743 = vld [vmem:[%s2] sm:$0x3f]
        %v4744 = vld [vmem:[%s2 + $0x8] sm:$0x3f]
        %v4745 = vld [vmem:[#allocation4] sm:$0xff]
        %v4746 = vld [vmem:[#allocation4 + $0x8] sm:$0xff]
        %v4747 = vld [vmem:[#allocation4 + $0x10] sm:$0xff]
        %v4748 = vld [vmem:[#allocation4 + $0x18] sm:$0xff]
        %v4749 = vld [vmem:[#allocation4 + $0x20] sm:$0xff]
        %v4750 = vld [vmem:[#allocation4 + $0x28] sm:$0xff]
        %v4751 = vld [vmem:[#allocation4 + $0x30] sm:$0xff]
        %v4752 = vld [vmem:[#allocation4 + $0x38] sm:$0xff]
        %v4753 = vld [vmem:[#allocation4 + $0x40] sm:$0xff]
        %v4754 = vld [vmem:[#allocation4 + $0x48] sm:$0xff]
        %v4755 = vld [vmem:[#allocation4 + $0x50] sm:$0xff]
        %v4756 = vld [vmem:[#allocation4 + $0x58] sm:$0xff]
        %v4757 = vld [vmem:[#allocation4 + $0x60] sm:$0xff]
        %v4758 = vld [vmem:[#allocation4 + $0x68] sm:$0xff]
        %v4759 = vld [vmem:[#allocation4 + $0x70] sm:$0xff]
        %v4760 = vld [vmem:[#allocation4 + $0x78] sm:$0xff]
        %v4761 = vld [vmem:[#allocation4 + $0x80] sm:$0xff]
        %v4762 = vld [vmem:[#allocation4 + $0x88] sm:$0xff]
        %v4763 = vld [vmem:[#allocation4 + $0x90] sm:$0xff]
        %v4764 = vld [vmem:[#allocation4 + $0x98] sm:$0xff]
        %v4765 = vld [vmem:[#allocation4 + $0xa0] sm:$0xff]
        %v4766 = vld [vmem:[#allocation4 + $0xa8] sm:$0xff]
        %v4767 = vld [vmem:[#allocation4 + $0xb0] sm:$0xff]
        %v4768 = vld [vmem:[#allocation4 + $0xb8] sm:$0xff]
        %v4769 = vld [vmem:[#allocation4 + $0xc0] sm:$0xff]
        %v4770 = vld [vmem:[#allocation4 + $0xc8] sm:$0xff]
        %v4771 = vld [vmem:[#allocation4 + $0xd0] sm:$0xff]
        %v4772 = vld [vmem:[#allocation4 + $0xd8] sm:$0xff]
        %v4773 = vld [vmem:[#allocation4 + $0xe0] sm:$0xff]
        %v4774 = vld [vmem:[#allocation4 + $0xe8] sm:$0xff]
        %v4775 = vld [vmem:[#allocation4 + $0xf0] sm:$0xff]
        %v4776 = vld [vmem:[#allocation4 + $0xf8] sm:$0xff]
        %v4777 = vld [vmem:[#allocation4 + $0x100] sm:$0xff]
        %v4778 = vld [vmem:[#allocation4 + $0x108] sm:$0xff]
        %v4779 = vld [vmem:[#allocation4 + $0x110] sm:$0xff]
        %v4780 = vld [vmem:[#allocation4 + $0x118] sm:$0xff]
        %v4781 = vld [vmem:[#allocation4 + $0x120] sm:$0xff]
        %v4782 = vld [vmem:[#allocation4 + $0x128] sm:$0xff]
        %v4783 = vld [vmem:[#allocation4 + $0x130] sm:$0xff]
        %v4784 = vld [vmem:[#allocation4 + $0x138] sm:$0xff]
        %v4785 = vld [vmem:[#allocation4 + $0x140] sm:$0xff]
        %v4786 = vld [vmem:[#allocation4 + $0x148] sm:$0xff]
        %v4787 = vld [vmem:[#allocation4 + $0x150] sm:$0xff]
        %v4788 = vld [vmem:[#allocation4 + $0x158] sm:$0xff]
        %v4789 = vld [vmem:[#allocation4 + $0x160] sm:$0xff]
        %v4790 = vld [vmem:[#allocation4 + $0x168] sm:$0xff]
        %v4791 = vld [vmem:[#allocation4 + $0x170] sm:$0xff]
        %v4792 = vld [vmem:[#allocation4 + $0x178] sm:$0xff]
        %v4793 = vld [vmem:[#allocation4 + $0x180] sm:$0xff]
        %v4794 = vld [vmem:[#allocation4 + $0x188] sm:$0xff]
        %v4795 = vld [vmem:[#allocation4 + $0x190] sm:$0xff]
        %v4796 = vld [vmem:[#allocation4 + $0x198] sm:$0xff]
        %v4797 = vld [vmem:[#allocation4 + $0x1a0] sm:$0xff]
        %v4798 = vld [vmem:[#allocation4 + $0x1a8] sm:$0xff]
        %v4799 = vld [vmem:[#allocation4 + $0x1b0] sm:$0xff]
        %v4800 = vld [vmem:[#allocation4 + $0x1b8] sm:$0xff]
        %v4801 = vld [vmem:[#allocation4 + $0x1c0] sm:$0xff]
        %v4802 = vld [vmem:[#allocation4 + $0x1c8] sm:$0xff]
        %v4803 = vld [vmem:[#allocation4 + $0x1d0] sm:$0xff]
        %v4804 = vld [vmem:[#allocation4 + $0x1d8] sm:$0xff]
        %v4805 = vld [vmem:[#allocation4 + $0x1e0] sm:$0xff]
        %v4806 = vld [vmem:[#allocation4 + $0x1e8] sm:$0xff]
        %v4807 = vld [vmem:[#allocation4 + $0x1f0] sm:$0xff]
        %v4808 = vld [vmem:[#allocation4 + $0x1f8] sm:$0xff]
        %v4809 = vld [vmem:[#allocation4 + $0x200] sm:$0xff]
        %v4810 = vld [vmem:[#allocation4 + $0x208] sm:$0xff]
        %v4811 = vld [vmem:[#allocation4 + $0x210] sm:$0xff]
        %v4812 = vld [vmem:[#allocation4 + $0x218] sm:$0xff]
        %v4813 = vld [vmem:[#allocation4 + $0x220] sm:$0xff]
        %v4814 = vld [vmem:[#allocation4 + $0x228] sm:$0xff]
        %v4815 = vld [vmem:[#allocation4 + $0x230] sm:$0xff]
        %v4816 = vld [vmem:[#allocation4 + $0x238] sm:$0xff]
        %v4817 = vld [vmem:[#allocation4 + $0x240] sm:$0xff]
        %v4818 = vld [vmem:[#allocation4 + $0x248] sm:$0xff]
        %v4819 = vld [vmem:[#allocation4 + $0x250] sm:$0xff]
        %v4820 = vld [vmem:[#allocation4 + $0x258] sm:$0xff]
        %v4821 = vld [vmem:[#allocation4 + $0x260] sm:$0xff]
        %v4822 = vld [vmem:[#allocation4 + $0x268] sm:$0xff]
        %v4823 = vld [vmem:[#allocation4 + $0x270] sm:$0xff]
        %v4824 = vld [vmem:[#allocation4 + $0x278] sm:$0xff]
        %v4825 = vld [vmem:[#allocation4 + $0x280] sm:$0xff]
        %v4826 = vld [vmem:[#allocation4 + $0x288] sm:$0xff]
        %v4827 = vld [vmem:[#allocation4 + $0x290] sm:$0xff]
        %v4828 = vld [vmem:[#allocation4 + $0x298] sm:$0xff]
        %v4829 = vld [vmem:[#allocation4 + $0x2a0] sm:$0xff]
        %v4830 = vld [vmem:[#allocation4 + $0x2a8] sm:$0xff]
        %v4831 = vld [vmem:[#allocation4 + $0x2b0] sm:$0xff]
        %v4832 = vld [vmem:[#allocation4 + $0x2b8] sm:$0xff]
        %v4833 = vld [vmem:[#allocation4 + $0x2c0] sm:$0xff]
        %v4834 = vld [vmem:[#allocation4 + $0x2c8] sm:$0xff]
        %v4835 = vld [vmem:[#allocation4 + $0x2d0] sm:$0xff]
        %v4836 = vld [vmem:[#allocation4 + $0x2d8] sm:$0xff]
        %v4837 = vld [vmem:[#allocation4 + $0x2e0] sm:$0xff]
        %v4838 = vld [vmem:[#allocation4 + $0x2e8] sm:$0xff]
        %v4839 = vld [vmem:[#allocation4 + $0x2f0] sm:$0xff]
        %v4840 = vld [vmem:[#allocation4 + $0x2f8] sm:$0xff]
        %v4841 = vld [vmem:[#allocation4 + $0x300] sm:$0xff]
        %v4842 = vld [vmem:[#allocation4 + $0x308] sm:$0xff]
        %v4843 = vld [vmem:[#allocation4 + $0x310] sm:$0xff]
        %v4844 = vld [vmem:[#allocation4 + $0x318] sm:$0xff]
        %v4845 = vld [vmem:[#allocation4 + $0x320] sm:$0xff]
        %v4846 = vld [vmem:[#allocation4 + $0x328] sm:$0xff]
        %v4847 = vld [vmem:[#allocation4 + $0x330] sm:$0xff]
        %v4848 = vld [vmem:[#allocation4 + $0x338] sm:$0xff]
        %v4849 = vld [vmem:[#allocation4 + $0x340] sm:$0xff]
        %v4850 = vld [vmem:[#allocation4 + $0x348] sm:$0xff]
        %v4851 = vld [vmem:[#allocation4 + $0x350] sm:$0xff]
        %v4852 = vld [vmem:[#allocation4 + $0x358] sm:$0xff]
        %v4853 = vld [vmem:[#allocation4 + $0x360] sm:$0xff]
        %v4854 = vld [vmem:[#allocation4 + $0x368] sm:$0xff]
        %v4855 = vld [vmem:[#allocation4 + $0x370] sm:$0xff]
        %v4856 = vld [vmem:[#allocation4 + $0x378] sm:$0xff]
        %v4857 = vld [vmem:[#allocation4 + $0x380] sm:$0xff]
        %v4858 = vld [vmem:[#allocation4 + $0x388] sm:$0xff]
        %v4859 = vld [vmem:[#allocation4 + $0x390] sm:$0xff]
        %v4860 = vld [vmem:[#allocation4 + $0x398] sm:$0xff]
        %v4861 = vld [vmem:[#allocation4 + $0x3a0] sm:$0xff]
        %v4862 = vld [vmem:[#allocation4 + $0x3a8] sm:$0xff]
        %v4863 = vld [vmem:[#allocation4 + $0x3b0] sm:$0xff]
        %v4864 = vld [vmem:[#allocation4 + $0x3b8] sm:$0xff]
        %v4865 = vld [vmem:[#allocation4 + $0x3c0] sm:$0xff]
        %v4866 = vld [vmem:[#allocation4 + $0x3c8] sm:$0xff]
        %v4867 = vld [vmem:[#allocation4 + $0x3d0] sm:$0xff]
        %v4868 = vld [vmem:[#allocation4 + $0x3d8] sm:$0xff]
        %v4869 = vld [vmem:[#allocation4 + $0x3e0] sm:$0xff]
        %v4870 = vld [vmem:[#allocation4 + $0x3e8] sm:$0xff]
        %v4871 = vld [vmem:[#allocation4 + $0x3f0] sm:$0xff]
        %v4872 = vld [vmem:[#allocation4 + $0x3f8] sm:$0xff]
        %v4873 = vld [vmem:[#allocation4 + $0x400] sm:$0xff]
        %v4874 = vld [vmem:[#allocation4 + $0x408] sm:$0xff]
        %v4875 = vld [vmem:[#allocation4 + $0x410] sm:$0xff]
        %v4876 = vld [vmem:[#allocation4 + $0x418] sm:$0xff]
        %v4877 = vld [vmem:[#allocation4 + $0x420] sm:$0xff]
        %v4878 = vld [vmem:[#allocation4 + $0x428] sm:$0xff]
        %v4879 = vld [vmem:[#allocation4 + $0x430] sm:$0xff]
        %v4880 = vld [vmem:[#allocation4 + $0x438] sm:$0xff]
        %v4881 = vld [vmem:[#allocation4 + $0x440] sm:$0xff]
        %v4882 = vld [vmem:[#allocation4 + $0x448] sm:$0xff]
        %v4883 = vld [vmem:[#allocation4 + $0x450] sm:$0xff]
        %v4884 = vld [vmem:[#allocation4 + $0x458] sm:$0xff]
        %v4885 = vld [vmem:[#allocation4 + $0x460] sm:$0xff]
        %v4886 = vld [vmem:[#allocation4 + $0x468] sm:$0xff]
        %v4887 = vld [vmem:[#allocation4 + $0x470] sm:$0xff]
        %v4888 = vld [vmem:[#allocation4 + $0x478] sm:$0xff]
        %v4889 = vld [vmem:[#allocation4 + $0x480] sm:$0xff]
        %v4890 = vld [vmem:[#allocation4 + $0x488] sm:$0xff]
        %v4891 = vld [vmem:[#allocation4 + $0x490] sm:$0xff]
        %v4892 = vld [vmem:[#allocation4 + $0x498] sm:$0xff]
        %v4893 = vld [vmem:[#allocation4 + $0x4a0] sm:$0xff]
        %v4894 = vld [vmem:[#allocation4 + $0x4a8] sm:$0xff]
        %v4895 = vld [vmem:[#allocation4 + $0x4b0] sm:$0xff]
        %v4896 = vld [vmem:[#allocation4 + $0x4b8] sm:$0xff]
        %v4897 = vld [vmem:[#allocation4 + $0x4c0] sm:$0xff]
        %v4898 = vld [vmem:[#allocation4 + $0x4c8] sm:$0xff]
        %v4899 = vld [vmem:[#allocation4 + $0x4d0] sm:$0xff]
        %v4900 = vld [vmem:[#allocation4 + $0x4d8] sm:$0xff]
        %v4901 = vld [vmem:[#allocation4 + $0x4e0] sm:$0xff]
        %v4902 = vld [vmem:[#allocation4 + $0x4e8] sm:$0xff]
        %v4903 = vld [vmem:[#allocation4 + $0x4f0] sm:$0xff]
        %v4904 = vld [vmem:[#allocation4 + $0x4f8] sm:$0xff]
        %v4905 = vld [vmem:[#allocation4 + $0x500] sm:$0xff]
        %v4906 = vld [vmem:[#allocation4 + $0x508] sm:$0xff]
        %v4907 = vld [vmem:[#allocation4 + $0x510] sm:$0xff]
        %v4908 = vld [vmem:[#allocation4 + $0x518] sm:$0xff]
        %v4909 = vld [vmem:[#allocation4 + $0x520] sm:$0xff]
        %v4910 = vld [vmem:[#allocation4 + $0x528] sm:$0xff]
        %v4911 = vld [vmem:[#allocation4 + $0x530] sm:$0xff]
        %v4912 = vld [vmem:[#allocation4 + $0x538] sm:$0xff]
        %v4913 = vld [vmem:[#allocation4 + $0x540] sm:$0xff]
        %v4914 = vld [vmem:[#allocation4 + $0x548] sm:$0xff]
        %v4915 = vld [vmem:[#allocation4 + $0x550] sm:$0xff]
        %v4916 = vld [vmem:[#allocation4 + $0x558] sm:$0xff]
        %v4917 = vld [vmem:[#allocation4 + $0x560] sm:$0xff]
        %v4918 = vld [vmem:[#allocation4 + $0x568] sm:$0xff]
        %v4919 = vld [vmem:[#allocation4 + $0x570] sm:$0xff]
        %v4920 = vld [vmem:[#allocation4 + $0x578] sm:$0xff]
        %v4921 = vld [vmem:[#allocation4 + $0x580] sm:$0xff]
        %v4922 = vld [vmem:[#allocation4 + $0x588] sm:$0xff]
        %v4923 = vld [vmem:[#allocation4 + $0x590] sm:$0xff]
        %v4924 = vld [vmem:[#allocation4 + $0x598] sm:$0xff]
        %v4925 = vld [vmem:[#allocation4 + $0x5a0] sm:$0xff]
        %v4926 = vld [vmem:[#allocation4 + $0x5a8] sm:$0xff]
        %v4927 = vld [vmem:[#allocation4 + $0x5b0] sm:$0xff]
        %v4928 = vld [vmem:[#allocation4 + $0x5b8] sm:$0xff]
        %v4929 = vld [vmem:[#allocation4 + $0x5c0] sm:$0xff]
        %v4930 = vld [vmem:[#allocation4 + $0x5c8] sm:$0xff]
        %v4931 = vld [vmem:[#allocation4 + $0x5d0] sm:$0xff]
        %v4932 = vld [vmem:[#allocation4 + $0x5d8] sm:$0xff]
        %v4933 = vld [vmem:[#allocation4 + $0x5e0] sm:$0xff]
        %v4934 = vld [vmem:[#allocation4 + $0x5e8] sm:$0xff]
        %v4935 = vld [vmem:[#allocation4 + $0x5f0] sm:$0xff]
        %v4936 = vld [vmem:[#allocation4 + $0x5f8] sm:$0xff]
        %v4937 = vld [vmem:[#allocation4 + $0x600] sm:$0xff]
        %v4938 = vld [vmem:[#allocation4 + $0x608] sm:$0xff]
        %v4939 = vld [vmem:[#allocation4 + $0x610] sm:$0xff]
        %v4940 = vld [vmem:[#allocation4 + $0x618] sm:$0xff]
        %v4941 = vld [vmem:[#allocation4 + $0x620] sm:$0xff]
        %v4942 = vld [vmem:[#allocation4 + $0x628] sm:$0xff]
        %v4943 = vld [vmem:[#allocation4 + $0x630] sm:$0xff]
        %v4944 = vld [vmem:[#allocation4 + $0x638] sm:$0xff]
        %v4945 = vld [vmem:[%s3] sm:$0x3f]
        %4947 = vset.pattern.permute.xlu0 0
        %4948 = vperm.xlu0 %4947, %v4945
        %v4949 = vpop.permute.xlu0 %4948
        %vm4951 = vcmask 588800
        %v4953 = vsel %vm4951, %v4744, 0
        %4955 = vmatprep.subr.mxu0 %v4866
        %4956 = vmatpush1.msra.mxu0 %v4865
        %4957 = vmatprep.subr.mxu0 %v4858
        %4958 = vmatpush1.msra.mxu0 %v4857
        %4959 = vmatprep.subr.mxu0 %v4850
        %4960 = vmatpush1.msra.mxu0 %v4849
        %4961 = vmatprep.subr.mxu0 %v4842
        %4962 = vmatpush1.msra.mxu0 %v4841
        %4963 = vmatprep.subr.mxu0 %v4834
        %4964 = vmatpush1.msra.mxu0 %v4833
        %4965 = vmatprep.subr.mxu0 %v4826
        %4966 = vmatpush1.msra.mxu0 %v4825
        %4967 = vmatprep.subr.mxu0 %v4818
        %4968 = vmatpush1.msra.mxu0 %v4817
        %4969 = vmatprep.subr.mxu0 %v4810
        %4970 = vmatpush1.msra.mxu0 %v4809
        %4971 = vmatprep.subr.mxu0 %v4802
        %4972 = vmatpush1.msra.mxu0 %v4801
        %4973 = vmatprep.subr.mxu0 %v4794
        %4974 = vmatpush1.msra.mxu0 %v4793
        %4975 = vmatprep.subr.mxu0 %v4786
        %4976 = vmatpush1.msra.mxu0 %v4785
        %4977 = vmatprep.subr.mxu0 %v4778
        %4978 = vmatpush1.msra.mxu0 %v4777
        %4979 = vmatprep.subr.mxu0 %v4770
        %4980 = vmatpush1.msra.mxu0 %v4769
        %4981 = vmatprep.subr.mxu0 %v4762
        %4982 = vmatpush1.msra.mxu0 %v4761
        %4983 = vmatprep.subr.mxu0 %v4754
        %4984 = vmatpush1.msra.mxu0 %v4753
        %4985 = vmatprep.subr.mxu0 %v4746
        %4986 = vmatpush1.msra.mxu0 %v4745
        %4987 = vmatprep.subr.mxu0 0.0
        %4988 = vmatpush2.msra.mxu0 0.0
        %4989 = vmatprep.subr.mxu0 0.0
        %4990 = vmatpush2.msra.mxu0 0.0
        %4991 = vmatprep.subr.mxu0 0.0
        %4992 = vmatpush2.msra.mxu0 0.0
        %4993 = vmatprep.subr.mxu0 0.0
        %4994 = vmatpush2.msra.mxu0 0.0
        %4995 = vmatprep.subr.mxu0 0.0
        %4996 = vmatpush2.msra.mxu0 0.0
        %4997 = vmatprep.subr.mxu0 0.0
        %4998 = vmatpush2.msra.mxu0 0.0
        %4999 = vmatprep.subr.mxu0 0.0
        %5000 = vmatpush2.msra.mxu0 0.0
        %5001 = vmatprep.subr.mxu0 %v4938
        %5002 = vmatpush2.msra.mxu0 %v4937
        %5003 = vmatprep.subr.mxu0 %v4930
        %5004 = vmatpush2.msra.mxu0 %v4929
        %5005 = vmatprep.subr.mxu0 %v4922
        %5006 = vmatpush2.msra.mxu0 %v4921
        %5007 = vmatprep.subr.mxu0 %v4914
        %5008 = vmatpush2.msra.mxu0 %v4913
        %5009 = vmatprep.subr.mxu0 %v4906
        %5010 = vmatpush2.msra.mxu0 %v4905
        %5011 = vmatprep.subr.mxu0 %v4898
        %5012 = vmatpush2.msra.mxu0 %v4897
        %5013 = vmatprep.subr.mxu0 %v4890
        %5014 = vmatpush2.msra.mxu0 %v4889
        %5015 = vmatprep.subr.mxu0 %v4882
        %5016 = vmatpush2.msra.mxu0 %v4881
        %5017 = vmatprep.subr.mxu0 %v4874
        %5018 = vmatpush2.msra.mxu0 %v4873
        %5019 = vmatprep.mubr.f32.mxu0 %v4953
        %5020 = vmatmul.mubr.f32.gmra.mxu0 %v4743
        %v5021 = vpop.f32.mrf.mxu0
        %v5022 = vadd.f32 %v4949, %v5021
        %v5023 = vpop.f32.mrf.mxu0
        %v5024 = vadd.f32 %v4949, %v5023
        %5025 = vdwg.mxu0
        %5026 = vmatprep.subr.mxu0 %v4868
        %5027 = vmatpush1.msra.mxu0 %v4867
        %5028 = vmatprep.subr.mxu0 %v4860
        %5029 = vmatpush1.msra.mxu0 %v4859
        %5030 = vmatprep.subr.mxu0 %v4852
        %5031 = vmatpush1.msra.mxu0 %v4851
        %5032 = vmatprep.subr.mxu0 %v4844
        %5033 = vmatpush1.msra.mxu0 %v4843
        %5034 = vmatprep.subr.mxu0 %v4836
        %5035 = vmatpush1.msra.mxu0 %v4835
        %5036 = vmatprep.subr.mxu0 %v4828
        %5037 = vmatpush1.msra.mxu0 %v4827
        %5038 = vmatprep.subr.mxu0 %v4820
        %5039 = vmatpush1.msra.mxu0 %v4819
        %5040 = vmatprep.subr.mxu0 %v4812
        %5041 = vmatpush1.msra.mxu0 %v4811
        %5042 = vmatprep.subr.mxu0 %v4804
        %5043 = vmatpush1.msra.mxu0 %v4803
        %5044 = vmatprep.subr.mxu0 %v4796
        %5045 = vmatpush1.msra.mxu0 %v4795
        %5046 = vmatprep.subr.mxu0 %v4788
        %5047 = vmatpush1.msra.mxu0 %v4787
        %5048 = vmatprep.subr.mxu0 %v4780
        %5049 = vmatpush1.msra.mxu0 %v4779
        %5050 = vmatprep.subr.mxu0 %v4772
        %5051 = vmatpush1.msra.mxu0 %v4771
        %5052 = vmatprep.subr.mxu0 %v4764
        %5053 = vmatpush1.msra.mxu0 %v4763
        %5054 = vmatprep.subr.mxu0 %v4756
        %5055 = vmatpush1.msra.mxu0 %v4755
        %5056 = vmatprep.subr.mxu0 %v4748
        %5057 = vmatpush1.msra.mxu0 %v4747
        %5058 = vmatprep.subr.mxu0 0.0
        %5059 = vmatpush2.msra.mxu0 0.0
        %5060 = vmatprep.subr.mxu0 0.0
        %5061 = vmatpush2.msra.mxu0 0.0
        %5062 = vmatprep.subr.mxu0 0.0
        %5063 = vmatpush2.msra.mxu0 0.0
        %5064 = vmatprep.subr.mxu0 0.0
        %5065 = vmatpush2.msra.mxu0 0.0
        %5066 = vmatprep.subr.mxu0 0.0
        %5067 = vmatpush2.msra.mxu0 0.0
        %5068 = vmatprep.subr.mxu0 0.0
        %5069 = vmatpush2.msra.mxu0 0.0
        %5070 = vmatprep.subr.mxu0 0.0
        %5071 = vmatpush2.msra.mxu0 0.0
        %5072 = vmatprep.subr.mxu0 %v4940
        %5073 = vmatpush2.msra.mxu0 %v4939
        %5074 = vmatprep.subr.mxu0 %v4932
        %5075 = vmatpush2.msra.mxu0 %v4931
        %5076 = vmatprep.subr.mxu0 %v4924
        %5077 = vmatpush2.msra.mxu0 %v4923
        %5078 = vmatprep.subr.mxu0 %v4916
        %5079 = vmatpush2.msra.mxu0 %v4915
        %5080 = vmatprep.subr.mxu0 %v4908
        %5081 = vmatpush2.msra.mxu0 %v4907
        %5082 = vmatprep.subr.mxu0 %v4900
        %5083 = vmatpush2.msra.mxu0 %v4899
        %5084 = vmatprep.subr.mxu0 %v4892
        %5085 = vmatpush2.msra.mxu0 %v4891
        %5086 = vmatprep.subr.mxu0 %v4884
        %5087 = vmatpush2.msra.mxu0 %v4883
        %5088 = vmatprep.subr.mxu0 %v4876
        %5089 = vmatpush2.msra.mxu0 %v4875
        %5090 = vmatprep.mubr.f32.mxu0 %v4953
        %5091 = vmatmul.mubr.f32.gmra.mxu0 %v4743
        %v5092 = vpop.f32.mrf.mxu0
        %v5093 = vadd.f32 %v4949, %v5092
        %v5094 = vpop.f32.mrf.mxu0
        %v5095 = vadd.f32 %v4949, %v5094
        %5096 = vdwg.mxu0
        %5097 = vmatprep.subr.mxu0 %v4870
        %5098 = vmatpush1.msra.mxu0 %v4869
        %5099 = vmatprep.subr.mxu0 %v4862
        %5100 = vmatpush1.msra.mxu0 %v4861
        %5101 = vmatprep.subr.mxu0 %v4854
        %5102 = vmatpush1.msra.mxu0 %v4853
        %5103 = vmatprep.subr.mxu0 %v4846
        %5104 = vmatpush1.msra.mxu0 %v4845
        %5105 = vmatprep.subr.mxu0 %v4838
        %5106 = vmatpush1.msra.mxu0 %v4837
        %5107 = vmatprep.subr.mxu0 %v4830
        %5108 = vmatpush1.msra.mxu0 %v4829
        %5109 = vmatprep.subr.mxu0 %v4822
        %5110 = vmatpush1.msra.mxu0 %v4821
        %5111 = vmatprep.subr.mxu0 %v4814
        %5112 = vmatpush1.msra.mxu0 %v4813
        %5113 = vmatprep.subr.mxu0 %v4806
        %5114 = vmatpush1.msra.mxu0 %v4805
        %5115 = vmatprep.subr.mxu0 %v4798
        %5116 = vmatpush1.msra.mxu0 %v4797
        %5117 = vmatprep.subr.mxu0 %v4790
        %5118 = vmatpush1.msra.mxu0 %v4789
        %5119 = vmatprep.subr.mxu0 %v4782
        %5120 = vmatpush1.msra.mxu0 %v4781
        %5121 = vmatprep.subr.mxu0 %v4774
        %5122 = vmatpush1.msra.mxu0 %v4773
        %5123 = vmatprep.subr.mxu0 %v4766
        %5124 = vmatpush1.msra.mxu0 %v4765
        %5125 = vmatprep.subr.mxu0 %v4758
        %5126 = vmatpush1.msra.mxu0 %v4757
        %5127 = vmatprep.subr.mxu0 %v4750
        %5128 = vmatpush1.msra.mxu0 %v4749
        %5129 = vmatprep.subr.mxu0 0.0
        %5130 = vmatpush2.msra.mxu0 0.0
        %5131 = vmatprep.subr.mxu0 0.0
        %5132 = vmatpush2.msra.mxu0 0.0
        %5133 = vmatprep.subr.mxu0 0.0
        %5134 = vmatpush2.msra.mxu0 0.0
        %5135 = vmatprep.subr.mxu0 0.0
        %5136 = vmatpush2.msra.mxu0 0.0
        %5137 = vmatprep.subr.mxu0 0.0
        %5138 = vmatpush2.msra.mxu0 0.0
        %5139 = vmatprep.subr.mxu0 0.0
        %5140 = vmatpush2.msra.mxu0 0.0
        %5141 = vmatprep.subr.mxu0 0.0
        %5142 = vmatpush2.msra.mxu0 0.0
        %5143 = vmatprep.subr.mxu0 %v4942
        %5144 = vmatpush2.msra.mxu0 %v4941
        %5145 = vmatprep.subr.mxu0 %v4934
        %5146 = vmatpush2.msra.mxu0 %v4933
        %5147 = vmatprep.subr.mxu0 %v4926
        %5148 = vmatpush2.msra.mxu0 %v4925
        %5149 = vmatprep.subr.mxu0 %v4918
        %5150 = vmatpush2.msra.mxu0 %v4917
        %5151 = vmatprep.subr.mxu0 %v4910
        %5152 = vmatpush2.msra.mxu0 %v4909
        %5153 = vmatprep.subr.mxu0 %v4902
        %5154 = vmatpush2.msra.mxu0 %v4901
        %5155 = vmatprep.subr.mxu0 %v4894
        %5156 = vmatpush2.msra.mxu0 %v4893
        %5157 = vmatprep.subr.mxu0 %v4886
        %5158 = vmatpush2.msra.mxu0 %v4885
        %5159 = vmatprep.subr.mxu0 %v4878
        %5160 = vmatpush2.msra.mxu0 %v4877
        %5161 = vmatprep.mubr.f32.mxu0 %v4953
        %5162 = vmatmul.mubr.f32.gmra.mxu0 %v4743
        %v5163 = vpop.f32.mrf.mxu0
        %v5164 = vadd.f32 %v4949, %v5163
        %v5165 = vpop.f32.mrf.mxu0
        %v5166 = vadd.f32 %v4949, %v5165
        %5167 = vdwg.mxu0
        %5168 = vmatprep.subr.mxu0 %v4872
        %5169 = vmatpush1.msra.mxu0 %v4871
        %5170 = vmatprep.subr.mxu0 %v4864
        %5171 = vmatpush1.msra.mxu0 %v4863
        %5172 = vmatprep.subr.mxu0 %v4856
        %5173 = vmatpush1.msra.mxu0 %v4855
        %5174 = vmatprep.subr.mxu0 %v4848
        %5175 = vmatpush1.msra.mxu0 %v4847
        %5176 = vmatprep.subr.mxu0 %v4840
        %5177 = vmatpush1.msra.mxu0 %v4839
        %5178 = vmatprep.subr.mxu0 %v4832
        %5179 = vmatpush1.msra.mxu0 %v4831
        %5180 = vmatprep.subr.mxu0 %v4824
        %5181 = vmatpush1.msra.mxu0 %v4823
        %5182 = vmatprep.subr.mxu0 %v4816
        %5183 = vmatpush1.msra.mxu0 %v4815
        %5184 = vmatprep.subr.mxu0 %v4808
        %5185 = vmatpush1.msra.mxu0 %v4807
        %5186 = vmatprep.subr.mxu0 %v4800
        %5187 = vmatpush1.msra.mxu0 %v4799
        %5188 = vmatprep.subr.mxu0 %v4792
        %5189 = vmatpush1.msra.mxu0 %v4791
        %5190 = vmatprep.subr.mxu0 %v4784
        %5191 = vmatpush1.msra.mxu0 %v4783
        %5192 = vmatprep.subr.mxu0 %v4776
        %5193 = vmatpush1.msra.mxu0 %v4775
        %5194 = vmatprep.subr.mxu0 %v4768
        %5195 = vmatpush1.msra.mxu0 %v4767
        %5196 = vmatprep.subr.mxu0 %v4760
        %5197 = vmatpush1.msra.mxu0 %v4759
        %5198 = vmatprep.subr.mxu0 %v4752
        %5199 = vmatpush1.msra.mxu0 %v4751
        %5200 = vmatprep.subr.mxu0 0.0
        %5201 = vmatpush2.msra.mxu0 0.0
        %5202 = vmatprep.subr.mxu0 0.0
        %5203 = vmatpush2.msra.mxu0 0.0
        %5204 = vmatprep.subr.mxu0 0.0
        %5205 = vmatpush2.msra.mxu0 0.0
        %5206 = vmatprep.subr.mxu0 0.0
        %5207 = vmatpush2.msra.mxu0 0.0
        %5208 = vmatprep.subr.mxu0 0.0
        %5209 = vmatpush2.msra.mxu0 0.0
        %5210 = vmatprep.subr.mxu0 0.0
        %5211 = vmatpush2.msra.mxu0 0.0
        %5212 = vmatprep.subr.mxu0 0.0
        %5213 = vmatpush2.msra.mxu0 0.0
        %5214 = vmatprep.subr.mxu0 %v4944
        %5215 = vmatpush2.msra.mxu0 %v4943
        %5216 = vmatprep.subr.mxu0 %v4936
        %5217 = vmatpush2.msra.mxu0 %v4935
        %5218 = vmatprep.subr.mxu0 %v4928
        %5219 = vmatpush2.msra.mxu0 %v4927
        %5220 = vmatprep.subr.mxu0 %v4920
        %5221 = vmatpush2.msra.mxu0 %v4919
        %5222 = vmatprep.subr.mxu0 %v4912
        %5223 = vmatpush2.msra.mxu0 %v4911
        %5224 = vmatprep.subr.mxu0 %v4904
        %5225 = vmatpush2.msra.mxu0 %v4903
        %5226 = vmatprep.subr.mxu0 %v4896
        %5227 = vmatpush2.msra.mxu0 %v4895
        %5228 = vmatprep.subr.mxu0 %v4888
        %5229 = vmatpush2.msra.mxu0 %v4887
        %5230 = vmatprep.subr.mxu0 %v4880
        %5231 = vmatpush2.msra.mxu0 %v4879
        %5232 = vmatprep.mubr.f32.mxu0 %v4953
        %5233 = vmatmul.mubr.f32.gmra.mxu0 %v4743
        %v5234 = vpop.f32.mrf.mxu0
        %v5235 = vadd.f32 %v4949, %v5234
        %v5236 = vpop.f32.mrf.mxu0
        %v5237 = vadd.f32 %v4949, %v5236
        %5238 = vdwg.mxu0
        %vm5239 = vcmp.ge.f32.partialorder %v5022, 0.0
        %vm5240 = vcmp.ge.f32.partialorder %v5024, 0.0
        %vm5241 = vcmp.ge.f32.partialorder %v5093, 0.0
        %vm5242 = vcmp.ge.f32.partialorder %v5095, 0.0
        %vm5243 = vcmp.ge.f32.partialorder %v5164, 0.0
        %vm5244 = vcmp.ge.f32.partialorder %v5166, 0.0
        %vm5245 = vcmp.ge.f32.partialorder %v5235, 0.0
        %vm5246 = vcmp.ge.f32.partialorder %v5237, 0.0
        %v5247 = vmul.f32 %v5022, 0.01
        %v5248 = vmul.f32 %v5024, 0.01
        %v5249 = vmul.f32 %v5093, 0.01
        %v5250 = vmul.f32 %v5095, 0.01
        %v5251 = vmul.f32 %v5164, 0.01
        %v5252 = vmul.f32 %v5166, 0.01
        %v5253 = vmul.f32 %v5235, 0.01
        %v5254 = vmul.f32 %v5237, 0.01
        %v5255 = vsel %vm5239, %v5022, %v5247
        %v5256 = vsel %vm5240, %v5024, %v5248
        %v5257 = vsel %vm5241, %v5093, %v5249
        %v5258 = vsel %vm5242, %v5095, %v5250
        %v5259 = vsel %vm5243, %v5164, %v5251
        %v5260 = vsel %vm5244, %v5166, %v5252
        %v5261 = vsel %vm5245, %v5235, %v5253
        %v5262 = vsel %vm5246, %v5237, %v5254
        %vm5263 = vcmask 1041408
        %v5264 = vsel %vm5263, %v5255, 0.0
        %v5265 = vsel %vm5263, %v5256, 0.0
        %v5266 = vadd.f32 %v5264, %v5265
        %v5267 = vsel %vm5263, %v5257, 0.0
        %v5268 = vadd.f32 %v5266, %v5267
        %v5269 = vsel %vm5263, %v5258, 0.0
        %v5270 = vadd.f32 %v5268, %v5269
        %v5271 = vsel %vm5263, %v5259, 0.0
        %v5272 = vadd.f32 %v5270, %v5271
        %v5273 = vsel %vm5263, %v5260, 0.0
        %v5274 = vadd.f32 %v5272, %v5273
        %v5275 = vsel %vm5263, %v5261, 0.0
        %v5276 = vadd.f32 %v5274, %v5275
        %v5277 = vsel %vm5263, %v5262, 0.0
        %v5278 = vadd.f32 %v5276, %v5277
        %5279 = vadd.xlane.f32.xlu0 %v5278
        %v5280 = vpop.xlane.xlu0 %5279
        %v5281 = vrot.slane %v5280, 4
        %v5282 = vadd.f32 %v5280, %v5281
        %v5283 = vrot.slane %v5282, 2
        %v5284 = vadd.f32 %v5282, %v5283
        %v5285 = vrot.slane %v5284, 1
        %v5286 = vadd.f32 %v5284, %v5285
        %s5287 = vtos %v5286
        %v5288 = vrcp.pop 2048.0
        %s5289 = vtos %v5288
        %s5290 = smul.f32 %s5287, %s5289
        %v5291 = vstv %s5290
        %v5292 = vsub.f32 %v5255, %v5291
        %v5293 = vsub.f32 %v5256, %v5291
        %v5294 = vsub.f32 %v5257, %v5291
        %v5295 = vsub.f32 %v5258, %v5291
        %v5296 = vsub.f32 %v5259, %v5291
        %v5297 = vsub.f32 %v5260, %v5291
        %v5298 = vsub.f32 %v5261, %v5291
        %v5299 = vsub.f32 %v5262, %v5291
        %v5300 = vmul.f32 %v5292, %v5292
        %v5301 = vmul.f32 %v5293, %v5293
        %v5302 = vmul.f32 %v5294, %v5294
        %v5303 = vmul.f32 %v5295, %v5295
        %v5304 = vmul.f32 %v5296, %v5296
        %v5305 = vmul.f32 %v5297, %v5297
        %v5306 = vmul.f32 %v5298, %v5298
        %v5307 = vmul.f32 %v5299, %v5299
        %v5308 = vsel %vm5263, %v5300, 0.0
        %v5309 = vsel %vm5263, %v5301, 0.0
        %v5310 = vadd.f32 %v5308, %v5309
        %v5311 = vsel %vm5263, %v5302, 0.0
        %v5312 = vadd.f32 %v5310, %v5311
        %v5313 = vsel %vm5263, %v5303, 0.0
        %v5314 = vadd.f32 %v5312, %v5313
        %v5315 = vsel %vm5263, %v5304, 0.0
        %v5316 = vadd.f32 %v5314, %v5315
        %v5317 = vsel %vm5263, %v5305, 0.0
        %v5318 = vadd.f32 %v5316, %v5317
        %v5319 = vsel %vm5263, %v5306, 0.0
        %v5320 = vadd.f32 %v5318, %v5319
        %v5321 = vsel %vm5263, %v5307, 0.0
        %v5322 = vadd.f32 %v5320, %v5321
        %5323 = vadd.xlane.f32.xlu0 %v5322
        %v5324 = vpop.xlane.xlu0 %5323
        %v5325 = vrot.slane %v5324, 4
        %v5326 = vadd.f32 %v5324, %v5325
        %v5327 = vrot.slane %v5326, 2
        %v5328 = vadd.f32 %v5326, %v5327
        %v5329 = vrot.slane %v5328, 1
        %v5330 = vadd.f32 %v5328, %v5329
        %s5331 = vtos %v5330
        %v5332 = vrcp.pop 2048.0
        %s5333 = vtos %v5332
        %s5334 = smul.f32 %s5331, %s5333
        %s5335 = sadd.f32 %s5334, 1e-05
        %v5336 = vstv %s5335
        %v5337 = vrsqrt.pop %v5336
        %s5338 = vtos %v5337
        %v5339 = vstv %s5338
        %v5340 = vmul.f32 %v5292, %v5339
        %v5341 = vmul.f32 %v5293, %v5339
        %v5342 = vmul.f32 %v5294, %v5339
        %v5343 = vmul.f32 %v5295, %v5339
        %v5344 = vmul.f32 %v5296, %v5339
        %v5345 = vmul.f32 %v5297, %v5339
        %v5346 = vmul.f32 %v5298, %v5339
        %v5347 = vmul.f32 %v5299, %v5339
        %v5348 = vld [vmem:[%s4] sm:$0x3]
        %5350 = vset.pattern.permute.xlu0 0
        %5351 = vperm.xlu0 %5350, %v5348
        %v5352 = vpop.permute.xlu0 %5351
        %v5354 = vmul.f32 %v5340, %v5352
        %v5355 = vmul.f32 %v5341, %v5352
        %v5356 = vmul.f32 %v5342, %v5352
        %v5357 = vmul.f32 %v5343, %v5352
        %v5358 = vmul.f32 %v5344, %v5352
        %v5359 = vmul.f32 %v5345, %v5352
        %v5360 = vmul.f32 %v5346, %v5352
        %v5361 = vmul.f32 %v5347, %v5352
        %v5362 = vld [vmem:[%s5] sm:$0x3]
        %5364 = vset.pattern.permute.xlu0 0
        %5365 = vperm.xlu0 %5364, %v5362
        %v5366 = vpop.permute.xlu0 %5365
        %v5368 = vadd.f32 %v5354, %v5366
        %v5369 = vadd.f32 %v5355, %v5366
        %v5370 = vadd.f32 %v5356, %v5366
        %v5371 = vadd.f32 %v5357, %v5366
        %v5372 = vadd.f32 %v5358, %v5366
        %v5373 = vadd.f32 %v5359, %v5366
        %v5374 = vadd.f32 %v5360, %v5366
        %v5375 = vadd.f32 %v5361, %v5366
        %5376 = vst [vmem:[#allocation3 + $0x8] sm:$0x3] %v5368
        %5377 = vst [vmem:[#allocation3 + $0x10] sm:$0x3] %v5369
        %5378 = vst [vmem:[#allocation3 + $0x18] sm:$0x3] %v5370
        %5379 = vst [vmem:[#allocation3 + $0x20] sm:$0x3] %v5371
        %5380 = vst [vmem:[#allocation3 + $0x28] sm:$0x3] %v5372
        %5381 = vst [vmem:[#allocation3 + $0x30] sm:$0x3] %v5373
        %5382 = vst [vmem:[#allocation3 + $0x38] sm:$0x3] %v5374
        %5383 = vst [vmem:[#allocation3 + $0x40] sm:$0x3] %v5375
        %v5392 = vrot.slane %v5255, 2
        %v5393 = vrot.slane %v5256, 2
        %v5394 = vrot.slane %v5257, 2
        %v5395 = vrot.slane %v5258, 2
        %v5396 = vrot.slane %v5259, 2
        %v5397 = vrot.slane %v5260, 2
        %v5398 = vrot.slane %v5261, 2
        %v5399 = vrot.slane %v5262, 2
        %v5408 = vsel %vm5263, %v5392, 0.0
        %v5409 = vsel %vm5263, %v5393, 0.0
        %v5410 = vadd.f32 %v5408, %v5409
        %v5411 = vsel %vm5263, %v5394, 0.0
        %v5412 = vadd.f32 %v5410, %v5411
        %v5413 = vsel %vm5263, %v5395, 0.0
        %v5414 = vadd.f32 %v5412, %v5413
        %v5415 = vsel %vm5263, %v5396, 0.0
        %v5416 = vadd.f32 %v5414, %v5415
        %v5417 = vsel %vm5263, %v5397, 0.0
        %v5418 = vadd.f32 %v5416, %v5417
        %v5419 = vsel %vm5263, %v5398, 0.0
        %v5420 = vadd.f32 %v5418, %v5419
        %v5421 = vsel %vm5263, %v5399, 0.0
        %v5422 = vadd.f32 %v5420, %v5421
        %5423 = vadd.xlane.f32.xlu0 %v5422
        %v5424 = vpop.xlane.xlu0 %5423
        %v5425 = vrot.slane %v5424, 4
        %v5426 = vadd.f32 %v5424, %v5425
        %v5427 = vrot.slane %v5426, 2
        %v5428 = vadd.f32 %v5426, %v5427
        %v5429 = vrot.slane %v5428, 1
        %v5430 = vadd.f32 %v5428, %v5429
        %s5431 = vtos %v5430
        %v5432 = vrcp.pop 2048.0
        %s5433 = vtos %v5432
        %s5434 = smul.f32 %s5431, %s5433
        %v5435 = vstv %s5434
        %v5436 = vsub.f32 %v5255, %v5435
        %v5437 = vsub.f32 %v5256, %v5435
        %v5438 = vsub.f32 %v5257, %v5435
        %v5439 = vsub.f32 %v5258, %v5435
        %v5440 = vsub.f32 %v5259, %v5435
        %v5441 = vsub.f32 %v5260, %v5435
        %v5442 = vsub.f32 %v5261, %v5435
        %v5443 = vsub.f32 %v5262, %v5435
        %v5444 = vmul.f32 %v5436, %v5436
        %v5445 = vmul.f32 %v5437, %v5437
        %v5446 = vmul.f32 %v5438, %v5438
        %v5447 = vmul.f32 %v5439, %v5439
        %v5448 = vmul.f32 %v5440, %v5440
        %v5449 = vmul.f32 %v5441, %v5441
        %v5450 = vmul.f32 %v5442, %v5442
        %v5451 = vmul.f32 %v5443, %v5443
        %v5460 = vrot.slane %v5444, 2
        %v5461 = vrot.slane %v5445, 2
        %v5462 = vrot.slane %v5446, 2
        %v5463 = vrot.slane %v5447, 2
        %v5464 = vrot.slane %v5448, 2
        %v5465 = vrot.slane %v5449, 2
        %v5466 = vrot.slane %v5450, 2
        %v5467 = vrot.slane %v5451, 2
        %v5476 = vsel %vm5263, %v5460, 0.0
        %v5477 = vsel %vm5263, %v5461, 0.0
        %v5478 = vadd.f32 %v5476, %v5477
        %v5479 = vsel %vm5263, %v5462, 0.0
        %v5480 = vadd.f32 %v5478, %v5479
        %v5481 = vsel %vm5263, %v5463, 0.0
        %v5482 = vadd.f32 %v5480, %v5481
        %v5483 = vsel %vm5263, %v5464, 0.0
        %v5484 = vadd.f32 %v5482, %v5483
        %v5485 = vsel %vm5263, %v5465, 0.0
        %v5486 = vadd.f32 %v5484, %v5485
        %v5487 = vsel %vm5263, %v5466, 0.0
        %v5488 = vadd.f32 %v5486, %v5487
        %v5489 = vsel %vm5263, %v5467, 0.0
        %v5490 = vadd.f32 %v5488, %v5489
        %5491 = vadd.xlane.f32.xlu0 %v5490
        %v5492 = vpop.xlane.xlu0 %5491
        %v5493 = vrot.slane %v5492, 4
        %v5494 = vadd.f32 %v5492, %v5493
        %v5495 = vrot.slane %v5494, 2
        %v5496 = vadd.f32 %v5494, %v5495
        %v5497 = vrot.slane %v5496, 1
        %v5498 = vadd.f32 %v5496, %v5497
        %s5499 = vtos %v5498
        %v5500 = vrcp.pop 2048.0
        %s5501 = vtos %v5500
        %s5502 = smul.f32 %s5499, %s5501
        %s5503 = sadd.f32 %s5502, 1e-05
        %v5504 = vstv %s5503
        %v5505 = vrsqrt.pop %v5504
        %s5506 = vtos %v5505
        %v5507 = vstv %s5506
        %v5508 = vmul.f32 %v5436, %v5507
        %v5509 = vmul.f32 %v5437, %v5507
        %v5510 = vmul.f32 %v5438, %v5507
        %v5511 = vmul.f32 %v5439, %v5507
        %v5512 = vmul.f32 %v5440, %v5507
        %v5513 = vmul.f32 %v5441, %v5507
        %v5514 = vmul.f32 %v5442, %v5507
        %v5515 = vmul.f32 %v5443, %v5507
        %v5516 = vld [vmem:[%s4 + $0x2] sm:$0x3]
        %5518 = vset.pattern.permute.xlu0 0
        %5519 = vperm.xlu0 %5518, %v5516
        %v5520 = vpop.permute.xlu0 %5519
        %v5521 = vrot.slane %v5520, 6
        %v5523 = vmul.f32 %v5508, %v5521
        %v5524 = vmul.f32 %v5509, %v5521
        %v5525 = vmul.f32 %v5510, %v5521
        %v5526 = vmul.f32 %v5511, %v5521
        %v5527 = vmul.f32 %v5512, %v5521
        %v5528 = vmul.f32 %v5513, %v5521
        %v5529 = vmul.f32 %v5514, %v5521
        %v5530 = vmul.f32 %v5515, %v5521
        %v5531 = vld [vmem:[%s5 + $0x2] sm:$0x3]
        %5533 = vset.pattern.permute.xlu0 0
        %5534 = vperm.xlu0 %5533, %v5531
        %v5535 = vpop.permute.xlu0 %5534
        %v5536 = vrot.slane %v5535, 6
        %v5538 = vadd.f32 %v5523, %v5536
        %v5539 = vadd.f32 %v5524, %v5536
        %v5540 = vadd.f32 %v5525, %v5536
        %v5541 = vadd.f32 %v5526, %v5536
        %v5542 = vadd.f32 %v5527, %v5536
        %v5543 = vadd.f32 %v5528, %v5536
        %v5544 = vadd.f32 %v5529, %v5536
        %v5545 = vadd.f32 %v5530, %v5536
        %5546 = vst [vmem:[#allocation3 + $0x8] sm:$0xc] %v5538
        %5547 = vst [vmem:[#allocation3 + $0x10] sm:$0xc] %v5539
        %5548 = vst [vmem:[#allocation3 + $0x18] sm:$0xc] %v5540
        %5549 = vst [vmem:[#allocation3 + $0x20] sm:$0xc] %v5541
        %5550 = vst [vmem:[#allocation3 + $0x28] sm:$0xc] %v5542
        %5551 = vst [vmem:[#allocation3 + $0x30] sm:$0xc] %v5543
        %5552 = vst [vmem:[#allocation3 + $0x38] sm:$0xc] %v5544
        %5553 = vst [vmem:[#allocation3 + $0x40] sm:$0xc] %v5545
        %v5554 = vrot.slane %v5255, 4
        %v5555 = vrot.slane %v5256, 4
        %v5556 = vrot.slane %v5257, 4
        %v5557 = vrot.slane %v5258, 4
        %v5558 = vrot.slane %v5259, 4
        %v5559 = vrot.slane %v5260, 4
        %v5560 = vrot.slane %v5261, 4
        %v5561 = vrot.slane %v5262, 4
        %v5570 = vsel %vm5263, %v5554, 0.0
        %v5571 = vsel %vm5263, %v5555, 0.0
        %v5572 = vadd.f32 %v5570, %v5571
        %v5573 = vsel %vm5263, %v5556, 0.0
        %v5574 = vadd.f32 %v5572, %v5573
        %v5575 = vsel %vm5263, %v5557, 0.0
        %v5576 = vadd.f32 %v5574, %v5575
        %v5577 = vsel %vm5263, %v5558, 0.0
        %v5578 = vadd.f32 %v5576, %v5577
        %v5579 = vsel %vm5263, %v5559, 0.0
        %v5580 = vadd.f32 %v5578, %v5579
        %v5581 = vsel %vm5263, %v5560, 0.0
        %v5582 = vadd.f32 %v5580, %v5581
        %v5583 = vsel %vm5263, %v5561, 0.0
        %v5584 = vadd.f32 %v5582, %v5583
        %5585 = vadd.xlane.f32.xlu0 %v5584
        %v5586 = vpop.xlane.xlu0 %5585
        %v5587 = vrot.slane %v5586, 4
        %v5588 = vadd.f32 %v5586, %v5587
        %v5589 = vrot.slane %v5588, 2
        %v5590 = vadd.f32 %v5588, %v5589
        %v5591 = vrot.slane %v5590, 1
        %v5592 = vadd.f32 %v5590, %v5591
        %s5593 = vtos %v5592
        %v5594 = vrcp.pop 2048.0
        %s5595 = vtos %v5594
        %s5596 = smul.f32 %s5593, %s5595
        %v5597 = vstv %s5596
        %v5598 = vsub.f32 %v5255, %v5597
        %v5599 = vsub.f32 %v5256, %v5597
        %v5600 = vsub.f32 %v5257, %v5597
        %v5601 = vsub.f32 %v5258, %v5597
        %v5602 = vsub.f32 %v5259, %v5597
        %v5603 = vsub.f32 %v5260, %v5597
        %v5604 = vsub.f32 %v5261, %v5597
        %v5605 = vsub.f32 %v5262, %v5597
        %v5606 = vmul.f32 %v5598, %v5598
        %v5607 = vmul.f32 %v5599, %v5599
        %v5608 = vmul.f32 %v5600, %v5600
        %v5609 = vmul.f32 %v5601, %v5601
        %v5610 = vmul.f32 %v5602, %v5602
        %v5611 = vmul.f32 %v5603, %v5603
        %v5612 = vmul.f32 %v5604, %v5604
        %v5613 = vmul.f32 %v5605, %v5605
        %v5622 = vrot.slane %v5606, 4
        %v5623 = vrot.slane %v5607, 4
        %v5624 = vrot.slane %v5608, 4
        %v5625 = vrot.slane %v5609, 4
        %v5626 = vrot.slane %v5610, 4
        %v5627 = vrot.slane %v5611, 4
        %v5628 = vrot.slane %v5612, 4
        %v5629 = vrot.slane %v5613, 4
        %v5638 = vsel %vm5263, %v5622, 0.0
        %v5639 = vsel %vm5263, %v5623, 0.0
        %v5640 = vadd.f32 %v5638, %v5639
        %v5641 = vsel %vm5263, %v5624, 0.0
        %v5642 = vadd.f32 %v5640, %v5641
        %v5643 = vsel %vm5263, %v5625, 0.0
        %v5644 = vadd.f32 %v5642, %v5643
        %v5645 = vsel %vm5263, %v5626, 0.0
        %v5646 = vadd.f32 %v5644, %v5645
        %v5647 = vsel %vm5263, %v5627, 0.0
        %v5648 = vadd.f32 %v5646, %v5647
        %v5649 = vsel %vm5263, %v5628, 0.0
        %v5650 = vadd.f32 %v5648, %v5649
        %v5651 = vsel %vm5263, %v5629, 0.0
        %v5652 = vadd.f32 %v5650, %v5651
        %5653 = vadd.xlane.f32.xlu0 %v5652
        %v5654 = vpop.xlane.xlu0 %5653
        %v5655 = vrot.slane %v5654, 4
        %v5656 = vadd.f32 %v5654, %v5655
        %v5657 = vrot.slane %v5656, 2
        %v5658 = vadd.f32 %v5656, %v5657
        %v5659 = vrot.slane %v5658, 1
        %v5660 = vadd.f32 %v5658, %v5659
        %s5661 = vtos %v5660
        %v5662 = vrcp.pop 2048.0
        %s5663 = vtos %v5662
        %s5664 = smul.f32 %s5661, %s5663
        %s5665 = sadd.f32 %s5664, 1e-05
        %v5666 = vstv %s5665
        %v5667 = vrsqrt.pop %v5666
        %s5668 = vtos %v5667
        %v5669 = vstv %s5668
        %v5670 = vmul.f32 %v5598, %v5669
        %v5671 = vmul.f32 %v5599, %v5669
        %v5672 = vmul.f32 %v5600, %v5669
        %v5673 = vmul.f32 %v5601, %v5669
        %v5674 = vmul.f32 %v5602, %v5669
        %v5675 = vmul.f32 %v5603, %v5669
        %v5676 = vmul.f32 %v5604, %v5669
        %v5677 = vmul.f32 %v5605, %v5669
        %v5678 = vld [vmem:[%s4 + $0x4] sm:$0x3]
        %5680 = vset.pattern.permute.xlu0 0
        %5681 = vperm.xlu0 %5680, %v5678
        %v5682 = vpop.permute.xlu0 %5681
        %v5683 = vrot.slane %v5682, 4
        %v5685 = vmul.f32 %v5670, %v5683
        %v5686 = vmul.f32 %v5671, %v5683
        %v5687 = vmul.f32 %v5672, %v5683
        %v5688 = vmul.f32 %v5673, %v5683
        %v5689 = vmul.f32 %v5674, %v5683
        %v5690 = vmul.f32 %v5675, %v5683
        %v5691 = vmul.f32 %v5676, %v5683
        %v5692 = vmul.f32 %v5677, %v5683
        %v5693 = vld [vmem:[%s5 + $0x4] sm:$0x3]
        %5695 = vset.pattern.permute.xlu0 0
        %5696 = vperm.xlu0 %5695, %v5693
        %v5697 = vpop.permute.xlu0 %5696
        %v5698 = vrot.slane %v5697, 4
        %v5700 = vadd.f32 %v5685, %v5698
        %v5701 = vadd.f32 %v5686, %v5698
        %v5702 = vadd.f32 %v5687, %v5698
        %v5703 = vadd.f32 %v5688, %v5698
        %v5704 = vadd.f32 %v5689, %v5698
        %v5705 = vadd.f32 %v5690, %v5698
        %v5706 = vadd.f32 %v5691, %v5698
        %v5707 = vadd.f32 %v5692, %v5698
        %5708 = vst [vmem:[#allocation3 + $0x8] sm:$0x30] %v5700
        %5709 = vst [vmem:[#allocation3 + $0x10] sm:$0x30] %v5701
        %5710 = vst [vmem:[#allocation3 + $0x18] sm:$0x30] %v5702
        %5711 = vst [vmem:[#allocation3 + $0x20] sm:$0x30] %v5703
        %5712 = vst [vmem:[#allocation3 + $0x28] sm:$0x30] %v5704
        %5713 = vst [vmem:[#allocation3 + $0x30] sm:$0x30] %v5705
        %5714 = vst [vmem:[#allocation3 + $0x38] sm:$0x30] %v5706
        %5715 = vst [vmem:[#allocation3 + $0x40] sm:$0x30] %v5707
        %v5716 = vld [vmem:[#allocation3] sm:$0x3f]
        %v5717 = vld [vmem:[#allocation3 + $0x8] sm:$0x3f]
        %v5718 = vld [vmem:[#allocation3 + $0x10] sm:$0x3f]
        %v5719 = vld [vmem:[#allocation3 + $0x18] sm:$0x3f]
        %v5720 = vld [vmem:[#allocation3 + $0x20] sm:$0x3f]
        %v5721 = vld [vmem:[#allocation3 + $0x28] sm:$0x3f]
        %v5722 = vld [vmem:[#allocation3 + $0x30] sm:$0x3f]
        %v5723 = vld [vmem:[#allocation3 + $0x38] sm:$0x3f]
        %v5724 = vld [vmem:[#allocation3 + $0x40] sm:$0x3f]
        %5734 = vrot.lane.b32.xlu0 %v5716, 66
        %v5735 = vpop.permute.xlu0 %5734
        %5736 = vrot.lane.b32.xlu0 %v5717, 66
        %v5737 = vpop.permute.xlu0 %5736
        %5738 = vrot.lane.b32.xlu0 %v5718, 66
        %v5739 = vpop.permute.xlu0 %5738
        %5740 = vrot.lane.b32.xlu0 %v5719, 66
        %v5741 = vpop.permute.xlu0 %5740
        %5742 = vrot.lane.b32.xlu0 %v5720, 66
        %v5743 = vpop.permute.xlu0 %5742
        %5744 = vrot.lane.b32.xlu0 %v5721, 66
        %v5745 = vpop.permute.xlu0 %5744
        %5746 = vrot.lane.b32.xlu0 %v5722, 66
        %v5747 = vpop.permute.xlu0 %5746
        %5748 = vrot.lane.b32.xlu0 %v5723, 66
        %v5749 = vpop.permute.xlu0 %5748
        %5750 = vrot.lane.b32.xlu0 %v5724, 66
        %v5751 = vpop.permute.xlu0 %5750
        %v5752 = vsel %vm741, %v5735, %v5737
        %v5753 = vsel %vm741, %v5737, %v5739
        %v5754 = vsel %vm741, %v5739, %v5741
        %v5755 = vsel %vm741, %v5741, %v5743
        %v5756 = vsel %vm741, %v5743, %v5745
        %v5757 = vsel %vm741, %v5745, %v5747
        %v5758 = vsel %vm741, %v5747, %v5749
        %v5759 = vsel %vm741, %v5749, %v5751
        %v5768 = vsel %vm706, %v5752, 0.0
        %v5769 = vsel %vm707, %v5753, 0.0
        %v5770 = vsel %vm708, %v5754, 0.0
        %v5771 = vsel %vm709, %v5755, 0.0
        %v5772 = vsel %vm710, %v5756, 0.0
        %v5773 = vsel %vm711, %v5757, 0.0
        %v5774 = vsel %vm712, %v5758, 0.0
        %v5775 = vsel %vm713, %v5759, 0.0
        %5776 = vst [vmem:[#allocation5] sm:$0x3f] %v5768
        %5777 = vst [vmem:[#allocation5 + $0x8] sm:$0x3f] %v5769
        %5778 = vst [vmem:[#allocation5 + $0x10] sm:$0x3f] %v5770
        %5779 = vst [vmem:[#allocation5 + $0x18] sm:$0x3f] %v5771
        %5780 = vst [vmem:[#allocation5 + $0x20] sm:$0x3f] %v5772
        %5781 = vst [vmem:[#allocation5 + $0x28] sm:$0x3f] %v5773
        %5782 = vst [vmem:[#allocation5 + $0x30] sm:$0x3f] %v5774
        %5783 = vst [vmem:[#allocation5 + $0x38] sm:$0x3f] %v5775
        %v5784 = vld [vmem:[#allocation3] sm:$0x3f]
        %v5785 = vld [vmem:[#allocation3 + $0x8] sm:$0x3f]
        %v5786 = vld [vmem:[#allocation3 + $0x10] sm:$0x3f]
        %v5787 = vld [vmem:[#allocation3 + $0x18] sm:$0x3f]
        %v5788 = vld [vmem:[#allocation3 + $0x20] sm:$0x3f]
        %v5789 = vld [vmem:[#allocation3 + $0x28] sm:$0x3f]
        %v5790 = vld [vmem:[#allocation3 + $0x30] sm:$0x3f]
        %v5791 = vld [vmem:[#allocation3 + $0x38] sm:$0x3f]
        %v5792 = vld [vmem:[#allocation3 + $0x40] sm:$0x3f]
        %5802 = vrot.lane.b32.xlu0 %v5784, 34
        %v5803 = vpop.permute.xlu0 %5802
        %5804 = vrot.lane.b32.xlu0 %v5785, 34
        %v5805 = vpop.permute.xlu0 %5804
        %5806 = vrot.lane.b32.xlu0 %v5786, 34
        %v5807 = vpop.permute.xlu0 %5806
        %5808 = vrot.lane.b32.xlu0 %v5787, 34
        %v5809 = vpop.permute.xlu0 %5808
        %5810 = vrot.lane.b32.xlu0 %v5788, 34
        %v5811 = vpop.permute.xlu0 %5810
        %5812 = vrot.lane.b32.xlu0 %v5789, 34
        %v5813 = vpop.permute.xlu0 %5812
        %5814 = vrot.lane.b32.xlu0 %v5790, 34
        %v5815 = vpop.permute.xlu0 %5814
        %5816 = vrot.lane.b32.xlu0 %v5791, 34
        %v5817 = vpop.permute.xlu0 %5816
        %5818 = vrot.lane.b32.xlu0 %v5792, 34
        %v5819 = vpop.permute.xlu0 %5818
        %v5820 = vsel %vm830, %v5803, %v5805
        %v5821 = vsel %vm830, %v5805, %v5807
        %v5822 = vsel %vm830, %v5807, %v5809
        %v5823 = vsel %vm830, %v5809, %v5811
        %v5824 = vsel %vm830, %v5811, %v5813
        %v5825 = vsel %vm830, %v5813, %v5815
        %v5826 = vsel %vm830, %v5815, %v5817
        %v5827 = vsel %vm830, %v5817, %v5819
        %v5836 = vsel %vm706, %v5820, 0.0
        %v5837 = vsel %vm707, %v5821, 0.0
        %v5838 = vsel %vm708, %v5822, 0.0
        %v5839 = vsel %vm709, %v5823, 0.0
        %v5840 = vsel %vm710, %v5824, 0.0
        %v5841 = vsel %vm711, %v5825, 0.0
        %v5842 = vsel %vm712, %v5826, 0.0
        %v5843 = vsel %vm713, %v5827, 0.0
        %5844 = vst [vmem:[#allocation5 + $0x140] sm:$0x3f] %v5836
        %5845 = vst [vmem:[#allocation5 + $0x148] sm:$0x3f] %v5837
        %5846 = vst [vmem:[#allocation5 + $0x150] sm:$0x3f] %v5838
        %5847 = vst [vmem:[#allocation5 + $0x158] sm:$0x3f] %v5839
        %5848 = vst [vmem:[#allocation5 + $0x160] sm:$0x3f] %v5840
        %5849 = vst [vmem:[#allocation5 + $0x168] sm:$0x3f] %v5841
        %5850 = vst [vmem:[#allocation5 + $0x170] sm:$0x3f] %v5842
        %5851 = vst [vmem:[#allocation5 + $0x178] sm:$0x3f] %v5843
        %v5852 = vld [vmem:[#allocation3] sm:$0x3f]
        %v5853 = vld [vmem:[#allocation3 + $0x8] sm:$0x3f]
        %v5854 = vld [vmem:[#allocation3 + $0x10] sm:$0x3f]
        %v5855 = vld [vmem:[#allocation3 + $0x18] sm:$0x3f]
        %v5856 = vld [vmem:[#allocation3 + $0x20] sm:$0x3f]
        %v5857 = vld [vmem:[#allocation3 + $0x28] sm:$0x3f]
        %v5858 = vld [vmem:[#allocation3 + $0x30] sm:$0x3f]
        %v5859 = vld [vmem:[#allocation3 + $0x38] sm:$0x3f]
        %v5860 = vld [vmem:[#allocation3 + $0x40] sm:$0x3f]
        %5870 = vrot.lane.b32.xlu0 %v5852, 2
        %v5871 = vpop.permute.xlu0 %5870
        %5872 = vrot.lane.b32.xlu0 %v5853, 2
        %v5873 = vpop.permute.xlu0 %5872
        %5874 = vrot.lane.b32.xlu0 %v5854, 2
        %v5875 = vpop.permute.xlu0 %5874
        %5876 = vrot.lane.b32.xlu0 %v5855, 2
        %v5877 = vpop.permute.xlu0 %5876
        %5878 = vrot.lane.b32.xlu0 %v5856, 2
        %v5879 = vpop.permute.xlu0 %5878
        %5880 = vrot.lane.b32.xlu0 %v5857, 2
        %v5881 = vpop.permute.xlu0 %5880
        %5882 = vrot.lane.b32.xlu0 %v5858, 2
        %v5883 = vpop.permute.xlu0 %5882
        %5884 = vrot.lane.b32.xlu0 %v5859, 2
        %v5885 = vpop.permute.xlu0 %5884
        %5886 = vrot.lane.b32.xlu0 %v5860, 2
        %v5887 = vpop.permute.xlu0 %5886
        %v5888 = vsel %vm919, %v5871, %v5873
        %v5889 = vsel %vm919, %v5873, %v5875
        %v5890 = vsel %vm919, %v5875, %v5877
        %v5891 = vsel %vm919, %v5877, %v5879
        %v5892 = vsel %vm919, %v5879, %v5881
        %v5893 = vsel %vm919, %v5881, %v5883
        %v5894 = vsel %vm919, %v5883, %v5885
        %v5895 = vsel %vm919, %v5885, %v5887
        %v5904 = vsel %vm706, %v5888, 0.0
        %v5905 = vsel %vm707, %v5889, 0.0
        %v5906 = vsel %vm708, %v5890, 0.0
        %v5907 = vsel %vm709, %v5891, 0.0
        %v5908 = vsel %vm710, %v5892, 0.0
        %v5909 = vsel %vm711, %v5893, 0.0
        %v5910 = vsel %vm712, %v5894, 0.0
        %v5911 = vsel %vm713, %v5895, 0.0
        %5912 = vst [vmem:[#allocation5 + $0x280] sm:$0x3f] %v5904
        %5913 = vst [vmem:[#allocation5 + $0x288] sm:$0x3f] %v5905
        %5914 = vst [vmem:[#allocation5 + $0x290] sm:$0x3f] %v5906
        %5915 = vst [vmem:[#allocation5 + $0x298] sm:$0x3f] %v5907
        %5916 = vst [vmem:[#allocation5 + $0x2a0] sm:$0x3f] %v5908
        %5917 = vst [vmem:[#allocation5 + $0x2a8] sm:$0x3f] %v5909
        %5918 = vst [vmem:[#allocation5 + $0x2b0] sm:$0x3f] %v5910
        %5919 = vst [vmem:[#allocation5 + $0x2b8] sm:$0x3f] %v5911
        %v5920 = vld [vmem:[#allocation3 + $0x8] sm:$0x3f]
        %v5921 = vld [vmem:[#allocation3 + $0x10] sm:$0x3f]
        %v5922 = vld [vmem:[#allocation3 + $0x18] sm:$0x3f]
        %v5923 = vld [vmem:[#allocation3 + $0x20] sm:$0x3f]
        %v5924 = vld [vmem:[#allocation3 + $0x28] sm:$0x3f]
        %v5925 = vld [vmem:[#allocation3 + $0x30] sm:$0x3f]
        %v5926 = vld [vmem:[#allocation3 + $0x38] sm:$0x3f]
        %v5927 = vld [vmem:[#allocation3 + $0x40] sm:$0x3f]
        %v5928 = vld [vmem:[#allocation3 + $0x48] sm:$0x3f]
        %5938 = vrot.lane.b32.xlu0 %v5920, 98
        %v5939 = vpop.permute.xlu0 %5938
        %5940 = vrot.lane.b32.xlu0 %v5921, 98
        %v5941 = vpop.permute.xlu0 %5940
        %5942 = vrot.lane.b32.xlu0 %v5922, 98
        %v5943 = vpop.permute.xlu0 %5942
        %5944 = vrot.lane.b32.xlu0 %v5923, 98
        %v5945 = vpop.permute.xlu0 %5944
        %5946 = vrot.lane.b32.xlu0 %v5924, 98
        %v5947 = vpop.permute.xlu0 %5946
        %5948 = vrot.lane.b32.xlu0 %v5925, 98
        %v5949 = vpop.permute.xlu0 %5948
        %5950 = vrot.lane.b32.xlu0 %v5926, 98
        %v5951 = vpop.permute.xlu0 %5950
        %5952 = vrot.lane.b32.xlu0 %v5927, 98
        %v5953 = vpop.permute.xlu0 %5952
        %5954 = vrot.lane.b32.xlu0 %v5928, 98
        %v5955 = vpop.permute.xlu0 %5954
        %v5956 = vsel %vm1008, %v5939, %v5941
        %v5957 = vsel %vm1008, %v5941, %v5943
        %v5958 = vsel %vm1008, %v5943, %v5945
        %v5959 = vsel %vm1008, %v5945, %v5947
        %v5960 = vsel %vm1008, %v5947, %v5949
        %v5961 = vsel %vm1008, %v5949, %v5951
        %v5962 = vsel %vm1008, %v5951, %v5953
        %v5963 = vsel %vm1008, %v5953, %v5955
        %v5972 = vsel %vm706, %v5956, 0.0
        %v5973 = vsel %vm707, %v5957, 0.0
        %v5974 = vsel %vm708, %v5958, 0.0
        %v5975 = vsel %vm709, %v5959, 0.0
        %v5976 = vsel %vm710, %v5960, 0.0
        %v5977 = vsel %vm711, %v5961, 0.0
        %v5978 = vsel %vm712, %v5962, 0.0
        %v5979 = vsel %vm713, %v5963, 0.0
        %5980 = vst [vmem:[#allocation5 + $0x3c0] sm:$0x3f] %v5972
        %5981 = vst [vmem:[#allocation5 + $0x3c8] sm:$0x3f] %v5973
        %5982 = vst [vmem:[#allocation5 + $0x3d0] sm:$0x3f] %v5974
        %5983 = vst [vmem:[#allocation5 + $0x3d8] sm:$0x3f] %v5975
        %5984 = vst [vmem:[#allocation5 + $0x3e0] sm:$0x3f] %v5976
        %5985 = vst [vmem:[#allocation5 + $0x3e8] sm:$0x3f] %v5977
        %5986 = vst [vmem:[#allocation5 + $0x3f0] sm:$0x3f] %v5978
        %5987 = vst [vmem:[#allocation5 + $0x3f8] sm:$0x3f] %v5979
        %v5988 = vld [vmem:[#allocation3 + $0x8] sm:$0x3f]
        %v5989 = vld [vmem:[#allocation3 + $0x10] sm:$0x3f]
        %v5990 = vld [vmem:[#allocation3 + $0x18] sm:$0x3f]
        %v5991 = vld [vmem:[#allocation3 + $0x20] sm:$0x3f]
        %v5992 = vld [vmem:[#allocation3 + $0x28] sm:$0x3f]
        %v5993 = vld [vmem:[#allocation3 + $0x30] sm:$0x3f]
        %v5994 = vld [vmem:[#allocation3 + $0x38] sm:$0x3f]
        %v5995 = vld [vmem:[#allocation3 + $0x40] sm:$0x3f]
        %v5996 = vld [vmem:[#allocation3 + $0x48] sm:$0x3f]
        %6006 = vrot.lane.b32.xlu0 %v5988, 66
        %v6007 = vpop.permute.xlu0 %6006
        %6008 = vrot.lane.b32.xlu0 %v5989, 66
        %v6009 = vpop.permute.xlu0 %6008
        %6010 = vrot.lane.b32.xlu0 %v5990, 66
        %v6011 = vpop.permute.xlu0 %6010
        %6012 = vrot.lane.b32.xlu0 %v5991, 66
        %v6013 = vpop.permute.xlu0 %6012
        %6014 = vrot.lane.b32.xlu0 %v5992, 66
        %v6015 = vpop.permute.xlu0 %6014
        %6016 = vrot.lane.b32.xlu0 %v5993, 66
        %v6017 = vpop.permute.xlu0 %6016
        %6018 = vrot.lane.b32.xlu0 %v5994, 66
        %v6019 = vpop.permute.xlu0 %6018
        %6020 = vrot.lane.b32.xlu0 %v5995, 66
        %v6021 = vpop.permute.xlu0 %6020
        %6022 = vrot.lane.b32.xlu0 %v5996, 66
        %v6023 = vpop.permute.xlu0 %6022
        %v6024 = vsel %vm741, %v6007, %v6009
        %v6025 = vsel %vm741, %v6009, %v6011
        %v6026 = vsel %vm741, %v6011, %v6013
        %v6027 = vsel %vm741, %v6013, %v6015
        %v6028 = vsel %vm741, %v6015, %v6017
        %v6029 = vsel %vm741, %v6017, %v6019
        %v6030 = vsel %vm741, %v6019, %v6021
        %v6031 = vsel %vm741, %v6021, %v6023
        %v6040 = vsel %vm706, %v6024, 0.0
        %v6041 = vsel %vm707, %v6025, 0.0
        %v6042 = vsel %vm708, %v6026, 0.0
        %v6043 = vsel %vm709, %v6027, 0.0
        %v6044 = vsel %vm710, %v6028, 0.0
        %v6045 = vsel %vm711, %v6029, 0.0
        %v6046 = vsel %vm712, %v6030, 0.0
        %v6047 = vsel %vm713, %v6031, 0.0
        %6048 = vst [vmem:[#allocation5 + $0x500] sm:$0x3f] %v6040
        %6049 = vst [vmem:[#allocation5 + $0x508] sm:$0x3f] %v6041
        %6050 = vst [vmem:[#allocation5 + $0x510] sm:$0x3f] %v6042
        %6051 = vst [vmem:[#allocation5 + $0x518] sm:$0x3f] %v6043
        %6052 = vst [vmem:[#allocation5 + $0x520] sm:$0x3f] %v6044
        %6053 = vst [vmem:[#allocation5 + $0x528] sm:$0x3f] %v6045
        %6054 = vst [vmem:[#allocation5 + $0x530] sm:$0x3f] %v6046
        %6055 = vst [vmem:[#allocation5 + $0x538] sm:$0x3f] %v6047
        %v6056 = vld [vmem:[#allocation3] sm:$0x3f]
        %v6057 = vld [vmem:[#allocation3 + $0x8] sm:$0x3f]
        %v6058 = vld [vmem:[#allocation3 + $0x10] sm:$0x3f]
        %v6059 = vld [vmem:[#allocation3 + $0x18] sm:$0x3f]
        %v6060 = vld [vmem:[#allocation3 + $0x20] sm:$0x3f]
        %v6061 = vld [vmem:[#allocation3 + $0x28] sm:$0x3f]
        %v6062 = vld [vmem:[#allocation3 + $0x30] sm:$0x3f]
        %v6063 = vld [vmem:[#allocation3 + $0x38] sm:$0x3f]
        %v6064 = vld [vmem:[#allocation3 + $0x40] sm:$0x3f]
        %6074 = vrot.lane.b32.xlu0 %v6056, 65
        %v6075 = vpop.permute.xlu0 %6074
        %6076 = vrot.lane.b32.xlu0 %v6057, 65
        %v6077 = vpop.permute.xlu0 %6076
        %6078 = vrot.lane.b32.xlu0 %v6058, 65
        %v6079 = vpop.permute.xlu0 %6078
        %6080 = vrot.lane.b32.xlu0 %v6059, 65
        %v6081 = vpop.permute.xlu0 %6080
        %6082 = vrot.lane.b32.xlu0 %v6060, 65
        %v6083 = vpop.permute.xlu0 %6082
        %6084 = vrot.lane.b32.xlu0 %v6061, 65
        %v6085 = vpop.permute.xlu0 %6084
        %6086 = vrot.lane.b32.xlu0 %v6062, 65
        %v6087 = vpop.permute.xlu0 %6086
        %6088 = vrot.lane.b32.xlu0 %v6063, 65
        %v6089 = vpop.permute.xlu0 %6088
        %6090 = vrot.lane.b32.xlu0 %v6064, 65
        %v6091 = vpop.permute.xlu0 %6090
        %v6092 = vsel %vm1233, %v6075, %v6077
        %v6093 = vsel %vm1233, %v6077, %v6079
        %v6094 = vsel %vm1233, %v6079, %v6081
        %v6095 = vsel %vm1233, %v6081, %v6083
        %v6096 = vsel %vm1233, %v6083, %v6085
        %v6097 = vsel %vm1233, %v6085, %v6087
        %v6098 = vsel %vm1233, %v6087, %v6089
        %v6099 = vsel %vm1233, %v6089, %v6091
        %v6108 = vsel %vm1198, %v6092, 0.0
        %v6109 = vsel %vm1199, %v6093, 0.0
        %v6110 = vsel %vm1200, %v6094, 0.0
        %v6111 = vsel %vm1201, %v6095, 0.0
        %v6112 = vsel %vm1202, %v6096, 0.0
        %v6113 = vsel %vm1203, %v6097, 0.0
        %v6114 = vsel %vm1204, %v6098, 0.0
        %v6115 = vsel %vm1205, %v6099, 0.0
        %6116 = vst [vmem:[#allocation5 + $0x40] sm:$0x3f] %v6108
        %6117 = vst [vmem:[#allocation5 + $0x48] sm:$0x3f] %v6109
        %6118 = vst [vmem:[#allocation5 + $0x50] sm:$0x3f] %v6110
        %6119 = vst [vmem:[#allocation5 + $0x58] sm:$0x3f] %v6111
        %6120 = vst [vmem:[#allocation5 + $0x60] sm:$0x3f] %v6112
        %6121 = vst [vmem:[#allocation5 + $0x68] sm:$0x3f] %v6113
        %6122 = vst [vmem:[#allocation5 + $0x70] sm:$0x3f] %v6114
        %6123 = vst [vmem:[#allocation5 + $0x78] sm:$0x3f] %v6115
        %v6124 = vld [vmem:[#allocation3] sm:$0x3f]
        %v6125 = vld [vmem:[#allocation3 + $0x8] sm:$0x3f]
        %v6126 = vld [vmem:[#allocation3 + $0x10] sm:$0x3f]
        %v6127 = vld [vmem:[#allocation3 + $0x18] sm:$0x3f]
        %v6128 = vld [vmem:[#allocation3 + $0x20] sm:$0x3f]
        %v6129 = vld [vmem:[#allocation3 + $0x28] sm:$0x3f]
        %v6130 = vld [vmem:[#allocation3 + $0x30] sm:$0x3f]
        %v6131 = vld [vmem:[#allocation3 + $0x38] sm:$0x3f]
        %v6132 = vld [vmem:[#allocation3 + $0x40] sm:$0x3f]
        %6142 = vrot.lane.b32.xlu0 %v6124, 33
        %v6143 = vpop.permute.xlu0 %6142
        %6144 = vrot.lane.b32.xlu0 %v6125, 33
        %v6145 = vpop.permute.xlu0 %6144
        %6146 = vrot.lane.b32.xlu0 %v6126, 33
        %v6147 = vpop.permute.xlu0 %6146
        %6148 = vrot.lane.b32.xlu0 %v6127, 33
        %v6149 = vpop.permute.xlu0 %6148
        %6150 = vrot.lane.b32.xlu0 %v6128, 33
        %v6151 = vpop.permute.xlu0 %6150
        %6152 = vrot.lane.b32.xlu0 %v6129, 33
        %v6153 = vpop.permute.xlu0 %6152
        %6154 = vrot.lane.b32.xlu0 %v6130, 33
        %v6155 = vpop.permute.xlu0 %6154
        %6156 = vrot.lane.b32.xlu0 %v6131, 33
        %v6157 = vpop.permute.xlu0 %6156
        %6158 = vrot.lane.b32.xlu0 %v6132, 33
        %v6159 = vpop.permute.xlu0 %6158
        %v6160 = vsel %vm1322, %v6143, %v6145
        %v6161 = vsel %vm1322, %v6145, %v6147
        %v6162 = vsel %vm1322, %v6147, %v6149
        %v6163 = vsel %vm1322, %v6149, %v6151
        %v6164 = vsel %vm1322, %v6151, %v6153
        %v6165 = vsel %vm1322, %v6153, %v6155
        %v6166 = vsel %vm1322, %v6155, %v6157
        %v6167 = vsel %vm1322, %v6157, %v6159
        %v6176 = vsel %vm1198, %v6160, 0.0
        %v6177 = vsel %vm1199, %v6161, 0.0
        %v6178 = vsel %vm1200, %v6162, 0.0
        %v6179 = vsel %vm1201, %v6163, 0.0
        %v6180 = vsel %vm1202, %v6164, 0.0
        %v6181 = vsel %vm1203, %v6165, 0.0
        %v6182 = vsel %vm1204, %v6166, 0.0
        %v6183 = vsel %vm1205, %v6167, 0.0
        %6184 = vst [vmem:[#allocation5 + $0x180] sm:$0x3f] %v6176
        %6185 = vst [vmem:[#allocation5 + $0x188] sm:$0x3f] %v6177
        %6186 = vst [vmem:[#allocation5 + $0x190] sm:$0x3f] %v6178
        %6187 = vst [vmem:[#allocation5 + $0x198] sm:$0x3f] %v6179
        %6188 = vst [vmem:[#allocation5 + $0x1a0] sm:$0x3f] %v6180
        %6189 = vst [vmem:[#allocation5 + $0x1a8] sm:$0x3f] %v6181
        %6190 = vst [vmem:[#allocation5 + $0x1b0] sm:$0x3f] %v6182
        %6191 = vst [vmem:[#allocation5 + $0x1b8] sm:$0x3f] %v6183
        %v6192 = vld [vmem:[#allocation3] sm:$0x3f]
        %v6193 = vld [vmem:[#allocation3 + $0x8] sm:$0x3f]
        %v6194 = vld [vmem:[#allocation3 + $0x10] sm:$0x3f]
        %v6195 = vld [vmem:[#allocation3 + $0x18] sm:$0x3f]
        %v6196 = vld [vmem:[#allocation3 + $0x20] sm:$0x3f]
        %v6197 = vld [vmem:[#allocation3 + $0x28] sm:$0x3f]
        %v6198 = vld [vmem:[#allocation3 + $0x30] sm:$0x3f]
        %v6199 = vld [vmem:[#allocation3 + $0x38] sm:$0x3f]
        %v6200 = vld [vmem:[#allocation3 + $0x40] sm:$0x3f]
        %6210 = vrot.lane.b32.xlu0 %v6192, 1
        %v6211 = vpop.permute.xlu0 %6210
        %6212 = vrot.lane.b32.xlu0 %v6193, 1
        %v6213 = vpop.permute.xlu0 %6212
        %6214 = vrot.lane.b32.xlu0 %v6194, 1
        %v6215 = vpop.permute.xlu0 %6214
        %6216 = vrot.lane.b32.xlu0 %v6195, 1
        %v6217 = vpop.permute.xlu0 %6216
        %6218 = vrot.lane.b32.xlu0 %v6196, 1
        %v6219 = vpop.permute.xlu0 %6218
        %6220 = vrot.lane.b32.xlu0 %v6197, 1
        %v6221 = vpop.permute.xlu0 %6220
        %6222 = vrot.lane.b32.xlu0 %v6198, 1
        %v6223 = vpop.permute.xlu0 %6222
        %6224 = vrot.lane.b32.xlu0 %v6199, 1
        %v6225 = vpop.permute.xlu0 %6224
        %6226 = vrot.lane.b32.xlu0 %v6200, 1
        %v6227 = vpop.permute.xlu0 %6226
        %v6228 = vsel %vm1411, %v6211, %v6213
        %v6229 = vsel %vm1411, %v6213, %v6215
        %v6230 = vsel %vm1411, %v6215, %v6217
        %v6231 = vsel %vm1411, %v6217, %v6219
        %v6232 = vsel %vm1411, %v6219, %v6221
        %v6233 = vsel %vm1411, %v6221, %v6223
        %v6234 = vsel %vm1411, %v6223, %v6225
        %v6235 = vsel %vm1411, %v6225, %v6227
        %v6244 = vsel %vm1198, %v6228, 0.0
        %v6245 = vsel %vm1199, %v6229, 0.0
        %v6246 = vsel %vm1200, %v6230, 0.0
        %v6247 = vsel %vm1201, %v6231, 0.0
        %v6248 = vsel %vm1202, %v6232, 0.0
        %v6249 = vsel %vm1203, %v6233, 0.0
        %v6250 = vsel %vm1204, %v6234, 0.0
        %v6251 = vsel %vm1205, %v6235, 0.0
        %6252 = vst [vmem:[#allocation5 + $0x2c0] sm:$0x3f] %v6244
        %6253 = vst [vmem:[#allocation5 + $0x2c8] sm:$0x3f] %v6245
        %6254 = vst [vmem:[#allocation5 + $0x2d0] sm:$0x3f] %v6246
        %6255 = vst [vmem:[#allocation5 + $0x2d8] sm:$0x3f] %v6247
        %6256 = vst [vmem:[#allocation5 + $0x2e0] sm:$0x3f] %v6248
        %6257 = vst [vmem:[#allocation5 + $0x2e8] sm:$0x3f] %v6249
        %6258 = vst [vmem:[#allocation5 + $0x2f0] sm:$0x3f] %v6250
        %6259 = vst [vmem:[#allocation5 + $0x2f8] sm:$0x3f] %v6251
        %v6260 = vld [vmem:[#allocation3 + $0x8] sm:$0x3f]
        %v6261 = vld [vmem:[#allocation3 + $0x10] sm:$0x3f]
        %v6262 = vld [vmem:[#allocation3 + $0x18] sm:$0x3f]
        %v6263 = vld [vmem:[#allocation3 + $0x20] sm:$0x3f]
        %v6264 = vld [vmem:[#allocation3 + $0x28] sm:$0x3f]
        %v6265 = vld [vmem:[#allocation3 + $0x30] sm:$0x3f]
        %v6266 = vld [vmem:[#allocation3 + $0x38] sm:$0x3f]
        %v6267 = vld [vmem:[#allocation3 + $0x40] sm:$0x3f]
        %v6268 = vld [vmem:[#allocation3 + $0x48] sm:$0x3f]
        %6278 = vrot.lane.b32.xlu0 %v6260, 97
        %v6279 = vpop.permute.xlu0 %6278
        %6280 = vrot.lane.b32.xlu0 %v6261, 97
        %v6281 = vpop.permute.xlu0 %6280
        %6282 = vrot.lane.b32.xlu0 %v6262, 97
        %v6283 = vpop.permute.xlu0 %6282
        %6284 = vrot.lane.b32.xlu0 %v6263, 97
        %v6285 = vpop.permute.xlu0 %6284
        %6286 = vrot.lane.b32.xlu0 %v6264, 97
        %v6287 = vpop.permute.xlu0 %6286
        %6288 = vrot.lane.b32.xlu0 %v6265, 97
        %v6289 = vpop.permute.xlu0 %6288
        %6290 = vrot.lane.b32.xlu0 %v6266, 97
        %v6291 = vpop.permute.xlu0 %6290
        %6292 = vrot.lane.b32.xlu0 %v6267, 97
        %v6293 = vpop.permute.xlu0 %6292
        %6294 = vrot.lane.b32.xlu0 %v6268, 97
        %v6295 = vpop.permute.xlu0 %6294
        %v6296 = vsel %vm1500, %v6279, %v6281
        %v6297 = vsel %vm1500, %v6281, %v6283
        %v6298 = vsel %vm1500, %v6283, %v6285
        %v6299 = vsel %vm1500, %v6285, %v6287
        %v6300 = vsel %vm1500, %v6287, %v6289
        %v6301 = vsel %vm1500, %v6289, %v6291
        %v6302 = vsel %vm1500, %v6291, %v6293
        %v6303 = vsel %vm1500, %v6293, %v6295
        %v6312 = vsel %vm1198, %v6296, 0.0
        %v6313 = vsel %vm1199, %v6297, 0.0
        %v6314 = vsel %vm1200, %v6298, 0.0
        %v6315 = vsel %vm1201, %v6299, 0.0
        %v6316 = vsel %vm1202, %v6300, 0.0
        %v6317 = vsel %vm1203, %v6301, 0.0
        %v6318 = vsel %vm1204, %v6302, 0.0
        %v6319 = vsel %vm1205, %v6303, 0.0
        %6320 = vst [vmem:[#allocation5 + $0x400] sm:$0x3f] %v6312
        %6321 = vst [vmem:[#allocation5 + $0x408] sm:$0x3f] %v6313
        %6322 = vst [vmem:[#allocation5 + $0x410] sm:$0x3f] %v6314
        %6323 = vst [vmem:[#allocation5 + $0x418] sm:$0x3f] %v6315
        %6324 = vst [vmem:[#allocation5 + $0x420] sm:$0x3f] %v6316
        %6325 = vst [vmem:[#allocation5 + $0x428] sm:$0x3f] %v6317
        %6326 = vst [vmem:[#allocation5 + $0x430] sm:$0x3f] %v6318
        %6327 = vst [vmem:[#allocation5 + $0x438] sm:$0x3f] %v6319
        %v6328 = vld [vmem:[#allocation3 + $0x8] sm:$0x3f]
        %v6329 = vld [vmem:[#allocation3 + $0x10] sm:$0x3f]
        %v6330 = vld [vmem:[#allocation3 + $0x18] sm:$0x3f]
        %v6331 = vld [vmem:[#allocation3 + $0x20] sm:$0x3f]
        %v6332 = vld [vmem:[#allocation3 + $0x28] sm:$0x3f]
        %v6333 = vld [vmem:[#allocation3 + $0x30] sm:$0x3f]
        %v6334 = vld [vmem:[#allocation3 + $0x38] sm:$0x3f]
        %v6335 = vld [vmem:[#allocation3 + $0x40] sm:$0x3f]
        %v6336 = vld [vmem:[#allocation3 + $0x48] sm:$0x3f]
        %6346 = vrot.lane.b32.xlu0 %v6328, 65
        %v6347 = vpop.permute.xlu0 %6346
        %6348 = vrot.lane.b32.xlu0 %v6329, 65
        %v6349 = vpop.permute.xlu0 %6348
        %6350 = vrot.lane.b32.xlu0 %v6330, 65
        %v6351 = vpop.permute.xlu0 %6350
        %6352 = vrot.lane.b32.xlu0 %v6331, 65
        %v6353 = vpop.permute.xlu0 %6352
        %6354 = vrot.lane.b32.xlu0 %v6332, 65
        %v6355 = vpop.permute.xlu0 %6354
        %6356 = vrot.lane.b32.xlu0 %v6333, 65
        %v6357 = vpop.permute.xlu0 %6356
        %6358 = vrot.lane.b32.xlu0 %v6334, 65
        %v6359 = vpop.permute.xlu0 %6358
        %6360 = vrot.lane.b32.xlu0 %v6335, 65
        %v6361 = vpop.permute.xlu0 %6360
        %6362 = vrot.lane.b32.xlu0 %v6336, 65
        %v6363 = vpop.permute.xlu0 %6362
        %v6364 = vsel %vm1233, %v6347, %v6349
        %v6365 = vsel %vm1233, %v6349, %v6351
        %v6366 = vsel %vm1233, %v6351, %v6353
        %v6367 = vsel %vm1233, %v6353, %v6355
        %v6368 = vsel %vm1233, %v6355, %v6357
        %v6369 = vsel %vm1233, %v6357, %v6359
        %v6370 = vsel %vm1233, %v6359, %v6361
        %v6371 = vsel %vm1233, %v6361, %v6363
        %v6380 = vsel %vm1198, %v6364, 0.0
        %v6381 = vsel %vm1199, %v6365, 0.0
        %v6382 = vsel %vm1200, %v6366, 0.0
        %v6383 = vsel %vm1201, %v6367, 0.0
        %v6384 = vsel %vm1202, %v6368, 0.0
        %v6385 = vsel %vm1203, %v6369, 0.0
        %v6386 = vsel %vm1204, %v6370, 0.0
        %v6387 = vsel %vm1205, %v6371, 0.0
        %6388 = vst [vmem:[#allocation5 + $0x540] sm:$0x3f] %v6380
        %6389 = vst [vmem:[#allocation5 + $0x548] sm:$0x3f] %v6381
        %6390 = vst [vmem:[#allocation5 + $0x550] sm:$0x3f] %v6382
        %6391 = vst [vmem:[#allocation5 + $0x558] sm:$0x3f] %v6383
        %6392 = vst [vmem:[#allocation5 + $0x560] sm:$0x3f] %v6384
        %6393 = vst [vmem:[#allocation5 + $0x568] sm:$0x3f] %v6385
        %6394 = vst [vmem:[#allocation5 + $0x570] sm:$0x3f] %v6386
        %6395 = vst [vmem:[#allocation5 + $0x578] sm:$0x3f] %v6387
        %v6396 = vld [vmem:[#allocation3] sm:$0x3f]
        %v6397 = vld [vmem:[#allocation3 + $0x8] sm:$0x3f]
        %v6398 = vld [vmem:[#allocation3 + $0x10] sm:$0x3f]
        %v6399 = vld [vmem:[#allocation3 + $0x18] sm:$0x3f]
        %v6400 = vld [vmem:[#allocation3 + $0x20] sm:$0x3f]
        %v6401 = vld [vmem:[#allocation3 + $0x28] sm:$0x3f]
        %v6402 = vld [vmem:[#allocation3 + $0x30] sm:$0x3f]
        %v6403 = vld [vmem:[#allocation3 + $0x38] sm:$0x3f]
        %v6404 = vld [vmem:[#allocation3 + $0x40] sm:$0x3f]
        %6414 = vrot.lane.b32.xlu0 %v6396, 64
        %v6415 = vpop.permute.xlu0 %6414
        %6416 = vrot.lane.b32.xlu0 %v6397, 64
        %v6417 = vpop.permute.xlu0 %6416
        %6418 = vrot.lane.b32.xlu0 %v6398, 64
        %v6419 = vpop.permute.xlu0 %6418
        %6420 = vrot.lane.b32.xlu0 %v6399, 64
        %v6421 = vpop.permute.xlu0 %6420
        %6422 = vrot.lane.b32.xlu0 %v6400, 64
        %v6423 = vpop.permute.xlu0 %6422
        %6424 = vrot.lane.b32.xlu0 %v6401, 64
        %v6425 = vpop.permute.xlu0 %6424
        %6426 = vrot.lane.b32.xlu0 %v6402, 64
        %v6427 = vpop.permute.xlu0 %6426
        %6428 = vrot.lane.b32.xlu0 %v6403, 64
        %v6429 = vpop.permute.xlu0 %6428
        %6430 = vrot.lane.b32.xlu0 %v6404, 64
        %v6431 = vpop.permute.xlu0 %6430
        %v6432 = vsel %vm1717, %v6415, %v6417
        %v6433 = vsel %vm1717, %v6417, %v6419
        %v6434 = vsel %vm1717, %v6419, %v6421
        %v6435 = vsel %vm1717, %v6421, %v6423
        %v6436 = vsel %vm1717, %v6423, %v6425
        %v6437 = vsel %vm1717, %v6425, %v6427
        %v6438 = vsel %vm1717, %v6427, %v6429
        %v6439 = vsel %vm1717, %v6429, %v6431
        %v6448 = vsel %vm1682, %v6432, 0.0
        %v6449 = vsel %vm1683, %v6433, 0.0
        %v6450 = vsel %vm1684, %v6434, 0.0
        %v6451 = vsel %vm1685, %v6435, 0.0
        %v6452 = vsel %vm1686, %v6436, 0.0
        %v6453 = vsel %vm1687, %v6437, 0.0
        %v6454 = vsel %vm1688, %v6438, 0.0
        %v6455 = vsel %vm1689, %v6439, 0.0
        %6456 = vst [vmem:[#allocation5 + $0x80] sm:$0x3f] %v6448
        %6457 = vst [vmem:[#allocation5 + $0x88] sm:$0x3f] %v6449
        %6458 = vst [vmem:[#allocation5 + $0x90] sm:$0x3f] %v6450
        %6459 = vst [vmem:[#allocation5 + $0x98] sm:$0x3f] %v6451
        %6460 = vst [vmem:[#allocation5 + $0xa0] sm:$0x3f] %v6452
        %6461 = vst [vmem:[#allocation5 + $0xa8] sm:$0x3f] %v6453
        %6462 = vst [vmem:[#allocation5 + $0xb0] sm:$0x3f] %v6454
        %6463 = vst [vmem:[#allocation5 + $0xb8] sm:$0x3f] %v6455
        %v6464 = vld [vmem:[#allocation3] sm:$0x3f]
        %v6465 = vld [vmem:[#allocation3 + $0x8] sm:$0x3f]
        %v6466 = vld [vmem:[#allocation3 + $0x10] sm:$0x3f]
        %v6467 = vld [vmem:[#allocation3 + $0x18] sm:$0x3f]
        %v6468 = vld [vmem:[#allocation3 + $0x20] sm:$0x3f]
        %v6469 = vld [vmem:[#allocation3 + $0x28] sm:$0x3f]
        %v6470 = vld [vmem:[#allocation3 + $0x30] sm:$0x3f]
        %v6471 = vld [vmem:[#allocation3 + $0x38] sm:$0x3f]
        %v6472 = vld [vmem:[#allocation3 + $0x40] sm:$0x3f]
        %6482 = vrot.lane.b32.xlu0 %v6464, 32
        %v6483 = vpop.permute.xlu0 %6482
        %6484 = vrot.lane.b32.xlu0 %v6465, 32
        %v6485 = vpop.permute.xlu0 %6484
        %6486 = vrot.lane.b32.xlu0 %v6466, 32
        %v6487 = vpop.permute.xlu0 %6486
        %6488 = vrot.lane.b32.xlu0 %v6467, 32
        %v6489 = vpop.permute.xlu0 %6488
        %6490 = vrot.lane.b32.xlu0 %v6468, 32
        %v6491 = vpop.permute.xlu0 %6490
        %6492 = vrot.lane.b32.xlu0 %v6469, 32
        %v6493 = vpop.permute.xlu0 %6492
        %6494 = vrot.lane.b32.xlu0 %v6470, 32
        %v6495 = vpop.permute.xlu0 %6494
        %6496 = vrot.lane.b32.xlu0 %v6471, 32
        %v6497 = vpop.permute.xlu0 %6496
        %6498 = vrot.lane.b32.xlu0 %v6472, 32
        %v6499 = vpop.permute.xlu0 %6498
        %v6500 = vsel %vm1806, %v6483, %v6485
        %v6501 = vsel %vm1806, %v6485, %v6487
        %v6502 = vsel %vm1806, %v6487, %v6489
        %v6503 = vsel %vm1806, %v6489, %v6491
        %v6504 = vsel %vm1806, %v6491, %v6493
        %v6505 = vsel %vm1806, %v6493, %v6495
        %v6506 = vsel %vm1806, %v6495, %v6497
        %v6507 = vsel %vm1806, %v6497, %v6499
        %v6516 = vsel %vm1682, %v6500, 0.0
        %v6517 = vsel %vm1683, %v6501, 0.0
        %v6518 = vsel %vm1684, %v6502, 0.0
        %v6519 = vsel %vm1685, %v6503, 0.0
        %v6520 = vsel %vm1686, %v6504, 0.0
        %v6521 = vsel %vm1687, %v6505, 0.0
        %v6522 = vsel %vm1688, %v6506, 0.0
        %v6523 = vsel %vm1689, %v6507, 0.0
        %6524 = vst [vmem:[#allocation5 + $0x1c0] sm:$0x3f] %v6516
        %6525 = vst [vmem:[#allocation5 + $0x1c8] sm:$0x3f] %v6517
        %6526 = vst [vmem:[#allocation5 + $0x1d0] sm:$0x3f] %v6518
        %6527 = vst [vmem:[#allocation5 + $0x1d8] sm:$0x3f] %v6519
        %6528 = vst [vmem:[#allocation5 + $0x1e0] sm:$0x3f] %v6520
        %6529 = vst [vmem:[#allocation5 + $0x1e8] sm:$0x3f] %v6521
        %6530 = vst [vmem:[#allocation5 + $0x1f0] sm:$0x3f] %v6522
        %6531 = vst [vmem:[#allocation5 + $0x1f8] sm:$0x3f] %v6523
        %v6532 = vld [vmem:[#allocation3 + $0x8] sm:$0x3f]
        %v6533 = vld [vmem:[#allocation3 + $0x10] sm:$0x3f]
        %v6534 = vld [vmem:[#allocation3 + $0x18] sm:$0x3f]
        %v6535 = vld [vmem:[#allocation3 + $0x20] sm:$0x3f]
        %v6536 = vld [vmem:[#allocation3 + $0x28] sm:$0x3f]
        %v6537 = vld [vmem:[#allocation3 + $0x30] sm:$0x3f]
        %v6538 = vld [vmem:[#allocation3 + $0x38] sm:$0x3f]
        %v6539 = vld [vmem:[#allocation3 + $0x40] sm:$0x3f]
        %v6540 = vsel %vm1682, %v6532, 0.0
        %v6541 = vsel %vm1683, %v6533, 0.0
        %v6542 = vsel %vm1684, %v6534, 0.0
        %v6543 = vsel %vm1685, %v6535, 0.0
        %v6544 = vsel %vm1686, %v6536, 0.0
        %v6545 = vsel %vm1687, %v6537, 0.0
        %v6546 = vsel %vm1688, %v6538, 0.0
        %v6547 = vsel %vm1689, %v6539, 0.0
        %6548 = vst [vmem:[#allocation5 + $0x300] sm:$0x3f] %v6540
        %6549 = vst [vmem:[#allocation5 + $0x308] sm:$0x3f] %v6541
        %6550 = vst [vmem:[#allocation5 + $0x310] sm:$0x3f] %v6542
        %6551 = vst [vmem:[#allocation5 + $0x318] sm:$0x3f] %v6543
        %6552 = vst [vmem:[#allocation5 + $0x320] sm:$0x3f] %v6544
        %6553 = vst [vmem:[#allocation5 + $0x328] sm:$0x3f] %v6545
        %6554 = vst [vmem:[#allocation5 + $0x330] sm:$0x3f] %v6546
        %6555 = vst [vmem:[#allocation5 + $0x338] sm:$0x3f] %v6547
        %v6556 = vld [vmem:[#allocation3 + $0x8] sm:$0x3f]
        %v6557 = vld [vmem:[#allocation3 + $0x10] sm:$0x3f]
        %v6558 = vld [vmem:[#allocation3 + $0x18] sm:$0x3f]
        %v6559 = vld [vmem:[#allocation3 + $0x20] sm:$0x3f]
        %v6560 = vld [vmem:[#allocation3 + $0x28] sm:$0x3f]
        %v6561 = vld [vmem:[#allocation3 + $0x30] sm:$0x3f]
        %v6562 = vld [vmem:[#allocation3 + $0x38] sm:$0x3f]
        %v6563 = vld [vmem:[#allocation3 + $0x40] sm:$0x3f]
        %v6564 = vld [vmem:[#allocation3 + $0x48] sm:$0x3f]
        %6574 = vrot.lane.b32.xlu0 %v6556, 96
        %v6575 = vpop.permute.xlu0 %6574
        %6576 = vrot.lane.b32.xlu0 %v6557, 96
        %v6577 = vpop.permute.xlu0 %6576
        %6578 = vrot.lane.b32.xlu0 %v6558, 96
        %v6579 = vpop.permute.xlu0 %6578
        %6580 = vrot.lane.b32.xlu0 %v6559, 96
        %v6581 = vpop.permute.xlu0 %6580
        %6582 = vrot.lane.b32.xlu0 %v6560, 96
        %v6583 = vpop.permute.xlu0 %6582
        %6584 = vrot.lane.b32.xlu0 %v6561, 96
        %v6585 = vpop.permute.xlu0 %6584
        %6586 = vrot.lane.b32.xlu0 %v6562, 96
        %v6587 = vpop.permute.xlu0 %6586
        %6588 = vrot.lane.b32.xlu0 %v6563, 96
        %v6589 = vpop.permute.xlu0 %6588
        %6590 = vrot.lane.b32.xlu0 %v6564, 96
        %v6591 = vpop.permute.xlu0 %6590
        %v6592 = vsel %vm1951, %v6575, %v6577
        %v6593 = vsel %vm1951, %v6577, %v6579
        %v6594 = vsel %vm1951, %v6579, %v6581
        %v6595 = vsel %vm1951, %v6581, %v6583
        %v6596 = vsel %vm1951, %v6583, %v6585
        %v6597 = vsel %vm1951, %v6585, %v6587
        %v6598 = vsel %vm1951, %v6587, %v6589
        %v6599 = vsel %vm1951, %v6589, %v6591
        %v6608 = vsel %vm1682, %v6592, 0.0
        %v6609 = vsel %vm1683, %v6593, 0.0
        %v6610 = vsel %vm1684, %v6594, 0.0
        %v6611 = vsel %vm1685, %v6595, 0.0
        %v6612 = vsel %vm1686, %v6596, 0.0
        %v6613 = vsel %vm1687, %v6597, 0.0
        %v6614 = vsel %vm1688, %v6598, 0.0
        %v6615 = vsel %vm1689, %v6599, 0.0
        %6616 = vst [vmem:[#allocation5 + $0x440] sm:$0x3f] %v6608
        %6617 = vst [vmem:[#allocation5 + $0x448] sm:$0x3f] %v6609
        %6618 = vst [vmem:[#allocation5 + $0x450] sm:$0x3f] %v6610
        %6619 = vst [vmem:[#allocation5 + $0x458] sm:$0x3f] %v6611
        %6620 = vst [vmem:[#allocation5 + $0x460] sm:$0x3f] %v6612
        %6621 = vst [vmem:[#allocation5 + $0x468] sm:$0x3f] %v6613
        %6622 = vst [vmem:[#allocation5 + $0x470] sm:$0x3f] %v6614
        %6623 = vst [vmem:[#allocation5 + $0x478] sm:$0x3f] %v6615
        %v6624 = vld [vmem:[#allocation3 + $0x8] sm:$0x3f]
        %v6625 = vld [vmem:[#allocation3 + $0x10] sm:$0x3f]
        %v6626 = vld [vmem:[#allocation3 + $0x18] sm:$0x3f]
        %v6627 = vld [vmem:[#allocation3 + $0x20] sm:$0x3f]
        %v6628 = vld [vmem:[#allocation3 + $0x28] sm:$0x3f]
        %v6629 = vld [vmem:[#allocation3 + $0x30] sm:$0x3f]
        %v6630 = vld [vmem:[#allocation3 + $0x38] sm:$0x3f]
        %v6631 = vld [vmem:[#allocation3 + $0x40] sm:$0x3f]
        %v6632 = vld [vmem:[#allocation3 + $0x48] sm:$0x3f]
        %6642 = vrot.lane.b32.xlu0 %v6624, 64
        %v6643 = vpop.permute.xlu0 %6642
        %6644 = vrot.lane.b32.xlu0 %v6625, 64
        %v6645 = vpop.permute.xlu0 %6644
        %6646 = vrot.lane.b32.xlu0 %v6626, 64
        %v6647 = vpop.permute.xlu0 %6646
        %6648 = vrot.lane.b32.xlu0 %v6627, 64
        %v6649 = vpop.permute.xlu0 %6648
        %6650 = vrot.lane.b32.xlu0 %v6628, 64
        %v6651 = vpop.permute.xlu0 %6650
        %6652 = vrot.lane.b32.xlu0 %v6629, 64
        %v6653 = vpop.permute.xlu0 %6652
        %6654 = vrot.lane.b32.xlu0 %v6630, 64
        %v6655 = vpop.permute.xlu0 %6654
        %6656 = vrot.lane.b32.xlu0 %v6631, 64
        %v6657 = vpop.permute.xlu0 %6656
        %6658 = vrot.lane.b32.xlu0 %v6632, 64
        %v6659 = vpop.permute.xlu0 %6658
        %v6660 = vsel %vm1717, %v6643, %v6645
        %v6661 = vsel %vm1717, %v6645, %v6647
        %v6662 = vsel %vm1717, %v6647, %v6649
        %v6663 = vsel %vm1717, %v6649, %v6651
        %v6664 = vsel %vm1717, %v6651, %v6653
        %v6665 = vsel %vm1717, %v6653, %v6655
        %v6666 = vsel %vm1717, %v6655, %v6657
        %v6667 = vsel %vm1717, %v6657, %v6659
        %v6676 = vsel %vm1682, %v6660, 0.0
        %v6677 = vsel %vm1683, %v6661, 0.0
        %v6678 = vsel %vm1684, %v6662, 0.0
        %v6679 = vsel %vm1685, %v6663, 0.0
        %v6680 = vsel %vm1686, %v6664, 0.0
        %v6681 = vsel %vm1687, %v6665, 0.0
        %v6682 = vsel %vm1688, %v6666, 0.0
        %v6683 = vsel %vm1689, %v6667, 0.0
        %6684 = vst [vmem:[#allocation5 + $0x580] sm:$0x3f] %v6676
        %6685 = vst [vmem:[#allocation5 + $0x588] sm:$0x3f] %v6677
        %6686 = vst [vmem:[#allocation5 + $0x590] sm:$0x3f] %v6678
        %6687 = vst [vmem:[#allocation5 + $0x598] sm:$0x3f] %v6679
        %6688 = vst [vmem:[#allocation5 + $0x5a0] sm:$0x3f] %v6680
        %6689 = vst [vmem:[#allocation5 + $0x5a8] sm:$0x3f] %v6681
        %6690 = vst [vmem:[#allocation5 + $0x5b0] sm:$0x3f] %v6682
        %6691 = vst [vmem:[#allocation5 + $0x5b8] sm:$0x3f] %v6683
        %v6692 = vld [vmem:[#allocation3] sm:$0x3f]
        %v6693 = vld [vmem:[#allocation3 + $0x8] sm:$0x3f]
        %v6694 = vld [vmem:[#allocation3 + $0x10] sm:$0x3f]
        %v6695 = vld [vmem:[#allocation3 + $0x18] sm:$0x3f]
        %v6696 = vld [vmem:[#allocation3 + $0x20] sm:$0x3f]
        %v6697 = vld [vmem:[#allocation3 + $0x28] sm:$0x3f]
        %v6698 = vld [vmem:[#allocation3 + $0x30] sm:$0x3f]
        %v6699 = vld [vmem:[#allocation3 + $0x38] sm:$0x3f]
        %v6700 = vld [vmem:[#allocation3 + $0x40] sm:$0x3f]
        %6710 = vrot.lane.b32.xlu0 %v6692, 63
        %v6711 = vpop.permute.xlu0 %6710
        %6712 = vrot.lane.b32.xlu0 %v6693, 63
        %v6713 = vpop.permute.xlu0 %6712
        %6714 = vrot.lane.b32.xlu0 %v6694, 63
        %v6715 = vpop.permute.xlu0 %6714
        %6716 = vrot.lane.b32.xlu0 %v6695, 63
        %v6717 = vpop.permute.xlu0 %6716
        %6718 = vrot.lane.b32.xlu0 %v6696, 63
        %v6719 = vpop.permute.xlu0 %6718
        %6720 = vrot.lane.b32.xlu0 %v6697, 63
        %v6721 = vpop.permute.xlu0 %6720
        %6722 = vrot.lane.b32.xlu0 %v6698, 63
        %v6723 = vpop.permute.xlu0 %6722
        %6724 = vrot.lane.b32.xlu0 %v6699, 63
        %v6725 = vpop.permute.xlu0 %6724
        %6726 = vrot.lane.b32.xlu0 %v6700, 63
        %v6727 = vpop.permute.xlu0 %6726
        %v6728 = vsel %vm2176, %v6711, %v6713
        %v6729 = vsel %vm2176, %v6713, %v6715
        %v6730 = vsel %vm2176, %v6715, %v6717
        %v6731 = vsel %vm2176, %v6717, %v6719
        %v6732 = vsel %vm2176, %v6719, %v6721
        %v6733 = vsel %vm2176, %v6721, %v6723
        %v6734 = vsel %vm2176, %v6723, %v6725
        %v6735 = vsel %vm2176, %v6725, %v6727
        %v6744 = vsel %vm2141, %v6728, 0.0
        %v6745 = vsel %vm2142, %v6729, 0.0
        %v6746 = vsel %vm2143, %v6730, 0.0
        %v6747 = vsel %vm2144, %v6731, 0.0
        %v6748 = vsel %vm2145, %v6732, 0.0
        %v6749 = vsel %vm2146, %v6733, 0.0
        %v6750 = vsel %vm2147, %v6734, 0.0
        %v6751 = vsel %vm2148, %v6735, 0.0
        %6752 = vst [vmem:[#allocation5 + $0xc0] sm:$0x3f] %v6744
        %6753 = vst [vmem:[#allocation5 + $0xc8] sm:$0x3f] %v6745
        %6754 = vst [vmem:[#allocation5 + $0xd0] sm:$0x3f] %v6746
        %6755 = vst [vmem:[#allocation5 + $0xd8] sm:$0x3f] %v6747
        %6756 = vst [vmem:[#allocation5 + $0xe0] sm:$0x3f] %v6748
        %6757 = vst [vmem:[#allocation5 + $0xe8] sm:$0x3f] %v6749
        %6758 = vst [vmem:[#allocation5 + $0xf0] sm:$0x3f] %v6750
        %6759 = vst [vmem:[#allocation5 + $0xf8] sm:$0x3f] %v6751
        %v6760 = vld [vmem:[#allocation3] sm:$0x3f]
        %v6761 = vld [vmem:[#allocation3 + $0x8] sm:$0x3f]
        %v6762 = vld [vmem:[#allocation3 + $0x10] sm:$0x3f]
        %v6763 = vld [vmem:[#allocation3 + $0x18] sm:$0x3f]
        %v6764 = vld [vmem:[#allocation3 + $0x20] sm:$0x3f]
        %v6765 = vld [vmem:[#allocation3 + $0x28] sm:$0x3f]
        %v6766 = vld [vmem:[#allocation3 + $0x30] sm:$0x3f]
        %v6767 = vld [vmem:[#allocation3 + $0x38] sm:$0x3f]
        %v6768 = vld [vmem:[#allocation3 + $0x40] sm:$0x3f]
        %6778 = vrot.lane.b32.xlu0 %v6760, 31
        %v6779 = vpop.permute.xlu0 %6778
        %6780 = vrot.lane.b32.xlu0 %v6761, 31
        %v6781 = vpop.permute.xlu0 %6780
        %6782 = vrot.lane.b32.xlu0 %v6762, 31
        %v6783 = vpop.permute.xlu0 %6782
        %6784 = vrot.lane.b32.xlu0 %v6763, 31
        %v6785 = vpop.permute.xlu0 %6784
        %6786 = vrot.lane.b32.xlu0 %v6764, 31
        %v6787 = vpop.permute.xlu0 %6786
        %6788 = vrot.lane.b32.xlu0 %v6765, 31
        %v6789 = vpop.permute.xlu0 %6788
        %6790 = vrot.lane.b32.xlu0 %v6766, 31
        %v6791 = vpop.permute.xlu0 %6790
        %6792 = vrot.lane.b32.xlu0 %v6767, 31
        %v6793 = vpop.permute.xlu0 %6792
        %6794 = vrot.lane.b32.xlu0 %v6768, 31
        %v6795 = vpop.permute.xlu0 %6794
        %v6796 = vsel %vm2265, %v6779, %v6781
        %v6797 = vsel %vm2265, %v6781, %v6783
        %v6798 = vsel %vm2265, %v6783, %v6785
        %v6799 = vsel %vm2265, %v6785, %v6787
        %v6800 = vsel %vm2265, %v6787, %v6789
        %v6801 = vsel %vm2265, %v6789, %v6791
        %v6802 = vsel %vm2265, %v6791, %v6793
        %v6803 = vsel %vm2265, %v6793, %v6795
        %v6812 = vsel %vm2141, %v6796, 0.0
        %v6813 = vsel %vm2142, %v6797, 0.0
        %v6814 = vsel %vm2143, %v6798, 0.0
        %v6815 = vsel %vm2144, %v6799, 0.0
        %v6816 = vsel %vm2145, %v6800, 0.0
        %v6817 = vsel %vm2146, %v6801, 0.0
        %v6818 = vsel %vm2147, %v6802, 0.0
        %v6819 = vsel %vm2148, %v6803, 0.0
        %6820 = vst [vmem:[#allocation5 + $0x200] sm:$0x3f] %v6812
        %6821 = vst [vmem:[#allocation5 + $0x208] sm:$0x3f] %v6813
        %6822 = vst [vmem:[#allocation5 + $0x210] sm:$0x3f] %v6814
        %6823 = vst [vmem:[#allocation5 + $0x218] sm:$0x3f] %v6815
        %6824 = vst [vmem:[#allocation5 + $0x220] sm:$0x3f] %v6816
        %6825 = vst [vmem:[#allocation5 + $0x228] sm:$0x3f] %v6817
        %6826 = vst [vmem:[#allocation5 + $0x230] sm:$0x3f] %v6818
        %6827 = vst [vmem:[#allocation5 + $0x238] sm:$0x3f] %v6819
        %v6828 = vld [vmem:[#allocation3 + $0x8] sm:$0x3f]
        %v6829 = vld [vmem:[#allocation3 + $0x10] sm:$0x3f]
        %v6830 = vld [vmem:[#allocation3 + $0x18] sm:$0x3f]
        %v6831 = vld [vmem:[#allocation3 + $0x20] sm:$0x3f]
        %v6832 = vld [vmem:[#allocation3 + $0x28] sm:$0x3f]
        %v6833 = vld [vmem:[#allocation3 + $0x30] sm:$0x3f]
        %v6834 = vld [vmem:[#allocation3 + $0x38] sm:$0x3f]
        %v6835 = vld [vmem:[#allocation3 + $0x40] sm:$0x3f]
        %v6836 = vld [vmem:[#allocation3 + $0x48] sm:$0x3f]
        %6846 = vrot.lane.b32.xlu0 %v6828, 127
        %v6847 = vpop.permute.xlu0 %6846
        %6848 = vrot.lane.b32.xlu0 %v6829, 127
        %v6849 = vpop.permute.xlu0 %6848
        %6850 = vrot.lane.b32.xlu0 %v6830, 127
        %v6851 = vpop.permute.xlu0 %6850
        %6852 = vrot.lane.b32.xlu0 %v6831, 127
        %v6853 = vpop.permute.xlu0 %6852
        %6854 = vrot.lane.b32.xlu0 %v6832, 127
        %v6855 = vpop.permute.xlu0 %6854
        %6856 = vrot.lane.b32.xlu0 %v6833, 127
        %v6857 = vpop.permute.xlu0 %6856
        %6858 = vrot.lane.b32.xlu0 %v6834, 127
        %v6859 = vpop.permute.xlu0 %6858
        %6860 = vrot.lane.b32.xlu0 %v6835, 127
        %v6861 = vpop.permute.xlu0 %6860
        %6862 = vrot.lane.b32.xlu0 %v6836, 127
        %v6863 = vpop.permute.xlu0 %6862
        %v6864 = vsel %vm2354, %v6847, %v6849
        %v6865 = vsel %vm2354, %v6849, %v6851
        %v6866 = vsel %vm2354, %v6851, %v6853
        %v6867 = vsel %vm2354, %v6853, %v6855
        %v6868 = vsel %vm2354, %v6855, %v6857
        %v6869 = vsel %vm2354, %v6857, %v6859
        %v6870 = vsel %vm2354, %v6859, %v6861
        %v6871 = vsel %vm2354, %v6861, %v6863
        %v6880 = vsel %vm2141, %v6864, 0.0
        %v6881 = vsel %vm2142, %v6865, 0.0
        %v6882 = vsel %vm2143, %v6866, 0.0
        %v6883 = vsel %vm2144, %v6867, 0.0
        %v6884 = vsel %vm2145, %v6868, 0.0
        %v6885 = vsel %vm2146, %v6869, 0.0
        %v6886 = vsel %vm2147, %v6870, 0.0
        %v6887 = vsel %vm2148, %v6871, 0.0
        %6888 = vst [vmem:[#allocation5 + $0x340] sm:$0x3f] %v6880
        %6889 = vst [vmem:[#allocation5 + $0x348] sm:$0x3f] %v6881
        %6890 = vst [vmem:[#allocation5 + $0x350] sm:$0x3f] %v6882
        %6891 = vst [vmem:[#allocation5 + $0x358] sm:$0x3f] %v6883
        %6892 = vst [vmem:[#allocation5 + $0x360] sm:$0x3f] %v6884
        %6893 = vst [vmem:[#allocation5 + $0x368] sm:$0x3f] %v6885
        %6894 = vst [vmem:[#allocation5 + $0x370] sm:$0x3f] %v6886
        %6895 = vst [vmem:[#allocation5 + $0x378] sm:$0x3f] %v6887
        %v6896 = vld [vmem:[#allocation3 + $0x8] sm:$0x3f]
        %v6897 = vld [vmem:[#allocation3 + $0x10] sm:$0x3f]
        %v6898 = vld [vmem:[#allocation3 + $0x18] sm:$0x3f]
        %v6899 = vld [vmem:[#allocation3 + $0x20] sm:$0x3f]
        %v6900 = vld [vmem:[#allocation3 + $0x28] sm:$0x3f]
        %v6901 = vld [vmem:[#allocation3 + $0x30] sm:$0x3f]
        %v6902 = vld [vmem:[#allocation3 + $0x38] sm:$0x3f]
        %v6903 = vld [vmem:[#allocation3 + $0x40] sm:$0x3f]
        %v6904 = vld [vmem:[#allocation3 + $0x48] sm:$0x3f]
        %6914 = vrot.lane.b32.xlu0 %v6896, 95
        %v6915 = vpop.permute.xlu0 %6914
        %6916 = vrot.lane.b32.xlu0 %v6897, 95
        %v6917 = vpop.permute.xlu0 %6916
        %6918 = vrot.lane.b32.xlu0 %v6898, 95
        %v6919 = vpop.permute.xlu0 %6918
        %6920 = vrot.lane.b32.xlu0 %v6899, 95
        %v6921 = vpop.permute.xlu0 %6920
        %6922 = vrot.lane.b32.xlu0 %v6900, 95
        %v6923 = vpop.permute.xlu0 %6922
        %6924 = vrot.lane.b32.xlu0 %v6901, 95
        %v6925 = vpop.permute.xlu0 %6924
        %6926 = vrot.lane.b32.xlu0 %v6902, 95
        %v6927 = vpop.permute.xlu0 %6926
        %6928 = vrot.lane.b32.xlu0 %v6903, 95
        %v6929 = vpop.permute.xlu0 %6928
        %6930 = vrot.lane.b32.xlu0 %v6904, 95
        %v6931 = vpop.permute.xlu0 %6930
        %v6932 = vsel %vm2443, %v6915, %v6917
        %v6933 = vsel %vm2443, %v6917, %v6919
        %v6934 = vsel %vm2443, %v6919, %v6921
        %v6935 = vsel %vm2443, %v6921, %v6923
        %v6936 = vsel %vm2443, %v6923, %v6925
        %v6937 = vsel %vm2443, %v6925, %v6927
        %v6938 = vsel %vm2443, %v6927, %v6929
        %v6939 = vsel %vm2443, %v6929, %v6931
        %v6948 = vsel %vm2141, %v6932, 0.0
        %v6949 = vsel %vm2142, %v6933, 0.0
        %v6950 = vsel %vm2143, %v6934, 0.0
        %v6951 = vsel %vm2144, %v6935, 0.0
        %v6952 = vsel %vm2145, %v6936, 0.0
        %v6953 = vsel %vm2146, %v6937, 0.0
        %v6954 = vsel %vm2147, %v6938, 0.0
        %v6955 = vsel %vm2148, %v6939, 0.0
        %6956 = vst [vmem:[#allocation5 + $0x480] sm:$0x3f] %v6948
        %6957 = vst [vmem:[#allocation5 + $0x488] sm:$0x3f] %v6949
        %6958 = vst [vmem:[#allocation5 + $0x490] sm:$0x3f] %v6950
        %6959 = vst [vmem:[#allocation5 + $0x498] sm:$0x3f] %v6951
        %6960 = vst [vmem:[#allocation5 + $0x4a0] sm:$0x3f] %v6952
        %6961 = vst [vmem:[#allocation5 + $0x4a8] sm:$0x3f] %v6953
        %6962 = vst [vmem:[#allocation5 + $0x4b0] sm:$0x3f] %v6954
        %6963 = vst [vmem:[#allocation5 + $0x4b8] sm:$0x3f] %v6955
        %v6964 = vld [vmem:[#allocation3 + $0x8] sm:$0x3f]
        %v6965 = vld [vmem:[#allocation3 + $0x10] sm:$0x3f]
        %v6966 = vld [vmem:[#allocation3 + $0x18] sm:$0x3f]
        %v6967 = vld [vmem:[#allocation3 + $0x20] sm:$0x3f]
        %v6968 = vld [vmem:[#allocation3 + $0x28] sm:$0x3f]
        %v6969 = vld [vmem:[#allocation3 + $0x30] sm:$0x3f]
        %v6970 = vld [vmem:[#allocation3 + $0x38] sm:$0x3f]
        %v6971 = vld [vmem:[#allocation3 + $0x40] sm:$0x3f]
        %v6972 = vld [vmem:[#allocation3 + $0x48] sm:$0x3f]
        %6982 = vrot.lane.b32.xlu0 %v6964, 63
        %v6983 = vpop.permute.xlu0 %6982
        %6984 = vrot.lane.b32.xlu0 %v6965, 63
        %v6985 = vpop.permute.xlu0 %6984
        %6986 = vrot.lane.b32.xlu0 %v6966, 63
        %v6987 = vpop.permute.xlu0 %6986
        %6988 = vrot.lane.b32.xlu0 %v6967, 63
        %v6989 = vpop.permute.xlu0 %6988
        %6990 = vrot.lane.b32.xlu0 %v6968, 63
        %v6991 = vpop.permute.xlu0 %6990
        %6992 = vrot.lane.b32.xlu0 %v6969, 63
        %v6993 = vpop.permute.xlu0 %6992
        %6994 = vrot.lane.b32.xlu0 %v6970, 63
        %v6995 = vpop.permute.xlu0 %6994
        %6996 = vrot.lane.b32.xlu0 %v6971, 63
        %v6997 = vpop.permute.xlu0 %6996
        %6998 = vrot.lane.b32.xlu0 %v6972, 63
        %v6999 = vpop.permute.xlu0 %6998
        %v7000 = vsel %vm2176, %v6983, %v6985
        %v7001 = vsel %vm2176, %v6985, %v6987
        %v7002 = vsel %vm2176, %v6987, %v6989
        %v7003 = vsel %vm2176, %v6989, %v6991
        %v7004 = vsel %vm2176, %v6991, %v6993
        %v7005 = vsel %vm2176, %v6993, %v6995
        %v7006 = vsel %vm2176, %v6995, %v6997
        %v7007 = vsel %vm2176, %v6997, %v6999
        %v7016 = vsel %vm2141, %v7000, 0.0
        %v7017 = vsel %vm2142, %v7001, 0.0
        %v7018 = vsel %vm2143, %v7002, 0.0
        %v7019 = vsel %vm2144, %v7003, 0.0
        %v7020 = vsel %vm2145, %v7004, 0.0
        %v7021 = vsel %vm2146, %v7005, 0.0
        %v7022 = vsel %vm2147, %v7006, 0.0
        %v7023 = vsel %vm2148, %v7007, 0.0
        %7024 = vst [vmem:[#allocation5 + $0x5c0] sm:$0x3f] %v7016
        %7025 = vst [vmem:[#allocation5 + $0x5c8] sm:$0x3f] %v7017
        %7026 = vst [vmem:[#allocation5 + $0x5d0] sm:$0x3f] %v7018
        %7027 = vst [vmem:[#allocation5 + $0x5d8] sm:$0x3f] %v7019
        %7028 = vst [vmem:[#allocation5 + $0x5e0] sm:$0x3f] %v7020
        %7029 = vst [vmem:[#allocation5 + $0x5e8] sm:$0x3f] %v7021
        %7030 = vst [vmem:[#allocation5 + $0x5f0] sm:$0x3f] %v7022
        %7031 = vst [vmem:[#allocation5 + $0x5f8] sm:$0x3f] %v7023
        %v7032 = vld [vmem:[#allocation3] sm:$0x3f]
        %v7033 = vld [vmem:[#allocation3 + $0x8] sm:$0x3f]
        %v7034 = vld [vmem:[#allocation3 + $0x10] sm:$0x3f]
        %v7035 = vld [vmem:[#allocation3 + $0x18] sm:$0x3f]
        %v7036 = vld [vmem:[#allocation3 + $0x20] sm:$0x3f]
        %v7037 = vld [vmem:[#allocation3 + $0x28] sm:$0x3f]
        %v7038 = vld [vmem:[#allocation3 + $0x30] sm:$0x3f]
        %v7039 = vld [vmem:[#allocation3 + $0x38] sm:$0x3f]
        %v7040 = vld [vmem:[#allocation3 + $0x40] sm:$0x3f]
        %7050 = vrot.lane.b32.xlu0 %v7032, 62
        %v7051 = vpop.permute.xlu0 %7050
        %7052 = vrot.lane.b32.xlu0 %v7033, 62
        %v7053 = vpop.permute.xlu0 %7052
        %7054 = vrot.lane.b32.xlu0 %v7034, 62
        %v7055 = vpop.permute.xlu0 %7054
        %7056 = vrot.lane.b32.xlu0 %v7035, 62
        %v7057 = vpop.permute.xlu0 %7056
        %7058 = vrot.lane.b32.xlu0 %v7036, 62
        %v7059 = vpop.permute.xlu0 %7058
        %7060 = vrot.lane.b32.xlu0 %v7037, 62
        %v7061 = vpop.permute.xlu0 %7060
        %7062 = vrot.lane.b32.xlu0 %v7038, 62
        %v7063 = vpop.permute.xlu0 %7062
        %7064 = vrot.lane.b32.xlu0 %v7039, 62
        %v7065 = vpop.permute.xlu0 %7064
        %7066 = vrot.lane.b32.xlu0 %v7040, 62
        %v7067 = vpop.permute.xlu0 %7066
        %v7068 = vsel %vm2668, %v7051, %v7053
        %v7069 = vsel %vm2668, %v7053, %v7055
        %v7070 = vsel %vm2668, %v7055, %v7057
        %v7071 = vsel %vm2668, %v7057, %v7059
        %v7072 = vsel %vm2668, %v7059, %v7061
        %v7073 = vsel %vm2668, %v7061, %v7063
        %v7074 = vsel %vm2668, %v7063, %v7065
        %v7075 = vsel %vm2668, %v7065, %v7067
        %v7084 = vsel %vm2633, %v7068, 0.0
        %v7085 = vsel %vm2634, %v7069, 0.0
        %v7086 = vsel %vm2635, %v7070, 0.0
        %v7087 = vsel %vm2636, %v7071, 0.0
        %v7088 = vsel %vm2637, %v7072, 0.0
        %v7089 = vsel %vm2638, %v7073, 0.0
        %v7090 = vsel %vm2639, %v7074, 0.0
        %v7091 = vsel %vm2640, %v7075, 0.0
        %7092 = vst [vmem:[#allocation5 + $0x100] sm:$0x3f] %v7084
        %7093 = vst [vmem:[#allocation5 + $0x108] sm:$0x3f] %v7085
        %7094 = vst [vmem:[#allocation5 + $0x110] sm:$0x3f] %v7086
        %7095 = vst [vmem:[#allocation5 + $0x118] sm:$0x3f] %v7087
        %7096 = vst [vmem:[#allocation5 + $0x120] sm:$0x3f] %v7088
        %7097 = vst [vmem:[#allocation5 + $0x128] sm:$0x3f] %v7089
        %7098 = vst [vmem:[#allocation5 + $0x130] sm:$0x3f] %v7090
        %7099 = vst [vmem:[#allocation5 + $0x138] sm:$0x3f] %v7091
        %v7100 = vld [vmem:[#allocation3] sm:$0x3f]
        %v7101 = vld [vmem:[#allocation3 + $0x8] sm:$0x3f]
        %v7102 = vld [vmem:[#allocation3 + $0x10] sm:$0x3f]
        %v7103 = vld [vmem:[#allocation3 + $0x18] sm:$0x3f]
        %v7104 = vld [vmem:[#allocation3 + $0x20] sm:$0x3f]
        %v7105 = vld [vmem:[#allocation3 + $0x28] sm:$0x3f]
        %v7106 = vld [vmem:[#allocation3 + $0x30] sm:$0x3f]
        %v7107 = vld [vmem:[#allocation3 + $0x38] sm:$0x3f]
        %v7108 = vld [vmem:[#allocation3 + $0x40] sm:$0x3f]
        %7118 = vrot.lane.b32.xlu0 %v7100, 30
        %v7119 = vpop.permute.xlu0 %7118
        %7120 = vrot.lane.b32.xlu0 %v7101, 30
        %v7121 = vpop.permute.xlu0 %7120
        %7122 = vrot.lane.b32.xlu0 %v7102, 30
        %v7123 = vpop.permute.xlu0 %7122
        %7124 = vrot.lane.b32.xlu0 %v7103, 30
        %v7125 = vpop.permute.xlu0 %7124
        %7126 = vrot.lane.b32.xlu0 %v7104, 30
        %v7127 = vpop.permute.xlu0 %7126
        %7128 = vrot.lane.b32.xlu0 %v7105, 30
        %v7129 = vpop.permute.xlu0 %7128
        %7130 = vrot.lane.b32.xlu0 %v7106, 30
        %v7131 = vpop.permute.xlu0 %7130
        %7132 = vrot.lane.b32.xlu0 %v7107, 30
        %v7133 = vpop.permute.xlu0 %7132
        %7134 = vrot.lane.b32.xlu0 %v7108, 30
        %v7135 = vpop.permute.xlu0 %7134
        %v7136 = vsel %vm2757, %v7119, %v7121
        %v7137 = vsel %vm2757, %v7121, %v7123
        %v7138 = vsel %vm2757, %v7123, %v7125
        %v7139 = vsel %vm2757, %v7125, %v7127
        %v7140 = vsel %vm2757, %v7127, %v7129
        %v7141 = vsel %vm2757, %v7129, %v7131
        %v7142 = vsel %vm2757, %v7131, %v7133
        %v7143 = vsel %vm2757, %v7133, %v7135
        %v7152 = vsel %vm2633, %v7136, 0.0
        %v7153 = vsel %vm2634, %v7137, 0.0
        %v7154 = vsel %vm2635, %v7138, 0.0
        %v7155 = vsel %vm2636, %v7139, 0.0
        %v7156 = vsel %vm2637, %v7140, 0.0
        %v7157 = vsel %vm2638, %v7141, 0.0
        %v7158 = vsel %vm2639, %v7142, 0.0
        %v7159 = vsel %vm2640, %v7143, 0.0
        %7160 = vst [vmem:[#allocation5 + $0x240] sm:$0x3f] %v7152
        %7161 = vst [vmem:[#allocation5 + $0x248] sm:$0x3f] %v7153
        %7162 = vst [vmem:[#allocation5 + $0x250] sm:$0x3f] %v7154
        %7163 = vst [vmem:[#allocation5 + $0x258] sm:$0x3f] %v7155
        %7164 = vst [vmem:[#allocation5 + $0x260] sm:$0x3f] %v7156
        %7165 = vst [vmem:[#allocation5 + $0x268] sm:$0x3f] %v7157
        %7166 = vst [vmem:[#allocation5 + $0x270] sm:$0x3f] %v7158
        %7167 = vst [vmem:[#allocation5 + $0x278] sm:$0x3f] %v7159
        %v7168 = vld [vmem:[#allocation3 + $0x8] sm:$0x3f]
        %v7169 = vld [vmem:[#allocation3 + $0x10] sm:$0x3f]
        %v7170 = vld [vmem:[#allocation3 + $0x18] sm:$0x3f]
        %v7171 = vld [vmem:[#allocation3 + $0x20] sm:$0x3f]
        %v7172 = vld [vmem:[#allocation3 + $0x28] sm:$0x3f]
        %v7173 = vld [vmem:[#allocation3 + $0x30] sm:$0x3f]
        %v7174 = vld [vmem:[#allocation3 + $0x38] sm:$0x3f]
        %v7175 = vld [vmem:[#allocation3 + $0x40] sm:$0x3f]
        %v7176 = vld [vmem:[#allocation3 + $0x48] sm:$0x3f]
        %7186 = vrot.lane.b32.xlu0 %v7168, 126
        %v7187 = vpop.permute.xlu0 %7186
        %7188 = vrot.lane.b32.xlu0 %v7169, 126
        %v7189 = vpop.permute.xlu0 %7188
        %7190 = vrot.lane.b32.xlu0 %v7170, 126
        %v7191 = vpop.permute.xlu0 %7190
        %7192 = vrot.lane.b32.xlu0 %v7171, 126
        %v7193 = vpop.permute.xlu0 %7192
        %7194 = vrot.lane.b32.xlu0 %v7172, 126
        %v7195 = vpop.permute.xlu0 %7194
        %7196 = vrot.lane.b32.xlu0 %v7173, 126
        %v7197 = vpop.permute.xlu0 %7196
        %7198 = vrot.lane.b32.xlu0 %v7174, 126
        %v7199 = vpop.permute.xlu0 %7198
        %7200 = vrot.lane.b32.xlu0 %v7175, 126
        %v7201 = vpop.permute.xlu0 %7200
        %7202 = vrot.lane.b32.xlu0 %v7176, 126
        %v7203 = vpop.permute.xlu0 %7202
        %v7204 = vsel %vm2846, %v7187, %v7189
        %v7205 = vsel %vm2846, %v7189, %v7191
        %v7206 = vsel %vm2846, %v7191, %v7193
        %v7207 = vsel %vm2846, %v7193, %v7195
        %v7208 = vsel %vm2846, %v7195, %v7197
        %v7209 = vsel %vm2846, %v7197, %v7199
        %v7210 = vsel %vm2846, %v7199, %v7201
        %v7211 = vsel %vm2846, %v7201, %v7203
        %v7220 = vsel %vm2633, %v7204, 0.0
        %v7221 = vsel %vm2634, %v7205, 0.0
        %v7222 = vsel %vm2635, %v7206, 0.0
        %v7223 = vsel %vm2636, %v7207, 0.0
        %v7224 = vsel %vm2637, %v7208, 0.0
        %v7225 = vsel %vm2638, %v7209, 0.0
        %v7226 = vsel %vm2639, %v7210, 0.0
        %v7227 = vsel %vm2640, %v7211, 0.0
        %7228 = vst [vmem:[#allocation5 + $0x380] sm:$0x3f] %v7220
        %7229 = vst [vmem:[#allocation5 + $0x388] sm:$0x3f] %v7221
        %7230 = vst [vmem:[#allocation5 + $0x390] sm:$0x3f] %v7222
        %7231 = vst [vmem:[#allocation5 + $0x398] sm:$0x3f] %v7223
        %7232 = vst [vmem:[#allocation5 + $0x3a0] sm:$0x3f] %v7224
        %7233 = vst [vmem:[#allocation5 + $0x3a8] sm:$0x3f] %v7225
        %7234 = vst [vmem:[#allocation5 + $0x3b0] sm:$0x3f] %v7226
        %7235 = vst [vmem:[#allocation5 + $0x3b8] sm:$0x3f] %v7227
        %v7236 = vld [vmem:[#allocation3 + $0x8] sm:$0x3f]
        %v7237 = vld [vmem:[#allocation3 + $0x10] sm:$0x3f]
        %v7238 = vld [vmem:[#allocation3 + $0x18] sm:$0x3f]
        %v7239 = vld [vmem:[#allocation3 + $0x20] sm:$0x3f]
        %v7240 = vld [vmem:[#allocation3 + $0x28] sm:$0x3f]
        %v7241 = vld [vmem:[#allocation3 + $0x30] sm:$0x3f]
        %v7242 = vld [vmem:[#allocation3 + $0x38] sm:$0x3f]
        %v7243 = vld [vmem:[#allocation3 + $0x40] sm:$0x3f]
        %v7244 = vld [vmem:[#allocation3 + $0x48] sm:$0x3f]
        %7254 = vrot.lane.b32.xlu0 %v7236, 94
        %v7255 = vpop.permute.xlu0 %7254
        %7256 = vrot.lane.b32.xlu0 %v7237, 94
        %v7257 = vpop.permute.xlu0 %7256
        %7258 = vrot.lane.b32.xlu0 %v7238, 94
        %v7259 = vpop.permute.xlu0 %7258
        %7260 = vrot.lane.b32.xlu0 %v7239, 94
        %v7261 = vpop.permute.xlu0 %7260
        %7262 = vrot.lane.b32.xlu0 %v7240, 94
        %v7263 = vpop.permute.xlu0 %7262
        %7264 = vrot.lane.b32.xlu0 %v7241, 94
        %v7265 = vpop.permute.xlu0 %7264
        %7266 = vrot.lane.b32.xlu0 %v7242, 94
        %v7267 = vpop.permute.xlu0 %7266
        %7268 = vrot.lane.b32.xlu0 %v7243, 94
        %v7269 = vpop.permute.xlu0 %7268
        %7270 = vrot.lane.b32.xlu0 %v7244, 94
        %v7271 = vpop.permute.xlu0 %7270
        %v7272 = vsel %vm2935, %v7255, %v7257
        %v7273 = vsel %vm2935, %v7257, %v7259
        %v7274 = vsel %vm2935, %v7259, %v7261
        %v7275 = vsel %vm2935, %v7261, %v7263
        %v7276 = vsel %vm2935, %v7263, %v7265
        %v7277 = vsel %vm2935, %v7265, %v7267
        %v7278 = vsel %vm2935, %v7267, %v7269
        %v7279 = vsel %vm2935, %v7269, %v7271
        %v7288 = vsel %vm2633, %v7272, 0.0
        %v7289 = vsel %vm2634, %v7273, 0.0
        %v7290 = vsel %vm2635, %v7274, 0.0
        %v7291 = vsel %vm2636, %v7275, 0.0
        %v7292 = vsel %vm2637, %v7276, 0.0
        %v7293 = vsel %vm2638, %v7277, 0.0
        %v7294 = vsel %vm2639, %v7278, 0.0
        %v7295 = vsel %vm2640, %v7279, 0.0
        %7296 = vst [vmem:[#allocation5 + $0x4c0] sm:$0x3f] %v7288
        %7297 = vst [vmem:[#allocation5 + $0x4c8] sm:$0x3f] %v7289
        %7298 = vst [vmem:[#allocation5 + $0x4d0] sm:$0x3f] %v7290
        %7299 = vst [vmem:[#allocation5 + $0x4d8] sm:$0x3f] %v7291
        %7300 = vst [vmem:[#allocation5 + $0x4e0] sm:$0x3f] %v7292
        %7301 = vst [vmem:[#allocation5 + $0x4e8] sm:$0x3f] %v7293
        %7302 = vst [vmem:[#allocation5 + $0x4f0] sm:$0x3f] %v7294
        %7303 = vst [vmem:[#allocation5 + $0x4f8] sm:$0x3f] %v7295
        %v7304 = vld [vmem:[#allocation3 + $0x8] sm:$0x3f]
        %v7305 = vld [vmem:[#allocation3 + $0x10] sm:$0x3f]
        %v7306 = vld [vmem:[#allocation3 + $0x18] sm:$0x3f]
        %v7307 = vld [vmem:[#allocation3 + $0x20] sm:$0x3f]
        %v7308 = vld [vmem:[#allocation3 + $0x28] sm:$0x3f]
        %v7309 = vld [vmem:[#allocation3 + $0x30] sm:$0x3f]
        %v7310 = vld [vmem:[#allocation3 + $0x38] sm:$0x3f]
        %v7311 = vld [vmem:[#allocation3 + $0x40] sm:$0x3f]
        %v7312 = vld [vmem:[#allocation3 + $0x48] sm:$0x3f]
        %7322 = vrot.lane.b32.xlu0 %v7304, 62
        %v7323 = vpop.permute.xlu0 %7322
        %7324 = vrot.lane.b32.xlu0 %v7305, 62
        %v7325 = vpop.permute.xlu0 %7324
        %7326 = vrot.lane.b32.xlu0 %v7306, 62
        %v7327 = vpop.permute.xlu0 %7326
        %7328 = vrot.lane.b32.xlu0 %v7307, 62
        %v7329 = vpop.permute.xlu0 %7328
        %7330 = vrot.lane.b32.xlu0 %v7308, 62
        %v7331 = vpop.permute.xlu0 %7330
        %7332 = vrot.lane.b32.xlu0 %v7309, 62
        %v7333 = vpop.permute.xlu0 %7332
        %7334 = vrot.lane.b32.xlu0 %v7310, 62
        %v7335 = vpop.permute.xlu0 %7334
        %7336 = vrot.lane.b32.xlu0 %v7311, 62
        %v7337 = vpop.permute.xlu0 %7336
        %7338 = vrot.lane.b32.xlu0 %v7312, 62
        %v7339 = vpop.permute.xlu0 %7338
        %v7340 = vsel %vm2668, %v7323, %v7325
        %v7341 = vsel %vm2668, %v7325, %v7327
        %v7342 = vsel %vm2668, %v7327, %v7329
        %v7343 = vsel %vm2668, %v7329, %v7331
        %v7344 = vsel %vm2668, %v7331, %v7333
        %v7345 = vsel %vm2668, %v7333, %v7335
        %v7346 = vsel %vm2668, %v7335, %v7337
        %v7347 = vsel %vm2668, %v7337, %v7339
        %v7356 = vsel %vm2633, %v7340, 0.0
        %v7357 = vsel %vm2634, %v7341, 0.0
        %v7358 = vsel %vm2635, %v7342, 0.0
        %v7359 = vsel %vm2636, %v7343, 0.0
        %v7360 = vsel %vm2637, %v7344, 0.0
        %v7361 = vsel %vm2638, %v7345, 0.0
        %v7362 = vsel %vm2639, %v7346, 0.0
        %v7363 = vsel %vm2640, %v7347, 0.0
        %7364 = vst [vmem:[#allocation5 + $0x600] sm:$0x3f] %v7356
        %7365 = vst [vmem:[#allocation5 + $0x608] sm:$0x3f] %v7357
        %7366 = vst [vmem:[#allocation5 + $0x610] sm:$0x3f] %v7358
        %7367 = vst [vmem:[#allocation5 + $0x618] sm:$0x3f] %v7359
        %7368 = vst [vmem:[#allocation5 + $0x620] sm:$0x3f] %v7360
        %7369 = vst [vmem:[#allocation5 + $0x628] sm:$0x3f] %v7361
        %7370 = vst [vmem:[#allocation5 + $0x630] sm:$0x3f] %v7362
        %7371 = vst [vmem:[#allocation5 + $0x638] sm:$0x3f] %v7363
        %v7372 = vld [vmem:[%s6] sm:$0x1f]
        %v7373 = vld [vmem:[%s6 + $0x8] sm:$0x1f]
        %v7374 = vld [vmem:[#allocation5] sm:$0xff]
        %v7375 = vld [vmem:[#allocation5 + $0x8] sm:$0xff]
        %v7376 = vld [vmem:[#allocation5 + $0x10] sm:$0xff]
        %v7377 = vld [vmem:[#allocation5 + $0x18] sm:$0xff]
        %v7378 = vld [vmem:[#allocation5 + $0x20] sm:$0xff]
        %v7379 = vld [vmem:[#allocation5 + $0x28] sm:$0xff]
        %v7380 = vld [vmem:[#allocation5 + $0x30] sm:$0xff]
        %v7381 = vld [vmem:[#allocation5 + $0x38] sm:$0xff]
        %v7382 = vld [vmem:[#allocation5 + $0x40] sm:$0xff]
        %v7383 = vld [vmem:[#allocation5 + $0x48] sm:$0xff]
        %v7384 = vld [vmem:[#allocation5 + $0x50] sm:$0xff]
        %v7385 = vld [vmem:[#allocation5 + $0x58] sm:$0xff]
        %v7386 = vld [vmem:[#allocation5 + $0x60] sm:$0xff]
        %v7387 = vld [vmem:[#allocation5 + $0x68] sm:$0xff]
        %v7388 = vld [vmem:[#allocation5 + $0x70] sm:$0xff]
        %v7389 = vld [vmem:[#allocation5 + $0x78] sm:$0xff]
        %v7390 = vld [vmem:[#allocation5 + $0x80] sm:$0xff]
        %v7391 = vld [vmem:[#allocation5 + $0x88] sm:$0xff]
        %v7392 = vld [vmem:[#allocation5 + $0x90] sm:$0xff]
        %v7393 = vld [vmem:[#allocation5 + $0x98] sm:$0xff]
        %v7394 = vld [vmem:[#allocation5 + $0xa0] sm:$0xff]
        %v7395 = vld [vmem:[#allocation5 + $0xa8] sm:$0xff]
        %v7396 = vld [vmem:[#allocation5 + $0xb0] sm:$0xff]
        %v7397 = vld [vmem:[#allocation5 + $0xb8] sm:$0xff]
        %v7398 = vld [vmem:[#allocation5 + $0xc0] sm:$0xff]
        %v7399 = vld [vmem:[#allocation5 + $0xc8] sm:$0xff]
        %v7400 = vld [vmem:[#allocation5 + $0xd0] sm:$0xff]
        %v7401 = vld [vmem:[#allocation5 + $0xd8] sm:$0xff]
        %v7402 = vld [vmem:[#allocation5 + $0xe0] sm:$0xff]
        %v7403 = vld [vmem:[#allocation5 + $0xe8] sm:$0xff]
        %v7404 = vld [vmem:[#allocation5 + $0xf0] sm:$0xff]
        %v7405 = vld [vmem:[#allocation5 + $0xf8] sm:$0xff]
        %v7406 = vld [vmem:[#allocation5 + $0x100] sm:$0xff]
        %v7407 = vld [vmem:[#allocation5 + $0x108] sm:$0xff]
        %v7408 = vld [vmem:[#allocation5 + $0x110] sm:$0xff]
        %v7409 = vld [vmem:[#allocation5 + $0x118] sm:$0xff]
        %v7410 = vld [vmem:[#allocation5 + $0x120] sm:$0xff]
        %v7411 = vld [vmem:[#allocation5 + $0x128] sm:$0xff]
        %v7412 = vld [vmem:[#allocation5 + $0x130] sm:$0xff]
        %v7413 = vld [vmem:[#allocation5 + $0x138] sm:$0xff]
        %v7414 = vld [vmem:[#allocation5 + $0x140] sm:$0xff]
        %v7415 = vld [vmem:[#allocation5 + $0x148] sm:$0xff]
        %v7416 = vld [vmem:[#allocation5 + $0x150] sm:$0xff]
        %v7417 = vld [vmem:[#allocation5 + $0x158] sm:$0xff]
        %v7418 = vld [vmem:[#allocation5 + $0x160] sm:$0xff]
        %v7419 = vld [vmem:[#allocation5 + $0x168] sm:$0xff]
        %v7420 = vld [vmem:[#allocation5 + $0x170] sm:$0xff]
        %v7421 = vld [vmem:[#allocation5 + $0x178] sm:$0xff]
        %v7422 = vld [vmem:[#allocation5 + $0x180] sm:$0xff]
        %v7423 = vld [vmem:[#allocation5 + $0x188] sm:$0xff]
        %v7424 = vld [vmem:[#allocation5 + $0x190] sm:$0xff]
        %v7425 = vld [vmem:[#allocation5 + $0x198] sm:$0xff]
        %v7426 = vld [vmem:[#allocation5 + $0x1a0] sm:$0xff]
        %v7427 = vld [vmem:[#allocation5 + $0x1a8] sm:$0xff]
        %v7428 = vld [vmem:[#allocation5 + $0x1b0] sm:$0xff]
        %v7429 = vld [vmem:[#allocation5 + $0x1b8] sm:$0xff]
        %v7430 = vld [vmem:[#allocation5 + $0x1c0] sm:$0xff]
        %v7431 = vld [vmem:[#allocation5 + $0x1c8] sm:$0xff]
        %v7432 = vld [vmem:[#allocation5 + $0x1d0] sm:$0xff]
        %v7433 = vld [vmem:[#allocation5 + $0x1d8] sm:$0xff]
        %v7434 = vld [vmem:[#allocation5 + $0x1e0] sm:$0xff]
        %v7435 = vld [vmem:[#allocation5 + $0x1e8] sm:$0xff]
        %v7436 = vld [vmem:[#allocation5 + $0x1f0] sm:$0xff]
        %v7437 = vld [vmem:[#allocation5 + $0x1f8] sm:$0xff]
        %v7438 = vld [vmem:[#allocation5 + $0x200] sm:$0xff]
        %v7439 = vld [vmem:[#allocation5 + $0x208] sm:$0xff]
        %v7440 = vld [vmem:[#allocation5 + $0x210] sm:$0xff]
        %v7441 = vld [vmem:[#allocation5 + $0x218] sm:$0xff]
        %v7442 = vld [vmem:[#allocation5 + $0x220] sm:$0xff]
        %v7443 = vld [vmem:[#allocation5 + $0x228] sm:$0xff]
        %v7444 = vld [vmem:[#allocation5 + $0x230] sm:$0xff]
        %v7445 = vld [vmem:[#allocation5 + $0x238] sm:$0xff]
        %v7446 = vld [vmem:[#allocation5 + $0x240] sm:$0xff]
        %v7447 = vld [vmem:[#allocation5 + $0x248] sm:$0xff]
        %v7448 = vld [vmem:[#allocation5 + $0x250] sm:$0xff]
        %v7449 = vld [vmem:[#allocation5 + $0x258] sm:$0xff]
        %v7450 = vld [vmem:[#allocation5 + $0x260] sm:$0xff]
        %v7451 = vld [vmem:[#allocation5 + $0x268] sm:$0xff]
        %v7452 = vld [vmem:[#allocation5 + $0x270] sm:$0xff]
        %v7453 = vld [vmem:[#allocation5 + $0x278] sm:$0xff]
        %v7454 = vld [vmem:[#allocation5 + $0x280] sm:$0xff]
        %v7455 = vld [vmem:[#allocation5 + $0x288] sm:$0xff]
        %v7456 = vld [vmem:[#allocation5 + $0x290] sm:$0xff]
        %v7457 = vld [vmem:[#allocation5 + $0x298] sm:$0xff]
        %v7458 = vld [vmem:[#allocation5 + $0x2a0] sm:$0xff]
        %v7459 = vld [vmem:[#allocation5 + $0x2a8] sm:$0xff]
        %v7460 = vld [vmem:[#allocation5 + $0x2b0] sm:$0xff]
        %v7461 = vld [vmem:[#allocation5 + $0x2b8] sm:$0xff]
        %v7462 = vld [vmem:[#allocation5 + $0x2c0] sm:$0xff]
        %v7463 = vld [vmem:[#allocation5 + $0x2c8] sm:$0xff]
        %v7464 = vld [vmem:[#allocation5 + $0x2d0] sm:$0xff]
        %v7465 = vld [vmem:[#allocation5 + $0x2d8] sm:$0xff]
        %v7466 = vld [vmem:[#allocation5 + $0x2e0] sm:$0xff]
        %v7467 = vld [vmem:[#allocation5 + $0x2e8] sm:$0xff]
        %v7468 = vld [vmem:[#allocation5 + $0x2f0] sm:$0xff]
        %v7469 = vld [vmem:[#allocation5 + $0x2f8] sm:$0xff]
        %v7470 = vld [vmem:[#allocation5 + $0x300] sm:$0xff]
        %v7471 = vld [vmem:[#allocation5 + $0x308] sm:$0xff]
        %v7472 = vld [vmem:[#allocation5 + $0x310] sm:$0xff]
        %v7473 = vld [vmem:[#allocation5 + $0x318] sm:$0xff]
        %v7474 = vld [vmem:[#allocation5 + $0x320] sm:$0xff]
        %v7475 = vld [vmem:[#allocation5 + $0x328] sm:$0xff]
        %v7476 = vld [vmem:[#allocation5 + $0x330] sm:$0xff]
        %v7477 = vld [vmem:[#allocation5 + $0x338] sm:$0xff]
        %v7478 = vld [vmem:[#allocation5 + $0x340] sm:$0xff]
        %v7479 = vld [vmem:[#allocation5 + $0x348] sm:$0xff]
        %v7480 = vld [vmem:[#allocation5 + $0x350] sm:$0xff]
        %v7481 = vld [vmem:[#allocation5 + $0x358] sm:$0xff]
        %v7482 = vld [vmem:[#allocation5 + $0x360] sm:$0xff]
        %v7483 = vld [vmem:[#allocation5 + $0x368] sm:$0xff]
        %v7484 = vld [vmem:[#allocation5 + $0x370] sm:$0xff]
        %v7485 = vld [vmem:[#allocation5 + $0x378] sm:$0xff]
        %v7486 = vld [vmem:[#allocation5 + $0x380] sm:$0xff]
        %v7487 = vld [vmem:[#allocation5 + $0x388] sm:$0xff]
        %v7488 = vld [vmem:[#allocation5 + $0x390] sm:$0xff]
        %v7489 = vld [vmem:[#allocation5 + $0x398] sm:$0xff]
        %v7490 = vld [vmem:[#allocation5 + $0x3a0] sm:$0xff]
        %v7491 = vld [vmem:[#allocation5 + $0x3a8] sm:$0xff]
        %v7492 = vld [vmem:[#allocation5 + $0x3b0] sm:$0xff]
        %v7493 = vld [vmem:[#allocation5 + $0x3b8] sm:$0xff]
        %v7494 = vld [vmem:[#allocation5 + $0x3c0] sm:$0xff]
        %v7495 = vld [vmem:[#allocation5 + $0x3c8] sm:$0xff]
        %v7496 = vld [vmem:[#allocation5 + $0x3d0] sm:$0xff]
        %v7497 = vld [vmem:[#allocation5 + $0x3d8] sm:$0xff]
        %v7498 = vld [vmem:[#allocation5 + $0x3e0] sm:$0xff]
        %v7499 = vld [vmem:[#allocation5 + $0x3e8] sm:$0xff]
        %v7500 = vld [vmem:[#allocation5 + $0x3f0] sm:$0xff]
        %v7501 = vld [vmem:[#allocation5 + $0x3f8] sm:$0xff]
        %v7502 = vld [vmem:[#allocation5 + $0x400] sm:$0xff]
        %v7503 = vld [vmem:[#allocation5 + $0x408] sm:$0xff]
        %v7504 = vld [vmem:[#allocation5 + $0x410] sm:$0xff]
        %v7505 = vld [vmem:[#allocation5 + $0x418] sm:$0xff]
        %v7506 = vld [vmem:[#allocation5 + $0x420] sm:$0xff]
        %v7507 = vld [vmem:[#allocation5 + $0x428] sm:$0xff]
        %v7508 = vld [vmem:[#allocation5 + $0x430] sm:$0xff]
        %v7509 = vld [vmem:[#allocation5 + $0x438] sm:$0xff]
        %v7510 = vld [vmem:[#allocation5 + $0x440] sm:$0xff]
        %v7511 = vld [vmem:[#allocation5 + $0x448] sm:$0xff]
        %v7512 = vld [vmem:[#allocation5 + $0x450] sm:$0xff]
        %v7513 = vld [vmem:[#allocation5 + $0x458] sm:$0xff]
        %v7514 = vld [vmem:[#allocation5 + $0x460] sm:$0xff]
        %v7515 = vld [vmem:[#allocation5 + $0x468] sm:$0xff]
        %v7516 = vld [vmem:[#allocation5 + $0x470] sm:$0xff]
        %v7517 = vld [vmem:[#allocation5 + $0x478] sm:$0xff]
        %v7518 = vld [vmem:[#allocation5 + $0x480] sm:$0xff]
        %v7519 = vld [vmem:[#allocation5 + $0x488] sm:$0xff]
        %v7520 = vld [vmem:[#allocation5 + $0x490] sm:$0xff]
        %v7521 = vld [vmem:[#allocation5 + $0x498] sm:$0xff]
        %v7522 = vld [vmem:[#allocation5 + $0x4a0] sm:$0xff]
        %v7523 = vld [vmem:[#allocation5 + $0x4a8] sm:$0xff]
        %v7524 = vld [vmem:[#allocation5 + $0x4b0] sm:$0xff]
        %v7525 = vld [vmem:[#allocation5 + $0x4b8] sm:$0xff]
        %v7526 = vld [vmem:[#allocation5 + $0x4c0] sm:$0xff]
        %v7527 = vld [vmem:[#allocation5 + $0x4c8] sm:$0xff]
        %v7528 = vld [vmem:[#allocation5 + $0x4d0] sm:$0xff]
        %v7529 = vld [vmem:[#allocation5 + $0x4d8] sm:$0xff]
        %v7530 = vld [vmem:[#allocation5 + $0x4e0] sm:$0xff]
        %v7531 = vld [vmem:[#allocation5 + $0x4e8] sm:$0xff]
        %v7532 = vld [vmem:[#allocation5 + $0x4f0] sm:$0xff]
        %v7533 = vld [vmem:[#allocation5 + $0x4f8] sm:$0xff]
        %v7534 = vld [vmem:[#allocation5 + $0x500] sm:$0xff]
        %v7535 = vld [vmem:[#allocation5 + $0x508] sm:$0xff]
        %v7536 = vld [vmem:[#allocation5 + $0x510] sm:$0xff]
        %v7537 = vld [vmem:[#allocation5 + $0x518] sm:$0xff]
        %v7538 = vld [vmem:[#allocation5 + $0x520] sm:$0xff]
        %v7539 = vld [vmem:[#allocation5 + $0x528] sm:$0xff]
        %v7540 = vld [vmem:[#allocation5 + $0x530] sm:$0xff]
        %v7541 = vld [vmem:[#allocation5 + $0x538] sm:$0xff]
        %v7542 = vld [vmem:[#allocation5 + $0x540] sm:$0xff]
        %v7543 = vld [vmem:[#allocation5 + $0x548] sm:$0xff]
        %v7544 = vld [vmem:[#allocation5 + $0x550] sm:$0xff]
        %v7545 = vld [vmem:[#allocation5 + $0x558] sm:$0xff]
        %v7546 = vld [vmem:[#allocation5 + $0x560] sm:$0xff]
        %v7547 = vld [vmem:[#allocation5 + $0x568] sm:$0xff]
        %v7548 = vld [vmem:[#allocation5 + $0x570] sm:$0xff]
        %v7549 = vld [vmem:[#allocation5 + $0x578] sm:$0xff]
        %v7550 = vld [vmem:[#allocation5 + $0x580] sm:$0xff]
        %v7551 = vld [vmem:[#allocation5 + $0x588] sm:$0xff]
        %v7552 = vld [vmem:[#allocation5 + $0x590] sm:$0xff]
        %v7553 = vld [vmem:[#allocation5 + $0x598] sm:$0xff]
        %v7554 = vld [vmem:[#allocation5 + $0x5a0] sm:$0xff]
        %v7555 = vld [vmem:[#allocation5 + $0x5a8] sm:$0xff]
        %v7556 = vld [vmem:[#allocation5 + $0x5b0] sm:$0xff]
        %v7557 = vld [vmem:[#allocation5 + $0x5b8] sm:$0xff]
        %v7558 = vld [vmem:[#allocation5 + $0x5c0] sm:$0xff]
        %v7559 = vld [vmem:[#allocation5 + $0x5c8] sm:$0xff]
        %v7560 = vld [vmem:[#allocation5 + $0x5d0] sm:$0xff]
        %v7561 = vld [vmem:[#allocation5 + $0x5d8] sm:$0xff]
        %v7562 = vld [vmem:[#allocation5 + $0x5e0] sm:$0xff]
        %v7563 = vld [vmem:[#allocation5 + $0x5e8] sm:$0xff]
        %v7564 = vld [vmem:[#allocation5 + $0x5f0] sm:$0xff]
        %v7565 = vld [vmem:[#allocation5 + $0x5f8] sm:$0xff]
        %v7566 = vld [vmem:[#allocation5 + $0x600] sm:$0xff]
        %v7567 = vld [vmem:[#allocation5 + $0x608] sm:$0xff]
        %v7568 = vld [vmem:[#allocation5 + $0x610] sm:$0xff]
        %v7569 = vld [vmem:[#allocation5 + $0x618] sm:$0xff]
        %v7570 = vld [vmem:[#allocation5 + $0x620] sm:$0xff]
        %v7571 = vld [vmem:[#allocation5 + $0x628] sm:$0xff]
        %v7572 = vld [vmem:[#allocation5 + $0x630] sm:$0xff]
        %v7573 = vld [vmem:[#allocation5 + $0x638] sm:$0xff]
        %v7574 = vld [vmem:[%s7] sm:$0x1f]
        %7576 = vset.pattern.permute.xlu0 0
        %7577 = vperm.xlu0 %7576, %v7574
        %v7578 = vpop.permute.xlu0 %7577
        %v7581 = vsel %vm4951, %v7373, 0
        %7583 = vmatprep.subr.mxu0 %v7495
        %7584 = vmatpush1.msra.mxu0 %v7494
        %7585 = vmatprep.subr.mxu0 %v7487
        %7586 = vmatpush1.msra.mxu0 %v7486
        %7587 = vmatprep.subr.mxu0 %v7479
        %7588 = vmatpush1.msra.mxu0 %v7478
        %7589 = vmatprep.subr.mxu0 %v7471
        %7590 = vmatpush1.msra.mxu0 %v7470
        %7591 = vmatprep.subr.mxu0 %v7463
        %7592 = vmatpush1.msra.mxu0 %v7462
        %7593 = vmatprep.subr.mxu0 %v7455
        %7594 = vmatpush1.msra.mxu0 %v7454
        %7595 = vmatprep.subr.mxu0 %v7447
        %7596 = vmatpush1.msra.mxu0 %v7446
        %7597 = vmatprep.subr.mxu0 %v7439
        %7598 = vmatpush1.msra.mxu0 %v7438
        %7599 = vmatprep.subr.mxu0 %v7431
        %7600 = vmatpush1.msra.mxu0 %v7430
        %7601 = vmatprep.subr.mxu0 %v7423
        %7602 = vmatpush1.msra.mxu0 %v7422
        %7603 = vmatprep.subr.mxu0 %v7415
        %7604 = vmatpush1.msra.mxu0 %v7414
        %7605 = vmatprep.subr.mxu0 %v7407
        %7606 = vmatpush1.msra.mxu0 %v7406
        %7607 = vmatprep.subr.mxu0 %v7399
        %7608 = vmatpush1.msra.mxu0 %v7398
        %7609 = vmatprep.subr.mxu0 %v7391
        %7610 = vmatpush1.msra.mxu0 %v7390
        %7611 = vmatprep.subr.mxu0 %v7383
        %7612 = vmatpush1.msra.mxu0 %v7382
        %7613 = vmatprep.subr.mxu0 %v7375
        %7614 = vmatpush1.msra.mxu0 %v7374
        %7615 = vmatprep.subr.mxu0 0.0
        %7616 = vmatpush2.msra.mxu0 0.0
        %7617 = vmatprep.subr.mxu0 0.0
        %7618 = vmatpush2.msra.mxu0 0.0
        %7619 = vmatprep.subr.mxu0 0.0
        %7620 = vmatpush2.msra.mxu0 0.0
        %7621 = vmatprep.subr.mxu0 0.0
        %7622 = vmatpush2.msra.mxu0 0.0
        %7623 = vmatprep.subr.mxu0 0.0
        %7624 = vmatpush2.msra.mxu0 0.0
        %7625 = vmatprep.subr.mxu0 0.0
        %7626 = vmatpush2.msra.mxu0 0.0
        %7627 = vmatprep.subr.mxu0 0.0
        %7628 = vmatpush2.msra.mxu0 0.0
        %7629 = vmatprep.subr.mxu0 %v7567
        %7630 = vmatpush2.msra.mxu0 %v7566
        %7631 = vmatprep.subr.mxu0 %v7559
        %7632 = vmatpush2.msra.mxu0 %v7558
        %7633 = vmatprep.subr.mxu0 %v7551
        %7634 = vmatpush2.msra.mxu0 %v7550
        %7635 = vmatprep.subr.mxu0 %v7543
        %7636 = vmatpush2.msra.mxu0 %v7542
        %7637 = vmatprep.subr.mxu0 %v7535
        %7638 = vmatpush2.msra.mxu0 %v7534
        %7639 = vmatprep.subr.mxu0 %v7527
        %7640 = vmatpush2.msra.mxu0 %v7526
        %7641 = vmatprep.subr.mxu0 %v7519
        %7642 = vmatpush2.msra.mxu0 %v7518
        %7643 = vmatprep.subr.mxu0 %v7511
        %7644 = vmatpush2.msra.mxu0 %v7510
        %7645 = vmatprep.subr.mxu0 %v7503
        %7646 = vmatpush2.msra.mxu0 %v7502
        %7647 = vmatprep.mubr.f32.mxu0 %v7581
        %7648 = vmatmul.mubr.f32.gmra.mxu0 %v7372
        %v7649 = vpop.f32.mrf.mxu0
        %v7650 = vadd.f32 %v7578, %v7649
        %v7651 = vpop.f32.mrf.mxu0
        %v7652 = vadd.f32 %v7578, %v7651
        %7653 = vdwg.mxu0
        %7654 = vmatprep.subr.mxu0 %v7497
        %7655 = vmatpush1.msra.mxu0 %v7496
        %7656 = vmatprep.subr.mxu0 %v7489
        %7657 = vmatpush1.msra.mxu0 %v7488
        %7658 = vmatprep.subr.mxu0 %v7481
        %7659 = vmatpush1.msra.mxu0 %v7480
        %7660 = vmatprep.subr.mxu0 %v7473
        %7661 = vmatpush1.msra.mxu0 %v7472
        %7662 = vmatprep.subr.mxu0 %v7465
        %7663 = vmatpush1.msra.mxu0 %v7464
        %7664 = vmatprep.subr.mxu0 %v7457
        %7665 = vmatpush1.msra.mxu0 %v7456
        %7666 = vmatprep.subr.mxu0 %v7449
        %7667 = vmatpush1.msra.mxu0 %v7448
        %7668 = vmatprep.subr.mxu0 %v7441
        %7669 = vmatpush1.msra.mxu0 %v7440
        %7670 = vmatprep.subr.mxu0 %v7433
        %7671 = vmatpush1.msra.mxu0 %v7432
        %7672 = vmatprep.subr.mxu0 %v7425
        %7673 = vmatpush1.msra.mxu0 %v7424
        %7674 = vmatprep.subr.mxu0 %v7417
        %7675 = vmatpush1.msra.mxu0 %v7416
        %7676 = vmatprep.subr.mxu0 %v7409
        %7677 = vmatpush1.msra.mxu0 %v7408
        %7678 = vmatprep.subr.mxu0 %v7401
        %7679 = vmatpush1.msra.mxu0 %v7400
        %7680 = vmatprep.subr.mxu0 %v7393
        %7681 = vmatpush1.msra.mxu0 %v7392
        %7682 = vmatprep.subr.mxu0 %v7385
        %7683 = vmatpush1.msra.mxu0 %v7384
        %7684 = vmatprep.subr.mxu0 %v7377
        %7685 = vmatpush1.msra.mxu0 %v7376
        %7686 = vmatprep.subr.mxu0 0.0
        %7687 = vmatpush2.msra.mxu0 0.0
        %7688 = vmatprep.subr.mxu0 0.0
        %7689 = vmatpush2.msra.mxu0 0.0
        %7690 = vmatprep.subr.mxu0 0.0
        %7691 = vmatpush2.msra.mxu0 0.0
        %7692 = vmatprep.subr.mxu0 0.0
        %7693 = vmatpush2.msra.mxu0 0.0
        %7694 = vmatprep.subr.mxu0 0.0
        %7695 = vmatpush2.msra.mxu0 0.0
        %7696 = vmatprep.subr.mxu0 0.0
        %7697 = vmatpush2.msra.mxu0 0.0
        %7698 = vmatprep.subr.mxu0 0.0
        %7699 = vmatpush2.msra.mxu0 0.0
        %7700 = vmatprep.subr.mxu0 %v7569
        %7701 = vmatpush2.msra.mxu0 %v7568
        %7702 = vmatprep.subr.mxu0 %v7561
        %7703 = vmatpush2.msra.mxu0 %v7560
        %7704 = vmatprep.subr.mxu0 %v7553
        %7705 = vmatpush2.msra.mxu0 %v7552
        %7706 = vmatprep.subr.mxu0 %v7545
        %7707 = vmatpush2.msra.mxu0 %v7544
        %7708 = vmatprep.subr.mxu0 %v7537
        %7709 = vmatpush2.msra.mxu0 %v7536
        %7710 = vmatprep.subr.mxu0 %v7529
        %7711 = vmatpush2.msra.mxu0 %v7528
        %7712 = vmatprep.subr.mxu0 %v7521
        %7713 = vmatpush2.msra.mxu0 %v7520
        %7714 = vmatprep.subr.mxu0 %v7513
        %7715 = vmatpush2.msra.mxu0 %v7512
        %7716 = vmatprep.subr.mxu0 %v7505
        %7717 = vmatpush2.msra.mxu0 %v7504
        %7718 = vmatprep.mubr.f32.mxu0 %v7581
        %7719 = vmatmul.mubr.f32.gmra.mxu0 %v7372
        %v7720 = vpop.f32.mrf.mxu0
        %v7721 = vadd.f32 %v7578, %v7720
        %v7722 = vpop.f32.mrf.mxu0
        %v7723 = vadd.f32 %v7578, %v7722
        %7724 = vdwg.mxu0
        %7725 = vmatprep.subr.mxu0 %v7499
        %7726 = vmatpush1.msra.mxu0 %v7498
        %7727 = vmatprep.subr.mxu0 %v7491
        %7728 = vmatpush1.msra.mxu0 %v7490
        %7729 = vmatprep.subr.mxu0 %v7483
        %7730 = vmatpush1.msra.mxu0 %v7482
        %7731 = vmatprep.subr.mxu0 %v7475
        %7732 = vmatpush1.msra.mxu0 %v7474
        %7733 = vmatprep.subr.mxu0 %v7467
        %7734 = vmatpush1.msra.mxu0 %v7466
        %7735 = vmatprep.subr.mxu0 %v7459
        %7736 = vmatpush1.msra.mxu0 %v7458
        %7737 = vmatprep.subr.mxu0 %v7451
        %7738 = vmatpush1.msra.mxu0 %v7450
        %7739 = vmatprep.subr.mxu0 %v7443
        %7740 = vmatpush1.msra.mxu0 %v7442
        %7741 = vmatprep.subr.mxu0 %v7435
        %7742 = vmatpush1.msra.mxu0 %v7434
        %7743 = vmatprep.subr.mxu0 %v7427
        %7744 = vmatpush1.msra.mxu0 %v7426
        %7745 = vmatprep.subr.mxu0 %v7419
        %7746 = vmatpush1.msra.mxu0 %v7418
        %7747 = vmatprep.subr.mxu0 %v7411
        %7748 = vmatpush1.msra.mxu0 %v7410
        %7749 = vmatprep.subr.mxu0 %v7403
        %7750 = vmatpush1.msra.mxu0 %v7402
        %7751 = vmatprep.subr.mxu0 %v7395
        %7752 = vmatpush1.msra.mxu0 %v7394
        %7753 = vmatprep.subr.mxu0 %v7387
        %7754 = vmatpush1.msra.mxu0 %v7386
        %7755 = vmatprep.subr.mxu0 %v7379
        %7756 = vmatpush1.msra.mxu0 %v7378
        %7757 = vmatprep.subr.mxu0 0.0
        %7758 = vmatpush2.msra.mxu0 0.0
        %7759 = vmatprep.subr.mxu0 0.0
        %7760 = vmatpush2.msra.mxu0 0.0
        %7761 = vmatprep.subr.mxu0 0.0
        %7762 = vmatpush2.msra.mxu0 0.0
        %7763 = vmatprep.subr.mxu0 0.0
        %7764 = vmatpush2.msra.mxu0 0.0
        %7765 = vmatprep.subr.mxu0 0.0
        %7766 = vmatpush2.msra.mxu0 0.0
        %7767 = vmatprep.subr.mxu0 0.0
        %7768 = vmatpush2.msra.mxu0 0.0
        %7769 = vmatprep.subr.mxu0 0.0
        %7770 = vmatpush2.msra.mxu0 0.0
        %7771 = vmatprep.subr.mxu0 %v7571
        %7772 = vmatpush2.msra.mxu0 %v7570
        %7773 = vmatprep.subr.mxu0 %v7563
        %7774 = vmatpush2.msra.mxu0 %v7562
        %7775 = vmatprep.subr.mxu0 %v7555
        %7776 = vmatpush2.msra.mxu0 %v7554
        %7777 = vmatprep.subr.mxu0 %v7547
        %7778 = vmatpush2.msra.mxu0 %v7546
        %7779 = vmatprep.subr.mxu0 %v7539
        %7780 = vmatpush2.msra.mxu0 %v7538
        %7781 = vmatprep.subr.mxu0 %v7531
        %7782 = vmatpush2.msra.mxu0 %v7530
        %7783 = vmatprep.subr.mxu0 %v7523
        %7784 = vmatpush2.msra.mxu0 %v7522
        %7785 = vmatprep.subr.mxu0 %v7515
        %7786 = vmatpush2.msra.mxu0 %v7514
        %7787 = vmatprep.subr.mxu0 %v7507
        %7788 = vmatpush2.msra.mxu0 %v7506
        %7789 = vmatprep.mubr.f32.mxu0 %v7581
        %7790 = vmatmul.mubr.f32.gmra.mxu0 %v7372
        %v7791 = vpop.f32.mrf.mxu0
        %v7792 = vadd.f32 %v7578, %v7791
        %v7793 = vpop.f32.mrf.mxu0
        %v7794 = vadd.f32 %v7578, %v7793
        %7795 = vdwg.mxu0
        %7796 = vmatprep.subr.mxu0 %v7501
        %7797 = vmatpush1.msra.mxu0 %v7500
        %7798 = vmatprep.subr.mxu0 %v7493
        %7799 = vmatpush1.msra.mxu0 %v7492
        %7800 = vmatprep.subr.mxu0 %v7485
        %7801 = vmatpush1.msra.mxu0 %v7484
        %7802 = vmatprep.subr.mxu0 %v7477
        %7803 = vmatpush1.msra.mxu0 %v7476
        %7804 = vmatprep.subr.mxu0 %v7469
        %7805 = vmatpush1.msra.mxu0 %v7468
        %7806 = vmatprep.subr.mxu0 %v7461
        %7807 = vmatpush1.msra.mxu0 %v7460
        %7808 = vmatprep.subr.mxu0 %v7453
        %7809 = vmatpush1.msra.mxu0 %v7452
        %7810 = vmatprep.subr.mxu0 %v7445
        %7811 = vmatpush1.msra.mxu0 %v7444
        %7812 = vmatprep.subr.mxu0 %v7437
        %7813 = vmatpush1.msra.mxu0 %v7436
        %7814 = vmatprep.subr.mxu0 %v7429
        %7815 = vmatpush1.msra.mxu0 %v7428
        %7816 = vmatprep.subr.mxu0 %v7421
        %7817 = vmatpush1.msra.mxu0 %v7420
        %7818 = vmatprep.subr.mxu0 %v7413
        %7819 = vmatpush1.msra.mxu0 %v7412
        %7820 = vmatprep.subr.mxu0 %v7405
        %7821 = vmatpush1.msra.mxu0 %v7404
        %7822 = vmatprep.subr.mxu0 %v7397
        %7823 = vmatpush1.msra.mxu0 %v7396
        %7824 = vmatprep.subr.mxu0 %v7389
        %7825 = vmatpush1.msra.mxu0 %v7388
        %7826 = vmatprep.subr.mxu0 %v7381
        %7827 = vmatpush1.msra.mxu0 %v7380
        %7828 = vmatprep.subr.mxu0 0.0
        %7829 = vmatpush2.msra.mxu0 0.0
        %7830 = vmatprep.subr.mxu0 0.0
        %7831 = vmatpush2.msra.mxu0 0.0
        %7832 = vmatprep.subr.mxu0 0.0
        %7833 = vmatpush2.msra.mxu0 0.0
        %7834 = vmatprep.subr.mxu0 0.0
        %7835 = vmatpush2.msra.mxu0 0.0
        %7836 = vmatprep.subr.mxu0 0.0
        %7837 = vmatpush2.msra.mxu0 0.0
        %7838 = vmatprep.subr.mxu0 0.0
        %7839 = vmatpush2.msra.mxu0 0.0
        %7840 = vmatprep.subr.mxu0 0.0
        %7841 = vmatpush2.msra.mxu0 0.0
        %7842 = vmatprep.subr.mxu0 %v7573
        %7843 = vmatpush2.msra.mxu0 %v7572
        %7844 = vmatprep.subr.mxu0 %v7565
        %7845 = vmatpush2.msra.mxu0 %v7564
        %7846 = vmatprep.subr.mxu0 %v7557
        %7847 = vmatpush2.msra.mxu0 %v7556
        %7848 = vmatprep.subr.mxu0 %v7549
        %7849 = vmatpush2.msra.mxu0 %v7548
        %7850 = vmatprep.subr.mxu0 %v7541
        %7851 = vmatpush2.msra.mxu0 %v7540
        %7852 = vmatprep.subr.mxu0 %v7533
        %7853 = vmatpush2.msra.mxu0 %v7532
        %7854 = vmatprep.subr.mxu0 %v7525
        %7855 = vmatpush2.msra.mxu0 %v7524
        %7856 = vmatprep.subr.mxu0 %v7517
        %7857 = vmatpush2.msra.mxu0 %v7516
        %7858 = vmatprep.subr.mxu0 %v7509
        %7859 = vmatpush2.msra.mxu0 %v7508
        %7860 = vmatprep.mubr.f32.mxu0 %v7581
        %7861 = vmatmul.mubr.f32.gmra.mxu0 %v7372
        %v7862 = vpop.f32.mrf.mxu0
        %v7863 = vadd.f32 %v7578, %v7862
        %v7864 = vpop.f32.mrf.mxu0
        %v7865 = vadd.f32 %v7578, %v7864
        %7866 = vdwg.mxu0
        %vm7867 = vcmp.ge.f32.partialorder %v7650, 0.0
        %vm7868 = vcmp.ge.f32.partialorder %v7652, 0.0
        %vm7869 = vcmp.ge.f32.partialorder %v7721, 0.0
        %vm7870 = vcmp.ge.f32.partialorder %v7723, 0.0
        %vm7871 = vcmp.ge.f32.partialorder %v7792, 0.0
        %vm7872 = vcmp.ge.f32.partialorder %v7794, 0.0
        %vm7873 = vcmp.ge.f32.partialorder %v7863, 0.0
        %vm7874 = vcmp.ge.f32.partialorder %v7865, 0.0
        %v7875 = vmul.f32 %v7650, 0.01
        %v7876 = vmul.f32 %v7652, 0.01
        %v7877 = vmul.f32 %v7721, 0.01
        %v7878 = vmul.f32 %v7723, 0.01
        %v7879 = vmul.f32 %v7792, 0.01
        %v7880 = vmul.f32 %v7794, 0.01
        %v7881 = vmul.f32 %v7863, 0.01
        %v7882 = vmul.f32 %v7865, 0.01
        %v7883 = vsel %vm7867, %v7650, %v7875
        %v7884 = vsel %vm7868, %v7652, %v7876
        %v7885 = vsel %vm7869, %v7721, %v7877
        %v7886 = vsel %vm7870, %v7723, %v7878
        %v7887 = vsel %vm7871, %v7792, %v7879
        %v7888 = vsel %vm7872, %v7794, %v7880
        %v7889 = vsel %vm7873, %v7863, %v7881
        %v7890 = vsel %vm7874, %v7865, %v7882
        %v7891 = vld [vmem:[#allocation2 + $0x8] sm:$0x1f]
        %v7892 = vld [vmem:[#allocation2 + $0x10] sm:$0x1f]
        %v7893 = vld [vmem:[#allocation2 + $0x18] sm:$0x1f]
        %v7894 = vld [vmem:[#allocation2 + $0x20] sm:$0x1f]
        %v7895 = vld [vmem:[#allocation2 + $0x28] sm:$0x1f]
        %v7896 = vld [vmem:[#allocation2 + $0x30] sm:$0x1f]
        %v7897 = vld [vmem:[#allocation2 + $0x38] sm:$0x1f]
        %v7898 = vld [vmem:[#allocation2 + $0x40] sm:$0x1f]
        %v7899 = vmul.f32 %v7891, 0.0
        %v7900 = vmul.f32 %v7892, 0.0
        %v7901 = vmul.f32 %v7893, 0.0
        %v7902 = vmul.f32 %v7894, 0.0
        %v7903 = vmul.f32 %v7895, 0.0
        %v7904 = vmul.f32 %v7896, 0.0
        %v7905 = vmul.f32 %v7897, 0.0
        %v7906 = vmul.f32 %v7898, 0.0
        %v7907 = vadd.f32 %v7899, %v7883
        %v7908 = vadd.f32 %v7900, %v7884
        %v7909 = vadd.f32 %v7901, %v7885
        %v7910 = vadd.f32 %v7902, %v7886
        %v7911 = vadd.f32 %v7903, %v7887
        %v7912 = vadd.f32 %v7904, %v7888
        %v7913 = vadd.f32 %v7905, %v7889
        %v7914 = vadd.f32 %v7906, %v7890
        %v7915 = vsub.f32 %v7907, %v7891
        %v7916 = vsub.f32 %v7908, %v7892
        %v7917 = vsub.f32 %v7909, %v7893
        %v7918 = vsub.f32 %v7910, %v7894
        %v7919 = vsub.f32 %v7911, %v7895
        %v7920 = vsub.f32 %v7912, %v7896
        %v7921 = vsub.f32 %v7913, %v7897
        %v7922 = vsub.f32 %v7914, %v7898
        %v7923 = vmul.f32 %v7915, %v7915
        %v7924 = vmul.f32 %v7916, %v7916
        %v7925 = vmul.f32 %v7917, %v7917
        %v7926 = vmul.f32 %v7918, %v7918
        %v7927 = vmul.f32 %v7919, %v7919
        %v7928 = vmul.f32 %v7920, %v7920
        %v7929 = vmul.f32 %v7921, %v7921
        %v7930 = vmul.f32 %v7922, %v7922
        %vm7931 = vcmask 1044480
        %v7932 = vsel %vm7931, %v7923, 0.0
        %v7933 = vsel %vm7931, %v7924, 0.0
        %v7934 = vadd.f32 %v7932, %v7933
        %v7935 = vsel %vm7931, %v7925, 0.0
        %v7936 = vadd.f32 %v7934, %v7935
        %v7937 = vsel %vm7931, %v7926, 0.0
        %v7938 = vadd.f32 %v7936, %v7937
        %v7939 = vsel %vm7931, %v7927, 0.0
        %v7940 = vadd.f32 %v7938, %v7939
        %v7941 = vsel %vm7931, %v7928, 0.0
        %v7942 = vadd.f32 %v7940, %v7941
        %v7943 = vsel %vm7931, %v7929, 0.0
        %v7944 = vadd.f32 %v7942, %v7943
        %v7945 = vsel %vm7931, %v7930, 0.0
        %v7946 = vadd.f32 %v7944, %v7945
        %7947 = vadd.xlane.f32.xlu0 %v7946
        %v7948 = vpop.xlane.xlu0 %7947
        %v7949 = vrot.slane %v7948, 4
        %v7950 = vadd.f32 %v7948, %v7949
        %v7951 = vrot.slane %v7950, 2
        %v7952 = vadd.f32 %v7950, %v7951
        %v7953 = vrot.slane %v7952, 1
        %v7954 = vadd.f32 %v7952, %v7953
        %s7955 = vtos %v7954
        %v7956 = vstv %s7955
        %v7957 = vrsqrt.pop %v7956
        %v7958 = vmul.f32 %v7956, %v7957
        %vm7959 = vcmp.eq.f32.partialorder %v7956, inf
        %v7960 = vsel %vm7959, %v7956, %v7958
        %vm7961 = vcmp.eq.f32.partialorder %v7956, 0.0
        %v7962 = vand.u32 %v7956, 2147483648
        %v7963 = vsel %vm7961, %v7962, %v7960
        %s7964 = vtos %v7963
        %v7965 = vmul.f32 %v7891, %v7891
        %v7966 = vmul.f32 %v7892, %v7892
        %v7967 = vmul.f32 %v7893, %v7893
        %v7968 = vmul.f32 %v7894, %v7894
        %v7969 = vmul.f32 %v7895, %v7895
        %v7970 = vmul.f32 %v7896, %v7896
        %v7971 = vmul.f32 %v7897, %v7897
        %v7972 = vmul.f32 %v7898, %v7898
        %v7973 = vsel %vm7931, %v7965, 0.0
        %v7974 = vsel %vm7931, %v7966, 0.0
        %v7975 = vadd.f32 %v7973, %v7974
        %v7976 = vsel %vm7931, %v7967, 0.0
        %v7977 = vadd.f32 %v7975, %v7976
        %v7978 = vsel %vm7931, %v7968, 0.0
        %v7979 = vadd.f32 %v7977, %v7978
        %v7980 = vsel %vm7931, %v7969, 0.0
        %v7981 = vadd.f32 %v7979, %v7980
        %v7982 = vsel %vm7931, %v7970, 0.0
        %v7983 = vadd.f32 %v7981, %v7982
        %v7984 = vsel %vm7931, %v7971, 0.0
        %v7985 = vadd.f32 %v7983, %v7984
        %v7986 = vsel %vm7931, %v7972, 0.0
        %v7987 = vadd.f32 %v7985, %v7986
        %7988 = vadd.xlane.f32.xlu0 %v7987
        %v7989 = vpop.xlane.xlu0 %7988
        %v7990 = vrot.slane %v7989, 4
        %v7991 = vadd.f32 %v7989, %v7990
        %v7992 = vrot.slane %v7991, 2
        %v7993 = vadd.f32 %v7991, %v7992
        %v7994 = vrot.slane %v7993, 1
        %v7995 = vadd.f32 %v7993, %v7994
        %s7996 = vtos %v7995
        %v7997 = vstv %s7996
        %v7998 = vrsqrt.pop %v7997
        %v7999 = vmul.f32 %v7997, %v7998
        %vm8000 = vcmp.eq.f32.partialorder %v7997, inf
        %v8001 = vsel %vm8000, %v7997, %v7999
        %vm8002 = vcmp.eq.f32.partialorder %v7997, 0.0
        %v8003 = vand.u32 %v7997, 2147483648
        %v8004 = vsel %vm8002, %v8003, %v8001
        %s8005 = vtos %v8004
        %s8006 = sadd.f32 %s8005, 1e-08
        %8007 = vst [vmem:[#allocation2 + $0x8] sm:$0x1f] %v7907
        %8008 = vst [vmem:[#allocation2 + $0x10] sm:$0x1f] %v7908
        %8009 = vst [vmem:[#allocation2 + $0x18] sm:$0x1f] %v7909
        %8010 = vst [vmem:[#allocation2 + $0x20] sm:$0x1f] %v7910
        %8011 = vst [vmem:[#allocation2 + $0x28] sm:$0x1f] %v7911
        %8012 = vst [vmem:[#allocation2 + $0x30] sm:$0x1f] %v7912
        %8013 = vst [vmem:[#allocation2 + $0x38] sm:$0x1f] %v7913
        %8014 = vst [vmem:[#allocation2 + $0x40] sm:$0x1f] %v7914
        %s8015 = smul.f32 %s8006, 0.0
        %p8016 = scmp.gt.f32.partialorder %s7964, %s8015
        %s8017 = scalar_select %p8016, 1, 0
        %8018 = sst [smem:[%s3080]] %s8017
      $region56: #{unit_forward.1} parent=51 // pred_fallthru
        _
      %v8019 = vld [vmem:[#allocation2 + $0x8] sm:$0x1f]
      %v8020 = vld [vmem:[#allocation2 + $0x10] sm:$0x1f]
      %v8021 = vld [vmem:[#allocation2 + $0x18] sm:$0x1f]
      %v8022 = vld [vmem:[#allocation2 + $0x20] sm:$0x1f]
      %v8023 = vld [vmem:[#allocation2 + $0x28] sm:$0x1f]
      %v8024 = vld [vmem:[#allocation2 + $0x30] sm:$0x1f]
      %v8025 = vld [vmem:[#allocation2 + $0x38] sm:$0x1f]
      %v8026 = vld [vmem:[#allocation2 + $0x40] sm:$0x1f]
      %8027 = vst [vmem:[%s325] sm:$0x1f] %v8019
      %8028 = vst [vmem:[%s325 + $0x8] sm:$0x1f] %v8020
      %8029 = vst [vmem:[%s325 + $0x10] sm:$0x1f] %v8021
      %8030 = vst [vmem:[%s325 + $0x18] sm:$0x1f] %v8022
      %8031 = vst [vmem:[%s325 + $0x20] sm:$0x1f] %v8023
      %8032 = vst [vmem:[%s325 + $0x28] sm:$0x1f] %v8024
      %8033 = vst [vmem:[%s325 + $0x30] sm:$0x1f] %v8025
      %8034 = vst [vmem:[%s325 + $0x38] sm:$0x1f] %v8026
      %p8035 = scmp.lt.s32.totalorder %s19, 1
      %s8036 = scalar_select %p8035, %s19, 1
      %s8037 = smul.addr %s8036, 8
      %s8038 = smul.addr %s8037, 8
      %s8039 = scalar_lea.vmem %s8, %s8038
      // Predicated region
      $region57: #{unit_forward.1} parent=51 // pred_check
        %p8040 = pneg %p215
      $region58: #{unit_forward.1} parent=51 // pred_check_branch
        %8042 = sbr.rel (%p8040) target = $region60
      $region59: #{unit_forward.1} parent=51 // pred_region
        _
      $region60: #{unit_forward.1} parent=51 // pred_fallthru
        _
    $region52: #{unit_forward.1} parent=5 // pred_fallthru
      _
    %p8043 = scmp.le.s32.totalorder 2, %s14
    // Predicated region
    $region61: #{unit_forward.1} parent=5 // pred_check
      %p8044 = pneg %p8043
    $region62: #{unit_forward.1} parent=5 // pred_check_branch
      %8046 = sbr.rel (%p8044) target = $region64
    $region63: #{unit_forward.1} parent=5 // pred_region
      %s8047 = ssub.s32 %s14, 2
      // Predicated region
      $region65: #{unit_forward.1} parent=63 // pred_check
        %p8048 = pneg %p221
      $region66: #{unit_forward.1} parent=63 // pred_check_branch
        %8050 = sbr.rel (%p8048) target = $region68
      $region67: #{unit_forward.1} parent=63 // pred_region
        %p8051 = scmp.lt.s32.totalorder %s20, 1
        %s8052 = scalar_select %p8051, %s20, 1
        %s8053 = smul.addr %s8052, 8
        %s8054 = smul.addr %s8053, 8
        %s8055 = scalar_lea.vmem %s8, %s8054
      $region68: #{unit_forward.1} parent=63 // pred_fallthru
        _
    $region64: #{unit_forward.1} parent=5 // pred_fallthru
      _
  $region6: #{unit_forward.1} parent=0 // loop_footer
    %s18 = sadd.s32 1, %s14
  $region7: #{unit_forward.1} parent=0 // loop_footer_branch
    %13 = sbr.rel target = $region3
  $region8: #{unit_forward.1} parent=0 // loop_exit
    _

</llo_original>
